<compile_context>
chip_gen: v5e
topology: v5e:2x2
jax: 0.10.0
libtpu: 0.0.40
codegen_flags: <defaults>
</compile_context>

<pallas_src>
import math
from functools import partial

import jax
import jax.numpy as jnp
from jax.experimental import pallas as pl
from jax.experimental.pallas import tpu as pltpu

CFG = dict(in_channels=4, out_channels=4, width=128, depth=2,
           ca_width=64, d_head=32, t_width=64, d_ff_mult=3)


# ----------------------------------------------------------------------------
# Tile-size helpers (lane-dense output tiles, sublane-aligned token tiles)
# ----------------------------------------------------------------------------
def _tile_lanes(dim):
    """Output-feature tile: a multiple of 128 lanes, else the full dim."""
    for c in (512, 384, 256, 128):
        if dim % c == 0:
            return c
    return dim


def _tile_tokens(dim):
    """Token tile: a multiple of 8 sublanes, else the full dim."""
    for c in (256, 128, 64, 32, 16, 8):
        if dim % c == 0:
            return c
    return dim


# ----------------------------------------------------------------------------
# Fused linear kernels (bf16 MXU, fp32 accumulation)
# ----------------------------------------------------------------------------
def _plain_linear_kernel(x_ref, w_ref, o_ref):
    o_ref[...] = jnp.dot(x_ref[...], w_ref[...],
                         preferred_element_type=jnp.float32).astype(o_ref.dtype)


def _norm_linear_kernel(x_ref, s_ref, w_ref, o_ref):
    # adaRMSNorm prologue fused into the matmul: rmsnorm(x) * (1 + scale) @ W
    x = x_ref[...].astype(jnp.float32)            # (tq, K)
    s = s_ref[...].astype(jnp.float32)            # (1, K)
    var = jnp.mean(x * x, axis=-1, keepdims=True)
    h = (x * jax.lax.rsqrt(var + 1e-6) * (1.0 + s)).astype(w_ref.dtype)
    o_ref[...] = jnp.dot(h, w_ref[...],
                         preferred_element_type=jnp.float32).astype(o_ref.dtype)


def _skip_linear_kernel(x_ref, skip_ref, w_ref, o_ref):
    # residual-add epilogue fused into the output projection
    acc = jnp.dot(x_ref[...], w_ref[...], preferred_element_type=jnp.float32)
    o_ref[...] = (skip_ref[...].astype(jnp.float32) + acc).astype(o_ref.dtype)


def _geglu_skip_linear_kernel(u_ref, skip_ref, w_ref, o_ref):
    # GEGLU prologue + residual epilogue fused into the down projection
    u = u_ref[...].astype(jnp.float32)            # (tq, 2F)
    f = u.shape[-1] // 2
    g = (u[:, :f] * jax.nn.gelu(u[:, f:], approximate=True)).astype(w_ref.dtype)
    acc = jnp.dot(g, w_ref[...], preferred_element_type=jnp.float32)
    o_ref[...] = (skip_ref[...].astype(jnp.float32) + acc).astype(o_ref.dtype)


def fused_linear(x, w, *, scale=None, skip=None, geglu=False,
                 out_dtype=jnp.bfloat16):
    """x: (B, N, K) @ w: (Kw, Nout) -> (B, N, Nout).

    Optional fusions:
      scale: (B, 1, K)     -> adaRMSNorm prologue: rmsnorm(x)*(1+scale)
      skip:  (B, N, Nout)  -> residual-add epilogue
      geglu: x is (B, N, 2F), w is (F, Nout); GEGLU prologue.
    Tiled over tokens and output features; full K per block (weights are bf16
    so even width=1152 blocks stay well under scoped VMEM).
    """
    assert not (scale is not None and (skip is not None or geglu))
    B, N, K = x.shape
    Kw, Nout = w.shape
    tq = _tile_tokens(N)
    tn = _tile_lanes(Nout)
    grid = (B, N // tq, Nout // tn)

    operands = [x]
    in_specs = [pl.BlockSpec((None, tq, K), lambda b, i, j: (b, i, 0))]
    if scale is not None:
        kernel = _norm_linear_kernel
        operands.append(scale)
        in_specs.append(pl.BlockSpec((None, 1, K), lambda b, i, j: (b, 0, 0)))
    elif skip is not None and geglu:
        kernel = _geglu_skip_linear_kernel
        operands.append(skip)
        in_specs.append(pl.BlockSpec((None, tq, tn), lambda b, i, j: (b, i, j)))
    elif skip is not None:
        kernel = _skip_linear_kernel
        operands.append(skip)
        in_specs.append(pl.BlockSpec((None, tq, tn), lambda b, i, j: (b, i, j)))
    else:
        kernel = _plain_linear_kernel
    operands.append(w)
    in_specs.append(pl.BlockSpec((Kw, tn), lambda b, i, j: (0, j)))

    return pl.pallas_call(
        kernel,
        out_shape=jax.ShapeDtypeStruct((B, N, Nout), out_dtype),
        grid=grid,
        in_specs=in_specs,
        out_specs=pl.BlockSpec((None, tq, tn), lambda b, i, j: (b, i, j)),
        compiler_params=pltpu.CompilerParams(
            dimension_semantics=("parallel", "parallel", "parallel")),
    )(*operands)


# ----------------------------------------------------------------------------
# Attention kernels: all heads of a batch element per grid step
# ----------------------------------------------------------------------------
def _self_attn_rope_kernel(q_ref, k_ref, v_ref, cos_ref, sin_ref, o_ref):
    q = q_ref[...].astype(jnp.float32)            # (H, N, Dh)
    k = k_ref[...].astype(jnp.float32)
    v = v_ref[...]                                # (H, N, Dh) bf16
    cos = cos_ref[...][None]                      # (1, N, Dh) fp32, duplicated halves
    sin = sin_ref[...][None]
    dh = q.shape[-1]
    half = dh // 2

    def rope(t):                                   # rotate-half axial RoPE
        rot = jnp.concatenate([-t[..., half:], t[..., :half]], axis=-1)
        return t * cos + rot * sin

    q = (rope(q) * (1.0 / math.sqrt(dh))).astype(jnp.bfloat16)
    k = rope(k).astype(jnp.bfloat16)
    s = jnp.einsum('hqd,hkd->hqk', q, k, preferred_element_type=jnp.float32)
    m = jnp.max(s, axis=-1, keepdims=True)
    p = jnp.exp(s - m)
    p = p * pl.reciprocal(jnp.sum(p, axis=-1, keepdims=True), approx=True)
    o_ref[...] = jnp.einsum('hqk,hkd->hqd', p.astype(v.dtype), v,
                            preferred_element_type=jnp.float32).astype(o_ref.dtype)


def _cross_attn_kernel(q_ref, k_ref, v_ref, o_ref):
    q = q_ref[...].astype(jnp.float32)            # (H, N, Dh)
    dh = q.shape[-1]
    q = (q * (1.0 / math.sqrt(dh))).astype(jnp.bfloat16)
    k = k_ref[...]                                # (H, M, Dh)
    v = v_ref[...]
    s = jnp.einsum('hqd,hkd->hqk', q, k, preferred_element_type=jnp.float32)
    m = jnp.max(s, axis=-1, keepdims=True)
    p = jnp.exp(s - m)
    p = p * pl.reciprocal(jnp.sum(p, axis=-1, keepdims=True), approx=True)
    o_ref[...] = jnp.einsum('hqk,hkd->hqd', p.astype(v.dtype), v,
                            preferred_element_type=jnp.float32).astype(o_ref.dtype)


def self_attention(q, k, v, cos, sin):
    # TODO(synk): at reference sequence lengths, switch to flash-style KV
    # tiling with online softmax instead of full (H, N, N) scores.
    B, H, N, Dh = q.shape
    return pl.pallas_call(
        _self_attn_rope_kernel,
        out_shape=jax.ShapeDtypeStruct((B, H, N, Dh), jnp.bfloat16),
        grid=(B,),
        in_specs=[pl.BlockSpec((None, H, N, Dh), lambda b: (b, 0, 0, 0))] * 3
                 + [pl.BlockSpec((None, N, Dh), lambda b: (b, 0, 0))] * 2,
        out_specs=pl.BlockSpec((None, H, N, Dh), lambda b: (b, 0, 0, 0)),
        compiler_params=pltpu.CompilerParams(dimension_semantics=("parallel",)),
    )(q, k, v, cos, sin)


def cross_attention(q, k, v):
    B, H, N, Dh = q.shape
    M = k.shape[2]
    return pl.pallas_call(
        _cross_attn_kernel,
        out_shape=jax.ShapeDtypeStruct((B, H, N, Dh), jnp.bfloat16),
        grid=(B,),
        in_specs=[pl.BlockSpec((None, H, N, Dh), lambda b: (b, 0, 0, 0)),
                  pl.BlockSpec((None, H, M, Dh), lambda b: (b, 0, 0, 0)),
                  pl.BlockSpec((None, H, M, Dh), lambda b: (b, 0, 0, 0))],
        out_specs=pl.BlockSpec((None, H, N, Dh), lambda b: (b, 0, 0, 0)),
        compiler_params=pltpu.CompilerParams(dimension_semantics=("parallel",)),
    )(q, k, v)


# ----------------------------------------------------------------------------
# Model glue (reshapes / parameter plumbing in plain JAX)
# ----------------------------------------------------------------------------
def downscale_pos(pos):
    """Mean-pool positions over each 2x2 patch."""
    B, H, W, cp = pos.shape
    pos = pos.reshape(B, H // 2, 2, W // 2, 2, cp)
    return pos.mean(axis=(2, 4))


def axial_rope_tables(pos, d_head):
    """pos: (B, N, 2) -> (cos, sin) tables of shape (B, N, d_head), halves duplicated."""
    half = d_head // 2
    quarter = half // 2
    freqs = jnp.exp(-math.log(10000.0)
                    * jnp.arange(quarter, dtype=jnp.float32) / quarter)
    theta = jnp.concatenate([pos[..., 0:1] * freqs,
                             pos[..., 1:2] * freqs], axis=-1)       # (B, N, half)
    theta = jnp.concatenate([theta, theta], axis=-1)                # (B, N, Dh)
    return jnp.cos(theta), jnp.sin(theta)


def cross_transformer_layer(x, x_cross_bf, layer_scales, cos, sin, p, cfg):
    B, N, C = x.shape
    dh = cfg["d_head"]
    nh = C // dh
    sa_s, ca_s, ff_s = layer_scales[0], layer_scales[1], layer_scales[2]  # (B,1,C)

    # --- self-attention: adaRMSNorm fused into qkv proj, residual into o proj ---
    qkv = fused_linear(x, p["w_qkv"], scale=sa_s, out_dtype=jnp.bfloat16)
    qkv = qkv.reshape(B, N, 3, nh, dh).transpose(2, 0, 3, 1, 4)     # (3,B,H,N,Dh)
    o = self_attention(qkv[0], qkv[1], qkv[2], cos, sin)
    o = o.transpose(0, 2, 1, 3).reshape(B, N, C)
    x = fused_linear(o, p["w_o"], skip=x, out_dtype=jnp.float32)

    # --- cross-attention (queries from x, keys/values from x_cross) ---
    q = fused_linear(x, p["w_q_ca"], scale=ca_s, out_dtype=jnp.bfloat16)
    kv = fused_linear(x_cross_bf, p["w_kv_ca"], out_dtype=jnp.bfloat16)
    S = x_cross_bf.shape[1]
    q = q.reshape(B, N, nh, dh).transpose(0, 2, 1, 3)
    kv = kv.reshape(B, S, 2, nh, dh).transpose(2, 0, 3, 1, 4)       # (2,B,H,S,Dh)
    o = cross_attention(q, kv[0], kv[1])
    o = o.transpose(0, 2, 1, 3).reshape(B, N, C)
    x = fused_linear(o, p["w_o_ca"], skip=x, out_dtype=jnp.float32)

    # --- GEGLU MLP: norm fused into up proj, GEGLU + residual fused into down proj ---
    up = fused_linear(x, p["w_up"], scale=ff_s, out_dtype=jnp.bfloat16)
    x = fused_linear(up, p["w_down"], skip=x, geglu=True, out_dtype=jnp.float32)
    return x


def ca_transformer_forward(params, x, pos, x_cross, cond_norm, cfg):
    # 'b c ... -> b ... c'
    x = jnp.transpose(x, (0, 2, 3, 1))
    pos = jnp.transpose(pos, (0, 2, 3, 1))
    B, H, W, Cin = x.shape
    c_pos = pos.shape[-1]

    # TokenMerge2D: 'b (h p1) (w p2) c -> b h w (p1 p2 c)' + Linear
    xp = x.reshape(B, H // 2, 2, W // 2, 2, Cin).transpose(0, 1, 3, 2, 4, 5)
    xp = xp.reshape(B, (H // 2) * (W // 2), 4 * Cin).astype(jnp.bfloat16)
    xt = fused_linear(xp, params["w_merge"], out_dtype=jnp.float32)  # (B,N,C) fp32

    pos = downscale_pos(pos).reshape(B, -1, c_pos)
    cos, sin = axial_rope_tables(pos, cfg["d_head"])

    C = xt.shape[-1]
    depth = len(params["layers"])

    # Batched conditioning projection: one matmul for all layers' ada scales.
    scales = fused_linear(cond_norm[:, None, :].astype(jnp.bfloat16),
                          params["w_ada"], out_dtype=jnp.float32)    # (B,1,d*3*C)
    scales = scales.reshape(B, 1, depth, 3, C).transpose(2, 3, 0, 1, 4)  # (d,3,B,1,C)

    x_cross_bf = x_cross.astype(jnp.bfloat16)
    for li, p in enumerate(params["layers"]):                        # Level: sequential
        xt = cross_transformer_layer(xt, x_cross_bf, scales[li], cos, sin, p, cfg)

    # TokenSplitLast2D: RMSNorm + Linear + 'b h w (p1 p2 c) -> b (h p1)(w p2) c'
    h, w_ = H // 2, W // 2
    split_scale = jnp.broadcast_to((params["split_norm"] - 1.0)[None, None, :],
                                   (B, 1, C))
    y = fused_linear(xt, params["w_split"], scale=split_scale,
                     out_dtype=jnp.float32)                          # (B, N, 4*out_c)
    oc = cfg["out_channels"]
    y = y.reshape(B, h, w_, 2, 2, oc).transpose(0, 1, 3, 2, 4, 5)
    y = y.reshape(B, h * 2, w_ * 2, oc)
    # 'b ... c -> b c ...'
    return jnp.transpose(y, (0, 3, 1, 2))


# ----------------------------------------------------------------------------
# Deterministic parameter init (weights stored bf16 for the MXU)
# ----------------------------------------------------------------------------
def _init_linear(key, fan_in, fan_out):
    return jax.random.normal(key, (fan_in, fan_out),
                             jnp.float32) / math.sqrt(fan_in)


def init_params(key, cfg):
    C = cfg["width"]
    T = cfg["t_width"]
    CA = cfg["ca_width"]
    F = cfg["d_ff_mult"] * C
    depth = cfg["depth"]
    bf = lambda a: a.astype(jnp.bfloat16)
    keys = iter(jax.random.split(key, 4 + 10 * depth))
    params = {
        "w_merge": bf(_init_linear(next(keys), cfg["in_channels"] * 4, C)),
        "w_split": bf(_init_linear(next(keys), C, cfg["out_channels"] * 4)),
        "split_norm": jnp.ones((C,), jnp.float32),
        "layers": [],
    }
    ada_cols = []
    for _ in range(depth):
        ada_sa = _init_linear(next(keys), T, C) * 0.1
        ada_ca = _init_linear(next(keys), T, C) * 0.1
        ada_ff = _init_linear(next(keys), T, C) * 0.1
        ada_cols.append(jnp.concatenate([ada_sa, ada_ca, ada_ff], axis=-1))
        p = {
            "w_qkv": bf(_init_linear(next(keys), C, 3 * C)),
            "w_o": bf(_init_linear(next(keys), C, C)),
            "w_q_ca": bf(_init_linear(next(keys), C, C)),
            "w_kv_ca": bf(_init_linear(next(keys), CA, 2 * C)),
            "w_o_ca": bf(_init_linear(next(keys), C, C)),
            "w_up": bf(_init_linear(next(keys), C, 2 * F)),
            "w_down": bf(_init_linear(next(keys), F, C)),
        }
        params["layers"].append(p)
    # All layers' adaRMSNorm conditioning weights stacked: (T, depth*3*C)
    params["w_ada"] = bf(jnp.concatenate(ada_cols, axis=-1))
    return params


if __name__ == "__main__":
    cfg = CFG
    key = jax.random.PRNGKey(0)
    kp, kx, kc, kt = jax.random.split(key, 4)

    B, H, W = 2, 16, 16
    S_cross = 8

    params = init_params(kp, cfg)
    x = jax.random.normal(kx, (B, cfg["in_channels"], H, W), jnp.float32)
    ys, xs = jnp.meshgrid(jnp.linspace(-1.0, 1.0, H),
                          jnp.linspace(-1.0, 1.0, W), indexing="ij")
    pos = jnp.broadcast_to(jnp.stack([ys, xs], axis=0)[None],
                           (B, 2, H, W)).astype(jnp.float32)
    x_cross = jax.random.normal(kc, (B, S_cross, cfg["ca_width"]), jnp.float32)
    cond_norm = jax.random.normal(kt, (B, cfg["t_width"]), jnp.float32)

    fwd = jax.jit(partial(ca_transformer_forward, cfg=cfg))
    out = fwd(params, x, pos, x_cross, cond_norm)
    jax.block_until_ready(out)
    assert out.shape == (B, cfg["out_channels"], H, W), out.shape
    assert jnp.all(jnp.isfinite(out))
    print("KERNEL_OK")
</pallas_src>

<mosaic_0001>
module attributes {stable_mosaic.version = 11 : i64} {
  func.func @_plain_linear_kernel(%arg0: i32, %arg1: i32, %arg2: i32, %arg3: memref<1x1x64xbf16, #tpu.memory_space<vmem>>, %arg4: memref<64x384xbf16, #tpu.memory_space<vmem>>, %arg5: memref<1x1x384xf32, #tpu.memory_space<vmem>>) attributes {dimension_semantics = [#tpu.dimension_semantics<parallel>, #tpu.dimension_semantics<parallel>, #tpu.dimension_semantics<parallel>], iteration_bounds = array<i64: 2, 1, 2>, scalar_prefetch = 0 : i64, scratch_operands = 0 : i64, tpu.core_type = #tpu.core_type<tc>, window_params = [{transform_indices = @transform_0, window_bounds = array<i64: 1, 1, 64>}, {transform_indices = @transform_1, window_bounds = array<i64: 64, 384>}, {transform_indices = @transform_2, window_bounds = array<i64: 1, 1, 384>}]} {
    %c0 = arith.constant 0 : index
    %c0_0 = arith.constant 0 : index
    %c0_1 = arith.constant 0 : index
    %0 = vector.load %arg3[%c0, %c0_0, %c0_1] : memref<1x1x64xbf16, #tpu.memory_space<vmem>>, vector<1x1x64xbf16>
    %1 = vector.shape_cast %0 : vector<1x1x64xbf16> to vector<1x64xbf16>
    %c0_2 = arith.constant 0 : index
    %c0_3 = arith.constant 0 : index
    %2 = vector.load %arg4[%c0_2, %c0_3] : memref<64x384xbf16, #tpu.memory_space<vmem>>, vector<64x384xbf16>
    %cst = arith.constant dense<0.000000e+00> : vector<1x384xf32>
    %3 = tpu.matmul %1, %2, %cst {dimension_numbers = #tpu.dot_dimension_numbers<[1], [0], [0], [1], [0, 0, 1, 1], [], []>} : vector<1x64xbf16>, vector<64x384xbf16>, vector<1x384xf32> -> vector<1x384xf32>
    %c0_4 = arith.constant 0 : index
    %c0_5 = arith.constant 0 : index
    %c0_6 = arith.constant 0 : index
    %4 = vector.load %arg5[%c0_4, %c0_5, %c0_6] : memref<1x1x384xf32, #tpu.memory_space<vmem>>, vector<1x1x384xf32>
    %5 = vector.shape_cast %4 : vector<1x1x384xf32> to vector<1x384xf32>
    %6 = vector.shape_cast %3 : vector<1x384xf32> to vector<1x1x384xf32>
    tpu.vector_store %arg5[%c0_4, %c0_5, %c0_6], %6 {strides = array<i32>} : memref<1x1x384xf32, #tpu.memory_space<vmem>>, vector<1x1x384xf32>,
    return
  }
  func.func @transform_0(%arg0: i32, %arg1: i32, %arg2: i32) -> (i32, i32, i32) {
    %c0_i32 = arith.constant 0 : i32
    %c0_i32_0 = arith.constant 0 : i32
    return %arg0, %arg1, %c0_i32 : i32, i32, i32
  }
  func.func @transform_1(%arg0: i32, %arg1: i32, %arg2: i32) -> (i32, i32) {
    %c0_i32 = arith.constant 0 : i32
    %c0_i32_0 = arith.constant 0 : i32
    return %c0_i32, %arg2 : i32, i32
  }
  func.func @transform_2(%arg0: i32, %arg1: i32, %arg2: i32) -> (i32, i32, i32) {
    %c0_i32 = arith.constant 0 : i32
    return %arg0, %arg1, %arg2 : i32, i32, i32
  }
}

module attributes {stable_mosaic.version = 11 : i64} {
  func.func @_plain_linear_kernel(%arg0: i32, %arg1: i32, %arg2: i32, %arg3: memref<1x64x16xbf16, #tpu.memory_space<vmem>>, %arg4: memref<16x128xbf16, #tpu.memory_space<vmem>>, %arg5: memref<1x64x128xf32, #tpu.memory_space<vmem>>) attributes {dimension_semantics = [#tpu.dimension_semantics<parallel>, #tpu.dimension_semantics<parallel>, #tpu.dimension_semantics<parallel>], iteration_bounds = array<i64: 2, 1, 1>, scalar_prefetch = 0 : i64, scratch_operands = 0 : i64, tpu.core_type = #tpu.core_type<tc>, window_params = [{transform_indices = @transform_0, window_bounds = array<i64: 1, 64, 16>}, {transform_indices = @transform_1, window_bounds = array<i64: 16, 128>}, {transform_indices = @transform_2, window_bounds = array<i64: 1, 64, 128>}]} {
    %c0 = arith.constant 0 : index
    %c0_0 = arith.constant 0 : index
    %c0_1 = arith.constant 0 : index
    %0 = vector.load %arg3[%c0, %c0_0, %c0_1] : memref<1x64x16xbf16, #tpu.memory_space<vmem>>, vector<1x64x16xbf16>
    %1 = vector.shape_cast %0 : vector<1x64x16xbf16> to vector<64x16xbf16>
    %c0_2 = arith.constant 0 : index
    %c0_3 = arith.constant 0 : index
    %2 = vector.load %arg4[%c0_2, %c0_3] : memref<16x128xbf16, #tpu.memory_space<vmem>>, vector<16x128xbf16>
    %cst = arith.constant dense<0.000000e+00> : vector<64x128xf32>
    %3 = tpu.matmul %1, %2, %cst {dimension_numbers = #tpu.dot_dimension_numbers<[1], [0], [0], [1], [0, 0, 1, 1], [], []>} : vector<64x16xbf16>, vector<16x128xbf16>, vector<64x128xf32> -> vector<64x128xf32>
    %c0_4 = arith.constant 0 : index
    %c0_5 = arith.constant 0 : index
    %c0_6 = arith.constant 0 : index
    %4 = vector.load %arg5[%c0_4, %c0_5, %c0_6] : memref<1x64x128xf32, #tpu.memory_space<vmem>>, vector<1x64x128xf32>
    %5 = vector.shape_cast %4 : vector<1x64x128xf32> to vector<64x128xf32>
    %6 = vector.shape_cast %3 : vector<64x128xf32> to vector<1x64x128xf32>
    tpu.vector_store %arg5[%c0_4, %c0_5, %c0_6], %6 {strides = array<i32>} : memref<1x64x128xf32, #tpu.memory_space<vmem>>, vector<1x64x128xf32>,
    return
  }
  func.func @transform_0(%arg0: i32, %arg1: i32, %arg2: i32) -> (i32, i32, i32) {
    %c0_i32 = arith.constant 0 : i32
    %c0_i32_0 = arith.constant 0 : i32
    return %arg0, %arg1, %c0_i32 : i32, i32, i32
  }
  func.func @transform_1(%arg0: i32, %arg1: i32, %arg2: i32) -> (i32, i32) {
    %c0_i32 = arith.constant 0 : i32
    %c0_i32_0 = arith.constant 0 : i32
    return %c0_i32, %arg2 : i32, i32
  }
  func.func @transform_2(%arg0: i32, %arg1: i32, %arg2: i32) -> (i32, i32, i32) {
    %c0_i32 = arith.constant 0 : i32
    return %arg0, %arg1, %arg2 : i32, i32, i32
  }
}

module attributes {stable_mosaic.version = 11 : i64} {
  func.func @_norm_linear_kernel(%arg0: i32, %arg1: i32, %arg2: i32, %arg3: memref<1x64x128xf32, #tpu.memory_space<vmem>>, %arg4: memref<1x1x128xf32, #tpu.memory_space<vmem>>, %arg5: memref<128x384xbf16, #tpu.memory_space<vmem>>, %arg6: memref<1x64x384xbf16, #tpu.memory_space<vmem>>) attributes {dimension_semantics = [#tpu.dimension_semantics<parallel>, #tpu.dimension_semantics<parallel>, #tpu.dimension_semantics<parallel>], iteration_bounds = array<i64: 2, 1, 1>, scalar_prefetch = 0 : i64, scratch_operands = 0 : i64, tpu.core_type = #tpu.core_type<tc>, window_params = [{transform_indices = @transform_0, window_bounds = array<i64: 1, 64, 128>}, {transform_indices = @transform_1, window_bounds = array<i64: 1, 1, 128>}, {transform_indices = @transform_2, window_bounds = array<i64: 128, 384>}, {transform_indices = @transform_3, window_bounds = array<i64: 1, 64, 384>}]} {
    %c0 = arith.constant 0 : index
    %c0_0 = arith.constant 0 : index
    %c0_1 = arith.constant 0 : index
    %0 = vector.load %arg3[%c0, %c0_0, %c0_1] : memref<1x64x128xf32, #tpu.memory_space<vmem>>, vector<1x64x128xf32>
    %1 = vector.shape_cast %0 : vector<1x64x128xf32> to vector<64x128xf32>
    %c0_2 = arith.constant 0 : index
    %c0_3 = arith.constant 0 : index
    %c0_4 = arith.constant 0 : index
    %2 = vector.load %arg4[%c0_2, %c0_3, %c0_4] : memref<1x1x128xf32, #tpu.memory_space<vmem>>, vector<1x1x128xf32>
    %3 = vector.shape_cast %2 : vector<1x1x128xf32> to vector<1x128xf32>
    %4 = arith.mulf %1, %1 : vector<64x128xf32>
    %cst = arith.constant dense<0.000000e+00> : vector<64xf32>
    %5 = vector.multi_reduction <add>, %4, %cst [1] : vector<64x128xf32> to vector<64xf32>
    %6 = vector.shape_cast %5 : vector<64xf32> to vector<64x1xf32>
    %cst_5 = arith.constant 1.280000e+02 : f32
    %7 = vector.broadcast %cst_5 : f32 to vector<64x1xf32>
    %8 = arith.divf %6, %7 : vector<64x1xf32>
    %cst_6 = arith.constant 9.99999997E-7 : f32
    %9 = vector.broadcast %cst_6 : f32 to vector<64x1xf32>
    %10 = arith.addf %8, %9 : vector<64x1xf32>
    %11 = math.rsqrt %10 : vector<64x1xf32>
    %12 = vector.broadcast %11 : vector<64x1xf32> to vector<64x128xf32>
    %13 = arith.mulf %1, %12 : vector<64x128xf32>
    %cst_7 = arith.constant 1.000000e+00 : f32
    %14 = vector.broadcast %cst_7 : f32 to vector<1x128xf32>
    %15 = arith.addf %14, %3 : vector<1x128xf32>
    %16 = vector.broadcast %15 : vector<1x128xf32> to vector<64x128xf32>
    %17 = arith.mulf %13, %16 : vector<64x128xf32>
    %18 = arith.truncf %17 : vector<64x128xf32> to vector<64x128xbf16>
    %c0_8 = arith.constant 0 : index
    %c0_9 = arith.constant 0 : index
    %19 = vector.load %arg5[%c0_8, %c0_9] : memref<128x384xbf16, #tpu.memory_space<vmem>>, vector<128x384xbf16>
    %cst_10 = arith.constant dense<0.000000e+00> : vector<64x384xf32>
    %20 = tpu.matmul %18, %19, %cst_10 {dimension_numbers = #tpu.dot_dimension_numbers<[1], [0], [0], [1], [0, 0, 1, 1], [], []>} : vector<64x128xbf16>, vector<128x384xbf16>, vector<64x384xf32> -> vector<64x384xf32>
    %21 = arith.truncf %20 : vector<64x384xf32> to vector<64x384xbf16>
    %c0_11 = arith.constant 0 : index
    %c0_12 = arith.constant 0 : index
    %c0_13 = arith.constant 0 : index
    %22 = vector.load %arg6[%c0_11, %c0_12, %c0_13] : memref<1x64x384xbf16, #tpu.memory_space<vmem>>, vector<1x64x384xbf16>
    %23 = vector.shape_cast %22 : vector<1x64x384xbf16> to vector<64x384xbf16>
    %24 = vector.shape_cast %21 : vector<64x384xbf16> to vector<1x64x384xbf16>
    tpu.vector_store %arg6[%c0_11, %c0_12, %c0_13], %24 {strides = array<i32>} : memref<1x64x384xbf16, #tpu.memory_space<vmem>>, vector<1x64x384xbf16>,
    return
  }
  func.func @transform_0(%arg0: i32, %arg1: i32, %arg2: i32) -> (i32, i32, i32) {
    %c0_i32 = arith.constant 0 : i32
    %c0_i32_0 = arith.constant 0 : i32
    return %arg0, %arg1, %c0_i32 : i32, i32, i32
  }
  func.func @transform_1(%arg0: i32, %arg1: i32, %arg2: i32) -> (i32, i32, i32) {
    %c0_i32 = arith.constant 0 : i32
    %c0_i32_0 = arith.constant 0 : i32
    %c0_i32_1 = arith.constant 0 : i32
    return %arg0, %c0_i32, %c0_i32_0 : i32, i32, i32
  }
  func.func @transform_2(%arg0: i32, %arg1: i32, %arg2: i32) -> (i32, i32) {
    %c0_i32 = arith.constant 0 : i32
    %c0_i32_0 = arith.constant 0 : i32
    return %c0_i32, %arg2 : i32, i32
  }
  func.func @transform_3(%arg0: i32, %arg1: i32, %arg2: i32) -> (i32, i32, i32) {
    %c0_i32 = arith.constant 0 : i32
    return %arg0, %arg1, %arg2 : i32, i32, i32
  }
}

module attributes {stable_mosaic.version = 11 : i64} {
  func.func @_self_attn_rope_kernel(%arg0: i32, %arg1: memref<1x4x64x32xbf16, #tpu.memory_space<vmem>>, %arg2: memref<1x4x64x32xbf16, #tpu.memory_space<vmem>>, %arg3: memref<1x4x64x32xbf16, #tpu.memory_space<vmem>>, %arg4: memref<1x64x32xf32, #tpu.memory_space<vmem>>, %arg5: memref<1x64x32xf32, #tpu.memory_space<vmem>>, %arg6: memref<1x4x64x32xbf16, #tpu.memory_space<vmem>>) attributes {dimension_semantics = [#tpu.dimension_semantics<parallel>], iteration_bounds = array<i64: 2>, scalar_prefetch = 0 : i64, scratch_operands = 0 : i64, tpu.core_type = #tpu.core_type<tc>, window_params = [{transform_indices = @transform_0, window_bounds = array<i64: 1, 4, 64, 32>}, {transform_indices = @transform_1, window_bounds = array<i64: 1, 4, 64, 32>}, {transform_indices = @transform_2, window_bounds = array<i64: 1, 4, 64, 32>}, {transform_indices = @transform_3, window_bounds = array<i64: 1, 64, 32>}, {transform_indices = @transform_4, window_bounds = array<i64: 1, 64, 32>}, {transform_indices = @transform_5, window_bounds = array<i64: 1, 4, 64, 32>}]} {
    %c0 = arith.constant 0 : index
    %c0_0 = arith.constant 0 : index
    %c0_1 = arith.constant 0 : index
    %c0_2 = arith.constant 0 : index
    %0 = vector.load %arg1[%c0, %c0_0, %c0_1, %c0_2] : memref<1x4x64x32xbf16, #tpu.memory_space<vmem>>, vector<1x4x64x32xbf16>
    %1 = vector.shape_cast %0 : vector<1x4x64x32xbf16> to vector<4x64x32xbf16>
    %2 = arith.extf %1 : vector<4x64x32xbf16> to vector<4x64x32xf32>
    %c0_3 = arith.constant 0 : index
    %c0_4 = arith.constant 0 : index
    %c0_5 = arith.constant 0 : index
    %c0_6 = arith.constant 0 : index
    %3 = vector.load %arg2[%c0_3, %c0_4, %c0_5, %c0_6] : memref<1x4x64x32xbf16, #tpu.memory_space<vmem>>, vector<1x4x64x32xbf16>
    %4 = vector.shape_cast %3 : vector<1x4x64x32xbf16> to vector<4x64x32xbf16>
    %5 = arith.extf %4 : vector<4x64x32xbf16> to vector<4x64x32xf32>
    %c0_7 = arith.constant 0 : index
    %c0_8 = arith.constant 0 : index
    %c0_9 = arith.constant 0 : index
    %c0_10 = arith.constant 0 : index
    %6 = vector.load %arg3[%c0_7, %c0_8, %c0_9, %c0_10] : memref<1x4x64x32xbf16, #tpu.memory_space<vmem>>, vector<1x4x64x32xbf16>
    %7 = vector.shape_cast %6 : vector<1x4x64x32xbf16> to vector<4x64x32xbf16>
    %c0_11 = arith.constant 0 : index
    %c0_12 = arith.constant 0 : index
    %c0_13 = arith.constant 0 : index
    %8 = vector.load %arg4[%c0_11, %c0_12, %c0_13] : memref<1x64x32xf32, #tpu.memory_space<vmem>>, vector<1x64x32xf32>
    %9 = vector.shape_cast %8 : vector<1x64x32xf32> to vector<64x32xf32>
    %10 = vector.shape_cast %9 : vector<64x32xf32> to vector<1x64x32xf32>
    %c0_14 = arith.constant 0 : index
    %c0_15 = arith.constant 0 : index
    %c0_16 = arith.constant 0 : index
    %11 = vector.load %arg5[%c0_14, %c0_15, %c0_16] : memref<1x64x32xf32, #tpu.memory_space<vmem>>, vector<1x64x32xf32>
    %12 = vector.shape_cast %11 : vector<1x64x32xf32> to vector<64x32xf32>
    %13 = vector.shape_cast %12 : vector<64x32xf32> to vector<1x64x32xf32>
    %14 = vector.extract_strided_slice %2 {offsets = [0, 0, 16], sizes = [4, 64, 16], strides = [1, 1, 1]} : vector<4x64x32xf32> to vector<4x64x16xf32>
    %cst = arith.constant 0.000000e+00 : f32
    %15 = vector.broadcast %cst : f32 to vector<4x64x16xf32>
    %16 = arith.subf %15, %14 : vector<4x64x16xf32>
    %17 = vector.extract_strided_slice %2 {offsets = [0, 0, 0], sizes = [4, 64, 16], strides = [1, 1, 1]} : vector<4x64x32xf32> to vector<4x64x16xf32>
    %18 = tpu.concatenate %16, %17 in 2 : vector<4x64x16xf32>, vector<4x64x16xf32> -> vector<4x64x32xf32>
    %19 = vector.broadcast %10 : vector<1x64x32xf32> to vector<4x64x32xf32>
    %20 = arith.mulf %2, %19 : vector<4x64x32xf32>
    %21 = vector.broadcast %13 : vector<1x64x32xf32> to vector<4x64x32xf32>
    %22 = arith.mulf %18, %21 : vector<4x64x32xf32>
    %23 = arith.addf %20, %22 : vector<4x64x32xf32>
    %cst_17 = arith.constant 0.176776692 : f32
    %24 = vector.broadcast %cst_17 : f32 to vector<4x64x32xf32>
    %25 = arith.mulf %23, %24 : vector<4x64x32xf32>
    %26 = arith.truncf %25 : vector<4x64x32xf32> to vector<4x64x32xbf16>
    %27 = vector.extract_strided_slice %5 {offsets = [0, 0, 16], sizes = [4, 64, 16], strides = [1, 1, 1]} : vector<4x64x32xf32> to vector<4x64x16xf32>
    %cst_18 = arith.constant 0.000000e+00 : f32
    %28 = vector.broadcast %cst_18 : f32 to vector<4x64x16xf32>
    %29 = arith.subf %28, %27 : vector<4x64x16xf32>
    %30 = vector.extract_strided_slice %5 {offsets = [0, 0, 0], sizes = [4, 64, 16], strides = [1, 1, 1]} : vector<4x64x32xf32> to vector<4x64x16xf32>
    %31 = tpu.concatenate %29, %30 in 2 : vector<4x64x16xf32>, vector<4x64x16xf32> -> vector<4x64x32xf32>
    %32 = vector.broadcast %10 : vector<1x64x32xf32> to vector<4x64x32xf32>
    %33 = arith.mulf %5, %32 : vector<4x64x32xf32>
    %34 = vector.broadcast %13 : vector<1x64x32xf32> to vector<4x64x32xf32>
    %35 = arith.mulf %31, %34 : vector<4x64x32xf32>
    %36 = arith.addf %33, %35 : vector<4x64x32xf32>
    %37 = arith.truncf %36 : vector<4x64x32xf32> to vector<4x64x32xbf16>
    "tpu.trace_start"() <{level = 10 : i32, message = "hqd,hkd->hqk"}> : () -> ()
    %cst_19 = arith.constant dense<0.000000e+00> : vector<4x64x64xf32>
    %38 = tpu.matmul %26, %37, %cst_19 {dimension_numbers = #tpu.dot_dimension_numbers<[2], [2], [1], [1], [0, 0, 0, 1, 1, 1], [0], [0]>} : vector<4x64x32xbf16>, vector<4x64x32xbf16>, vector<4x64x64xf32> -> vector<4x64x64xf32>
    "tpu.trace_stop"() : () -> ()
    %cst_20 = arith.constant dense<0xFF800000> : vector<4x64xf32>
    %39 = vector.multi_reduction <maximumf>, %38, %cst_20 [2] : vector<4x64x64xf32> to vector<4x64xf32>
    %40 = vector.shape_cast %39 : vector<4x64xf32> to vector<4x64x1xf32>
    %41 = vector.broadcast %40 : vector<4x64x1xf32> to vector<4x64x64xf32>
    %42 = arith.subf %38, %41 : vector<4x64x64xf32>
    %43 = math.exp %42 : vector<4x64x64xf32>
    %cst_21 = arith.constant dense<0.000000e+00> : vector<4x64xf32>
    %44 = vector.multi_reduction <add>, %43, %cst_21 [2] : vector<4x64x64xf32> to vector<4x64xf32>
    %45 = vector.shape_cast %44 : vector<4x64xf32> to vector<4x64x1xf32>
    %46 = tpu.reciprocal %45 {approx = true} : vector<4x64x1xf32> -> vector<4x64x1xf32>
    %47 = vector.broadcast %46 : vector<4x64x1xf32> to vector<4x64x64xf32>
    %48 = arith.mulf %43, %47 : vector<4x64x64xf32>
    %49 = arith.truncf %48 : vector<4x64x64xf32> to vector<4x64x64xbf16>
    "tpu.trace_start"() <{level = 10 : i32, message = "hqk,hkd->hqd"}> : () -> ()
    %cst_22 = arith.constant dense<0.000000e+00> : vector<4x64x32xf32>
    %50 = tpu.matmul %49, %7, %cst_22 {dimension_numbers = #tpu.dot_dimension_numbers<[2], [1], [1], [2], [0, 0, 0, 1, 1, 2], [0], [0]>} : vector<4x64x64xbf16>, vector<4x64x32xbf16>, vector<4x64x32xf32> -> vector<4x64x32xf32>
    "tpu.trace_stop"() : () -> ()
    %51 = arith.truncf %50 : vector<4x64x32xf32> to vector<4x64x32xbf16>
    %c0_23 = arith.constant 0 : index
    %c0_24 = arith.constant 0 : index
    %c0_25 = arith.constant 0 : index
    %c0_26 = arith.constant 0 : index
    %52 = vector.load %arg6[%c0_23, %c0_24, %c0_25, %c0_26] : memref<1x4x64x32xbf16, #tpu.memory_space<vmem>>, vector<1x4x64x32xbf16>
    %53 = vector.shape_cast %52 : vector<1x4x64x32xbf16> to vector<4x64x32xbf16>
    %54 = vector.shape_cast %51 : vector<4x64x32xbf16> to vector<1x4x64x32xbf16>
    tpu.vector_store %arg6[%c0_23, %c0_24, %c0_25, %c0_26], %54 {strides = array<i32>} : memref<1x4x64x32xbf16, #tpu.memory_space<vmem>>, vector<1x4x64x32xbf16>,
    return
  }
  func.func @transform_0(%arg0: i32) -> (i32, i32, i32, i32) {
    %c0_i32 = arith.constant 0 : i32
    %c0_i32_0 = arith.constant 0 : i32
    %c0_i32_1 = arith.constant 0 : i32
    %c0_i32_2 = arith.constant 0 : i32
    return %arg0, %c0_i32, %c0_i32_0, %c0_i32_1 : i32, i32, i32, i32
  }
  func.func @transform_1(%arg0: i32) -> (i32, i32, i32, i32) {
    %c0_i32 = arith.constant 0 : i32
    %c0_i32_0 = arith.constant 0 : i32
    %c0_i32_1 = arith.constant 0 : i32
    %c0_i32_2 = arith.constant 0 : i32
    return %arg0, %c0_i32, %c0_i32_0, %c0_i32_1 : i32, i32, i32, i32
  }
  func.func @transform_2(%arg0: i32) -> (i32, i32, i32, i32) {
    %c0_i32 = arith.constant 0 : i32
    %c0_i32_0 = arith.constant 0 : i32
    %c0_i32_1 = arith.constant 0 : i32
    %c0_i32_2 = arith.constant 0 : i32
    return %arg0, %c0_i32, %c0_i32_0, %c0_i32_1 : i32, i32, i32, i32
  }
  func.func @transform_3(%arg0: i32) -> (i32, i32, i32) {
    %c0_i32 = arith.constant 0 : i32
    %c0_i32_0 = arith.constant 0 : i32
    %c0_i32_1 = arith.constant 0 : i32
    return %arg0, %c0_i32, %c0_i32_0 : i32, i32, i32
  }
  func.func @transform_4(%arg0: i32) -> (i32, i32, i32) {
    %c0_i32 = arith.constant 0 : i32
    %c0_i32_0 = arith.constant 0 : i32
    %c0_i32_1 = arith.constant 0 : i32
    return %arg0, %c0_i32, %c0_i32_0 : i32, i32, i32
  }
  func.func @transform_5(%arg0: i32) -> (i32, i32, i32, i32) {
    %c0_i32 = arith.constant 0 : i32
    %c0_i32_0 = arith.constant 0 : i32
    %c0_i32_1 = arith.constant 0 : i32
    %c0_i32_2 = arith.constant 0 : i32
    return %arg0, %c0_i32, %c0_i32_0, %c0_i32_1 : i32, i32, i32, i32
  }
}

module attributes {stable_mosaic.version = 11 : i64} {
  func.func @_skip_linear_kernel(%arg0: i32, %arg1: i32, %arg2: i32, %arg3: memref<1x64x128xbf16, #tpu.memory_space<vmem>>, %arg4: memref<1x64x128xf32, #tpu.memory_space<vmem>>, %arg5: memref<128x128xbf16, #tpu.memory_space<vmem>>, %arg6: memref<1x64x128xf32, #tpu.memory_space<vmem>>) attributes {dimension_semantics = [#tpu.dimension_semantics<parallel>, #tpu.dimension_semantics<parallel>, #tpu.dimension_semantics<parallel>], iteration_bounds = array<i64: 2, 1, 1>, scalar_prefetch = 0 : i64, scratch_operands = 0 : i64, tpu.core_type = #tpu.core_type<tc>, window_params = [{transform_indices = @transform_0, window_bounds = array<i64: 1, 64, 128>}, {transform_indices = @transform_1, window_bounds = array<i64: 1, 64, 128>}, {transform_indices = @transform_2, window_bounds = array<i64: 128, 128>}, {transform_indices = @transform_3, window_bounds = array<i64: 1, 64, 128>}]} {
    %c0 = arith.constant 0 : index
    %c0_0 = arith.constant 0 : index
    %c0_1 = arith.constant 0 : index
    %0 = vector.load %arg3[%c0, %c0_0, %c0_1] : memref<1x64x128xbf16, #tpu.memory_space<vmem>>, vector<1x64x128xbf16>
    %1 = vector.shape_cast %0 : vector<1x64x128xbf16> to vector<64x128xbf16>
    %c0_2 = arith.constant 0 : index
    %c0_3 = arith.constant 0 : index
    %2 = vector.load %arg5[%c0_2, %c0_3] : memref<128x128xbf16, #tpu.memory_space<vmem>>, vector<128x128xbf16>
    %cst = arith.constant dense<0.000000e+00> : vector<64x128xf32>
    %3 = tpu.matmul %1, %2, %cst {dimension_numbers = #tpu.dot_dimension_numbers<[1], [0], [0], [1], [0, 0, 1, 1], [], []>} : vector<64x128xbf16>, vector<128x128xbf16>, vector<64x128xf32> -> vector<64x128xf32>
    %c0_4 = arith.constant 0 : index
    %c0_5 = arith.constant 0 : index
    %c0_6 = arith.constant 0 : index
    %4 = vector.load %arg4[%c0_4, %c0_5, %c0_6] : memref<1x64x128xf32, #tpu.memory_space<vmem>>, vector<1x64x128xf32>
    %5 = vector.shape_cast %4 : vector<1x64x128xf32> to vector<64x128xf32>
    %6 = arith.addf %5, %3 : vector<64x128xf32>
    %c0_7 = arith.constant 0 : index
    %c0_8 = arith.constant 0 : index
    %c0_9 = arith.constant 0 : index
    %7 = vector.load %arg6[%c0_7, %c0_8, %c0_9] : memref<1x64x128xf32, #tpu.memory_space<vmem>>, vector<1x64x128xf32>
    %8 = vector.shape_cast %7 : vector<1x64x128xf32> to vector<64x128xf32>
    %9 = vector.shape_cast %6 : vector<64x128xf32> to vector<1x64x128xf32>
    tpu.vector_store %arg6[%c0_7, %c0_8, %c0_9], %9 {strides = array<i32>} : memref<1x64x128xf32, #tpu.memory_space<vmem>>, vector<1x64x128xf32>,
    return
  }
  func.func @transform_0(%arg0: i32, %arg1: i32, %arg2: i32) -> (i32, i32, i32) {
    %c0_i32 = arith.constant 0 : i32
    %c0_i32_0 = arith.constant 0 : i32
    return %arg0, %arg1, %c0_i32 : i32, i32, i32
  }
  func.func @transform_1(%arg0: i32, %arg1: i32, %arg2: i32) -> (i32, i32, i32) {
    %c0_i32 = arith.constant 0 : i32
    return %arg0, %arg1, %arg2 : i32, i32, i32
  }
  func.func @transform_2(%arg0: i32, %arg1: i32, %arg2: i32) -> (i32, i32) {
    %c0_i32 = arith.constant 0 : i32
    %c0_i32_0 = arith.constant 0 : i32
    return %c0_i32, %arg2 : i32, i32
  }
  func.func @transform_3(%arg0: i32, %arg1: i32, %arg2: i32) -> (i32, i32, i32) {
    %c0_i32 = arith.constant 0 : i32
    return %arg0, %arg1, %arg2 : i32, i32, i32
  }
}

module attributes {stable_mosaic.version = 11 : i64} {
  func.func @_norm_linear_kernel(%arg0: i32, %arg1: i32, %arg2: i32, %arg3: memref<1x64x128xf32, #tpu.memory_space<vmem>>, %arg4: memref<1x1x128xf32, #tpu.memory_space<vmem>>, %arg5: memref<128x128xbf16, #tpu.memory_space<vmem>>, %arg6: memref<1x64x128xbf16, #tpu.memory_space<vmem>>) attributes {dimension_semantics = [#tpu.dimension_semantics<parallel>, #tpu.dimension_semantics<parallel>, #tpu.dimension_semantics<parallel>], iteration_bounds = array<i64: 2, 1, 1>, scalar_prefetch = 0 : i64, scratch_operands = 0 : i64, tpu.core_type = #tpu.core_type<tc>, window_params = [{transform_indices = @transform_0, window_bounds = array<i64: 1, 64, 128>}, {transform_indices = @transform_1, window_bounds = array<i64: 1, 1, 128>}, {transform_indices = @transform_2, window_bounds = array<i64: 128, 128>}, {transform_indices = @transform_3, window_bounds = array<i64: 1, 64, 128>}]} {
    %c0 = arith.constant 0 : index
    %c0_0 = arith.constant 0 : index
    %c0_1 = arith.constant 0 : index
    %0 = vector.load %arg3[%c0, %c0_0, %c0_1] : memref<1x64x128xf32, #tpu.memory_space<vmem>>, vector<1x64x128xf32>
    %1 = vector.shape_cast %0 : vector<1x64x128xf32> to vector<64x128xf32>
    %c0_2 = arith.constant 0 : index
    %c0_3 = arith.constant 0 : index
    %c0_4 = arith.constant 0 : index
    %2 = vector.load %arg4[%c0_2, %c0_3, %c0_4] : memref<1x1x128xf32, #tpu.memory_space<vmem>>, vector<1x1x128xf32>
    %3 = vector.shape_cast %2 : vector<1x1x128xf32> to vector<1x128xf32>
    %4 = arith.mulf %1, %1 : vector<64x128xf32>
    %cst = arith.constant dense<0.000000e+00> : vector<64xf32>
    %5 = vector.multi_reduction <add>, %4, %cst [1] : vector<64x128xf32> to vector<64xf32>
    %6 = vector.shape_cast %5 : vector<64xf32> to vector<64x1xf32>
    %cst_5 = arith.constant 1.280000e+02 : f32
    %7 = vector.broadcast %cst_5 : f32 to vector<64x1xf32>
    %8 = arith.divf %6, %7 : vector<64x1xf32>
    %cst_6 = arith.constant 9.99999997E-7 : f32
    %9 = vector.broadcast %cst_6 : f32 to vector<64x1xf32>
    %10 = arith.addf %8, %9 : vector<64x1xf32>
    %11 = math.rsqrt %10 : vector<64x1xf32>
    %12 = vector.broadcast %11 : vector<64x1xf32> to vector<64x128xf32>
    %13 = arith.mulf %1, %12 : vector<64x128xf32>
    %cst_7 = arith.constant 1.000000e+00 : f32
    %14 = vector.broadcast %cst_7 : f32 to vector<1x128xf32>
    %15 = arith.addf %14, %3 : vector<1x128xf32>
    %16 = vector.broadcast %15 : vector<1x128xf32> to vector<64x128xf32>
    %17 = arith.mulf %13, %16 : vector<64x128xf32>
    %18 = arith.truncf %17 : vector<64x128xf32> to vector<64x128xbf16>
    %c0_8 = arith.constant 0 : index
    %c0_9 = arith.constant 0 : index
    %19 = vector.load %arg5[%c0_8, %c0_9] : memref<128x128xbf16, #tpu.memory_space<vmem>>, vector<128x128xbf16>
    %cst_10 = arith.constant dense<0.000000e+00> : vector<64x128xf32>
    %20 = tpu.matmul %18, %19, %cst_10 {dimension_numbers = #tpu.dot_dimension_numbers<[1], [0], [0], [1], [0, 0, 1, 1], [], []>} : vector<64x128xbf16>, vector<128x128xbf16>, vector<64x128xf32> -> vector<64x128xf32>
    %21 = arith.truncf %20 : vector<64x128xf32> to vector<64x128xbf16>
    %c0_11 = arith.constant 0 : index
    %c0_12 = arith.constant 0 : index
    %c0_13 = arith.constant 0 : index
    %22 = vector.load %arg6[%c0_11, %c0_12, %c0_13] : memref<1x64x128xbf16, #tpu.memory_space<vmem>>, vector<1x64x128xbf16>
    %23 = vector.shape_cast %22 : vector<1x64x128xbf16> to vector<64x128xbf16>
    %24 = vector.shape_cast %21 : vector<64x128xbf16> to vector<1x64x128xbf16>
    tpu.vector_store %arg6[%c0_11, %c0_12, %c0_13], %24 {strides = array<i32>} : memref<1x64x128xbf16, #tpu.memory_space<vmem>>, vector<1x64x128xbf16>,
    return
  }
  func.func @transform_0(%arg0: i32, %arg1: i32, %arg2: i32) -> (i32, i32, i32) {
    %c0_i32 = arith.constant 0 : i32
    %c0_i32_0 = arith.constant 0 : i32
    return %arg0, %arg1, %c0_i32 : i32, i32, i32
  }
  func.func @transform_1(%arg0: i32, %arg1: i32, %arg2: i32) -> (i32, i32, i32) {
    %c0_i32 = arith.constant 0 : i32
    %c0_i32_0 = arith.constant 0 : i32
    %c0_i32_1 = arith.constant 0 : i32
    return %arg0, %c0_i32, %c0_i32_0 : i32, i32, i32
  }
  func.func @transform_2(%arg0: i32, %arg1: i32, %arg2: i32) -> (i32, i32) {
    %c0_i32 = arith.constant 0 : i32
    %c0_i32_0 = arith.constant 0 : i32
    return %c0_i32, %arg2 : i32, i32
  }
  func.func @transform_3(%arg0: i32, %arg1: i32, %arg2: i32) -> (i32, i32, i32) {
    %c0_i32 = arith.constant 0 : i32
    return %arg0, %arg1, %arg2 : i32, i32, i32
  }
}

module attributes {stable_mosaic.version = 11 : i64} {
  func.func @_plain_linear_kernel(%arg0: i32, %arg1: i32, %arg2: i32, %arg3: memref<1x8x64xbf16, #tpu.memory_space<vmem>>, %arg4: memref<64x256xbf16, #tpu.memory_space<vmem>>, %arg5: memref<1x8x256xbf16, #tpu.memory_space<vmem>>) attributes {dimension_semantics = [#tpu.dimension_semantics<parallel>, #tpu.dimension_semantics<parallel>, #tpu.dimension_semantics<parallel>], iteration_bounds = array<i64: 2, 1, 1>, scalar_prefetch = 0 : i64, scratch_operands = 0 : i64, tpu.core_type = #tpu.core_type<tc>, window_params = [{transform_indices = @transform_0, window_bounds = array<i64: 1, 8, 64>}, {transform_indices = @transform_1, window_bounds = array<i64: 64, 256>}, {transform_indices = @transform_2, window_bounds = array<i64: 1, 8, 256>}]} {
    %c0 = arith.constant 0 : index
    %c0_0 = arith.constant 0 : index
    %c0_1 = arith.constant 0 : index
    %0 = vector.load %arg3[%c0, %c0_0, %c0_1] : memref<1x8x64xbf16, #tpu.memory_space<vmem>>, vector<1x8x64xbf16>
    %1 = vector.shape_cast %0 : vector<1x8x64xbf16> to vector<8x64xbf16>
    %c0_2 = arith.constant 0 : index
    %c0_3 = arith.constant 0 : index
    %2 = vector.load %arg4[%c0_2, %c0_3] : memref<64x256xbf16, #tpu.memory_space<vmem>>, vector<64x256xbf16>
    %cst = arith.constant dense<0.000000e+00> : vector<8x256xf32>
    %3 = tpu.matmul %1, %2, %cst {dimension_numbers = #tpu.dot_dimension_numbers<[1], [0], [0], [1], [0, 0, 1, 1], [], []>} : vector<8x64xbf16>, vector<64x256xbf16>, vector<8x256xf32> -> vector<8x256xf32>
    %4 = arith.truncf %3 : vector<8x256xf32> to vector<8x256xbf16>
    %c0_4 = arith.constant 0 : index
    %c0_5 = arith.constant 0 : index
    %c0_6 = arith.constant 0 : index
    %5 = vector.load %arg5[%c0_4, %c0_5, %c0_6] : memref<1x8x256xbf16, #tpu.memory_space<vmem>>, vector<1x8x256xbf16>
    %6 = vector.shape_cast %5 : vector<1x8x256xbf16> to vector<8x256xbf16>
    %7 = vector.shape_cast %4 : vector<8x256xbf16> to vector<1x8x256xbf16>
    tpu.vector_store %arg5[%c0_4, %c0_5, %c0_6], %7 {strides = array<i32>} : memref<1x8x256xbf16, #tpu.memory_space<vmem>>, vector<1x8x256xbf16>,
    return
  }
  func.func @transform_0(%arg0: i32, %arg1: i32, %arg2: i32) -> (i32, i32, i32) {
    %c0_i32 = arith.constant 0 : i32
    %c0_i32_0 = arith.constant 0 : i32
    return %arg0, %arg1, %c0_i32 : i32, i32, i32
  }
  func.func @transform_1(%arg0: i32, %arg1: i32, %arg2: i32) -> (i32, i32) {
    %c0_i32 = arith.constant 0 : i32
    %c0_i32_0 = arith.constant 0 : i32
    return %c0_i32, %arg2 : i32, i32
  }
  func.func @transform_2(%arg0: i32, %arg1: i32, %arg2: i32) -> (i32, i32, i32) {
    %c0_i32 = arith.constant 0 : i32
    return %arg0, %arg1, %arg2 : i32, i32, i32
  }
}

module attributes {stable_mosaic.version = 11 : i64} {
  func.func @_cross_attn_kernel(%arg0: i32, %arg1: memref<1x4x64x32xbf16, #tpu.memory_space<vmem>>, %arg2: memref<1x4x8x32xbf16, #tpu.memory_space<vmem>>, %arg3: memref<1x4x8x32xbf16, #tpu.memory_space<vmem>>, %arg4: memref<1x4x64x32xbf16, #tpu.memory_space<vmem>>) attributes {dimension_semantics = [#tpu.dimension_semantics<parallel>], iteration_bounds = array<i64: 2>, scalar_prefetch = 0 : i64, scratch_operands = 0 : i64, tpu.core_type = #tpu.core_type<tc>, window_params = [{transform_indices = @transform_0, window_bounds = array<i64: 1, 4, 64, 32>}, {transform_indices = @transform_1, window_bounds = array<i64: 1, 4, 8, 32>}, {transform_indices = @transform_2, window_bounds = array<i64: 1, 4, 8, 32>}, {transform_indices = @transform_3, window_bounds = array<i64: 1, 4, 64, 32>}]} {
    %c0 = arith.constant 0 : index
    %c0_0 = arith.constant 0 : index
    %c0_1 = arith.constant 0 : index
    %c0_2 = arith.constant 0 : index
    %0 = vector.load %arg1[%c0, %c0_0, %c0_1, %c0_2] : memref<1x4x64x32xbf16, #tpu.memory_space<vmem>>, vector<1x4x64x32xbf16>
    %1 = vector.shape_cast %0 : vector<1x4x64x32xbf16> to vector<4x64x32xbf16>
    %2 = arith.extf %1 : vector<4x64x32xbf16> to vector<4x64x32xf32>
    %cst = arith.constant 0.176776692 : f32
    %3 = vector.broadcast %cst : f32 to vector<4x64x32xf32>
    %4 = arith.mulf %2, %3 : vector<4x64x32xf32>
    %5 = arith.truncf %4 : vector<4x64x32xf32> to vector<4x64x32xbf16>
    %c0_3 = arith.constant 0 : index
    %c0_4 = arith.constant 0 : index
    %c0_5 = arith.constant 0 : index
    %c0_6 = arith.constant 0 : index
    %6 = vector.load %arg2[%c0_3, %c0_4, %c0_5, %c0_6] : memref<1x4x8x32xbf16, #tpu.memory_space<vmem>>, vector<1x4x8x32xbf16>
    %7 = vector.shape_cast %6 : vector<1x4x8x32xbf16> to vector<4x8x32xbf16>
    %c0_7 = arith.constant 0 : index
    %c0_8 = arith.constant 0 : index
    %c0_9 = arith.constant 0 : index
    %c0_10 = arith.constant 0 : index
    %8 = vector.load %arg3[%c0_7, %c0_8, %c0_9, %c0_10] : memref<1x4x8x32xbf16, #tpu.memory_space<vmem>>, vector<1x4x8x32xbf16>
    %9 = vector.shape_cast %8 : vector<1x4x8x32xbf16> to vector<4x8x32xbf16>
    "tpu.trace_start"() <{level = 10 : i32, message = "hqd,hkd->hqk"}> : () -> ()
    %cst_11 = arith.constant dense<0.000000e+00> : vector<4x64x8xf32>
    %10 = tpu.matmul %5, %7, %cst_11 {dimension_numbers = #tpu.dot_dimension_numbers<[2], [2], [1], [1], [0, 0, 0, 1, 1, 1], [0], [0]>} : vector<4x64x32xbf16>, vector<4x8x32xbf16>, vector<4x64x8xf32> -> vector<4x64x8xf32>
    "tpu.trace_stop"() : () -> ()
    %cst_12 = arith.constant dense<0xFF800000> : vector<4x64xf32>
    %11 = vector.multi_reduction <maximumf>, %10, %cst_12 [2] : vector<4x64x8xf32> to vector<4x64xf32>
    %12 = vector.shape_cast %11 : vector<4x64xf32> to vector<4x64x1xf32>
    %13 = vector.broadcast %12 : vector<4x64x1xf32> to vector<4x64x8xf32>
    %14 = arith.subf %10, %13 : vector<4x64x8xf32>
    %15 = math.exp %14 : vector<4x64x8xf32>
    %cst_13 = arith.constant dense<0.000000e+00> : vector<4x64xf32>
    %16 = vector.multi_reduction <add>, %15, %cst_13 [2] : vector<4x64x8xf32> to vector<4x64xf32>
    %17 = vector.shape_cast %16 : vector<4x64xf32> to vector<4x64x1xf32>
    %18 = tpu.reciprocal %17 {approx = true} : vector<4x64x1xf32> -> vector<4x64x1xf32>
    %19 = vector.broadcast %18 : vector<4x64x1xf32> to vector<4x64x8xf32>
    %20 = arith.mulf %15, %19 : vector<4x64x8xf32>
    %21 = arith.truncf %20 : vector<4x64x8xf32> to vector<4x64x8xbf16>
    "tpu.trace_start"() <{level = 10 : i32, message = "hqk,hkd->hqd"}> : () -> ()
    %cst_14 = arith.constant dense<0.000000e+00> : vector<4x64x32xf32>
    %22 = tpu.matmul %21, %9, %cst_14 {dimension_numbers = #tpu.dot_dimension_numbers<[2], [1], [1], [2], [0, 0, 0, 1, 1, 2], [0], [0]>} : vector<4x64x8xbf16>, vector<4x8x32xbf16>, vector<4x64x32xf32> -> vector<4x64x32xf32>
    "tpu.trace_stop"() : () -> ()
    %23 = arith.truncf %22 : vector<4x64x32xf32> to vector<4x64x32xbf16>
    %c0_15 = arith.constant 0 : index
    %c0_16 = arith.constant 0 : index
    %c0_17 = arith.constant 0 : index
    %c0_18 = arith.constant 0 : index
    %24 = vector.load %arg4[%c0_15, %c0_16, %c0_17, %c0_18] : memref<1x4x64x32xbf16, #tpu.memory_space<vmem>>, vector<1x4x64x32xbf16>
    %25 = vector.shape_cast %24 : vector<1x4x64x32xbf16> to vector<4x64x32xbf16>
    %26 = vector.shape_cast %23 : vector<4x64x32xbf16> to vector<1x4x64x32xbf16>
    tpu.vector_store %arg4[%c0_15, %c0_16, %c0_17, %c0_18], %26 {strides = array<i32>} : memref<1x4x64x32xbf16, #tpu.memory_space<vmem>>, vector<1x4x64x32xbf16>,
    return
  }
  func.func @transform_0(%arg0: i32) -> (i32, i32, i32, i32) {
    %c0_i32 = arith.constant 0 : i32
    %c0_i32_0 = arith.constant 0 : i32
    %c0_i32_1 = arith.constant 0 : i32
    %c0_i32_2 = arith.constant 0 : i32
    return %arg0, %c0_i32, %c0_i32_0, %c0_i32_1 : i32, i32, i32, i32
  }
  func.func @transform_1(%arg0: i32) -> (i32, i32, i32, i32) {
    %c0_i32 = arith.constant 0 : i32
    %c0_i32_0 = arith.constant 0 : i32
    %c0_i32_1 = arith.constant 0 : i32
    %c0_i32_2 = arith.constant 0 : i32
    return %arg0, %c0_i32, %c0_i32_0, %c0_i32_1 : i32, i32, i32, i32
  }
  func.func @transform_2(%arg0: i32) -> (i32, i32, i32, i32) {
    %c0_i32 = arith.constant 0 : i32
    %c0_i32_0 = arith.constant 0 : i32
    %c0_i32_1 = arith.constant 0 : i32
    %c0_i32_2 = arith.constant 0 : i32
    return %arg0, %c0_i32, %c0_i32_0, %c0_i32_1 : i32, i32, i32, i32
  }
  func.func @transform_3(%arg0: i32) -> (i32, i32, i32, i32) {
    %c0_i32 = arith.constant 0 : i32
    %c0_i32_0 = arith.constant 0 : i32
    %c0_i32_1 = arith.constant 0 : i32
    %c0_i32_2 = arith.constant 0 : i32
    return %arg0, %c0_i32, %c0_i32_0, %c0_i32_1 : i32, i32, i32, i32
  }
}

module attributes {stable_mosaic.version = 11 : i64} {
  func.func @_norm_linear_kernel(%arg0: i32, %arg1: i32, %arg2: i32, %arg3: memref<1x64x128xf32, #tpu.memory_space<vmem>>, %arg4: memref<1x1x128xf32, #tpu.memory_space<vmem>>, %arg5: memref<128x384xbf16, #tpu.memory_space<vmem>>, %arg6: memref<1x64x384xbf16, #tpu.memory_space<vmem>>) attributes {dimension_semantics = [#tpu.dimension_semantics<parallel>, #tpu.dimension_semantics<parallel>, #tpu.dimension_semantics<parallel>], iteration_bounds = array<i64: 2, 1, 2>, scalar_prefetch = 0 : i64, scratch_operands = 0 : i64, tpu.core_type = #tpu.core_type<tc>, window_params = [{transform_indices = @transform_0, window_bounds = array<i64: 1, 64, 128>}, {transform_indices = @transform_1, window_bounds = array<i64: 1, 1, 128>}, {transform_indices = @transform_2, window_bounds = array<i64: 128, 384>}, {transform_indices = @transform_3, window_bounds = array<i64: 1, 64, 384>}]} {
    %c0 = arith.constant 0 : index
    %c0_0 = arith.constant 0 : index
    %c0_1 = arith.constant 0 : index
    %0 = vector.load %arg3[%c0, %c0_0, %c0_1] : memref<1x64x128xf32, #tpu.memory_space<vmem>>, vector<1x64x128xf32>
    %1 = vector.shape_cast %0 : vector<1x64x128xf32> to vector<64x128xf32>
    %c0_2 = arith.constant 0 : index
    %c0_3 = arith.constant 0 : index
    %c0_4 = arith.constant 0 : index
    %2 = vector.load %arg4[%c0_2, %c0_3, %c0_4] : memref<1x1x128xf32, #tpu.memory_space<vmem>>, vector<1x1x128xf32>
    %3 = vector.shape_cast %2 : vector<1x1x128xf32> to vector<1x128xf32>
    %4 = arith.mulf %1, %1 : vector<64x128xf32>
    %cst = arith.constant dense<0.000000e+00> : vector<64xf32>
    %5 = vector.multi_reduction <add>, %4, %cst [1] : vector<64x128xf32> to vector<64xf32>
    %6 = vector.shape_cast %5 : vector<64xf32> to vector<64x1xf32>
    %cst_5 = arith.constant 1.280000e+02 : f32
    %7 = vector.broadcast %cst_5 : f32 to vector<64x1xf32>
    %8 = arith.divf %6, %7 : vector<64x1xf32>
    %cst_6 = arith.constant 9.99999997E-7 : f32
    %9 = vector.broadcast %cst_6 : f32 to vector<64x1xf32>
    %10 = arith.addf %8, %9 : vector<64x1xf32>
    %11 = math.rsqrt %10 : vector<64x1xf32>
    %12 = vector.broadcast %11 : vector<64x1xf32> to vector<64x128xf32>
    %13 = arith.mulf %1, %12 : vector<64x128xf32>
    %cst_7 = arith.constant 1.000000e+00 : f32
    %14 = vector.broadcast %cst_7 : f32 to vector<1x128xf32>
    %15 = arith.addf %14, %3 : vector<1x128xf32>
    %16 = vector.broadcast %15 : vector<1x128xf32> to vector<64x128xf32>
    %17 = arith.mulf %13, %16 : vector<64x128xf32>
    %18 = arith.truncf %17 : vector<64x128xf32> to vector<64x128xbf16>
    %c0_8 = arith.constant 0 : index
    %c0_9 = arith.constant 0 : index
    %19 = vector.load %arg5[%c0_8, %c0_9] : memref<128x384xbf16, #tpu.memory_space<vmem>>, vector<128x384xbf16>
    %cst_10 = arith.constant dense<0.000000e+00> : vector<64x384xf32>
    %20 = tpu.matmul %18, %19, %cst_10 {dimension_numbers = #tpu.dot_dimension_numbers<[1], [0], [0], [1], [0, 0, 1, 1], [], []>} : vector<64x128xbf16>, vector<128x384xbf16>, vector<64x384xf32> -> vector<64x384xf32>
    %21 = arith.truncf %20 : vector<64x384xf32> to vector<64x384xbf16>
    %c0_11 = arith.constant 0 : index
    %c0_12 = arith.constant 0 : index
    %c0_13 = arith.constant 0 : index
    %22 = vector.load %arg6[%c0_11, %c0_12, %c0_13] : memref<1x64x384xbf16, #tpu.memory_space<vmem>>, vector<1x64x384xbf16>
    %23 = vector.shape_cast %22 : vector<1x64x384xbf16> to vector<64x384xbf16>
    %24 = vector.shape_cast %21 : vector<64x384xbf16> to vector<1x64x384xbf16>
    tpu.vector_store %arg6[%c0_11, %c0_12, %c0_13], %24 {strides = array<i32>} : memref<1x64x384xbf16, #tpu.memory_space<vmem>>, vector<1x64x384xbf16>,
    return
  }
  func.func @transform_0(%arg0: i32, %arg1: i32, %arg2: i32) -> (i32, i32, i32) {
    %c0_i32 = arith.constant 0 : i32
    %c0_i32_0 = arith.constant 0 : i32
    return %arg0, %arg1, %c0_i32 : i32, i32, i32
  }
  func.func @transform_1(%arg0: i32, %arg1: i32, %arg2: i32) -> (i32, i32, i32) {
    %c0_i32 = arith.constant 0 : i32
    %c0_i32_0 = arith.constant 0 : i32
    %c0_i32_1 = arith.constant 0 : i32
    return %arg0, %c0_i32, %c0_i32_0 : i32, i32, i32
  }
  func.func @transform_2(%arg0: i32, %arg1: i32, %arg2: i32) -> (i32, i32) {
    %c0_i32 = arith.constant 0 : i32
    %c0_i32_0 = arith.constant 0 : i32
    return %c0_i32, %arg2 : i32, i32
  }
  func.func @transform_3(%arg0: i32, %arg1: i32, %arg2: i32) -> (i32, i32, i32) {
    %c0_i32 = arith.constant 0 : i32
    return %arg0, %arg1, %arg2 : i32, i32, i32
  }
}

module attributes {stable_mosaic.version = 11 : i64} {
  func.func @_geglu_skip_linear_kernel(%arg0: i32, %arg1: i32, %arg2: i32, %arg3: memref<1x64x768xbf16, #tpu.memory_space<vmem>>, %arg4: memref<1x64x128xf32, #tpu.memory_space<vmem>>, %arg5: memref<384x128xbf16, #tpu.memory_space<vmem>>, %arg6: memref<1x64x128xf32, #tpu.memory_space<vmem>>) attributes {dimension_semantics = [#tpu.dimension_semantics<parallel>, #tpu.dimension_semantics<parallel>, #tpu.dimension_semantics<parallel>], iteration_bounds = array<i64: 2, 1, 1>, scalar_prefetch = 0 : i64, scratch_operands = 0 : i64, tpu.core_type = #tpu.core_type<tc>, window_params = [{transform_indices = @transform_0, window_bounds = array<i64: 1, 64, 768>}, {transform_indices = @transform_1, window_bounds = array<i64: 1, 64, 128>}, {transform_indices = @transform_2, window_bounds = array<i64: 384, 128>}, {transform_indices = @transform_3, window_bounds = array<i64: 1, 64, 128>}]} {
    %c0 = arith.constant 0 : index
    %c0_0 = arith.constant 0 : index
    %c0_1 = arith.constant 0 : index
    %0 = vector.load %arg3[%c0, %c0_0, %c0_1] : memref<1x64x768xbf16, #tpu.memory_space<vmem>>, vector<1x64x768xbf16>
    %1 = vector.shape_cast %0 : vector<1x64x768xbf16> to vector<64x768xbf16>
    %2 = arith.extf %1 : vector<64x768xbf16> to vector<64x768xf32>
    %3 = vector.extract_strided_slice %2 {offsets = [0, 0], sizes = [64, 384], strides = [1, 1]} : vector<64x768xf32> to vector<64x384xf32>
    %4 = vector.extract_strided_slice %2 {offsets = [0, 384], sizes = [64, 384], strides = [1, 1]} : vector<64x768xf32> to vector<64x384xf32>
    %5 = arith.mulf %4, %4 : vector<64x384xf32>
    %6 = arith.mulf %4, %5 : vector<64x384xf32>
    %cst = arith.constant 4.471500e-02 : f32
    %7 = vector.broadcast %cst : f32 to vector<64x384xf32>
    %8 = arith.mulf %7, %6 : vector<64x384xf32>
    %9 = arith.addf %4, %8 : vector<64x384xf32>
    %cst_2 = arith.constant 0.797884583 : f32
    %10 = vector.broadcast %cst_2 : f32 to vector<64x384xf32>
    %11 = arith.mulf %10, %9 : vector<64x384xf32>
    %12 = math.tanh %11 : vector<64x384xf32>
    %cst_3 = arith.constant 1.000000e+00 : f32
    %13 = vector.broadcast %cst_3 : f32 to vector<64x384xf32>
    %14 = arith.addf %13, %12 : vector<64x384xf32>
    %cst_4 = arith.constant 5.000000e-01 : f32
    %15 = vector.broadcast %cst_4 : f32 to vector<64x384xf32>
    %16 = arith.mulf %15, %14 : vector<64x384xf32>
    %17 = arith.mulf %4, %16 : vector<64x384xf32>
    %18 = arith.mulf %3, %17 : vector<64x384xf32>
    %19 = arith.truncf %18 : vector<64x384xf32> to vector<64x384xbf16>
    %c0_5 = arith.constant 0 : index
    %c0_6 = arith.constant 0 : index
    %20 = vector.load %arg5[%c0_5, %c0_6] : memref<384x128xbf16, #tpu.memory_space<vmem>>, vector<384x128xbf16>
    %cst_7 = arith.constant dense<0.000000e+00> : vector<64x128xf32>
    %21 = tpu.matmul %19, %20, %cst_7 {dimension_numbers = #tpu.dot_dimension_numbers<[1], [0], [0], [1], [0, 0, 1, 1], [], []>} : vector<64x384xbf16>, vector<384x128xbf16>, vector<64x128xf32> -> vector<64x128xf32>
    %c0_8 = arith.constant 0 : index
    %c0_9 = arith.constant 0 : index
    %c0_10 = arith.constant 0 : index
    %22 = vector.load %arg4[%c0_8, %c0_9, %c0_10] : memref<1x64x128xf32, #tpu.memory_space<vmem>>, vector<1x64x128xf32>
    %23 = vector.shape_cast %22 : vector<1x64x128xf32> to vector<64x128xf32>
    %24 = arith.addf %23, %21 : vector<64x128xf32>
    %c0_11 = arith.constant 0 : index
    %c0_12 = arith.constant 0 : index
    %c0_13 = arith.constant 0 : index
    %25 = vector.load %arg6[%c0_11, %c0_12, %c0_13] : memref<1x64x128xf32, #tpu.memory_space<vmem>>, vector<1x64x128xf32>
    %26 = vector.shape_cast %25 : vector<1x64x128xf32> to vector<64x128xf32>
    %27 = vector.shape_cast %24 : vector<64x128xf32> to vector<1x64x128xf32>
    tpu.vector_store %arg6[%c0_11, %c0_12, %c0_13], %27 {strides = array<i32>} : memref<1x64x128xf32, #tpu.memory_space<vmem>>, vector<1x64x128xf32>,
    return
  }
  func.func @transform_0(%arg0: i32, %arg1: i32, %arg2: i32) -> (i32, i32, i32) {
    %c0_i32 = arith.constant 0 : i32
    %c0_i32_0 = arith.constant 0 : i32
    return %arg0, %arg1, %c0_i32 : i32, i32, i32
  }
  func.func @transform_1(%arg0: i32, %arg1: i32, %arg2: i32) -> (i32, i32, i32) {
    %c0_i32 = arith.constant 0 : i32
    return %arg0, %arg1, %arg2 : i32, i32, i32
  }
  func.func @transform_2(%arg0: i32, %arg1: i32, %arg2: i32) -> (i32, i32) {
    %c0_i32 = arith.constant 0 : i32
    %c0_i32_0 = arith.constant 0 : i32
    return %c0_i32, %arg2 : i32, i32
  }
  func.func @transform_3(%arg0: i32, %arg1: i32, %arg2: i32) -> (i32, i32, i32) {
    %c0_i32 = arith.constant 0 : i32
    return %arg0, %arg1, %arg2 : i32, i32, i32
  }
}

module attributes {stable_mosaic.version = 11 : i64} {
  func.func @_norm_linear_kernel(%arg0: i32, %arg1: i32, %arg2: i32, %arg3: memref<1x64x128xf32, #tpu.memory_space<vmem>>, %arg4: memref<1x1x128xf32, #tpu.memory_space<vmem>>, %arg5: memref<128x16xbf16, #tpu.memory_space<vmem>>, %arg6: memref<1x64x16xf32, #tpu.memory_space<vmem>>) attributes {dimension_semantics = [#tpu.dimension_semantics<parallel>, #tpu.dimension_semantics<parallel>, #tpu.dimension_semantics<parallel>], iteration_bounds = array<i64: 2, 1, 1>, scalar_prefetch = 0 : i64, scratch_operands = 0 : i64, tpu.core_type = #tpu.core_type<tc>, window_params = [{transform_indices = @transform_0, window_bounds = array<i64: 1, 64, 128>}, {transform_indices = @transform_1, window_bounds = array<i64: 1, 1, 128>}, {transform_indices = @transform_2, window_bounds = array<i64: 128, 16>}, {transform_indices = @transform_3, window_bounds = array<i64: 1, 64, 16>}]} {
    %c0 = arith.constant 0 : index
    %c0_0 = arith.constant 0 : index
    %c0_1 = arith.constant 0 : index
    %0 = vector.load %arg3[%c0, %c0_0, %c0_1] : memref<1x64x128xf32, #tpu.memory_space<vmem>>, vector<1x64x128xf32>
    %1 = vector.shape_cast %0 : vector<1x64x128xf32> to vector<64x128xf32>
    %c0_2 = arith.constant 0 : index
    %c0_3 = arith.constant 0 : index
    %c0_4 = arith.constant 0 : index
    %2 = vector.load %arg4[%c0_2, %c0_3, %c0_4] : memref<1x1x128xf32, #tpu.memory_space<vmem>>, vector<1x1x128xf32>
    %3 = vector.shape_cast %2 : vector<1x1x128xf32> to vector<1x128xf32>
    %4 = arith.mulf %1, %1 : vector<64x128xf32>
    %cst = arith.constant dense<0.000000e+00> : vector<64xf32>
    %5 = vector.multi_reduction <add>, %4, %cst [1] : vector<64x128xf32> to vector<64xf32>
    %6 = vector.shape_cast %5 : vector<64xf32> to vector<64x1xf32>
    %cst_5 = arith.constant 1.280000e+02 : f32
    %7 = vector.broadcast %cst_5 : f32 to vector<64x1xf32>
    %8 = arith.divf %6, %7 : vector<64x1xf32>
    %cst_6 = arith.constant 9.99999997E-7 : f32
    %9 = vector.broadcast %cst_6 : f32 to vector<64x1xf32>
    %10 = arith.addf %8, %9 : vector<64x1xf32>
    %11 = math.rsqrt %10 : vector<64x1xf32>
    %12 = vector.broadcast %11 : vector<64x1xf32> to vector<64x128xf32>
    %13 = arith.mulf %1, %12 : vector<64x128xf32>
    %cst_7 = arith.constant 1.000000e+00 : f32
    %14 = vector.broadcast %cst_7 : f32 to vector<1x128xf32>
    %15 = arith.addf %14, %3 : vector<1x128xf32>
    %16 = vector.broadcast %15 : vector<1x128xf32> to vector<64x128xf32>
    %17 = arith.mulf %13, %16 : vector<64x128xf32>
    %18 = arith.truncf %17 : vector<64x128xf32> to vector<64x128xbf16>
    %c0_8 = arith.constant 0 : index
    %c0_9 = arith.constant 0 : index
    %19 = vector.load %arg5[%c0_8, %c0_9] : memref<128x16xbf16, #tpu.memory_space<vmem>>, vector<128x16xbf16>
    %cst_10 = arith.constant dense<0.000000e+00> : vector<64x16xf32>
    %20 = tpu.matmul %18, %19, %cst_10 {dimension_numbers = #tpu.dot_dimension_numbers<[1], [0], [0], [1], [0, 0, 1, 1], [], []>} : vector<64x128xbf16>, vector<128x16xbf16>, vector<64x16xf32> -> vector<64x16xf32>
    %c0_11 = arith.constant 0 : index
    %c0_12 = arith.constant 0 : index
    %c0_13 = arith.constant 0 : index
    %21 = vector.load %arg6[%c0_11, %c0_12, %c0_13] : memref<1x64x16xf32, #tpu.memory_space<vmem>>, vector<1x64x16xf32>
    %22 = vector.shape_cast %21 : vector<1x64x16xf32> to vector<64x16xf32>
    %23 = vector.shape_cast %20 : vector<64x16xf32> to vector<1x64x16xf32>
    tpu.vector_store %arg6[%c0_11, %c0_12, %c0_13], %23 {strides = array<i32>} : memref<1x64x16xf32, #tpu.memory_space<vmem>>, vector<1x64x16xf32>,
    return
  }
  func.func @transform_0(%arg0: i32, %arg1: i32, %arg2: i32) -> (i32, i32, i32) {
    %c0_i32 = arith.constant 0 : i32
    %c0_i32_0 = arith.constant 0 : i32
    return %arg0, %arg1, %c0_i32 : i32, i32, i32
  }
  func.func @transform_1(%arg0: i32, %arg1: i32, %arg2: i32) -> (i32, i32, i32) {
    %c0_i32 = arith.constant 0 : i32
    %c0_i32_0 = arith.constant 0 : i32
    %c0_i32_1 = arith.constant 0 : i32
    return %arg0, %c0_i32, %c0_i32_0 : i32, i32, i32
  }
  func.func @transform_2(%arg0: i32, %arg1: i32, %arg2: i32) -> (i32, i32) {
    %c0_i32 = arith.constant 0 : i32
    %c0_i32_0 = arith.constant 0 : i32
    return %c0_i32, %arg2 : i32, i32
  }
  func.func @transform_3(%arg0: i32, %arg1: i32, %arg2: i32) -> (i32, i32, i32) {
    %c0_i32 = arith.constant 0 : i32
    return %arg0, %arg1, %arg2 : i32, i32, i32
  }
}

</mosaic_0001>

<llo_original>
// kernel: ca_transformer_forward.22
$region0: #{ca_transformer_forward.22}
  #allocation0 [shape = 'u32[]', space=smem, size = 0x4, offset = 0x4, fixed_abs, tag = 'smem constant byte address 0x4 - core index']
  #allocation1 [shape = 'u32[72,128]{1,0:T(1,128)}', space=vmem, size = 0x9000, scoped, tag = 'internal scratch']
  %s0 = inlined_call_operand.vmem [shape: bf16[2,1,64], index: 0, kind: input, shape index: {}]
  %s1 = inlined_call_operand.vmem [shape: bf16[64,768], index: 1, kind: input, shape index: {}]
  %s2 = inlined_call_operand.vmem [shape: f32[2,1,768], index: 2, kind: output, shape index: {}]
  %s3 = sld [smem:[#allocation0]]
  $region67: #{ca_transformer_forward.22} parent=0
    _
  %s5 = ssub.s32 1, %s3
  %s6 = scalar_select 0, %s5, %s3
  $region1: #{ca_transformer_forward.22} parent=0
    #allocation2 [shape = 'u8[98304]{0}', space=vmem, size = 0x18000, scoped, tag = 'input window, operand 1']
    loop: start=0, step=1, limit=6
    $region2: #{ca_transformer_forward.22} parent=1 // loop_pre_header
      _
    $region3: #{ca_transformer_forward.22} parent=1 // loop_header
      %s8 = sphi 0, %s12
      %p9 = scmp.ge.s32.totalorder %s8, 6
      %s15 = sphi 0, %s34
      %s16 = sphi 0, %s30
      %s17 = sphi 0, %s26
      %s18 = sphi 0, %s15
      %s19 = sphi 0, %s16
      %s20 = sphi 0, %s17
      %s21 = sphi 0, %s18
      %s22 = sphi 0, %s19
      %s23 = sphi 0, %s20
      %s39 = sphi 0, %s41
      %s42 = sphi 0, %s39
      %s43 = sphi 0, %s42
      %s59 = sphi 0, %s43
      %s65 = sphi 0, %s67
      %s68 = sphi 0, %s65
      %s69 = sphi 0, %s68
      %s85 = sphi 0, %s69
      %s95 = sphi 0, %s97
      %s98 = sphi 0, %s95
      %s99 = sphi 0, %s98
      %s115 = sphi 0, %s99
    $region4: #{ca_transformer_forward.22} parent=1 // loop_header_branch
      %11 = sbr.rel (%p9) target = $region8
    $region5: #{ca_transformer_forward.22} parent=1 // loop_body
      %s13 = ssub.s32 %s8, 1
      %s14 = ssub.s32 %s8, 2
      %s24 = sadd.s32 1, %s17
      %p25 = scmp.ge.s32.totalorder %s24, 2
      %s26 = scalar_select %p25, 0, %s24
      %s27 = sadd.s32 1, %s16
      %s28 = scalar_select %p25, %s27, %s16
      %p29 = scmp.ge.s32.totalorder %s28, 1
      %s30 = scalar_select %p29, 0, %s28
      %s31 = sadd.s32 1, %s15
      %s32 = scalar_select %p29, %s31, %s15
      %p33 = scmp.ge.s32.totalorder %s32, 2
      %s34 = scalar_select %p33, 0, %s32
      %s35 = ssub.s32 %s15, %s34
      %s36 = ssub.s32 %s16, %s30
      %s37 = sor.u32 %s35, %s36
      %p38 = scmp.eq.s32.totalorder %s37, 0
      %s40 = sadd.s32 %s39, 1
      %s41 = scalar_select %p38, %s39, %s40
      %p44 = pneg %p38
      %p45 = scmp.eq.s32.totalorder %s8, 3
      %p46 = por %p44, %p45
      %p47 = scmp.ne.s32.totalorder %s39, %s42
      %p48 = scmp.eq.s32.totalorder %s8, 0
      %p49 = por %p47, %p48
      %p50 = scmp.ne.s32.totalorder %s39, %s42
      %p51 = scmp.eq.s32.totalorder %s13, 3
      %p52 = por %p50, %p51
      %p53 = scmp.ne.s32.totalorder %s42, %s43
      %p54 = scmp.eq.s32.totalorder %s13, 0
      %p55 = por %p53, %p54
      %p56 = scmp.ne.s32.totalorder %s42, %s43
      %p57 = scmp.eq.s32.totalorder %s14, 3
      %p58 = por %p56, %p57
      %p60 = scmp.ne.s32.totalorder %s43, %s59
      %p61 = scmp.eq.s32.totalorder %s14, 0
      %p62 = por %p60, %p61
      %s63 = ssub.s32 %s17, %s26
      %p64 = scmp.eq.s32.totalorder %s63, 0
      %s66 = sadd.s32 %s65, 1
      %s67 = scalar_select %p64, %s65, %s66
      %p70 = pneg %p64
      %p71 = scmp.eq.s32.totalorder %s8, 3
      %p72 = por %p70, %p71
      %p73 = scmp.ne.s32.totalorder %s65, %s68
      %p74 = scmp.eq.s32.totalorder %s8, 0
      %p75 = por %p73, %p74
      %p76 = scmp.ne.s32.totalorder %s65, %s68
      %p77 = scmp.eq.s32.totalorder %s13, 3
      %p78 = por %p76, %p77
      %p79 = scmp.ne.s32.totalorder %s68, %s69
      %p80 = scmp.eq.s32.totalorder %s13, 0
      %p81 = por %p79, %p80
      %p82 = scmp.ne.s32.totalorder %s68, %s69
      %p83 = scmp.eq.s32.totalorder %s14, 3
      %p84 = por %p82, %p83
      %p86 = scmp.ne.s32.totalorder %s69, %s85
      %p87 = scmp.eq.s32.totalorder %s14, 0
      %p88 = por %p86, %p87
      %s89 = ssub.s32 %s15, %s34
      %s90 = ssub.s32 %s16, %s30
      %s91 = sor.u32 %s89, %s90
      %s92 = ssub.s32 %s17, %s26
      %s93 = sor.u32 %s91, %s92
      %p94 = scmp.eq.s32.totalorder %s93, 0
      %s96 = sadd.s32 %s95, 1
      %s97 = scalar_select %p94, %s95, %s96
      %p100 = pneg %p94
      %p101 = scmp.eq.s32.totalorder %s8, 3
      %p102 = por %p100, %p101
      %p103 = scmp.ne.s32.totalorder %s95, %s98
      %p104 = scmp.eq.s32.totalorder %s8, 0
      %p105 = por %p103, %p104
      %p106 = scmp.ne.s32.totalorder %s95, %s98
      %p107 = scmp.eq.s32.totalorder %s13, 3
      %p108 = por %p106, %p107
      %p109 = scmp.ne.s32.totalorder %s98, %s99
      %p110 = scmp.eq.s32.totalorder %s13, 0
      %p111 = por %p109, %p110
      %p112 = scmp.ne.s32.totalorder %s98, %s99
      %p113 = scmp.eq.s32.totalorder %s14, 3
      %p114 = por %p112, %p113
      %p116 = scmp.ne.s32.totalorder %s99, %s115
      %p117 = scmp.eq.s32.totalorder %s14, 0
      %p118 = por %p116, %p117
      %p119 = scmp.le.s32.totalorder 1, %s8
      %p120 = scmp.lt.s32.totalorder %s8, 5
      %p121 = pnand %p119, %p120
      %p122 = pneg %p121
      // Predicated region
      $region9: #{ca_transformer_forward.22} parent=5 // pred_check
        _
      $region10: #{ca_transformer_forward.22} parent=5 // pred_check_branch
        %124 = sbr.rel (%p121) target = $region12
      $region11: #{ca_transformer_forward.22} parent=5 // pred_region
        %s125 = ssub.s32 %s8, 1
      $region12: #{ca_transformer_forward.22} parent=5 // pred_fallthru
        _
      %p126 = scmp.lt.s32.totalorder %s8, 4
      // Predicated region
      $region13: #{ca_transformer_forward.22} parent=5 // pred_check
        %p127 = pneg %p126
      $region14: #{ca_transformer_forward.22} parent=5 // pred_check_branch
        %129 = sbr.rel (%p127) target = $region16
      $region15: #{ca_transformer_forward.22} parent=5 // pred_region
        // Predicated region
        $region17: #{ca_transformer_forward.22} parent=15 // pred_check
          %p130 = pneg %p49
        $region18: #{ca_transformer_forward.22} parent=15 // pred_check_branch
          %132 = sbr.rel (%p130) target = $region20
        $region19: #{ca_transformer_forward.22} parent=15 // pred_region
          %p133 = scmp.lt.s32.totalorder %s15, 1
          %s134 = scalar_select %p133, %s15, 1
          %p135 = scmp.lt.s32.totalorder %s16, 0
          %s136 = scalar_select %p135, %s16, 0
          %s137 = sadd.s32 %s136, %s134
          %s138 = scalar_lea.vmem %s0, %s137
        $region20: #{ca_transformer_forward.22} parent=15 // pred_fallthru
          _
        // Predicated region
        $region21: #{ca_transformer_forward.22} parent=15 // pred_check
          %p139 = pneg %p75
        $region22: #{ca_transformer_forward.22} parent=15 // pred_check_branch
          %141 = sbr.rel (%p139) target = $region24
        $region23: #{ca_transformer_forward.22} parent=15 // pred_region
          %s142 = sand.u32 %s65, 1
          %s143 = sand.u32 %s65, 1
          %s144 = smul.addr %s143, 96
          %s145 = scalar_lea.vmem [#allocation2], %s144
          %s146 = smul.u32 3, %s17
          %s147 = smul.addr %s146, 4
          %s148 = scalar_lea.vmem %s1, %s147
          // Predicated region
          $region25: #{ca_transformer_forward.22} parent=23 // pred_check
            _
          $region26: #{ca_transformer_forward.22} parent=23 // pred_check_branch
            %150 = sbr.rel (0) target = $region28
          $region27: #{ca_transformer_forward.22} parent=23 // pred_region
            // Predicated region
            $region29: #{ca_transformer_forward.22} parent=27 // pred_check
              _
            $region30: #{ca_transformer_forward.22} parent=27 // pred_check_branch
              %152 = sbr.rel (0) target = $region32
            $region31: #{ca_transformer_forward.22} parent=27 // pred_region
              %s153 = scalar_lea.vmem %s148, 8
              %s154 = scalar_lea.vmem %s145, 8 [#allocation2]
              loop: start=0, step=1, limit=1
              $region33: #{ca_transformer_forward.22} parent=31 // loop_pre_header
                _
              $region34: #{ca_transformer_forward.22} parent=31 // loop_header
                %s156 = sphi 0, %s160
                %p157 = scmp.ge.s32.totalorder %s156, 1
                %s161 = sphi %s148, %s148
                %s162 = sphi %s145, %s145
              $region35: #{ca_transformer_forward.22} parent=31 // loop_header_branch
                %159 = sbr.rel (%p157) target = $region39
              $region36: #{ca_transformer_forward.22} parent=31 // loop_body
                %v163 = vld [vmem:[%s161] sm:$0xff]
                %164 = vst [vmem:[%s162] sm:$0xff] %v163
                %v165 = vld [vmem:[%s161 + $0x18] sm:$0xff]
                %166 = vst [vmem:[%s162 + $0xc] sm:$0xff] %v165
                %v167 = vld [vmem:[%s161 + $0x30] sm:$0xff]
                %168 = vst [vmem:[%s162 + $0x18] sm:$0xff] %v167
                %v169 = vld [vmem:[%s161 + $0x48] sm:$0xff]
                %170 = vst [vmem:[%s162 + $0x24] sm:$0xff] %v169
                %v171 = vld [vmem:[%s161 + $0x60] sm:$0xff]
                %172 = vst [vmem:[%s162 + $0x30] sm:$0xff] %v171
                %v173 = vld [vmem:[%s161 + $0x78] sm:$0xff]
                %174 = vst [vmem:[%s162 + $0x3c] sm:$0xff] %v173
                %v175 = vld [vmem:[%s161 + $0x90] sm:$0xff]
                %176 = vst [vmem:[%s162 + $0x48] sm:$0xff] %v175
                %v177 = vld [vmem:[%s161 + $0xa8] sm:$0xff]
                %178 = vst [vmem:[%s162 + $0x54] sm:$0xff] %v177
              $region37: #{ca_transformer_forward.22} parent=31 // loop_footer
                %s160 = sadd.s32 1, %s156
              $region38: #{ca_transformer_forward.22} parent=31 // loop_footer_branch
                %155 = sbr.rel target = $region34
              $region39: #{ca_transformer_forward.22} parent=31 // loop_exit
                _
              %s180 = ssub.s32 16, 1
              loop: start=0, step=1, limit=1
              $region40: #{ca_transformer_forward.22} parent=31 // loop_pre_header
                _
              $region41: #{ca_transformer_forward.22} parent=31 // loop_header
                %s182 = sphi 0, %s186
                %p183 = scmp.ge.s32.totalorder %s182, 1
                %s187 = sphi %s153, %s153
                %s188 = sphi %s154, %s154
              $region42: #{ca_transformer_forward.22} parent=31 // loop_header_branch
                %185 = sbr.rel (%p183) target = $region46
              $region43: #{ca_transformer_forward.22} parent=31 // loop_body
                %v189 = vld [vmem:[%s187] sm:%s180]
                %190 = vst [vmem:[%s188] sm:%s180] %v189
                %v191 = vld [vmem:[%s187 + $0x18] sm:%s180]
                %192 = vst [vmem:[%s188 + $0xc] sm:%s180] %v191
                %v193 = vld [vmem:[%s187 + $0x30] sm:%s180]
                %194 = vst [vmem:[%s188 + $0x18] sm:%s180] %v193
                %v195 = vld [vmem:[%s187 + $0x48] sm:%s180]
                %196 = vst [vmem:[%s188 + $0x24] sm:%s180] %v195
                %v197 = vld [vmem:[%s187 + $0x60] sm:%s180]
                %198 = vst [vmem:[%s188 + $0x30] sm:%s180] %v197
                %v199 = vld [vmem:[%s187 + $0x78] sm:%s180]
                %200 = vst [vmem:[%s188 + $0x3c] sm:%s180] %v199
                %v201 = vld [vmem:[%s187 + $0x90] sm:%s180]
                %202 = vst [vmem:[%s188 + $0x48] sm:%s180] %v201
                %v203 = vld [vmem:[%s187 + $0xa8] sm:%s180]
                %204 = vst [vmem:[%s188 + $0x54] sm:%s180] %v203
              $region44: #{ca_transformer_forward.22} parent=31 // loop_footer
                %s186 = sadd.s32 1, %s182
              $region45: #{ca_transformer_forward.22} parent=31 // loop_footer_branch
                %181 = sbr.rel target = $region41
              $region46: #{ca_transformer_forward.22} parent=31 // loop_exit
                _
            $region32: #{ca_transformer_forward.22} parent=27 // pred_fallthru
              _
          $region28: #{ca_transformer_forward.22} parent=23 // pred_fallthru
            _
          %205 = vnop
        $region24: #{ca_transformer_forward.22} parent=15 // pred_fallthru
          _
      $region16: #{ca_transformer_forward.22} parent=5 // pred_fallthru
        _
      %p206 = scmp.le.s32.totalorder 1, %s8
      %p207 = scmp.lt.s32.totalorder %s8, 5
      %p208 = pnand %p206, %p207
      %p209 = pneg %p208
      // Predicated region
      $region47: #{ca_transformer_forward.22} parent=5 // pred_check
        _
      $region48: #{ca_transformer_forward.22} parent=5 // pred_check_branch
        %211 = sbr.rel (%p208) target = $region50
      $region49: #{ca_transformer_forward.22} parent=5 // pred_region
        %s212 = ssub.s32 %s8, 1
        %s213 = sand.u32 %s68, 1
        %s214 = sand.u32 %s68, 1
        %s215 = smul.addr %s214, 96
        %s216 = scalar_lea.vmem [#allocation2], %s215
        // Predicated region
        $region51: #{ca_transformer_forward.22} parent=49 // pred_check
          %p217 = pneg %p81
        $region52: #{ca_transformer_forward.22} parent=49 // pred_check_branch
          %219 = sbr.rel (%p217) target = $region54
        $region53: #{ca_transformer_forward.22} parent=49 // pred_region
          _
        $region54: #{ca_transformer_forward.22} parent=49 // pred_fallthru
          _
        %p220 = scmp.lt.s32.totalorder %s18, 1
        %s221 = scalar_select %p220, %s18, 1
        %p222 = scmp.lt.s32.totalorder %s19, 0
        %s223 = scalar_select %p222, %s19, 0
        %s224 = sadd.s32 %s223, %s221
        %s225 = scalar_lea.vmem %s0, %s224
        %p226 = pneg %p55
        %p227 = pneg %p52
        %s228 = sand.u32 %s68, 1
        %s229 = sand.u32 %s68, 1
        %s230 = smul.addr %s229, 96
        %s231 = scalar_lea.vmem [#allocation2], %s230
        %p232 = pneg %p81
        %p233 = pneg %p78
        %p234 = pneg %p111
        %p235 = pneg %p108
        %s236 = smul.u32 3, %s20
        %p237 = scmp.lt.s32.totalorder %s18, 1
        %s238 = scalar_select %p237, %s18, 1
        %p239 = scmp.lt.s32.totalorder %s19, 0
        %s240 = scalar_select %p239, %s19, 0
        %p241 = scmp.lt.s32.totalorder %s236, 5
        %s242 = scalar_select %p241, %s236, 5
        %s243 = smul.addr %s240, 6
        %s244 = sadd.s32 %s242, %s243
        %s245 = smul.addr %s238, 6
        %s246 = sadd.s32 %s244, %s245
        %s247 = scalar_lea.vmem %s2, %s246
        %p248 = scmp.lt.s32.totalorder %s18, 1
        %s249 = scalar_select %p248, %s18, 1
        %p250 = scmp.lt.s32.totalorder %s19, 0
        %s251 = scalar_select %p250, %s19, 0
        %s252 = sadd.s32 %s251, %s249
        %s253 = scalar_lea.vmem %s0, %s252
        %s254 = smul.u32 3, %s20
        %s255 = smul.u32 3, %s20
        %p256 = scmp.lt.s32.totalorder %s18, 1
        %s257 = scalar_select %p256, %s18, 1
        %p258 = scmp.lt.s32.totalorder %s19, 0
        %s259 = scalar_select %p258, %s19, 0
        %p260 = scmp.lt.s32.totalorder %s255, 5
        %s261 = scalar_select %p260, %s255, 5
        %s262 = smul.addr %s259, 6
        %s263 = sadd.s32 %s261, %s262
        %s264 = smul.addr %s257, 6
        %s265 = sadd.s32 %s263, %s264
        %s266 = scalar_lea.vmem %s2, %s265
        %s267 = smul.u32 3, %s20
        %v269 = vld [vmem:[%s253] sm:$0x1]
        %v270 = vld [vmem:[%s216] sm:$0xff]
        %v271 = vld [vmem:[%s216 + $0x8] sm:$0xf]
        %v272 = vld [vmem:[%s216 + $0xc] sm:$0xff]
        %v273 = vld [vmem:[%s216 + $0x14] sm:$0xf]
        %v274 = vld [vmem:[%s216 + $0x18] sm:$0xff]
        %v275 = vld [vmem:[%s216 + $0x20] sm:$0xf]
        %v276 = vld [vmem:[%s216 + $0x24] sm:$0xff]
        %v277 = vld [vmem:[%s216 + $0x2c] sm:$0xf]
        %v278 = vld [vmem:[%s216 + $0x30] sm:$0xff]
        %v279 = vld [vmem:[%s216 + $0x38] sm:$0xf]
        %v280 = vld [vmem:[%s216 + $0x3c] sm:$0xff]
        %v281 = vld [vmem:[%s216 + $0x44] sm:$0xf]
        %v282 = vld [vmem:[%s216 + $0x48] sm:$0xff]
        %v283 = vld [vmem:[%s216 + $0x50] sm:$0xf]
        %v284 = vld [vmem:[%s216 + $0x54] sm:$0xff]
        %v285 = vld [vmem:[%s216 + $0x5c] sm:$0xf]
        %v302 = vunpack.c.l.b16 %v270
        %v303 = vunpack.c.h.b16 %v270
        %v304 = vunpack.c.l.b16 %v271
        %v305 = vunpack.c.l.b16 %v272
        %v306 = vunpack.c.h.b16 %v272
        %v307 = vunpack.c.l.b16 %v273
        %v308 = vunpack.c.l.b16 %v274
        %v309 = vunpack.c.h.b16 %v274
        %v310 = vunpack.c.l.b16 %v275
        %v311 = vunpack.c.l.b16 %v276
        %v312 = vunpack.c.h.b16 %v276
        %v313 = vunpack.c.l.b16 %v277
        %v314 = vunpack.c.l.b16 %v278
        %v315 = vunpack.c.h.b16 %v278
        %v316 = vunpack.c.l.b16 %v279
        %v317 = vunpack.c.l.b16 %v280
        %v318 = vunpack.c.h.b16 %v280
        %v319 = vunpack.c.l.b16 %v281
        %v320 = vunpack.c.l.b16 %v282
        %v321 = vunpack.c.h.b16 %v282
        %v322 = vunpack.c.l.b16 %v283
        %v323 = vunpack.c.l.b16 %v284
        %v324 = vunpack.c.h.b16 %v284
        %v325 = vunpack.c.l.b16 %v285
        %v326 = vpack.c.b16 %v305, %v302
        %v327 = vpack.c.b16 %v306, %v303
        %v328 = vpack.c.b16 %v307, %v304
        %v329 = vpack.c.b16 %v311, %v308
        %v330 = vpack.c.b16 %v312, %v309
        %v331 = vpack.c.b16 %v313, %v310
        %v332 = vpack.c.b16 %v317, %v314
        %v333 = vpack.c.b16 %v318, %v315
        %v334 = vpack.c.b16 %v319, %v316
        %v335 = vpack.c.b16 %v323, %v320
        %v336 = vpack.c.b16 %v324, %v321
        %v337 = vpack.c.b16 %v325, %v322
        %vm350 = vcmask 523264
        %v352 = vsel %vm350, %v269, 0
        %354 = vmatpush.bf16.msra.mxu0 0
        %355 = vmatpush.bf16.msra.mxu0 0
        %356 = vmatpush.bf16.msra.mxu0 0
        %357 = vmatpush.bf16.msra.mxu0 0
        %358 = vmatpush.bf16.msra.mxu0 %v335
        %359 = vmatpush.bf16.msra.mxu0 %v332
        %360 = vmatpush.bf16.msra.mxu0 %v329
        %361 = vmatpush.bf16.msra.mxu0 %v326
        %362 = vmatmul.bf16.gmra.mxu0 %v352
        %v363 = vpop.f32.mrf.mxu0
        %v364 = vadd.f32 0.0, %v363
        %v365 = vpop.f32.mrf.mxu0
        %366 = vdwg.mxu0
        %367 = vmatpush.bf16.msra.mxu0 0
        %368 = vmatpush.bf16.msra.mxu0 0
        %369 = vmatpush.bf16.msra.mxu0 0
        %370 = vmatpush.bf16.msra.mxu0 0
        %371 = vmatpush.bf16.msra.mxu0 %v336
        %372 = vmatpush.bf16.msra.mxu0 %v333
        %373 = vmatpush.bf16.msra.mxu0 %v330
        %374 = vmatpush.bf16.msra.mxu0 %v327
        %375 = vmatmul.bf16.gmra.mxu0 %v352
        %v376 = vpop.f32.mrf.mxu0
        %v377 = vadd.f32 0.0, %v376
        %v378 = vpop.f32.mrf.mxu0
        %379 = vdwg.mxu0
        %380 = vmatpush.bf16.msra.mxu0 0
        %381 = vmatpush.bf16.msra.mxu0 0
        %382 = vmatpush.bf16.msra.mxu0 0
        %383 = vmatpush.bf16.msra.mxu0 0
        %384 = vmatpush.bf16.msra.mxu0 %v337
        %385 = vmatpush.bf16.msra.mxu0 %v334
        %386 = vmatpush.bf16.msra.mxu0 %v331
        %387 = vmatpush.bf16.msra.mxu0 %v328
        %388 = vmatmul.bf16.gmra.mxu0 %v352
        %v389 = vpop.f32.mrf.mxu0
        %v390 = vadd.f32 0.0, %v389
        %v391 = vpop.f32.mrf.mxu0
        %392 = vdwg.mxu0
        %v396 = vrot.slane %v377, 7
        %v397 = vrot.slane %v390, 6
        %vm398 = vcmask 1040384
        %v399 = vsel %vm398, %v364, %v396
        %vm400 = vcmask 1041408
        %v401 = vsel %vm400, %v399, %v397
        %v403 = vlaneseq
        %vm404 = vcmp.ge.s32.totalorder %v403, 0
        %vm405 = vcmp.lt.s32.totalorder %v403, 384
        %vm406 = vmand %vm404, %vm405
        %407 = vst.msk [vmem:[%s266] sm:$0x7] %vm406, %v401
        %s408 = smul.u32 3, %s20
        %p409 = scmp.lt.s32.totalorder %s18, 1
        %s410 = scalar_select %p409, %s18, 1
        %p411 = scmp.lt.s32.totalorder %s19, 0
        %s412 = scalar_select %p411, %s19, 0
        %p413 = scmp.lt.s32.totalorder %s408, 5
        %s414 = scalar_select %p413, %s408, 5
        %s415 = smul.addr %s412, 6
        %s416 = sadd.s32 %s414, %s415
        %s417 = smul.addr %s410, 6
        %s418 = sadd.s32 %s416, %s417
        %s419 = scalar_lea.vmem %s2, %s418
        // Predicated region
        $region55: #{ca_transformer_forward.22} parent=49 // pred_check
          %p420 = pneg %p108
        $region56: #{ca_transformer_forward.22} parent=49 // pred_check_branch
          %422 = sbr.rel (%p420) target = $region58
        $region57: #{ca_transformer_forward.22} parent=49 // pred_region
          %s423 = smul.u32 3, %s20
        $region58: #{ca_transformer_forward.22} parent=49 // pred_fallthru
          _
      $region50: #{ca_transformer_forward.22} parent=5 // pred_fallthru
        _
      %p424 = scmp.le.s32.totalorder 2, %s8
      // Predicated region
      $region59: #{ca_transformer_forward.22} parent=5 // pred_check
        %p425 = pneg %p424
      $region60: #{ca_transformer_forward.22} parent=5 // pred_check_branch
        %427 = sbr.rel (%p425) target = $region62
      $region61: #{ca_transformer_forward.22} parent=5 // pred_region
        %s428 = ssub.s32 %s8, 2
        // Predicated region
        $region63: #{ca_transformer_forward.22} parent=61 // pred_check
          %p429 = pneg %p114
        $region64: #{ca_transformer_forward.22} parent=61 // pred_check_branch
          %431 = sbr.rel (%p429) target = $region66
        $region65: #{ca_transformer_forward.22} parent=61 // pred_region
          %s432 = smul.u32 3, %s23
          %p433 = scmp.lt.s32.totalorder %s21, 1
          %s434 = scalar_select %p433, %s21, 1
          %p435 = scmp.lt.s32.totalorder %s22, 0
          %s436 = scalar_select %p435, %s22, 0
          %p437 = scmp.lt.s32.totalorder %s432, 5
          %s438 = scalar_select %p437, %s432, 5
          %s439 = smul.addr %s436, 6
          %s440 = sadd.s32 %s438, %s439
          %s441 = smul.addr %s434, 6
          %s442 = sadd.s32 %s440, %s441
          %s443 = scalar_lea.vmem %s2, %s442
        $region66: #{ca_transformer_forward.22} parent=61 // pred_fallthru
          _
      $region62: #{ca_transformer_forward.22} parent=5 // pred_fallthru
        _
    $region6: #{ca_transformer_forward.22} parent=1 // loop_footer
      %s12 = sadd.s32 1, %s8
    $region7: #{ca_transformer_forward.22} parent=1 // loop_footer_branch
      %7 = sbr.rel target = $region3
    $region8: #{ca_transformer_forward.22} parent=1 // loop_exit
      _

// kernel: ca_transformer_forward.21
$region0: #{ca_transformer_forward.21}
  #allocation0 [shape = 'u32[]', space=smem, size = 0x4, offset = 0x4, fixed_abs, tag = 'smem constant byte address 0x4 - core index']
  #allocation1 [shape = 'u32[72,128]{1,0:T(1,128)}', space=vmem, size = 0x9000, scoped, tag = 'internal scratch']
  %s0 = inlined_call_operand.vmem [shape: bf16[2,64,16], index: 0, kind: input, shape index: {}]
  %s1 = inlined_call_operand.vmem [shape: bf16[16,128], index: 1, kind: input, shape index: {}]
  %s2 = inlined_call_operand.vmem [shape: f32[2,64,128], index: 2, kind: output, shape index: {}]
  %s3 = sld [smem:[#allocation0]]
  $region41: #{ca_transformer_forward.21} parent=0
    _
  %s5 = ssub.s32 1, %s3
  %s6 = scalar_select 0, %s5, %s3
  loop: start=0, step=1, limit=4
  $region2: #{ca_transformer_forward.21} parent=0 // loop_pre_header
    _
  $region3: #{ca_transformer_forward.21} parent=0 // loop_header
    %s8 = sphi 0, %s12
    %p9 = scmp.ge.s32.totalorder %s8, 4
    %s15 = sphi 0, %s34
    %s16 = sphi 0, %s30
    %s17 = sphi 0, %s26
    %s18 = sphi 0, %s15
    %s19 = sphi 0, %s16
    %s20 = sphi 0, %s17
    %s21 = sphi 0, %s18
    %s22 = sphi 0, %s19
    %s23 = sphi 0, %s20
    %s39 = sphi 0, %s41
    %s42 = sphi 0, %s39
    %s43 = sphi 0, %s42
    %s59 = sphi 0, %s43
    %s65 = sphi 0, %s67
    %s68 = sphi 0, %s65
    %s69 = sphi 0, %s68
    %s85 = sphi 0, %s69
    %s95 = sphi 0, %s97
    %s98 = sphi 0, %s95
    %s99 = sphi 0, %s98
    %s115 = sphi 0, %s99
  $region4: #{ca_transformer_forward.21} parent=0 // loop_header_branch
    %11 = sbr.rel (%p9) target = $region8
  $region5: #{ca_transformer_forward.21} parent=0 // loop_body
    %s13 = ssub.s32 %s8, 1
    %s14 = ssub.s32 %s8, 2
    %s24 = sadd.s32 1, %s17
    %p25 = scmp.ge.s32.totalorder %s24, 1
    %s26 = scalar_select %p25, 0, %s24
    %s27 = sadd.s32 1, %s16
    %s28 = scalar_select %p25, %s27, %s16
    %p29 = scmp.ge.s32.totalorder %s28, 1
    %s30 = scalar_select %p29, 0, %s28
    %s31 = sadd.s32 1, %s15
    %s32 = scalar_select %p29, %s31, %s15
    %p33 = scmp.ge.s32.totalorder %s32, 2
    %s34 = scalar_select %p33, 0, %s32
    %s35 = ssub.s32 %s15, %s34
    %s36 = ssub.s32 %s16, %s30
    %s37 = sor.u32 %s35, %s36
    %p38 = scmp.eq.s32.totalorder %s37, 0
    %s40 = sadd.s32 %s39, 1
    %s41 = scalar_select %p38, %s39, %s40
    %p44 = pneg %p38
    %p45 = scmp.eq.s32.totalorder %s8, 1
    %p46 = por %p44, %p45
    %p47 = scmp.ne.s32.totalorder %s39, %s42
    %p48 = scmp.eq.s32.totalorder %s8, 0
    %p49 = por %p47, %p48
    %p50 = scmp.ne.s32.totalorder %s39, %s42
    %p51 = scmp.eq.s32.totalorder %s13, 1
    %p52 = por %p50, %p51
    %p53 = scmp.ne.s32.totalorder %s42, %s43
    %p54 = scmp.eq.s32.totalorder %s13, 0
    %p55 = por %p53, %p54
    %p56 = scmp.ne.s32.totalorder %s42, %s43
    %p57 = scmp.eq.s32.totalorder %s14, 1
    %p58 = por %p56, %p57
    %p60 = scmp.ne.s32.totalorder %s43, %s59
    %p61 = scmp.eq.s32.totalorder %s14, 0
    %p62 = por %p60, %p61
    %s63 = ssub.s32 %s17, %s26
    %p64 = scmp.eq.s32.totalorder %s63, 0
    %s66 = sadd.s32 %s65, 1
    %s67 = scalar_select %p64, %s65, %s66
    %p70 = pneg %p64
    %p71 = scmp.eq.s32.totalorder %s8, 1
    %p72 = por %p70, %p71
    %p73 = scmp.ne.s32.totalorder %s65, %s68
    %p74 = scmp.eq.s32.totalorder %s8, 0
    %p75 = por %p73, %p74
    %p76 = scmp.ne.s32.totalorder %s65, %s68
    %p77 = scmp.eq.s32.totalorder %s13, 1
    %p78 = por %p76, %p77
    %p79 = scmp.ne.s32.totalorder %s68, %s69
    %p80 = scmp.eq.s32.totalorder %s13, 0
    %p81 = por %p79, %p80
    %p82 = scmp.ne.s32.totalorder %s68, %s69
    %p83 = scmp.eq.s32.totalorder %s14, 1
    %p84 = por %p82, %p83
    %p86 = scmp.ne.s32.totalorder %s69, %s85
    %p87 = scmp.eq.s32.totalorder %s14, 0
    %p88 = por %p86, %p87
    %s89 = ssub.s32 %s15, %s34
    %s90 = ssub.s32 %s16, %s30
    %s91 = sor.u32 %s89, %s90
    %s92 = ssub.s32 %s17, %s26
    %s93 = sor.u32 %s91, %s92
    %p94 = scmp.eq.s32.totalorder %s93, 0
    %s96 = sadd.s32 %s95, 1
    %s97 = scalar_select %p94, %s95, %s96
    %p100 = pneg %p94
    %p101 = scmp.eq.s32.totalorder %s8, 1
    %p102 = por %p100, %p101
    %p103 = scmp.ne.s32.totalorder %s95, %s98
    %p104 = scmp.eq.s32.totalorder %s8, 0
    %p105 = por %p103, %p104
    %p106 = scmp.ne.s32.totalorder %s95, %s98
    %p107 = scmp.eq.s32.totalorder %s13, 1
    %p108 = por %p106, %p107
    %p109 = scmp.ne.s32.totalorder %s98, %s99
    %p110 = scmp.eq.s32.totalorder %s13, 0
    %p111 = por %p109, %p110
    %p112 = scmp.ne.s32.totalorder %s98, %s99
    %p113 = scmp.eq.s32.totalorder %s14, 1
    %p114 = por %p112, %p113
    %p116 = scmp.ne.s32.totalorder %s99, %s115
    %p117 = scmp.eq.s32.totalorder %s14, 0
    %p118 = por %p116, %p117
    %p119 = scmp.le.s32.totalorder 1, %s8
    %p120 = scmp.lt.s32.totalorder %s8, 3
    %p121 = pnand %p119, %p120
    %p122 = pneg %p121
    // Predicated region
    $region9: #{ca_transformer_forward.21} parent=5 // pred_check
      _
    $region10: #{ca_transformer_forward.21} parent=5 // pred_check_branch
      %124 = sbr.rel (%p121) target = $region12
    $region11: #{ca_transformer_forward.21} parent=5 // pred_region
      %s125 = ssub.s32 %s8, 1
      // Predicated region
      $region13: #{ca_transformer_forward.21} parent=11 // pred_check
        %p126 = pneg %p81
      $region14: #{ca_transformer_forward.21} parent=11 // pred_check_branch
        %128 = sbr.rel (%p126) target = $region16
      $region15: #{ca_transformer_forward.21} parent=11 // pred_region
        %p129 = scmp.lt.s32.totalorder %s20, 0
        %s130 = scalar_select %p129, %s20, 0
        %s131 = smul.addr %s130, 4
        %s132 = scalar_lea.vmem %s1, %s131
      $region16: #{ca_transformer_forward.21} parent=11 // pred_fallthru
        _
    $region12: #{ca_transformer_forward.21} parent=5 // pred_fallthru
      _
    %p133 = scmp.lt.s32.totalorder %s8, 2
    // Predicated region
    $region17: #{ca_transformer_forward.21} parent=5 // pred_check
      %p134 = pneg %p133
    $region18: #{ca_transformer_forward.21} parent=5 // pred_check_branch
      %136 = sbr.rel (%p134) target = $region20
    $region19: #{ca_transformer_forward.21} parent=5 // pred_region
      // Predicated region
      $region21: #{ca_transformer_forward.21} parent=19 // pred_check
        %p137 = pneg %p49
      $region22: #{ca_transformer_forward.21} parent=19 // pred_check_branch
        %139 = sbr.rel (%p137) target = $region24
      $region23: #{ca_transformer_forward.21} parent=19 // pred_region
        %s140 = smul.u32 8, %s16
        %p141 = scmp.lt.s32.totalorder %s15, 1
        %s142 = scalar_select %p141, %s15, 1
        %p143 = scmp.lt.s32.totalorder %s140, 7
        %s144 = scalar_select %p143, %s140, 7
        %s145 = smul.addr %s142, 8
        %s146 = sadd.s32 %s144, %s145
        %s147 = smul.addr %s146, 4
        %s148 = scalar_lea.vmem %s0, %s147
        %s149 = smul.u32 8, %s16
      $region24: #{ca_transformer_forward.21} parent=19 // pred_fallthru
        _
    $region20: #{ca_transformer_forward.21} parent=5 // pred_fallthru
      _
    %p150 = scmp.le.s32.totalorder 1, %s8
    %p151 = scmp.lt.s32.totalorder %s8, 3
    %p152 = pnand %p150, %p151
    %p153 = pneg %p152
    // Predicated region
    $region25: #{ca_transformer_forward.21} parent=5 // pred_check
      _
    $region26: #{ca_transformer_forward.21} parent=5 // pred_check_branch
      %155 = sbr.rel (%p152) target = $region28
    $region27: #{ca_transformer_forward.21} parent=5 // pred_region
      %s156 = ssub.s32 %s8, 1
      %s157 = smul.u32 8, %s19
      %p158 = scmp.lt.s32.totalorder %s18, 1
      %s159 = scalar_select %p158, %s18, 1
      %p160 = scmp.lt.s32.totalorder %s157, 7
      %s161 = scalar_select %p160, %s157, 7
      %s162 = smul.addr %s159, 8
      %s163 = sadd.s32 %s161, %s162
      %s164 = smul.addr %s163, 4
      %s165 = scalar_lea.vmem %s0, %s164
      %p166 = pneg %p55
      %p167 = pneg %p52
      %p168 = scmp.lt.s32.totalorder %s20, 0
      %s169 = scalar_select %p168, %s20, 0
      %s170 = smul.addr %s169, 4
      %s171 = scalar_lea.vmem %s1, %s170
      %p172 = pneg %p81
      %p173 = pneg %p78
      %p174 = pneg %p111
      %p175 = pneg %p108
      %s176 = smul.u32 8, %s19
      %p177 = scmp.lt.s32.totalorder %s18, 1
      %s178 = scalar_select %p177, %s18, 1
      %p179 = scmp.lt.s32.totalorder %s176, 7
      %s180 = scalar_select %p179, %s176, 7
      %p181 = scmp.lt.s32.totalorder %s20, 0
      %s182 = scalar_select %p181, %s20, 0
      %s183 = sadd.s32 %s182, %s180
      %s184 = smul.addr %s178, 8
      %s185 = sadd.s32 %s183, %s184
      %s186 = smul.addr %s185, 8
      %s187 = scalar_lea.vmem %s2, %s186
      %s188 = smul.u32 8, %s19
      %p189 = scmp.lt.s32.totalorder %s18, 1
      %s190 = scalar_select %p189, %s18, 1
      %p191 = scmp.lt.s32.totalorder %s188, 7
      %s192 = scalar_select %p191, %s188, 7
      %s193 = smul.addr %s190, 8
      %s194 = sadd.s32 %s192, %s193
      %s195 = smul.addr %s194, 4
      %s196 = scalar_lea.vmem %s0, %s195
      %s197 = smul.u32 8, %s19
      %p198 = scmp.lt.s32.totalorder %s20, 0
      %s199 = scalar_select %p198, %s20, 0
      %s200 = smul.addr %s199, 4
      %s201 = scalar_lea.vmem %s1, %s200
      %s202 = smul.u32 8, %s19
      %p203 = scmp.lt.s32.totalorder %s18, 1
      %s204 = scalar_select %p203, %s18, 1
      %p205 = scmp.lt.s32.totalorder %s202, 7
      %s206 = scalar_select %p205, %s202, 7
      %p207 = scmp.lt.s32.totalorder %s20, 0
      %s208 = scalar_select %p207, %s20, 0
      %s209 = sadd.s32 %s208, %s206
      %s210 = smul.addr %s204, 8
      %s211 = sadd.s32 %s209, %s210
      %s212 = smul.addr %s211, 8
      %s213 = scalar_lea.vmem %s2, %s212
      %s214 = smul.u32 8, %s19
      %v216 = vld [vmem:[%s196] sm:$0xf]
      %v217 = vld [vmem:[%s196 + $0x4] sm:$0xf]
      %v218 = vld [vmem:[%s196 + $0x8] sm:$0xf]
      %v219 = vld [vmem:[%s196 + $0xc] sm:$0xf]
      %v220 = vld [vmem:[%s196 + $0x10] sm:$0xf]
      %v221 = vld [vmem:[%s196 + $0x14] sm:$0xf]
      %v222 = vld [vmem:[%s196 + $0x18] sm:$0xf]
      %v223 = vld [vmem:[%s196 + $0x1c] sm:$0xf]
      %v224 = vld [vmem:[%s201] sm:$0xf]
      %v225 = vld [vmem:[%s201 + $0x4] sm:$0xf]
      %v234 = vunpack.c.l.b16 %v216
      %v235 = vunpack.c.l.b16 %v217
      %v236 = vunpack.c.l.b16 %v218
      %v237 = vunpack.c.l.b16 %v219
      %v238 = vunpack.c.l.b16 %v220
      %v239 = vunpack.c.l.b16 %v221
      %v240 = vunpack.c.l.b16 %v222
      %v241 = vunpack.c.l.b16 %v223
      %v242 = vpack.c.b16 %v235, %v234
      %v243 = vpack.c.b16 %v237, %v236
      %v244 = vpack.c.b16 %v239, %v238
      %v245 = vpack.c.b16 %v241, %v240
      %v248 = vunpack.c.l.b16 %v224
      %v249 = vunpack.c.l.b16 %v225
      %v250 = vpack.c.b16 %v249, %v248
      %vm252 = vcmask 130048
      %v254 = vsel %vm252, %v242, 0
      %v257 = vsel %vm252, %v243, 0
      %v260 = vsel %vm252, %v244, 0
      %v263 = vsel %vm252, %v245, 0
      %265 = vmatpush.bf16.msra.mxu0 0
      %266 = vmatpush.bf16.msra.mxu0 0
      %267 = vmatpush.bf16.msra.mxu0 0
      %268 = vmatpush.bf16.msra.mxu0 0
      %269 = vmatpush.bf16.msra.mxu0 0
      %270 = vmatpush.bf16.msra.mxu0 0
      %271 = vmatpush.bf16.msra.mxu0 0
      %272 = vmatpush.bf16.msra.mxu0 %v250
      %273 = vmatmul.bf16.gmra.mxu0 %v254
      %v274 = vpop.f32.mrf.mxu0
      %v275 = vadd.f32 0.0, %v274
      %v276 = vpop.f32.mrf.mxu0
      %v277 = vadd.f32 0.0, %v276
      %278 = vmatmul.bf16.gmra.mxu0 %v257
      %v279 = vpop.f32.mrf.mxu0
      %v280 = vadd.f32 0.0, %v279
      %v281 = vpop.f32.mrf.mxu0
      %v282 = vadd.f32 0.0, %v281
      %283 = vmatmul.bf16.gmra.mxu0 %v260
      %v284 = vpop.f32.mrf.mxu0
      %v285 = vadd.f32 0.0, %v284
      %v286 = vpop.f32.mrf.mxu0
      %v287 = vadd.f32 0.0, %v286
      %288 = vmatmul.bf16.gmra.mxu0 %v263
      %v289 = vpop.f32.mrf.mxu0
      %v290 = vadd.f32 0.0, %v289
      %v291 = vpop.f32.mrf.mxu0
      %v292 = vadd.f32 0.0, %v291
      %293 = vdwg.mxu0
      %294 = vst [vmem:[%s213] sm:$0xff] %v275
      %295 = vst [vmem:[%s213 + $0x8] sm:$0xff] %v277
      %296 = vst [vmem:[%s213 + $0x10] sm:$0xff] %v280
      %297 = vst [vmem:[%s213 + $0x18] sm:$0xff] %v282
      %298 = vst [vmem:[%s213 + $0x20] sm:$0xff] %v285
      %299 = vst [vmem:[%s213 + $0x28] sm:$0xff] %v287
      %300 = vst [vmem:[%s213 + $0x30] sm:$0xff] %v290
      %301 = vst [vmem:[%s213 + $0x38] sm:$0xff] %v292
      %s302 = smul.u32 8, %s19
      %p303 = scmp.lt.s32.totalorder %s18, 1
      %s304 = scalar_select %p303, %s18, 1
      %p305 = scmp.lt.s32.totalorder %s302, 7
      %s306 = scalar_select %p305, %s302, 7
      %p307 = scmp.lt.s32.totalorder %s20, 0
      %s308 = scalar_select %p307, %s20, 0
      %s309 = sadd.s32 %s308, %s306
      %s310 = smul.addr %s304, 8
      %s311 = sadd.s32 %s309, %s310
      %s312 = smul.addr %s311, 8
      %s313 = scalar_lea.vmem %s2, %s312
      // Predicated region
      $region29: #{ca_transformer_forward.21} parent=27 // pred_check
        %p314 = pneg %p108
      $region30: #{ca_transformer_forward.21} parent=27 // pred_check_branch
        %316 = sbr.rel (%p314) target = $region32
      $region31: #{ca_transformer_forward.21} parent=27 // pred_region
        %s317 = smul.u32 8, %s19
      $region32: #{ca_transformer_forward.21} parent=27 // pred_fallthru
        _
    $region28: #{ca_transformer_forward.21} parent=5 // pred_fallthru
      _
    %p318 = scmp.le.s32.totalorder 2, %s8
    // Predicated region
    $region33: #{ca_transformer_forward.21} parent=5 // pred_check
      %p319 = pneg %p318
    $region34: #{ca_transformer_forward.21} parent=5 // pred_check_branch
      %321 = sbr.rel (%p319) target = $region36
    $region35: #{ca_transformer_forward.21} parent=5 // pred_region
      %s322 = ssub.s32 %s8, 2
      // Predicated region
      $region37: #{ca_transformer_forward.21} parent=35 // pred_check
        %p323 = pneg %p114
      $region38: #{ca_transformer_forward.21} parent=35 // pred_check_branch
        %325 = sbr.rel (%p323) target = $region40
      $region39: #{ca_transformer_forward.21} parent=35 // pred_region
        %s326 = smul.u32 8, %s22
        %p327 = scmp.lt.s32.totalorder %s21, 1
        %s328 = scalar_select %p327, %s21, 1
        %p329 = scmp.lt.s32.totalorder %s326, 7
        %s330 = scalar_select %p329, %s326, 7
        %p331 = scmp.lt.s32.totalorder %s23, 0
        %s332 = scalar_select %p331, %s23, 0
        %s333 = sadd.s32 %s332, %s330
        %s334 = smul.addr %s328, 8
        %s335 = sadd.s32 %s333, %s334
        %s336 = smul.addr %s335, 8
        %s337 = scalar_lea.vmem %s2, %s336
      $region40: #{ca_transformer_forward.21} parent=35 // pred_fallthru
        _
    $region36: #{ca_transformer_forward.21} parent=5 // pred_fallthru
      _
  $region6: #{ca_transformer_forward.21} parent=0 // loop_footer
    %s12 = sadd.s32 1, %s8
  $region7: #{ca_transformer_forward.21} parent=0 // loop_footer_branch
    %7 = sbr.rel target = $region3
  $region8: #{ca_transformer_forward.21} parent=0 // loop_exit
    _

// kernel: ca_transformer_forward.23
$region0: #{ca_transformer_forward.23}
  #allocation0 [shape = 'u32[]', space=smem, size = 0x4, offset = 0x4, fixed_abs, tag = 'smem constant byte address 0x4 - core index']
  #allocation1 [shape = 'u32[72,128]{1,0:T(1,128)}', space=vmem, size = 0x9000, scoped, tag = 'internal scratch']
  %s0 = inlined_call_operand.vmem [shape: f32[2,64,128], index: 0, kind: input, shape index: {}]
  %s1 = inlined_call_operand.vmem [shape: f32[2,1,128], index: 1, kind: input, shape index: {}]
  %s2 = inlined_call_operand.vmem [shape: bf16[128,384], index: 2, kind: input, shape index: {}]
  %s3 = inlined_call_operand.vmem [shape: bf16[2,64,384], index: 3, kind: output, shape index: {}]
  %s4 = sld [smem:[#allocation0]]
  $region45: #{ca_transformer_forward.23} parent=0
    _
  %s6 = ssub.s32 1, %s4
  %s7 = scalar_select 0, %s6, %s4
  loop: start=0, step=1, limit=4
  $region2: #{ca_transformer_forward.23} parent=0 // loop_pre_header
    _
  $region3: #{ca_transformer_forward.23} parent=0 // loop_header
    %s9 = sphi 0, %s13
    %p10 = scmp.ge.s32.totalorder %s9, 4
    %s16 = sphi 0, %s35
    %s17 = sphi 0, %s31
    %s18 = sphi 0, %s27
    %s19 = sphi 0, %s16
    %s20 = sphi 0, %s17
    %s21 = sphi 0, %s18
    %s22 = sphi 0, %s19
    %s23 = sphi 0, %s20
    %s24 = sphi 0, %s21
    %s40 = sphi 0, %s42
    %s43 = sphi 0, %s40
    %s44 = sphi 0, %s43
    %s60 = sphi 0, %s44
    %s66 = sphi 0, %s68
    %s69 = sphi 0, %s66
    %s70 = sphi 0, %s69
    %s86 = sphi 0, %s70
    %s92 = sphi 0, %s94
    %s95 = sphi 0, %s92
    %s96 = sphi 0, %s95
    %s112 = sphi 0, %s96
    %s122 = sphi 0, %s124
    %s125 = sphi 0, %s122
    %s126 = sphi 0, %s125
    %s142 = sphi 0, %s126
  $region4: #{ca_transformer_forward.23} parent=0 // loop_header_branch
    %12 = sbr.rel (%p10) target = $region8
  $region5: #{ca_transformer_forward.23} parent=0 // loop_body
    %s14 = ssub.s32 %s9, 1
    %s15 = ssub.s32 %s9, 2
    %s25 = sadd.s32 1, %s18
    %p26 = scmp.ge.s32.totalorder %s25, 1
    %s27 = scalar_select %p26, 0, %s25
    %s28 = sadd.s32 1, %s17
    %s29 = scalar_select %p26, %s28, %s17
    %p30 = scmp.ge.s32.totalorder %s29, 1
    %s31 = scalar_select %p30, 0, %s29
    %s32 = sadd.s32 1, %s16
    %s33 = scalar_select %p30, %s32, %s16
    %p34 = scmp.ge.s32.totalorder %s33, 2
    %s35 = scalar_select %p34, 0, %s33
    %s36 = ssub.s32 %s16, %s35
    %s37 = ssub.s32 %s17, %s31
    %s38 = sor.u32 %s36, %s37
    %p39 = scmp.eq.s32.totalorder %s38, 0
    %s41 = sadd.s32 %s40, 1
    %s42 = scalar_select %p39, %s40, %s41
    %p45 = pneg %p39
    %p46 = scmp.eq.s32.totalorder %s9, 1
    %p47 = por %p45, %p46
    %p48 = scmp.ne.s32.totalorder %s40, %s43
    %p49 = scmp.eq.s32.totalorder %s9, 0
    %p50 = por %p48, %p49
    %p51 = scmp.ne.s32.totalorder %s40, %s43
    %p52 = scmp.eq.s32.totalorder %s14, 1
    %p53 = por %p51, %p52
    %p54 = scmp.ne.s32.totalorder %s43, %s44
    %p55 = scmp.eq.s32.totalorder %s14, 0
    %p56 = por %p54, %p55
    %p57 = scmp.ne.s32.totalorder %s43, %s44
    %p58 = scmp.eq.s32.totalorder %s15, 1
    %p59 = por %p57, %p58
    %p61 = scmp.ne.s32.totalorder %s44, %s60
    %p62 = scmp.eq.s32.totalorder %s15, 0
    %p63 = por %p61, %p62
    %s64 = ssub.s32 %s16, %s35
    %p65 = scmp.eq.s32.totalorder %s64, 0
    %s67 = sadd.s32 %s66, 1
    %s68 = scalar_select %p65, %s66, %s67
    %p71 = pneg %p65
    %p72 = scmp.eq.s32.totalorder %s9, 1
    %p73 = por %p71, %p72
    %p74 = scmp.ne.s32.totalorder %s66, %s69
    %p75 = scmp.eq.s32.totalorder %s9, 0
    %p76 = por %p74, %p75
    %p77 = scmp.ne.s32.totalorder %s66, %s69
    %p78 = scmp.eq.s32.totalorder %s14, 1
    %p79 = por %p77, %p78
    %p80 = scmp.ne.s32.totalorder %s69, %s70
    %p81 = scmp.eq.s32.totalorder %s14, 0
    %p82 = por %p80, %p81
    %p83 = scmp.ne.s32.totalorder %s69, %s70
    %p84 = scmp.eq.s32.totalorder %s15, 1
    %p85 = por %p83, %p84
    %p87 = scmp.ne.s32.totalorder %s70, %s86
    %p88 = scmp.eq.s32.totalorder %s15, 0
    %p89 = por %p87, %p88
    %s90 = ssub.s32 %s18, %s27
    %p91 = scmp.eq.s32.totalorder %s90, 0
    %s93 = sadd.s32 %s92, 1
    %s94 = scalar_select %p91, %s92, %s93
    %p97 = pneg %p91
    %p98 = scmp.eq.s32.totalorder %s9, 1
    %p99 = por %p97, %p98
    %p100 = scmp.ne.s32.totalorder %s92, %s95
    %p101 = scmp.eq.s32.totalorder %s9, 0
    %p102 = por %p100, %p101
    %p103 = scmp.ne.s32.totalorder %s92, %s95
    %p104 = scmp.eq.s32.totalorder %s14, 1
    %p105 = por %p103, %p104
    %p106 = scmp.ne.s32.totalorder %s95, %s96
    %p107 = scmp.eq.s32.totalorder %s14, 0
    %p108 = por %p106, %p107
    %p109 = scmp.ne.s32.totalorder %s95, %s96
    %p110 = scmp.eq.s32.totalorder %s15, 1
    %p111 = por %p109, %p110
    %p113 = scmp.ne.s32.totalorder %s96, %s112
    %p114 = scmp.eq.s32.totalorder %s15, 0
    %p115 = por %p113, %p114
    %s116 = ssub.s32 %s16, %s35
    %s117 = ssub.s32 %s17, %s31
    %s118 = sor.u32 %s116, %s117
    %s119 = ssub.s32 %s18, %s27
    %s120 = sor.u32 %s118, %s119
    %p121 = scmp.eq.s32.totalorder %s120, 0
    %s123 = sadd.s32 %s122, 1
    %s124 = scalar_select %p121, %s122, %s123
    %p127 = pneg %p121
    %p128 = scmp.eq.s32.totalorder %s9, 1
    %p129 = por %p127, %p128
    %p130 = scmp.ne.s32.totalorder %s122, %s125
    %p131 = scmp.eq.s32.totalorder %s9, 0
    %p132 = por %p130, %p131
    %p133 = scmp.ne.s32.totalorder %s122, %s125
    %p134 = scmp.eq.s32.totalorder %s14, 1
    %p135 = por %p133, %p134
    %p136 = scmp.ne.s32.totalorder %s125, %s126
    %p137 = scmp.eq.s32.totalorder %s14, 0
    %p138 = por %p136, %p137
    %p139 = scmp.ne.s32.totalorder %s125, %s126
    %p140 = scmp.eq.s32.totalorder %s15, 1
    %p141 = por %p139, %p140
    %p143 = scmp.ne.s32.totalorder %s126, %s142
    %p144 = scmp.eq.s32.totalorder %s15, 0
    %p145 = por %p143, %p144
    %p146 = scmp.le.s32.totalorder 1, %s9
    %p147 = scmp.lt.s32.totalorder %s9, 3
    %p148 = pnand %p146, %p147
    %p149 = pneg %p148
    // Predicated region
    $region9: #{ca_transformer_forward.23} parent=5 // pred_check
      _
    $region10: #{ca_transformer_forward.23} parent=5 // pred_check_branch
      %151 = sbr.rel (%p148) target = $region12
    $region11: #{ca_transformer_forward.23} parent=5 // pred_region
      %s152 = ssub.s32 %s9, 1
      // Predicated region
      $region13: #{ca_transformer_forward.23} parent=11 // pred_check
        %p153 = pneg %p108
      $region14: #{ca_transformer_forward.23} parent=11 // pred_check_branch
        %155 = sbr.rel (%p153) target = $region16
      $region15: #{ca_transformer_forward.23} parent=11 // pred_region
        %s156 = smul.u32 3, %s21
        %p157 = scmp.lt.s32.totalorder %s156, 2
        %s158 = scalar_select %p157, %s156, 2
        %s159 = smul.addr %s158, 4
        %s160 = scalar_lea.vmem %s2, %s159
        %s161 = smul.u32 3, %s21
      $region16: #{ca_transformer_forward.23} parent=11 // pred_fallthru
        _
    $region12: #{ca_transformer_forward.23} parent=5 // pred_fallthru
      _
    %p162 = scmp.lt.s32.totalorder %s9, 2
    // Predicated region
    $region17: #{ca_transformer_forward.23} parent=5 // pred_check
      %p163 = pneg %p162
    $region18: #{ca_transformer_forward.23} parent=5 // pred_check_branch
      %165 = sbr.rel (%p163) target = $region20
    $region19: #{ca_transformer_forward.23} parent=5 // pred_region
      // Predicated region
      $region21: #{ca_transformer_forward.23} parent=19 // pred_check
        %p166 = pneg %p50
      $region22: #{ca_transformer_forward.23} parent=19 // pred_check_branch
        %168 = sbr.rel (%p166) target = $region24
      $region23: #{ca_transformer_forward.23} parent=19 // pred_region
        %s169 = smul.u32 8, %s17
        %p170 = scmp.lt.s32.totalorder %s16, 1
        %s171 = scalar_select %p170, %s16, 1
        %p172 = scmp.lt.s32.totalorder %s169, 7
        %s173 = scalar_select %p172, %s169, 7
        %s174 = smul.addr %s171, 8
        %s175 = sadd.s32 %s173, %s174
        %s176 = smul.addr %s175, 8
        %s177 = scalar_lea.vmem %s0, %s176
        %s178 = smul.u32 8, %s17
      $region24: #{ca_transformer_forward.23} parent=19 // pred_fallthru
        _
      // Predicated region
      $region25: #{ca_transformer_forward.23} parent=19 // pred_check
        %p179 = pneg %p76
      $region26: #{ca_transformer_forward.23} parent=19 // pred_check_branch
        %181 = sbr.rel (%p179) target = $region28
      $region27: #{ca_transformer_forward.23} parent=19 // pred_region
        %p182 = scmp.lt.s32.totalorder %s16, 1
        %s183 = scalar_select %p182, %s16, 1
        %s184 = scalar_lea.vmem %s1, %s183
      $region28: #{ca_transformer_forward.23} parent=19 // pred_fallthru
        _
    $region20: #{ca_transformer_forward.23} parent=5 // pred_fallthru
      _
    %p185 = scmp.le.s32.totalorder 1, %s9
    %p186 = scmp.lt.s32.totalorder %s9, 3
    %p187 = pnand %p185, %p186
    %p188 = pneg %p187
    // Predicated region
    $region29: #{ca_transformer_forward.23} parent=5 // pred_check
      _
    $region30: #{ca_transformer_forward.23} parent=5 // pred_check_branch
      %190 = sbr.rel (%p187) target = $region32
    $region31: #{ca_transformer_forward.23} parent=5 // pred_region
      %s191 = ssub.s32 %s9, 1
      %s192 = smul.u32 8, %s20
      %p193 = scmp.lt.s32.totalorder %s19, 1
      %s194 = scalar_select %p193, %s19, 1
      %p195 = scmp.lt.s32.totalorder %s192, 7
      %s196 = scalar_select %p195, %s192, 7
      %s197 = smul.addr %s194, 8
      %s198 = sadd.s32 %s196, %s197
      %s199 = smul.addr %s198, 8
      %s200 = scalar_lea.vmem %s0, %s199
      %p201 = pneg %p56
      %p202 = pneg %p53
      %p203 = scmp.lt.s32.totalorder %s19, 1
      %s204 = scalar_select %p203, %s19, 1
      %s205 = scalar_lea.vmem %s1, %s204
      %p206 = pneg %p82
      %p207 = pneg %p79
      %s208 = smul.u32 3, %s21
      %p209 = scmp.lt.s32.totalorder %s208, 2
      %s210 = scalar_select %p209, %s208, 2
      %s211 = smul.addr %s210, 4
      %s212 = scalar_lea.vmem %s2, %s211
      %p213 = pneg %p108
      %p214 = pneg %p105
      %p215 = pneg %p138
      %p216 = pneg %p135
      %s217 = smul.u32 8, %s20
      %s218 = smul.u32 3, %s21
      %p219 = scmp.lt.s32.totalorder %s19, 1
      %s220 = scalar_select %p219, %s19, 1
      %p221 = scmp.lt.s32.totalorder %s217, 7
      %s222 = scalar_select %p221, %s217, 7
      %p223 = scmp.lt.s32.totalorder %s218, 2
      %s224 = scalar_select %p223, %s218, 2
      %s225 = smul.addr %s222, 3
      %s226 = sadd.s32 %s224, %s225
      %s227 = smul.addr %s220, 24
      %s228 = sadd.s32 %s226, %s227
      %s229 = smul.addr %s228, 4
      %s230 = scalar_lea.vmem %s3, %s229
      %s231 = smul.u32 8, %s20
      %p232 = scmp.lt.s32.totalorder %s19, 1
      %s233 = scalar_select %p232, %s19, 1
      %p234 = scmp.lt.s32.totalorder %s231, 7
      %s235 = scalar_select %p234, %s231, 7
      %s236 = smul.addr %s233, 8
      %s237 = sadd.s32 %s235, %s236
      %s238 = smul.addr %s237, 8
      %s239 = scalar_lea.vmem %s0, %s238
      %s240 = smul.u32 8, %s20
      %p241 = scmp.lt.s32.totalorder %s19, 1
      %s242 = scalar_select %p241, %s19, 1
      %s243 = scalar_lea.vmem %s1, %s242
      %s244 = smul.u32 3, %s21
      %p245 = scmp.lt.s32.totalorder %s244, 2
      %s246 = scalar_select %p245, %s244, 2
      %s247 = smul.addr %s246, 4
      %s248 = scalar_lea.vmem %s2, %s247
      %s249 = smul.u32 3, %s21
      %s250 = smul.u32 8, %s20
      %s251 = smul.u32 3, %s21
      %p252 = scmp.lt.s32.totalorder %s19, 1
      %s253 = scalar_select %p252, %s19, 1
      %p254 = scmp.lt.s32.totalorder %s250, 7
      %s255 = scalar_select %p254, %s250, 7
      %p256 = scmp.lt.s32.totalorder %s251, 2
      %s257 = scalar_select %p256, %s251, 2
      %s258 = smul.addr %s255, 3
      %s259 = sadd.s32 %s257, %s258
      %s260 = smul.addr %s253, 24
      %s261 = sadd.s32 %s259, %s260
      %s262 = smul.addr %s261, 4
      %s263 = scalar_lea.vmem %s3, %s262
      %s264 = smul.u32 8, %s20
      %s265 = smul.u32 3, %s21
      %v266 = vld [vmem:[%s239] sm:$0xff]
      %v267 = vld [vmem:[%s239 + $0x8] sm:$0xff]
      %v268 = vld [vmem:[%s239 + $0x10] sm:$0xff]
      %v269 = vld [vmem:[%s239 + $0x18] sm:$0xff]
      %v270 = vld [vmem:[%s239 + $0x20] sm:$0xff]
      %v271 = vld [vmem:[%s239 + $0x28] sm:$0xff]
      %v272 = vld [vmem:[%s239 + $0x30] sm:$0xff]
      %v273 = vld [vmem:[%s239 + $0x38] sm:$0xff]
      %v274 = vld [vmem:[%s243] sm:$0x1]
      %v275 = vmul.f32 %v266, %v266
      %v276 = vmul.f32 %v267, %v267
      %v277 = vmul.f32 %v268, %v268
      %v278 = vmul.f32 %v269, %v269
      %v279 = vmul.f32 %v270, %v270
      %v280 = vmul.f32 %v271, %v271
      %v281 = vmul.f32 %v272, %v272
      %v282 = vmul.f32 %v273, %v273
      %283 = vadd.xlane.f32.xlu0 %v275
      %v284 = vpop.xlane.xlu0 %283
      %285 = vadd.xlane.f32.xlu0 %v276
      %v286 = vpop.xlane.xlu0 %285
      %287 = vadd.xlane.f32.xlu0 %v277
      %v288 = vpop.xlane.xlu0 %287
      %289 = vadd.xlane.f32.xlu0 %v278
      %v290 = vpop.xlane.xlu0 %289
      %291 = vadd.xlane.f32.xlu0 %v279
      %v292 = vpop.xlane.xlu0 %291
      %293 = vadd.xlane.f32.xlu0 %v280
      %v294 = vpop.xlane.xlu0 %293
      %295 = vadd.xlane.f32.xlu0 %v281
      %v296 = vpop.xlane.xlu0 %295
      %297 = vadd.xlane.f32.xlu0 %v282
      %v298 = vpop.xlane.xlu0 %297
      %v299 = vrcp.pop 128.0
      %v300 = vmul.f32 128.0, %v299
      %v301 = vsub.f32 1.0, %v300
      %v302 = vmul.f32 %v299, %v301
      %v303 = vadd.f32 %v299, %v302
      %vm304 = vweird.f32 %v299
      %v305 = vsel %vm304, %v299, %v303
      %v306 = vmul.f32 %v284, %v305
      %v307 = vmul.f32 %v286, %v305
      %v308 = vmul.f32 %v288, %v305
      %v309 = vmul.f32 %v290, %v305
      %v310 = vmul.f32 %v292, %v305
      %v311 = vmul.f32 %v294, %v305
      %v312 = vmul.f32 %v296, %v305
      %v313 = vmul.f32 %v298, %v305
      %v314 = vadd.f32 %v306, 1e-06
      %v315 = vadd.f32 %v307, 1e-06
      %v316 = vadd.f32 %v308, 1e-06
      %v317 = vadd.f32 %v309, 1e-06
      %v318 = vadd.f32 %v310, 1e-06
      %v319 = vadd.f32 %v311, 1e-06
      %v320 = vadd.f32 %v312, 1e-06
      %v321 = vadd.f32 %v313, 1e-06
      %v322 = vrsqrt.pop %v314
      %v323 = vmul.f32 %v322, %v314
      %v324 = vmul.f32 %v323, %v322
      %v325 = vmul.f32 0.5, %v324
      %v326 = vsub.f32 1.5, %v325
      %v327 = vmul.f32 %v322, %v326
      %vm328 = vweird.f32 %v314
      %vm329 = vweird.f32 %v322
      %vm330 = vmor %vm328, %vm329
      %v331 = vsel %vm330, %v322, %v327
      %v332 = vrsqrt.pop %v315
      %v333 = vmul.f32 %v332, %v315
      %v334 = vmul.f32 %v333, %v332
      %v335 = vmul.f32 0.5, %v334
      %v336 = vsub.f32 1.5, %v335
      %v337 = vmul.f32 %v332, %v336
      %vm338 = vweird.f32 %v315
      %vm339 = vweird.f32 %v332
      %vm340 = vmor %vm338, %vm339
      %v341 = vsel %vm340, %v332, %v337
      %v342 = vrsqrt.pop %v316
      %v343 = vmul.f32 %v342, %v316
      %v344 = vmul.f32 %v343, %v342
      %v345 = vmul.f32 0.5, %v344
      %v346 = vsub.f32 1.5, %v345
      %v347 = vmul.f32 %v342, %v346
      %vm348 = vweird.f32 %v316
      %vm349 = vweird.f32 %v342
      %vm350 = vmor %vm348, %vm349
      %v351 = vsel %vm350, %v342, %v347
      %v352 = vrsqrt.pop %v317
      %v353 = vmul.f32 %v352, %v317
      %v354 = vmul.f32 %v353, %v352
      %v355 = vmul.f32 0.5, %v354
      %v356 = vsub.f32 1.5, %v355
      %v357 = vmul.f32 %v352, %v356
      %vm358 = vweird.f32 %v317
      %vm359 = vweird.f32 %v352
      %vm360 = vmor %vm358, %vm359
      %v361 = vsel %vm360, %v352, %v357
      %v362 = vrsqrt.pop %v318
      %v363 = vmul.f32 %v362, %v318
      %v364 = vmul.f32 %v363, %v362
      %v365 = vmul.f32 0.5, %v364
      %v366 = vsub.f32 1.5, %v365
      %v367 = vmul.f32 %v362, %v366
      %vm368 = vweird.f32 %v318
      %vm369 = vweird.f32 %v362
      %vm370 = vmor %vm368, %vm369
      %v371 = vsel %vm370, %v362, %v367
      %v372 = vrsqrt.pop %v319
      %v373 = vmul.f32 %v372, %v319
      %v374 = vmul.f32 %v373, %v372
      %v375 = vmul.f32 0.5, %v374
      %v376 = vsub.f32 1.5, %v375
      %v377 = vmul.f32 %v372, %v376
      %vm378 = vweird.f32 %v319
      %vm379 = vweird.f32 %v372
      %vm380 = vmor %vm378, %vm379
      %v381 = vsel %vm380, %v372, %v377
      %v382 = vrsqrt.pop %v320
      %v383 = vmul.f32 %v382, %v320
      %v384 = vmul.f32 %v383, %v382
      %v385 = vmul.f32 0.5, %v384
      %v386 = vsub.f32 1.5, %v385
      %v387 = vmul.f32 %v382, %v386
      %vm388 = vweird.f32 %v320
      %vm389 = vweird.f32 %v382
      %vm390 = vmor %vm388, %vm389
      %v391 = vsel %vm390, %v382, %v387
      %v392 = vrsqrt.pop %v321
      %v393 = vmul.f32 %v392, %v321
      %v394 = vmul.f32 %v393, %v392
      %v395 = vmul.f32 0.5, %v394
      %v396 = vsub.f32 1.5, %v395
      %v397 = vmul.f32 %v392, %v396
      %vm398 = vweird.f32 %v321
      %vm399 = vweird.f32 %v392
      %vm400 = vmor %vm398, %vm399
      %v401 = vsel %vm400, %v392, %v397
      %v402 = vmul.f32 %v266, %v331
      %v403 = vmul.f32 %v267, %v341
      %v404 = vmul.f32 %v268, %v351
      %v405 = vmul.f32 %v269, %v361
      %v406 = vmul.f32 %v270, %v371
      %v407 = vmul.f32 %v271, %v381
      %v408 = vmul.f32 %v272, %v391
      %v409 = vmul.f32 %v273, %v401
      %v410 = vadd.f32 %v274, 1.0
      %v412 = vperm.slane %v410, 0
      %v414 = vmul.f32 %v402, %v412
      %v415 = vmul.f32 %v403, %v412
      %v416 = vmul.f32 %v404, %v412
      %v417 = vmul.f32 %v405, %v412
      %v418 = vmul.f32 %v406, %v412
      %v419 = vmul.f32 %v407, %v412
      %v420 = vmul.f32 %v408, %v412
      %v421 = vmul.f32 %v409, %v412
      %v422 = vpack.c.bf16 %v415, %v414
      %v423 = vpack.c.bf16 %v417, %v416
      %v424 = vpack.c.bf16 %v419, %v418
      %v425 = vpack.c.bf16 %v421, %v420
      %v426 = vld [vmem:[%s248] sm:$0xff]
      %v427 = vld [vmem:[%s248 + $0x8] sm:$0xf]
      %v428 = vld [vmem:[%s248 + $0xc] sm:$0xff]
      %v429 = vld [vmem:[%s248 + $0x14] sm:$0xf]
      %v430 = vld [vmem:[%s248 + $0x18] sm:$0xff]
      %v431 = vld [vmem:[%s248 + $0x20] sm:$0xf]
      %v432 = vld [vmem:[%s248 + $0x24] sm:$0xff]
      %v433 = vld [vmem:[%s248 + $0x2c] sm:$0xf]
      %v434 = vld [vmem:[%s248 + $0x30] sm:$0xff]
      %v435 = vld [vmem:[%s248 + $0x38] sm:$0xf]
      %v436 = vld [vmem:[%s248 + $0x3c] sm:$0xff]
      %v437 = vld [vmem:[%s248 + $0x44] sm:$0xf]
      %v438 = vld [vmem:[%s248 + $0x48] sm:$0xff]
      %v439 = vld [vmem:[%s248 + $0x50] sm:$0xf]
      %v440 = vld [vmem:[%s248 + $0x54] sm:$0xff]
      %v441 = vld [vmem:[%s248 + $0x5c] sm:$0xf]
      %v442 = vld [vmem:[%s248 + $0x60] sm:$0xff]
      %v443 = vld [vmem:[%s248 + $0x68] sm:$0xf]
      %v444 = vld [vmem:[%s248 + $0x6c] sm:$0xff]
      %v445 = vld [vmem:[%s248 + $0x74] sm:$0xf]
      %v446 = vld [vmem:[%s248 + $0x78] sm:$0xff]
      %v447 = vld [vmem:[%s248 + $0x80] sm:$0xf]
      %v448 = vld [vmem:[%s248 + $0x84] sm:$0xff]
      %v449 = vld [vmem:[%s248 + $0x8c] sm:$0xf]
      %v450 = vld [vmem:[%s248 + $0x90] sm:$0xff]
      %v451 = vld [vmem:[%s248 + $0x98] sm:$0xf]
      %v452 = vld [vmem:[%s248 + $0x9c] sm:$0xff]
      %v453 = vld [vmem:[%s248 + $0xa4] sm:$0xf]
      %v454 = vld [vmem:[%s248 + $0xa8] sm:$0xff]
      %v455 = vld [vmem:[%s248 + $0xb0] sm:$0xf]
      %v456 = vld [vmem:[%s248 + $0xb4] sm:$0xff]
      %v457 = vld [vmem:[%s248 + $0xbc] sm:$0xf]
      %v490 = vunpack.c.l.b16 %v426
      %v491 = vunpack.c.h.b16 %v426
      %v492 = vunpack.c.l.b16 %v427
      %v493 = vunpack.c.l.b16 %v428
      %v494 = vunpack.c.h.b16 %v428
      %v495 = vunpack.c.l.b16 %v429
      %v496 = vunpack.c.l.b16 %v430
      %v497 = vunpack.c.h.b16 %v430
      %v498 = vunpack.c.l.b16 %v431
      %v499 = vunpack.c.l.b16 %v432
      %v500 = vunpack.c.h.b16 %v432
      %v501 = vunpack.c.l.b16 %v433
      %v502 = vunpack.c.l.b16 %v434
      %v503 = vunpack.c.h.b16 %v434
      %v504 = vunpack.c.l.b16 %v435
      %v505 = vunpack.c.l.b16 %v436
      %v506 = vunpack.c.h.b16 %v436
      %v507 = vunpack.c.l.b16 %v437
      %v508 = vunpack.c.l.b16 %v438
      %v509 = vunpack.c.h.b16 %v438
      %v510 = vunpack.c.l.b16 %v439
      %v511 = vunpack.c.l.b16 %v440
      %v512 = vunpack.c.h.b16 %v440
      %v513 = vunpack.c.l.b16 %v441
      %v514 = vunpack.c.l.b16 %v442
      %v515 = vunpack.c.h.b16 %v442
      %v516 = vunpack.c.l.b16 %v443
      %v517 = vunpack.c.l.b16 %v444
      %v518 = vunpack.c.h.b16 %v444
      %v519 = vunpack.c.l.b16 %v445
      %v520 = vunpack.c.l.b16 %v446
      %v521 = vunpack.c.h.b16 %v446
      %v522 = vunpack.c.l.b16 %v447
      %v523 = vunpack.c.l.b16 %v448
      %v524 = vunpack.c.h.b16 %v448
      %v525 = vunpack.c.l.b16 %v449
      %v526 = vunpack.c.l.b16 %v450
      %v527 = vunpack.c.h.b16 %v450
      %v528 = vunpack.c.l.b16 %v451
      %v529 = vunpack.c.l.b16 %v452
      %v530 = vunpack.c.h.b16 %v452
      %v531 = vunpack.c.l.b16 %v453
      %v532 = vunpack.c.l.b16 %v454
      %v533 = vunpack.c.h.b16 %v454
      %v534 = vunpack.c.l.b16 %v455
      %v535 = vunpack.c.l.b16 %v456
      %v536 = vunpack.c.h.b16 %v456
      %v537 = vunpack.c.l.b16 %v457
      %v538 = vpack.c.b16 %v493, %v490
      %v539 = vpack.c.b16 %v494, %v491
      %v540 = vpack.c.b16 %v495, %v492
      %v541 = vpack.c.b16 %v499, %v496
      %v542 = vpack.c.b16 %v500, %v497
      %v543 = vpack.c.b16 %v501, %v498
      %v544 = vpack.c.b16 %v505, %v502
      %v545 = vpack.c.b16 %v506, %v503
      %v546 = vpack.c.b16 %v507, %v504
      %v547 = vpack.c.b16 %v511, %v508
      %v548 = vpack.c.b16 %v512, %v509
      %v549 = vpack.c.b16 %v513, %v510
      %v550 = vpack.c.b16 %v517, %v514
      %v551 = vpack.c.b16 %v518, %v515
      %v552 = vpack.c.b16 %v519, %v516
      %v553 = vpack.c.b16 %v523, %v520
      %v554 = vpack.c.b16 %v524, %v521
      %v555 = vpack.c.b16 %v525, %v522
      %v556 = vpack.c.b16 %v529, %v526
      %v557 = vpack.c.b16 %v530, %v527
      %v558 = vpack.c.b16 %v531, %v528
      %v559 = vpack.c.b16 %v535, %v532
      %v560 = vpack.c.b16 %v536, %v533
      %v561 = vpack.c.b16 %v537, %v534
      %586 = vmatpush.bf16.msra.mxu0 %v559
      %587 = vmatpush.bf16.msra.mxu0 %v556
      %588 = vmatpush.bf16.msra.mxu0 %v553
      %589 = vmatpush.bf16.msra.mxu0 %v550
      %590 = vmatpush.bf16.msra.mxu0 %v547
      %591 = vmatpush.bf16.msra.mxu0 %v544
      %592 = vmatpush.bf16.msra.mxu0 %v541
      %593 = vmatpush.bf16.msra.mxu0 %v538
      %594 = vmatmul.bf16.gmra.mxu0 %v422
      %v595 = vpop.f32.mrf.mxu0
      %v596 = vadd.f32 0.0, %v595
      %v597 = vpop.f32.mrf.mxu0
      %v598 = vadd.f32 0.0, %v597
      %599 = vmatmul.bf16.gmra.mxu0 %v423
      %v600 = vpop.f32.mrf.mxu0
      %v601 = vadd.f32 0.0, %v600
      %v602 = vpop.f32.mrf.mxu0
      %v603 = vadd.f32 0.0, %v602
      %604 = vmatmul.bf16.gmra.mxu0 %v424
      %v605 = vpop.f32.mrf.mxu0
      %v606 = vadd.f32 0.0, %v605
      %v607 = vpop.f32.mrf.mxu0
      %v608 = vadd.f32 0.0, %v607
      %609 = vmatmul.bf16.gmra.mxu0 %v425
      %v610 = vpop.f32.mrf.mxu0
      %v611 = vadd.f32 0.0, %v610
      %v612 = vpop.f32.mrf.mxu0
      %v613 = vadd.f32 0.0, %v612
      %614 = vdwg.mxu0
      %615 = vmatpush.bf16.msra.mxu0 %v560
      %616 = vmatpush.bf16.msra.mxu0 %v557
      %617 = vmatpush.bf16.msra.mxu0 %v554
      %618 = vmatpush.bf16.msra.mxu0 %v551
      %619 = vmatpush.bf16.msra.mxu0 %v548
      %620 = vmatpush.bf16.msra.mxu0 %v545
      %621 = vmatpush.bf16.msra.mxu0 %v542
      %622 = vmatpush.bf16.msra.mxu0 %v539
      %623 = vmatmul.bf16.gmra.mxu0 %v422
      %v624 = vpop.f32.mrf.mxu0
      %v625 = vadd.f32 0.0, %v624
      %v626 = vpop.f32.mrf.mxu0
      %v627 = vadd.f32 0.0, %v626
      %628 = vmatmul.bf16.gmra.mxu0 %v423
      %v629 = vpop.f32.mrf.mxu0
      %v630 = vadd.f32 0.0, %v629
      %v631 = vpop.f32.mrf.mxu0
      %v632 = vadd.f32 0.0, %v631
      %633 = vmatmul.bf16.gmra.mxu0 %v424
      %v634 = vpop.f32.mrf.mxu0
      %v635 = vadd.f32 0.0, %v634
      %v636 = vpop.f32.mrf.mxu0
      %v637 = vadd.f32 0.0, %v636
      %638 = vmatmul.bf16.gmra.mxu0 %v425
      %v639 = vpop.f32.mrf.mxu0
      %v640 = vadd.f32 0.0, %v639
      %v641 = vpop.f32.mrf.mxu0
      %v642 = vadd.f32 0.0, %v641
      %643 = vdwg.mxu0
      %644 = vmatpush.bf16.msra.mxu0 %v561
      %645 = vmatpush.bf16.msra.mxu0 %v558
      %646 = vmatpush.bf16.msra.mxu0 %v555
      %647 = vmatpush.bf16.msra.mxu0 %v552
      %648 = vmatpush.bf16.msra.mxu0 %v549
      %649 = vmatpush.bf16.msra.mxu0 %v546
      %650 = vmatpush.bf16.msra.mxu0 %v543
      %651 = vmatpush.bf16.msra.mxu0 %v540
      %652 = vmatmul.bf16.gmra.mxu0 %v422
      %v653 = vpop.f32.mrf.mxu0
      %v654 = vadd.f32 0.0, %v653
      %v655 = vpop.f32.mrf.mxu0
      %v656 = vadd.f32 0.0, %v655
      %657 = vmatmul.bf16.gmra.mxu0 %v423
      %v658 = vpop.f32.mrf.mxu0
      %v659 = vadd.f32 0.0, %v658
      %v660 = vpop.f32.mrf.mxu0
      %v661 = vadd.f32 0.0, %v660
      %662 = vmatmul.bf16.gmra.mxu0 %v424
      %v663 = vpop.f32.mrf.mxu0
      %v664 = vadd.f32 0.0, %v663
      %v665 = vpop.f32.mrf.mxu0
      %v666 = vadd.f32 0.0, %v665
      %667 = vmatmul.bf16.gmra.mxu0 %v425
      %v668 = vpop.f32.mrf.mxu0
      %v669 = vadd.f32 0.0, %v668
      %v670 = vpop.f32.mrf.mxu0
      %v671 = vadd.f32 0.0, %v670
      %672 = vdwg.mxu0
      %v673 = vpack.c.bf16 %v625, %v596
      %v674 = vpack.c.bf16 %v654, %v654
      %v675 = vpack.c.bf16 %v627, %v598
      %v676 = vpack.c.bf16 %v656, %v656
      %v677 = vpack.c.bf16 %v630, %v601
      %v678 = vpack.c.bf16 %v659, %v659
      %v679 = vpack.c.bf16 %v632, %v603
      %v680 = vpack.c.bf16 %v661, %v661
      %v681 = vpack.c.bf16 %v635, %v606
      %v682 = vpack.c.bf16 %v664, %v664
      %v683 = vpack.c.bf16 %v637, %v608
      %v684 = vpack.c.bf16 %v666, %v666
      %v685 = vpack.c.bf16 %v640, %v611
      %v686 = vpack.c.bf16 %v669, %v669
      %v687 = vpack.c.bf16 %v642, %v613
      %v688 = vpack.c.bf16 %v671, %v671
      %689 = vst [vmem:[%s263] sm:$0xff] %v673
      %690 = vst [vmem:[%s263 + $0x8] sm:$0xf] %v674
      %691 = vst [vmem:[%s263 + $0xc] sm:$0xff] %v675
      %692 = vst [vmem:[%s263 + $0x14] sm:$0xf] %v676
      %693 = vst [vmem:[%s263 + $0x18] sm:$0xff] %v677
      %694 = vst [vmem:[%s263 + $0x20] sm:$0xf] %v678
      %695 = vst [vmem:[%s263 + $0x24] sm:$0xff] %v679
      %696 = vst [vmem:[%s263 + $0x2c] sm:$0xf] %v680
      %697 = vst [vmem:[%s263 + $0x30] sm:$0xff] %v681
      %698 = vst [vmem:[%s263 + $0x38] sm:$0xf] %v682
      %699 = vst [vmem:[%s263 + $0x3c] sm:$0xff] %v683
      %700 = vst [vmem:[%s263 + $0x44] sm:$0xf] %v684
      %701 = vst [vmem:[%s263 + $0x48] sm:$0xff] %v685
      %702 = vst [vmem:[%s263 + $0x50] sm:$0xf] %v686
      %703 = vst [vmem:[%s263 + $0x54] sm:$0xff] %v687
      %704 = vst [vmem:[%s263 + $0x5c] sm:$0xf] %v688
      %s705 = smul.u32 8, %s20
      %s706 = smul.u32 3, %s21
      %p707 = scmp.lt.s32.totalorder %s19, 1
      %s708 = scalar_select %p707, %s19, 1
      %p709 = scmp.lt.s32.totalorder %s705, 7
      %s710 = scalar_select %p709, %s705, 7
      %p711 = scmp.lt.s32.totalorder %s706, 2
      %s712 = scalar_select %p711, %s706, 2
      %s713 = smul.addr %s710, 3
      %s714 = sadd.s32 %s712, %s713
      %s715 = smul.addr %s708, 24
      %s716 = sadd.s32 %s714, %s715
      %s717 = smul.addr %s716, 4
      %s718 = scalar_lea.vmem %s3, %s717
      // Predicated region
      $region33: #{ca_transformer_forward.23} parent=31 // pred_check
        %p719 = pneg %p135
      $region34: #{ca_transformer_forward.23} parent=31 // pred_check_branch
        %721 = sbr.rel (%p719) target = $region36
      $region35: #{ca_transformer_forward.23} parent=31 // pred_region
        %s722 = smul.u32 8, %s20
        %s723 = smul.u32 3, %s21
      $region36: #{ca_transformer_forward.23} parent=31 // pred_fallthru
        _
    $region32: #{ca_transformer_forward.23} parent=5 // pred_fallthru
      _
    %p724 = scmp.le.s32.totalorder 2, %s9
    // Predicated region
    $region37: #{ca_transformer_forward.23} parent=5 // pred_check
      %p725 = pneg %p724
    $region38: #{ca_transformer_forward.23} parent=5 // pred_check_branch
      %727 = sbr.rel (%p725) target = $region40
    $region39: #{ca_transformer_forward.23} parent=5 // pred_region
      %s728 = ssub.s32 %s9, 2
      // Predicated region
      $region41: #{ca_transformer_forward.23} parent=39 // pred_check
        %p729 = pneg %p141
      $region42: #{ca_transformer_forward.23} parent=39 // pred_check_branch
        %731 = sbr.rel (%p729) target = $region44
      $region43: #{ca_transformer_forward.23} parent=39 // pred_region
        %s732 = smul.u32 8, %s23
        %s733 = smul.u32 3, %s24
        %p734 = scmp.lt.s32.totalorder %s22, 1
        %s735 = scalar_select %p734, %s22, 1
        %p736 = scmp.lt.s32.totalorder %s732, 7
        %s737 = scalar_select %p736, %s732, 7
        %p738 = scmp.lt.s32.totalorder %s733, 2
        %s739 = scalar_select %p738, %s733, 2
        %s740 = smul.addr %s737, 3
        %s741 = sadd.s32 %s739, %s740
        %s742 = smul.addr %s735, 24
        %s743 = sadd.s32 %s741, %s742
        %s744 = smul.addr %s743, 4
        %s745 = scalar_lea.vmem %s3, %s744
      $region44: #{ca_transformer_forward.23} parent=39 // pred_fallthru
        _
    $region40: #{ca_transformer_forward.23} parent=5 // pred_fallthru
      _
  $region6: #{ca_transformer_forward.23} parent=0 // loop_footer
    %s13 = sadd.s32 1, %s9
  $region7: #{ca_transformer_forward.23} parent=0 // loop_footer_branch
    %8 = sbr.rel target = $region3
  $region8: #{ca_transformer_forward.23} parent=0 // loop_exit
    _

// kernel: ca_transformer_forward.25
$region0: #{ca_transformer_forward.25}
  #allocation0 [shape = 'u32[]', space=smem, size = 0x4, offset = 0x4, fixed_abs, tag = 'smem constant byte address 0x4 - core index']
  #allocation1 [shape = 'u32[72,128]{1,0:T(1,128)}', space=vmem, size = 0x9000, scoped, tag = 'internal scratch']
  %s0 = inlined_call_operand.vmem [shape: bf16[2,64,128], index: 0, kind: input, shape index: {}]
  %s1 = inlined_call_operand.vmem [shape: f32[2,64,128], index: 1, kind: input, shape index: {}]
  %s2 = inlined_call_operand.vmem [shape: bf16[128,128], index: 2, kind: input, shape index: {}]
  %s3 = inlined_call_operand.vmem [shape: f32[2,64,128], index: 3, kind: output, shape index: {}]
  %s4 = sld [smem:[#allocation0]]
  $region45: #{ca_transformer_forward.25} parent=0
    _
  %s6 = ssub.s32 1, %s4
  %s7 = scalar_select 0, %s6, %s4
  loop: start=0, step=1, limit=4
  $region2: #{ca_transformer_forward.25} parent=0 // loop_pre_header
    _
  $region3: #{ca_transformer_forward.25} parent=0 // loop_header
    %s9 = sphi 0, %s13
    %p10 = scmp.ge.s32.totalorder %s9, 4
    %s16 = sphi 0, %s35
    %s17 = sphi 0, %s31
    %s18 = sphi 0, %s27
    %s19 = sphi 0, %s16
    %s20 = sphi 0, %s17
    %s21 = sphi 0, %s18
    %s22 = sphi 0, %s19
    %s23 = sphi 0, %s20
    %s24 = sphi 0, %s21
    %s40 = sphi 0, %s42
    %s43 = sphi 0, %s40
    %s44 = sphi 0, %s43
    %s60 = sphi 0, %s44
    %s70 = sphi 0, %s72
    %s73 = sphi 0, %s70
    %s74 = sphi 0, %s73
    %s90 = sphi 0, %s74
    %s96 = sphi 0, %s98
    %s99 = sphi 0, %s96
    %s100 = sphi 0, %s99
    %s116 = sphi 0, %s100
    %s126 = sphi 0, %s128
    %s129 = sphi 0, %s126
    %s130 = sphi 0, %s129
    %s146 = sphi 0, %s130
  $region4: #{ca_transformer_forward.25} parent=0 // loop_header_branch
    %12 = sbr.rel (%p10) target = $region8
  $region5: #{ca_transformer_forward.25} parent=0 // loop_body
    %s14 = ssub.s32 %s9, 1
    %s15 = ssub.s32 %s9, 2
    %s25 = sadd.s32 1, %s18
    %p26 = scmp.ge.s32.totalorder %s25, 1
    %s27 = scalar_select %p26, 0, %s25
    %s28 = sadd.s32 1, %s17
    %s29 = scalar_select %p26, %s28, %s17
    %p30 = scmp.ge.s32.totalorder %s29, 1
    %s31 = scalar_select %p30, 0, %s29
    %s32 = sadd.s32 1, %s16
    %s33 = scalar_select %p30, %s32, %s16
    %p34 = scmp.ge.s32.totalorder %s33, 2
    %s35 = scalar_select %p34, 0, %s33
    %s36 = ssub.s32 %s16, %s35
    %s37 = ssub.s32 %s17, %s31
    %s38 = sor.u32 %s36, %s37
    %p39 = scmp.eq.s32.totalorder %s38, 0
    %s41 = sadd.s32 %s40, 1
    %s42 = scalar_select %p39, %s40, %s41
    %p45 = pneg %p39
    %p46 = scmp.eq.s32.totalorder %s9, 1
    %p47 = por %p45, %p46
    %p48 = scmp.ne.s32.totalorder %s40, %s43
    %p49 = scmp.eq.s32.totalorder %s9, 0
    %p50 = por %p48, %p49
    %p51 = scmp.ne.s32.totalorder %s40, %s43
    %p52 = scmp.eq.s32.totalorder %s14, 1
    %p53 = por %p51, %p52
    %p54 = scmp.ne.s32.totalorder %s43, %s44
    %p55 = scmp.eq.s32.totalorder %s14, 0
    %p56 = por %p54, %p55
    %p57 = scmp.ne.s32.totalorder %s43, %s44
    %p58 = scmp.eq.s32.totalorder %s15, 1
    %p59 = por %p57, %p58
    %p61 = scmp.ne.s32.totalorder %s44, %s60
    %p62 = scmp.eq.s32.totalorder %s15, 0
    %p63 = por %p61, %p62
    %s64 = ssub.s32 %s16, %s35
    %s65 = ssub.s32 %s17, %s31
    %s66 = sor.u32 %s64, %s65
    %s67 = ssub.s32 %s18, %s27
    %s68 = sor.u32 %s66, %s67
    %p69 = scmp.eq.s32.totalorder %s68, 0
    %s71 = sadd.s32 %s70, 1
    %s72 = scalar_select %p69, %s70, %s71
    %p75 = pneg %p69
    %p76 = scmp.eq.s32.totalorder %s9, 1
    %p77 = por %p75, %p76
    %p78 = scmp.ne.s32.totalorder %s70, %s73
    %p79 = scmp.eq.s32.totalorder %s9, 0
    %p80 = por %p78, %p79
    %p81 = scmp.ne.s32.totalorder %s70, %s73
    %p82 = scmp.eq.s32.totalorder %s14, 1
    %p83 = por %p81, %p82
    %p84 = scmp.ne.s32.totalorder %s73, %s74
    %p85 = scmp.eq.s32.totalorder %s14, 0
    %p86 = por %p84, %p85
    %p87 = scmp.ne.s32.totalorder %s73, %s74
    %p88 = scmp.eq.s32.totalorder %s15, 1
    %p89 = por %p87, %p88
    %p91 = scmp.ne.s32.totalorder %s74, %s90
    %p92 = scmp.eq.s32.totalorder %s15, 0
    %p93 = por %p91, %p92
    %s94 = ssub.s32 %s18, %s27
    %p95 = scmp.eq.s32.totalorder %s94, 0
    %s97 = sadd.s32 %s96, 1
    %s98 = scalar_select %p95, %s96, %s97
    %p101 = pneg %p95
    %p102 = scmp.eq.s32.totalorder %s9, 1
    %p103 = por %p101, %p102
    %p104 = scmp.ne.s32.totalorder %s96, %s99
    %p105 = scmp.eq.s32.totalorder %s9, 0
    %p106 = por %p104, %p105
    %p107 = scmp.ne.s32.totalorder %s96, %s99
    %p108 = scmp.eq.s32.totalorder %s14, 1
    %p109 = por %p107, %p108
    %p110 = scmp.ne.s32.totalorder %s99, %s100
    %p111 = scmp.eq.s32.totalorder %s14, 0
    %p112 = por %p110, %p111
    %p113 = scmp.ne.s32.totalorder %s99, %s100
    %p114 = scmp.eq.s32.totalorder %s15, 1
    %p115 = por %p113, %p114
    %p117 = scmp.ne.s32.totalorder %s100, %s116
    %p118 = scmp.eq.s32.totalorder %s15, 0
    %p119 = por %p117, %p118
    %s120 = ssub.s32 %s16, %s35
    %s121 = ssub.s32 %s17, %s31
    %s122 = sor.u32 %s120, %s121
    %s123 = ssub.s32 %s18, %s27
    %s124 = sor.u32 %s122, %s123
    %p125 = scmp.eq.s32.totalorder %s124, 0
    %s127 = sadd.s32 %s126, 1
    %s128 = scalar_select %p125, %s126, %s127
    %p131 = pneg %p125
    %p132 = scmp.eq.s32.totalorder %s9, 1
    %p133 = por %p131, %p132
    %p134 = scmp.ne.s32.totalorder %s126, %s129
    %p135 = scmp.eq.s32.totalorder %s9, 0
    %p136 = por %p134, %p135
    %p137 = scmp.ne.s32.totalorder %s126, %s129
    %p138 = scmp.eq.s32.totalorder %s14, 1
    %p139 = por %p137, %p138
    %p140 = scmp.ne.s32.totalorder %s129, %s130
    %p141 = scmp.eq.s32.totalorder %s14, 0
    %p142 = por %p140, %p141
    %p143 = scmp.ne.s32.totalorder %s129, %s130
    %p144 = scmp.eq.s32.totalorder %s15, 1
    %p145 = por %p143, %p144
    %p147 = scmp.ne.s32.totalorder %s130, %s146
    %p148 = scmp.eq.s32.totalorder %s15, 0
    %p149 = por %p147, %p148
    %p150 = scmp.le.s32.totalorder 1, %s9
    %p151 = scmp.lt.s32.totalorder %s9, 3
    %p152 = pnand %p150, %p151
    %p153 = pneg %p152
    // Predicated region
    $region9: #{ca_transformer_forward.25} parent=5 // pred_check
      _
    $region10: #{ca_transformer_forward.25} parent=5 // pred_check_branch
      %155 = sbr.rel (%p152) target = $region12
    $region11: #{ca_transformer_forward.25} parent=5 // pred_region
      %s156 = ssub.s32 %s9, 1
      // Predicated region
      $region13: #{ca_transformer_forward.25} parent=11 // pred_check
        %p157 = pneg %p112
      $region14: #{ca_transformer_forward.25} parent=11 // pred_check_branch
        %159 = sbr.rel (%p157) target = $region16
      $region15: #{ca_transformer_forward.25} parent=11 // pred_region
        %p160 = scmp.lt.s32.totalorder %s21, 0
        %s161 = scalar_select %p160, %s21, 0
        %s162 = smul.addr %s161, 4
        %s163 = scalar_lea.vmem %s2, %s162
      $region16: #{ca_transformer_forward.25} parent=11 // pred_fallthru
        _
    $region12: #{ca_transformer_forward.25} parent=5 // pred_fallthru
      _
    %p164 = scmp.lt.s32.totalorder %s9, 2
    // Predicated region
    $region17: #{ca_transformer_forward.25} parent=5 // pred_check
      %p165 = pneg %p164
    $region18: #{ca_transformer_forward.25} parent=5 // pred_check_branch
      %167 = sbr.rel (%p165) target = $region20
    $region19: #{ca_transformer_forward.25} parent=5 // pred_region
      // Predicated region
      $region21: #{ca_transformer_forward.25} parent=19 // pred_check
        %p168 = pneg %p50
      $region22: #{ca_transformer_forward.25} parent=19 // pred_check_branch
        %170 = sbr.rel (%p168) target = $region24
      $region23: #{ca_transformer_forward.25} parent=19 // pred_region
        %s171 = smul.u32 8, %s17
        %p172 = scmp.lt.s32.totalorder %s16, 1
        %s173 = scalar_select %p172, %s16, 1
        %p174 = scmp.lt.s32.totalorder %s171, 7
        %s175 = scalar_select %p174, %s171, 7
        %s176 = smul.addr %s173, 8
        %s177 = sadd.s32 %s175, %s176
        %s178 = smul.addr %s177, 4
        %s179 = scalar_lea.vmem %s0, %s178
        %s180 = smul.u32 8, %s17
      $region24: #{ca_transformer_forward.25} parent=19 // pred_fallthru
        _
      // Predicated region
      $region25: #{ca_transformer_forward.25} parent=19 // pred_check
        %p181 = pneg %p80
      $region26: #{ca_transformer_forward.25} parent=19 // pred_check_branch
        %183 = sbr.rel (%p181) target = $region28
      $region27: #{ca_transformer_forward.25} parent=19 // pred_region
        %s184 = smul.u32 8, %s17
        %p185 = scmp.lt.s32.totalorder %s16, 1
        %s186 = scalar_select %p185, %s16, 1
        %p187 = scmp.lt.s32.totalorder %s184, 7
        %s188 = scalar_select %p187, %s184, 7
        %p189 = scmp.lt.s32.totalorder %s18, 0
        %s190 = scalar_select %p189, %s18, 0
        %s191 = sadd.s32 %s190, %s188
        %s192 = smul.addr %s186, 8
        %s193 = sadd.s32 %s191, %s192
        %s194 = smul.addr %s193, 8
        %s195 = scalar_lea.vmem %s1, %s194
        %s196 = smul.u32 8, %s17
      $region28: #{ca_transformer_forward.25} parent=19 // pred_fallthru
        _
    $region20: #{ca_transformer_forward.25} parent=5 // pred_fallthru
      _
    %p197 = scmp.le.s32.totalorder 1, %s9
    %p198 = scmp.lt.s32.totalorder %s9, 3
    %p199 = pnand %p197, %p198
    %p200 = pneg %p199
    // Predicated region
    $region29: #{ca_transformer_forward.25} parent=5 // pred_check
      _
    $region30: #{ca_transformer_forward.25} parent=5 // pred_check_branch
      %202 = sbr.rel (%p199) target = $region32
    $region31: #{ca_transformer_forward.25} parent=5 // pred_region
      %s203 = ssub.s32 %s9, 1
      %s204 = smul.u32 8, %s20
      %p205 = scmp.lt.s32.totalorder %s19, 1
      %s206 = scalar_select %p205, %s19, 1
      %p207 = scmp.lt.s32.totalorder %s204, 7
      %s208 = scalar_select %p207, %s204, 7
      %s209 = smul.addr %s206, 8
      %s210 = sadd.s32 %s208, %s209
      %s211 = smul.addr %s210, 4
      %s212 = scalar_lea.vmem %s0, %s211
      %p213 = pneg %p56
      %p214 = pneg %p53
      %s215 = smul.u32 8, %s20
      %p216 = scmp.lt.s32.totalorder %s19, 1
      %s217 = scalar_select %p216, %s19, 1
      %p218 = scmp.lt.s32.totalorder %s215, 7
      %s219 = scalar_select %p218, %s215, 7
      %p220 = scmp.lt.s32.totalorder %s21, 0
      %s221 = scalar_select %p220, %s21, 0
      %s222 = sadd.s32 %s221, %s219
      %s223 = smul.addr %s217, 8
      %s224 = sadd.s32 %s222, %s223
      %s225 = smul.addr %s224, 8
      %s226 = scalar_lea.vmem %s1, %s225
      %p227 = pneg %p86
      %p228 = pneg %p83
      %p229 = scmp.lt.s32.totalorder %s21, 0
      %s230 = scalar_select %p229, %s21, 0
      %s231 = smul.addr %s230, 4
      %s232 = scalar_lea.vmem %s2, %s231
      %p233 = pneg %p112
      %p234 = pneg %p109
      %p235 = pneg %p142
      %p236 = pneg %p139
      %s237 = smul.u32 8, %s20
      %p238 = scmp.lt.s32.totalorder %s19, 1
      %s239 = scalar_select %p238, %s19, 1
      %p240 = scmp.lt.s32.totalorder %s237, 7
      %s241 = scalar_select %p240, %s237, 7
      %p242 = scmp.lt.s32.totalorder %s21, 0
      %s243 = scalar_select %p242, %s21, 0
      %s244 = sadd.s32 %s243, %s241
      %s245 = smul.addr %s239, 8
      %s246 = sadd.s32 %s244, %s245
      %s247 = smul.addr %s246, 8
      %s248 = scalar_lea.vmem %s3, %s247
      %s249 = smul.u32 8, %s20
      %p250 = scmp.lt.s32.totalorder %s19, 1
      %s251 = scalar_select %p250, %s19, 1
      %p252 = scmp.lt.s32.totalorder %s249, 7
      %s253 = scalar_select %p252, %s249, 7
      %s254 = smul.addr %s251, 8
      %s255 = sadd.s32 %s253, %s254
      %s256 = smul.addr %s255, 4
      %s257 = scalar_lea.vmem %s0, %s256
      %s258 = smul.u32 8, %s20
      %s259 = smul.u32 8, %s20
      %p260 = scmp.lt.s32.totalorder %s19, 1
      %s261 = scalar_select %p260, %s19, 1
      %p262 = scmp.lt.s32.totalorder %s259, 7
      %s263 = scalar_select %p262, %s259, 7
      %p264 = scmp.lt.s32.totalorder %s21, 0
      %s265 = scalar_select %p264, %s21, 0
      %s266 = sadd.s32 %s265, %s263
      %s267 = smul.addr %s261, 8
      %s268 = sadd.s32 %s266, %s267
      %s269 = smul.addr %s268, 8
      %s270 = scalar_lea.vmem %s1, %s269
      %s271 = smul.u32 8, %s20
      %p272 = scmp.lt.s32.totalorder %s21, 0
      %s273 = scalar_select %p272, %s21, 0
      %s274 = smul.addr %s273, 4
      %s275 = scalar_lea.vmem %s2, %s274
      %s276 = smul.u32 8, %s20
      %p277 = scmp.lt.s32.totalorder %s19, 1
      %s278 = scalar_select %p277, %s19, 1
      %p279 = scmp.lt.s32.totalorder %s276, 7
      %s280 = scalar_select %p279, %s276, 7
      %p281 = scmp.lt.s32.totalorder %s21, 0
      %s282 = scalar_select %p281, %s21, 0
      %s283 = sadd.s32 %s282, %s280
      %s284 = smul.addr %s278, 8
      %s285 = sadd.s32 %s283, %s284
      %s286 = smul.addr %s285, 8
      %s287 = scalar_lea.vmem %s3, %s286
      %s288 = smul.u32 8, %s20
      %v289 = vld [vmem:[%s257] sm:$0xf]
      %v290 = vld [vmem:[%s257 + $0x4] sm:$0xf]
      %v291 = vld [vmem:[%s257 + $0x8] sm:$0xf]
      %v292 = vld [vmem:[%s257 + $0xc] sm:$0xf]
      %v293 = vld [vmem:[%s257 + $0x10] sm:$0xf]
      %v294 = vld [vmem:[%s257 + $0x14] sm:$0xf]
      %v295 = vld [vmem:[%s257 + $0x18] sm:$0xf]
      %v296 = vld [vmem:[%s257 + $0x1c] sm:$0xf]
      %v297 = vld [vmem:[%s275] sm:$0xf]
      %v298 = vld [vmem:[%s275 + $0x4] sm:$0xf]
      %v299 = vld [vmem:[%s275 + $0x8] sm:$0xf]
      %v300 = vld [vmem:[%s275 + $0xc] sm:$0xf]
      %v301 = vld [vmem:[%s275 + $0x10] sm:$0xf]
      %v302 = vld [vmem:[%s275 + $0x14] sm:$0xf]
      %v303 = vld [vmem:[%s275 + $0x18] sm:$0xf]
      %v304 = vld [vmem:[%s275 + $0x1c] sm:$0xf]
      %v305 = vld [vmem:[%s275 + $0x20] sm:$0xf]
      %v306 = vld [vmem:[%s275 + $0x24] sm:$0xf]
      %v307 = vld [vmem:[%s275 + $0x28] sm:$0xf]
      %v308 = vld [vmem:[%s275 + $0x2c] sm:$0xf]
      %v309 = vld [vmem:[%s275 + $0x30] sm:$0xf]
      %v310 = vld [vmem:[%s275 + $0x34] sm:$0xf]
      %v311 = vld [vmem:[%s275 + $0x38] sm:$0xf]
      %v312 = vld [vmem:[%s275 + $0x3c] sm:$0xf]
      %v321 = vunpack.c.l.b16 %v289
      %v322 = vunpack.c.l.b16 %v290
      %v323 = vunpack.c.l.b16 %v291
      %v324 = vunpack.c.l.b16 %v292
      %v325 = vunpack.c.l.b16 %v293
      %v326 = vunpack.c.l.b16 %v294
      %v327 = vunpack.c.l.b16 %v295
      %v328 = vunpack.c.l.b16 %v296
      %v329 = vpack.c.b16 %v322, %v321
      %v330 = vpack.c.b16 %v324, %v323
      %v331 = vpack.c.b16 %v326, %v325
      %v332 = vpack.c.b16 %v328, %v327
      %v353 = vunpack.c.l.b16 %v297
      %v354 = vunpack.c.l.b16 %v298
      %v355 = vunpack.c.l.b16 %v299
      %v356 = vunpack.c.l.b16 %v300
      %v357 = vunpack.c.l.b16 %v301
      %v358 = vunpack.c.l.b16 %v302
      %v359 = vunpack.c.l.b16 %v303
      %v360 = vunpack.c.l.b16 %v304
      %v361 = vunpack.c.l.b16 %v305
      %v362 = vunpack.c.l.b16 %v306
      %v363 = vunpack.c.l.b16 %v307
      %v364 = vunpack.c.l.b16 %v308
      %v365 = vunpack.c.l.b16 %v309
      %v366 = vunpack.c.l.b16 %v310
      %v367 = vunpack.c.l.b16 %v311
      %v368 = vunpack.c.l.b16 %v312
      %v369 = vpack.c.b16 %v354, %v353
      %v370 = vpack.c.b16 %v356, %v355
      %v371 = vpack.c.b16 %v358, %v357
      %v372 = vpack.c.b16 %v360, %v359
      %v373 = vpack.c.b16 %v362, %v361
      %v374 = vpack.c.b16 %v364, %v363
      %v375 = vpack.c.b16 %v366, %v365
      %v376 = vpack.c.b16 %v368, %v367
      %385 = vmatpush.bf16.msra.mxu0 %v376
      %386 = vmatpush.bf16.msra.mxu0 %v375
      %387 = vmatpush.bf16.msra.mxu0 %v374
      %388 = vmatpush.bf16.msra.mxu0 %v373
      %389 = vmatpush.bf16.msra.mxu0 %v372
      %390 = vmatpush.bf16.msra.mxu0 %v371
      %391 = vmatpush.bf16.msra.mxu0 %v370
      %392 = vmatpush.bf16.msra.mxu0 %v369
      %393 = vmatmul.bf16.gmra.mxu0 %v329
      %v394 = vpop.f32.mrf.mxu0
      %v395 = vadd.f32 0.0, %v394
      %v396 = vpop.f32.mrf.mxu0
      %v397 = vadd.f32 0.0, %v396
      %398 = vmatmul.bf16.gmra.mxu0 %v330
      %v399 = vpop.f32.mrf.mxu0
      %v400 = vadd.f32 0.0, %v399
      %v401 = vpop.f32.mrf.mxu0
      %v402 = vadd.f32 0.0, %v401
      %403 = vmatmul.bf16.gmra.mxu0 %v331
      %v404 = vpop.f32.mrf.mxu0
      %v405 = vadd.f32 0.0, %v404
      %v406 = vpop.f32.mrf.mxu0
      %v407 = vadd.f32 0.0, %v406
      %408 = vmatmul.bf16.gmra.mxu0 %v332
      %v409 = vpop.f32.mrf.mxu0
      %v410 = vadd.f32 0.0, %v409
      %v411 = vpop.f32.mrf.mxu0
      %v412 = vadd.f32 0.0, %v411
      %413 = vdwg.mxu0
      %v414 = vld [vmem:[%s270] sm:$0xff]
      %v415 = vld [vmem:[%s270 + $0x8] sm:$0xff]
      %v416 = vld [vmem:[%s270 + $0x10] sm:$0xff]
      %v417 = vld [vmem:[%s270 + $0x18] sm:$0xff]
      %v418 = vld [vmem:[%s270 + $0x20] sm:$0xff]
      %v419 = vld [vmem:[%s270 + $0x28] sm:$0xff]
      %v420 = vld [vmem:[%s270 + $0x30] sm:$0xff]
      %v421 = vld [vmem:[%s270 + $0x38] sm:$0xff]
      %v422 = vadd.f32 %v414, %v395
      %v423 = vadd.f32 %v415, %v397
      %v424 = vadd.f32 %v416, %v400
      %v425 = vadd.f32 %v417, %v402
      %v426 = vadd.f32 %v418, %v405
      %v427 = vadd.f32 %v419, %v407
      %v428 = vadd.f32 %v420, %v410
      %v429 = vadd.f32 %v421, %v412
      %430 = vst [vmem:[%s287] sm:$0xff] %v422
      %431 = vst [vmem:[%s287 + $0x8] sm:$0xff] %v423
      %432 = vst [vmem:[%s287 + $0x10] sm:$0xff] %v424
      %433 = vst [vmem:[%s287 + $0x18] sm:$0xff] %v425
      %434 = vst [vmem:[%s287 + $0x20] sm:$0xff] %v426
      %435 = vst [vmem:[%s287 + $0x28] sm:$0xff] %v427
      %436 = vst [vmem:[%s287 + $0x30] sm:$0xff] %v428
      %437 = vst [vmem:[%s287 + $0x38] sm:$0xff] %v429
      %s438 = smul.u32 8, %s20
      %p439 = scmp.lt.s32.totalorder %s19, 1
      %s440 = scalar_select %p439, %s19, 1
      %p441 = scmp.lt.s32.totalorder %s438, 7
      %s442 = scalar_select %p441, %s438, 7
      %p443 = scmp.lt.s32.totalorder %s21, 0
      %s444 = scalar_select %p443, %s21, 0
      %s445 = sadd.s32 %s444, %s442
      %s446 = smul.addr %s440, 8
      %s447 = sadd.s32 %s445, %s446
      %s448 = smul.addr %s447, 8
      %s449 = scalar_lea.vmem %s3, %s448
      // Predicated region
      $region33: #{ca_transformer_forward.25} parent=31 // pred_check
        %p450 = pneg %p139
      $region34: #{ca_transformer_forward.25} parent=31 // pred_check_branch
        %452 = sbr.rel (%p450) target = $region36
      $region35: #{ca_transformer_forward.25} parent=31 // pred_region
        %s453 = smul.u32 8, %s20
      $region36: #{ca_transformer_forward.25} parent=31 // pred_fallthru
        _
    $region32: #{ca_transformer_forward.25} parent=5 // pred_fallthru
      _
    %p454 = scmp.le.s32.totalorder 2, %s9
    // Predicated region
    $region37: #{ca_transformer_forward.25} parent=5 // pred_check
      %p455 = pneg %p454
    $region38: #{ca_transformer_forward.25} parent=5 // pred_check_branch
      %457 = sbr.rel (%p455) target = $region40
    $region39: #{ca_transformer_forward.25} parent=5 // pred_region
      %s458 = ssub.s32 %s9, 2
      // Predicated region
      $region41: #{ca_transformer_forward.25} parent=39 // pred_check
        %p459 = pneg %p145
      $region42: #{ca_transformer_forward.25} parent=39 // pred_check_branch
        %461 = sbr.rel (%p459) target = $region44
      $region43: #{ca_transformer_forward.25} parent=39 // pred_region
        %s462 = smul.u32 8, %s23
        %p463 = scmp.lt.s32.totalorder %s22, 1
        %s464 = scalar_select %p463, %s22, 1
        %p465 = scmp.lt.s32.totalorder %s462, 7
        %s466 = scalar_select %p465, %s462, 7
        %p467 = scmp.lt.s32.totalorder %s24, 0
        %s468 = scalar_select %p467, %s24, 0
        %s469 = sadd.s32 %s468, %s466
        %s470 = smul.addr %s464, 8
        %s471 = sadd.s32 %s469, %s470
        %s472 = smul.addr %s471, 8
        %s473 = scalar_lea.vmem %s3, %s472
      $region44: #{ca_transformer_forward.25} parent=39 // pred_fallthru
        _
    $region40: #{ca_transformer_forward.25} parent=5 // pred_fallthru
      _
  $region6: #{ca_transformer_forward.25} parent=0 // loop_footer
    %s13 = sadd.s32 1, %s9
  $region7: #{ca_transformer_forward.25} parent=0 // loop_footer_branch
    %8 = sbr.rel target = $region3
  $region8: #{ca_transformer_forward.25} parent=0 // loop_exit
    _

// kernel: ca_transformer_forward.26
$region0: #{ca_transformer_forward.26}
  #allocation0 [shape = 'u32[]', space=smem, size = 0x4, offset = 0x4, fixed_abs, tag = 'smem constant byte address 0x4 - core index']
  #allocation1 [shape = 'u32[72,128]{1,0:T(1,128)}', space=vmem, size = 0x9000, scoped, tag = 'internal scratch']
  %s0 = inlined_call_operand.vmem [shape: f32[2,64,128], index: 0, kind: input, shape index: {}]
  %s1 = inlined_call_operand.vmem [shape: f32[2,1,128], index: 1, kind: input, shape index: {}]
  %s2 = inlined_call_operand.vmem [shape: bf16[128,128], index: 2, kind: input, shape index: {}]
  %s3 = inlined_call_operand.vmem [shape: bf16[2,64,128], index: 3, kind: output, shape index: {}]
  %s4 = sld [smem:[#allocation0]]
  $region45: #{ca_transformer_forward.26} parent=0
    _
  %s6 = ssub.s32 1, %s4
  %s7 = scalar_select 0, %s6, %s4
  loop: start=0, step=1, limit=4
  $region2: #{ca_transformer_forward.26} parent=0 // loop_pre_header
    _
  $region3: #{ca_transformer_forward.26} parent=0 // loop_header
    %s9 = sphi 0, %s13
    %p10 = scmp.ge.s32.totalorder %s9, 4
    %s16 = sphi 0, %s35
    %s17 = sphi 0, %s31
    %s18 = sphi 0, %s27
    %s19 = sphi 0, %s16
    %s20 = sphi 0, %s17
    %s21 = sphi 0, %s18
    %s22 = sphi 0, %s19
    %s23 = sphi 0, %s20
    %s24 = sphi 0, %s21
    %s40 = sphi 0, %s42
    %s43 = sphi 0, %s40
    %s44 = sphi 0, %s43
    %s60 = sphi 0, %s44
    %s66 = sphi 0, %s68
    %s69 = sphi 0, %s66
    %s70 = sphi 0, %s69
    %s86 = sphi 0, %s70
    %s92 = sphi 0, %s94
    %s95 = sphi 0, %s92
    %s96 = sphi 0, %s95
    %s112 = sphi 0, %s96
    %s122 = sphi 0, %s124
    %s125 = sphi 0, %s122
    %s126 = sphi 0, %s125
    %s142 = sphi 0, %s126
  $region4: #{ca_transformer_forward.26} parent=0 // loop_header_branch
    %12 = sbr.rel (%p10) target = $region8
  $region5: #{ca_transformer_forward.26} parent=0 // loop_body
    %s14 = ssub.s32 %s9, 1
    %s15 = ssub.s32 %s9, 2
    %s25 = sadd.s32 1, %s18
    %p26 = scmp.ge.s32.totalorder %s25, 1
    %s27 = scalar_select %p26, 0, %s25
    %s28 = sadd.s32 1, %s17
    %s29 = scalar_select %p26, %s28, %s17
    %p30 = scmp.ge.s32.totalorder %s29, 1
    %s31 = scalar_select %p30, 0, %s29
    %s32 = sadd.s32 1, %s16
    %s33 = scalar_select %p30, %s32, %s16
    %p34 = scmp.ge.s32.totalorder %s33, 2
    %s35 = scalar_select %p34, 0, %s33
    %s36 = ssub.s32 %s16, %s35
    %s37 = ssub.s32 %s17, %s31
    %s38 = sor.u32 %s36, %s37
    %p39 = scmp.eq.s32.totalorder %s38, 0
    %s41 = sadd.s32 %s40, 1
    %s42 = scalar_select %p39, %s40, %s41
    %p45 = pneg %p39
    %p46 = scmp.eq.s32.totalorder %s9, 1
    %p47 = por %p45, %p46
    %p48 = scmp.ne.s32.totalorder %s40, %s43
    %p49 = scmp.eq.s32.totalorder %s9, 0
    %p50 = por %p48, %p49
    %p51 = scmp.ne.s32.totalorder %s40, %s43
    %p52 = scmp.eq.s32.totalorder %s14, 1
    %p53 = por %p51, %p52
    %p54 = scmp.ne.s32.totalorder %s43, %s44
    %p55 = scmp.eq.s32.totalorder %s14, 0
    %p56 = por %p54, %p55
    %p57 = scmp.ne.s32.totalorder %s43, %s44
    %p58 = scmp.eq.s32.totalorder %s15, 1
    %p59 = por %p57, %p58
    %p61 = scmp.ne.s32.totalorder %s44, %s60
    %p62 = scmp.eq.s32.totalorder %s15, 0
    %p63 = por %p61, %p62
    %s64 = ssub.s32 %s16, %s35
    %p65 = scmp.eq.s32.totalorder %s64, 0
    %s67 = sadd.s32 %s66, 1
    %s68 = scalar_select %p65, %s66, %s67
    %p71 = pneg %p65
    %p72 = scmp.eq.s32.totalorder %s9, 1
    %p73 = por %p71, %p72
    %p74 = scmp.ne.s32.totalorder %s66, %s69
    %p75 = scmp.eq.s32.totalorder %s9, 0
    %p76 = por %p74, %p75
    %p77 = scmp.ne.s32.totalorder %s66, %s69
    %p78 = scmp.eq.s32.totalorder %s14, 1
    %p79 = por %p77, %p78
    %p80 = scmp.ne.s32.totalorder %s69, %s70
    %p81 = scmp.eq.s32.totalorder %s14, 0
    %p82 = por %p80, %p81
    %p83 = scmp.ne.s32.totalorder %s69, %s70
    %p84 = scmp.eq.s32.totalorder %s15, 1
    %p85 = por %p83, %p84
    %p87 = scmp.ne.s32.totalorder %s70, %s86
    %p88 = scmp.eq.s32.totalorder %s15, 0
    %p89 = por %p87, %p88
    %s90 = ssub.s32 %s18, %s27
    %p91 = scmp.eq.s32.totalorder %s90, 0
    %s93 = sadd.s32 %s92, 1
    %s94 = scalar_select %p91, %s92, %s93
    %p97 = pneg %p91
    %p98 = scmp.eq.s32.totalorder %s9, 1
    %p99 = por %p97, %p98
    %p100 = scmp.ne.s32.totalorder %s92, %s95
    %p101 = scmp.eq.s32.totalorder %s9, 0
    %p102 = por %p100, %p101
    %p103 = scmp.ne.s32.totalorder %s92, %s95
    %p104 = scmp.eq.s32.totalorder %s14, 1
    %p105 = por %p103, %p104
    %p106 = scmp.ne.s32.totalorder %s95, %s96
    %p107 = scmp.eq.s32.totalorder %s14, 0
    %p108 = por %p106, %p107
    %p109 = scmp.ne.s32.totalorder %s95, %s96
    %p110 = scmp.eq.s32.totalorder %s15, 1
    %p111 = por %p109, %p110
    %p113 = scmp.ne.s32.totalorder %s96, %s112
    %p114 = scmp.eq.s32.totalorder %s15, 0
    %p115 = por %p113, %p114
    %s116 = ssub.s32 %s16, %s35
    %s117 = ssub.s32 %s17, %s31
    %s118 = sor.u32 %s116, %s117
    %s119 = ssub.s32 %s18, %s27
    %s120 = sor.u32 %s118, %s119
    %p121 = scmp.eq.s32.totalorder %s120, 0
    %s123 = sadd.s32 %s122, 1
    %s124 = scalar_select %p121, %s122, %s123
    %p127 = pneg %p121
    %p128 = scmp.eq.s32.totalorder %s9, 1
    %p129 = por %p127, %p128
    %p130 = scmp.ne.s32.totalorder %s122, %s125
    %p131 = scmp.eq.s32.totalorder %s9, 0
    %p132 = por %p130, %p131
    %p133 = scmp.ne.s32.totalorder %s122, %s125
    %p134 = scmp.eq.s32.totalorder %s14, 1
    %p135 = por %p133, %p134
    %p136 = scmp.ne.s32.totalorder %s125, %s126
    %p137 = scmp.eq.s32.totalorder %s14, 0
    %p138 = por %p136, %p137
    %p139 = scmp.ne.s32.totalorder %s125, %s126
    %p140 = scmp.eq.s32.totalorder %s15, 1
    %p141 = por %p139, %p140
    %p143 = scmp.ne.s32.totalorder %s126, %s142
    %p144 = scmp.eq.s32.totalorder %s15, 0
    %p145 = por %p143, %p144
    %p146 = scmp.le.s32.totalorder 1, %s9
    %p147 = scmp.lt.s32.totalorder %s9, 3
    %p148 = pnand %p146, %p147
    %p149 = pneg %p148
    // Predicated region
    $region9: #{ca_transformer_forward.26} parent=5 // pred_check
      _
    $region10: #{ca_transformer_forward.26} parent=5 // pred_check_branch
      %151 = sbr.rel (%p148) target = $region12
    $region11: #{ca_transformer_forward.26} parent=5 // pred_region
      %s152 = ssub.s32 %s9, 1
      // Predicated region
      $region13: #{ca_transformer_forward.26} parent=11 // pred_check
        %p153 = pneg %p108
      $region14: #{ca_transformer_forward.26} parent=11 // pred_check_branch
        %155 = sbr.rel (%p153) target = $region16
      $region15: #{ca_transformer_forward.26} parent=11 // pred_region
        %p156 = scmp.lt.s32.totalorder %s21, 0
        %s157 = scalar_select %p156, %s21, 0
        %s158 = smul.addr %s157, 4
        %s159 = scalar_lea.vmem %s2, %s158
      $region16: #{ca_transformer_forward.26} parent=11 // pred_fallthru
        _
    $region12: #{ca_transformer_forward.26} parent=5 // pred_fallthru
      _
    %p160 = scmp.lt.s32.totalorder %s9, 2
    // Predicated region
    $region17: #{ca_transformer_forward.26} parent=5 // pred_check
      %p161 = pneg %p160
    $region18: #{ca_transformer_forward.26} parent=5 // pred_check_branch
      %163 = sbr.rel (%p161) target = $region20
    $region19: #{ca_transformer_forward.26} parent=5 // pred_region
      // Predicated region
      $region21: #{ca_transformer_forward.26} parent=19 // pred_check
        %p164 = pneg %p50
      $region22: #{ca_transformer_forward.26} parent=19 // pred_check_branch
        %166 = sbr.rel (%p164) target = $region24
      $region23: #{ca_transformer_forward.26} parent=19 // pred_region
        %s167 = smul.u32 8, %s17
        %p168 = scmp.lt.s32.totalorder %s16, 1
        %s169 = scalar_select %p168, %s16, 1
        %p170 = scmp.lt.s32.totalorder %s167, 7
        %s171 = scalar_select %p170, %s167, 7
        %s172 = smul.addr %s169, 8
        %s173 = sadd.s32 %s171, %s172
        %s174 = smul.addr %s173, 8
        %s175 = scalar_lea.vmem %s0, %s174
        %s176 = smul.u32 8, %s17
      $region24: #{ca_transformer_forward.26} parent=19 // pred_fallthru
        _
      // Predicated region
      $region25: #{ca_transformer_forward.26} parent=19 // pred_check
        %p177 = pneg %p76
      $region26: #{ca_transformer_forward.26} parent=19 // pred_check_branch
        %179 = sbr.rel (%p177) target = $region28
      $region27: #{ca_transformer_forward.26} parent=19 // pred_region
        %p180 = scmp.lt.s32.totalorder %s16, 1
        %s181 = scalar_select %p180, %s16, 1
        %s182 = scalar_lea.vmem %s1, %s181
      $region28: #{ca_transformer_forward.26} parent=19 // pred_fallthru
        _
    $region20: #{ca_transformer_forward.26} parent=5 // pred_fallthru
      _
    %p183 = scmp.le.s32.totalorder 1, %s9
    %p184 = scmp.lt.s32.totalorder %s9, 3
    %p185 = pnand %p183, %p184
    %p186 = pneg %p185
    // Predicated region
    $region29: #{ca_transformer_forward.26} parent=5 // pred_check
      _
    $region30: #{ca_transformer_forward.26} parent=5 // pred_check_branch
      %188 = sbr.rel (%p185) target = $region32
    $region31: #{ca_transformer_forward.26} parent=5 // pred_region
      %s189 = ssub.s32 %s9, 1
      %s190 = smul.u32 8, %s20
      %p191 = scmp.lt.s32.totalorder %s19, 1
      %s192 = scalar_select %p191, %s19, 1
      %p193 = scmp.lt.s32.totalorder %s190, 7
      %s194 = scalar_select %p193, %s190, 7
      %s195 = smul.addr %s192, 8
      %s196 = sadd.s32 %s194, %s195
      %s197 = smul.addr %s196, 8
      %s198 = scalar_lea.vmem %s0, %s197
      %p199 = pneg %p56
      %p200 = pneg %p53
      %p201 = scmp.lt.s32.totalorder %s19, 1
      %s202 = scalar_select %p201, %s19, 1
      %s203 = scalar_lea.vmem %s1, %s202
      %p204 = pneg %p82
      %p205 = pneg %p79
      %p206 = scmp.lt.s32.totalorder %s21, 0
      %s207 = scalar_select %p206, %s21, 0
      %s208 = smul.addr %s207, 4
      %s209 = scalar_lea.vmem %s2, %s208
      %p210 = pneg %p108
      %p211 = pneg %p105
      %p212 = pneg %p138
      %p213 = pneg %p135
      %s214 = smul.u32 8, %s20
      %p215 = scmp.lt.s32.totalorder %s19, 1
      %s216 = scalar_select %p215, %s19, 1
      %p217 = scmp.lt.s32.totalorder %s214, 7
      %s218 = scalar_select %p217, %s214, 7
      %p219 = scmp.lt.s32.totalorder %s21, 0
      %s220 = scalar_select %p219, %s21, 0
      %s221 = sadd.s32 %s220, %s218
      %s222 = smul.addr %s216, 8
      %s223 = sadd.s32 %s221, %s222
      %s224 = smul.addr %s223, 4
      %s225 = scalar_lea.vmem %s3, %s224
      %s226 = smul.u32 8, %s20
      %p227 = scmp.lt.s32.totalorder %s19, 1
      %s228 = scalar_select %p227, %s19, 1
      %p229 = scmp.lt.s32.totalorder %s226, 7
      %s230 = scalar_select %p229, %s226, 7
      %s231 = smul.addr %s228, 8
      %s232 = sadd.s32 %s230, %s231
      %s233 = smul.addr %s232, 8
      %s234 = scalar_lea.vmem %s0, %s233
      %s235 = smul.u32 8, %s20
      %p236 = scmp.lt.s32.totalorder %s19, 1
      %s237 = scalar_select %p236, %s19, 1
      %s238 = scalar_lea.vmem %s1, %s237
      %p239 = scmp.lt.s32.totalorder %s21, 0
      %s240 = scalar_select %p239, %s21, 0
      %s241 = smul.addr %s240, 4
      %s242 = scalar_lea.vmem %s2, %s241
      %s243 = smul.u32 8, %s20
      %p244 = scmp.lt.s32.totalorder %s19, 1
      %s245 = scalar_select %p244, %s19, 1
      %p246 = scmp.lt.s32.totalorder %s243, 7
      %s247 = scalar_select %p246, %s243, 7
      %p248 = scmp.lt.s32.totalorder %s21, 0
      %s249 = scalar_select %p248, %s21, 0
      %s250 = sadd.s32 %s249, %s247
      %s251 = smul.addr %s245, 8
      %s252 = sadd.s32 %s250, %s251
      %s253 = smul.addr %s252, 4
      %s254 = scalar_lea.vmem %s3, %s253
      %s255 = smul.u32 8, %s20
      %v256 = vld [vmem:[%s234] sm:$0xff]
      %v257 = vld [vmem:[%s234 + $0x8] sm:$0xff]
      %v258 = vld [vmem:[%s234 + $0x10] sm:$0xff]
      %v259 = vld [vmem:[%s234 + $0x18] sm:$0xff]
      %v260 = vld [vmem:[%s234 + $0x20] sm:$0xff]
      %v261 = vld [vmem:[%s234 + $0x28] sm:$0xff]
      %v262 = vld [vmem:[%s234 + $0x30] sm:$0xff]
      %v263 = vld [vmem:[%s234 + $0x38] sm:$0xff]
      %v264 = vld [vmem:[%s238] sm:$0x1]
      %v265 = vmul.f32 %v256, %v256
      %v266 = vmul.f32 %v257, %v257
      %v267 = vmul.f32 %v258, %v258
      %v268 = vmul.f32 %v259, %v259
      %v269 = vmul.f32 %v260, %v260
      %v270 = vmul.f32 %v261, %v261
      %v271 = vmul.f32 %v262, %v262
      %v272 = vmul.f32 %v263, %v263
      %273 = vadd.xlane.f32.xlu0 %v265
      %v274 = vpop.xlane.xlu0 %273
      %275 = vadd.xlane.f32.xlu0 %v266
      %v276 = vpop.xlane.xlu0 %275
      %277 = vadd.xlane.f32.xlu0 %v267
      %v278 = vpop.xlane.xlu0 %277
      %279 = vadd.xlane.f32.xlu0 %v268
      %v280 = vpop.xlane.xlu0 %279
      %281 = vadd.xlane.f32.xlu0 %v269
      %v282 = vpop.xlane.xlu0 %281
      %283 = vadd.xlane.f32.xlu0 %v270
      %v284 = vpop.xlane.xlu0 %283
      %285 = vadd.xlane.f32.xlu0 %v271
      %v286 = vpop.xlane.xlu0 %285
      %287 = vadd.xlane.f32.xlu0 %v272
      %v288 = vpop.xlane.xlu0 %287
      %v289 = vrcp.pop 128.0
      %v290 = vmul.f32 128.0, %v289
      %v291 = vsub.f32 1.0, %v290
      %v292 = vmul.f32 %v289, %v291
      %v293 = vadd.f32 %v289, %v292
      %vm294 = vweird.f32 %v289
      %v295 = vsel %vm294, %v289, %v293
      %v296 = vmul.f32 %v274, %v295
      %v297 = vmul.f32 %v276, %v295
      %v298 = vmul.f32 %v278, %v295
      %v299 = vmul.f32 %v280, %v295
      %v300 = vmul.f32 %v282, %v295
      %v301 = vmul.f32 %v284, %v295
      %v302 = vmul.f32 %v286, %v295
      %v303 = vmul.f32 %v288, %v295
      %v304 = vadd.f32 %v296, 1e-06
      %v305 = vadd.f32 %v297, 1e-06
      %v306 = vadd.f32 %v298, 1e-06
      %v307 = vadd.f32 %v299, 1e-06
      %v308 = vadd.f32 %v300, 1e-06
      %v309 = vadd.f32 %v301, 1e-06
      %v310 = vadd.f32 %v302, 1e-06
      %v311 = vadd.f32 %v303, 1e-06
      %v312 = vrsqrt.pop %v304
      %v313 = vmul.f32 %v312, %v304
      %v314 = vmul.f32 %v313, %v312
      %v315 = vmul.f32 0.5, %v314
      %v316 = vsub.f32 1.5, %v315
      %v317 = vmul.f32 %v312, %v316
      %vm318 = vweird.f32 %v304
      %vm319 = vweird.f32 %v312
      %vm320 = vmor %vm318, %vm319
      %v321 = vsel %vm320, %v312, %v317
      %v322 = vrsqrt.pop %v305
      %v323 = vmul.f32 %v322, %v305
      %v324 = vmul.f32 %v323, %v322
      %v325 = vmul.f32 0.5, %v324
      %v326 = vsub.f32 1.5, %v325
      %v327 = vmul.f32 %v322, %v326
      %vm328 = vweird.f32 %v305
      %vm329 = vweird.f32 %v322
      %vm330 = vmor %vm328, %vm329
      %v331 = vsel %vm330, %v322, %v327
      %v332 = vrsqrt.pop %v306
      %v333 = vmul.f32 %v332, %v306
      %v334 = vmul.f32 %v333, %v332
      %v335 = vmul.f32 0.5, %v334
      %v336 = vsub.f32 1.5, %v335
      %v337 = vmul.f32 %v332, %v336
      %vm338 = vweird.f32 %v306
      %vm339 = vweird.f32 %v332
      %vm340 = vmor %vm338, %vm339
      %v341 = vsel %vm340, %v332, %v337
      %v342 = vrsqrt.pop %v307
      %v343 = vmul.f32 %v342, %v307
      %v344 = vmul.f32 %v343, %v342
      %v345 = vmul.f32 0.5, %v344
      %v346 = vsub.f32 1.5, %v345
      %v347 = vmul.f32 %v342, %v346
      %vm348 = vweird.f32 %v307
      %vm349 = vweird.f32 %v342
      %vm350 = vmor %vm348, %vm349
      %v351 = vsel %vm350, %v342, %v347
      %v352 = vrsqrt.pop %v308
      %v353 = vmul.f32 %v352, %v308
      %v354 = vmul.f32 %v353, %v352
      %v355 = vmul.f32 0.5, %v354
      %v356 = vsub.f32 1.5, %v355
      %v357 = vmul.f32 %v352, %v356
      %vm358 = vweird.f32 %v308
      %vm359 = vweird.f32 %v352
      %vm360 = vmor %vm358, %vm359
      %v361 = vsel %vm360, %v352, %v357
      %v362 = vrsqrt.pop %v309
      %v363 = vmul.f32 %v362, %v309
      %v364 = vmul.f32 %v363, %v362
      %v365 = vmul.f32 0.5, %v364
      %v366 = vsub.f32 1.5, %v365
      %v367 = vmul.f32 %v362, %v366
      %vm368 = vweird.f32 %v309
      %vm369 = vweird.f32 %v362
      %vm370 = vmor %vm368, %vm369
      %v371 = vsel %vm370, %v362, %v367
      %v372 = vrsqrt.pop %v310
      %v373 = vmul.f32 %v372, %v310
      %v374 = vmul.f32 %v373, %v372
      %v375 = vmul.f32 0.5, %v374
      %v376 = vsub.f32 1.5, %v375
      %v377 = vmul.f32 %v372, %v376
      %vm378 = vweird.f32 %v310
      %vm379 = vweird.f32 %v372
      %vm380 = vmor %vm378, %vm379
      %v381 = vsel %vm380, %v372, %v377
      %v382 = vrsqrt.pop %v311
      %v383 = vmul.f32 %v382, %v311
      %v384 = vmul.f32 %v383, %v382
      %v385 = vmul.f32 0.5, %v384
      %v386 = vsub.f32 1.5, %v385
      %v387 = vmul.f32 %v382, %v386
      %vm388 = vweird.f32 %v311
      %vm389 = vweird.f32 %v382
      %vm390 = vmor %vm388, %vm389
      %v391 = vsel %vm390, %v382, %v387
      %v392 = vmul.f32 %v256, %v321
      %v393 = vmul.f32 %v257, %v331
      %v394 = vmul.f32 %v258, %v341
      %v395 = vmul.f32 %v259, %v351
      %v396 = vmul.f32 %v260, %v361
      %v397 = vmul.f32 %v261, %v371
      %v398 = vmul.f32 %v262, %v381
      %v399 = vmul.f32 %v263, %v391
      %v400 = vadd.f32 %v264, 1.0
      %v402 = vperm.slane %v400, 0
      %v404 = vmul.f32 %v392, %v402
      %v405 = vmul.f32 %v393, %v402
      %v406 = vmul.f32 %v394, %v402
      %v407 = vmul.f32 %v395, %v402
      %v408 = vmul.f32 %v396, %v402
      %v409 = vmul.f32 %v397, %v402
      %v410 = vmul.f32 %v398, %v402
      %v411 = vmul.f32 %v399, %v402
      %v412 = vpack.c.bf16 %v405, %v404
      %v413 = vpack.c.bf16 %v407, %v406
      %v414 = vpack.c.bf16 %v409, %v408
      %v415 = vpack.c.bf16 %v411, %v410
      %v416 = vld [vmem:[%s242] sm:$0xf]
      %v417 = vld [vmem:[%s242 + $0x4] sm:$0xf]
      %v418 = vld [vmem:[%s242 + $0x8] sm:$0xf]
      %v419 = vld [vmem:[%s242 + $0xc] sm:$0xf]
      %v420 = vld [vmem:[%s242 + $0x10] sm:$0xf]
      %v421 = vld [vmem:[%s242 + $0x14] sm:$0xf]
      %v422 = vld [vmem:[%s242 + $0x18] sm:$0xf]
      %v423 = vld [vmem:[%s242 + $0x1c] sm:$0xf]
      %v424 = vld [vmem:[%s242 + $0x20] sm:$0xf]
      %v425 = vld [vmem:[%s242 + $0x24] sm:$0xf]
      %v426 = vld [vmem:[%s242 + $0x28] sm:$0xf]
      %v427 = vld [vmem:[%s242 + $0x2c] sm:$0xf]
      %v428 = vld [vmem:[%s242 + $0x30] sm:$0xf]
      %v429 = vld [vmem:[%s242 + $0x34] sm:$0xf]
      %v430 = vld [vmem:[%s242 + $0x38] sm:$0xf]
      %v431 = vld [vmem:[%s242 + $0x3c] sm:$0xf]
      %v448 = vunpack.c.l.b16 %v416
      %v449 = vunpack.c.l.b16 %v417
      %v450 = vunpack.c.l.b16 %v418
      %v451 = vunpack.c.l.b16 %v419
      %v452 = vunpack.c.l.b16 %v420
      %v453 = vunpack.c.l.b16 %v421
      %v454 = vunpack.c.l.b16 %v422
      %v455 = vunpack.c.l.b16 %v423
      %v456 = vunpack.c.l.b16 %v424
      %v457 = vunpack.c.l.b16 %v425
      %v458 = vunpack.c.l.b16 %v426
      %v459 = vunpack.c.l.b16 %v427
      %v460 = vunpack.c.l.b16 %v428
      %v461 = vunpack.c.l.b16 %v429
      %v462 = vunpack.c.l.b16 %v430
      %v463 = vunpack.c.l.b16 %v431
      %v464 = vpack.c.b16 %v449, %v448
      %v465 = vpack.c.b16 %v451, %v450
      %v466 = vpack.c.b16 %v453, %v452
      %v467 = vpack.c.b16 %v455, %v454
      %v468 = vpack.c.b16 %v457, %v456
      %v469 = vpack.c.b16 %v459, %v458
      %v470 = vpack.c.b16 %v461, %v460
      %v471 = vpack.c.b16 %v463, %v462
      %480 = vmatpush.bf16.msra.mxu0 %v471
      %481 = vmatpush.bf16.msra.mxu0 %v470
      %482 = vmatpush.bf16.msra.mxu0 %v469
      %483 = vmatpush.bf16.msra.mxu0 %v468
      %484 = vmatpush.bf16.msra.mxu0 %v467
      %485 = vmatpush.bf16.msra.mxu0 %v466
      %486 = vmatpush.bf16.msra.mxu0 %v465
      %487 = vmatpush.bf16.msra.mxu0 %v464
      %488 = vmatmul.bf16.gmra.mxu0 %v412
      %v489 = vpop.f32.mrf.mxu0
      %v490 = vadd.f32 0.0, %v489
      %v491 = vpop.f32.mrf.mxu0
      %v492 = vadd.f32 0.0, %v491
      %493 = vmatmul.bf16.gmra.mxu0 %v413
      %v494 = vpop.f32.mrf.mxu0
      %v495 = vadd.f32 0.0, %v494
      %v496 = vpop.f32.mrf.mxu0
      %v497 = vadd.f32 0.0, %v496
      %498 = vmatmul.bf16.gmra.mxu0 %v414
      %v499 = vpop.f32.mrf.mxu0
      %v500 = vadd.f32 0.0, %v499
      %v501 = vpop.f32.mrf.mxu0
      %v502 = vadd.f32 0.0, %v501
      %503 = vmatmul.bf16.gmra.mxu0 %v415
      %v504 = vpop.f32.mrf.mxu0
      %v505 = vadd.f32 0.0, %v504
      %v506 = vpop.f32.mrf.mxu0
      %v507 = vadd.f32 0.0, %v506
      %508 = vdwg.mxu0
      %v509 = vpack.c.bf16 %v490, %v490
      %v510 = vpack.c.bf16 %v492, %v492
      %v511 = vpack.c.bf16 %v495, %v495
      %v512 = vpack.c.bf16 %v497, %v497
      %v513 = vpack.c.bf16 %v500, %v500
      %v514 = vpack.c.bf16 %v502, %v502
      %v515 = vpack.c.bf16 %v505, %v505
      %v516 = vpack.c.bf16 %v507, %v507
      %517 = vst [vmem:[%s254] sm:$0xf] %v509
      %518 = vst [vmem:[%s254 + $0x4] sm:$0xf] %v510
      %519 = vst [vmem:[%s254 + $0x8] sm:$0xf] %v511
      %520 = vst [vmem:[%s254 + $0xc] sm:$0xf] %v512
      %521 = vst [vmem:[%s254 + $0x10] sm:$0xf] %v513
      %522 = vst [vmem:[%s254 + $0x14] sm:$0xf] %v514
      %523 = vst [vmem:[%s254 + $0x18] sm:$0xf] %v515
      %524 = vst [vmem:[%s254 + $0x1c] sm:$0xf] %v516
      %s525 = smul.u32 8, %s20
      %p526 = scmp.lt.s32.totalorder %s19, 1
      %s527 = scalar_select %p526, %s19, 1
      %p528 = scmp.lt.s32.totalorder %s525, 7
      %s529 = scalar_select %p528, %s525, 7
      %p530 = scmp.lt.s32.totalorder %s21, 0
      %s531 = scalar_select %p530, %s21, 0
      %s532 = sadd.s32 %s531, %s529
      %s533 = smul.addr %s527, 8
      %s534 = sadd.s32 %s532, %s533
      %s535 = smul.addr %s534, 4
      %s536 = scalar_lea.vmem %s3, %s535
      // Predicated region
      $region33: #{ca_transformer_forward.26} parent=31 // pred_check
        %p537 = pneg %p135
      $region34: #{ca_transformer_forward.26} parent=31 // pred_check_branch
        %539 = sbr.rel (%p537) target = $region36
      $region35: #{ca_transformer_forward.26} parent=31 // pred_region
        %s540 = smul.u32 8, %s20
      $region36: #{ca_transformer_forward.26} parent=31 // pred_fallthru
        _
    $region32: #{ca_transformer_forward.26} parent=5 // pred_fallthru
      _
    %p541 = scmp.le.s32.totalorder 2, %s9
    // Predicated region
    $region37: #{ca_transformer_forward.26} parent=5 // pred_check
      %p542 = pneg %p541
    $region38: #{ca_transformer_forward.26} parent=5 // pred_check_branch
      %544 = sbr.rel (%p542) target = $region40
    $region39: #{ca_transformer_forward.26} parent=5 // pred_region
      %s545 = ssub.s32 %s9, 2
      // Predicated region
      $region41: #{ca_transformer_forward.26} parent=39 // pred_check
        %p546 = pneg %p141
      $region42: #{ca_transformer_forward.26} parent=39 // pred_check_branch
        %548 = sbr.rel (%p546) target = $region44
      $region43: #{ca_transformer_forward.26} parent=39 // pred_region
        %s549 = smul.u32 8, %s23
        %p550 = scmp.lt.s32.totalorder %s22, 1
        %s551 = scalar_select %p550, %s22, 1
        %p552 = scmp.lt.s32.totalorder %s549, 7
        %s553 = scalar_select %p552, %s549, 7
        %p554 = scmp.lt.s32.totalorder %s24, 0
        %s555 = scalar_select %p554, %s24, 0
        %s556 = sadd.s32 %s555, %s553
        %s557 = smul.addr %s551, 8
        %s558 = sadd.s32 %s556, %s557
        %s559 = smul.addr %s558, 4
        %s560 = scalar_lea.vmem %s3, %s559
      $region44: #{ca_transformer_forward.26} parent=39 // pred_fallthru
        _
    $region40: #{ca_transformer_forward.26} parent=5 // pred_fallthru
      _
  $region6: #{ca_transformer_forward.26} parent=0 // loop_footer
    %s13 = sadd.s32 1, %s9
  $region7: #{ca_transformer_forward.26} parent=0 // loop_footer_branch
    %8 = sbr.rel target = $region3
  $region8: #{ca_transformer_forward.26} parent=0 // loop_exit
    _

// kernel: ca_transformer_forward.27
$region0: #{ca_transformer_forward.27}
  #allocation0 [shape = 'u32[]', space=smem, size = 0x4, offset = 0x4, fixed_abs, tag = 'smem constant byte address 0x4 - core index']
  #allocation1 [shape = 'u32[72,128]{1,0:T(1,128)}', space=vmem, size = 0x9000, scoped, tag = 'internal scratch']
  %s0 = inlined_call_operand.vmem [shape: bf16[2,8,64], index: 0, kind: input, shape index: {}]
  %s1 = inlined_call_operand.vmem [shape: bf16[64,256], index: 1, kind: input, shape index: {}]
  %s2 = inlined_call_operand.vmem [shape: bf16[2,8,256], index: 2, kind: output, shape index: {}]
  %s3 = sld [smem:[#allocation0]]
  $region41: #{ca_transformer_forward.27} parent=0
    _
  %s5 = ssub.s32 1, %s3
  %s6 = scalar_select 0, %s5, %s3
  loop: start=0, step=1, limit=4
  $region2: #{ca_transformer_forward.27} parent=0 // loop_pre_header
    _
  $region3: #{ca_transformer_forward.27} parent=0 // loop_header
    %s8 = sphi 0, %s12
    %p9 = scmp.ge.s32.totalorder %s8, 4
    %s15 = sphi 0, %s34
    %s16 = sphi 0, %s30
    %s17 = sphi 0, %s26
    %s18 = sphi 0, %s15
    %s19 = sphi 0, %s16
    %s20 = sphi 0, %s17
    %s21 = sphi 0, %s18
    %s22 = sphi 0, %s19
    %s23 = sphi 0, %s20
    %s39 = sphi 0, %s41
    %s42 = sphi 0, %s39
    %s43 = sphi 0, %s42
    %s59 = sphi 0, %s43
    %s65 = sphi 0, %s67
    %s68 = sphi 0, %s65
    %s69 = sphi 0, %s68
    %s85 = sphi 0, %s69
    %s95 = sphi 0, %s97
    %s98 = sphi 0, %s95
    %s99 = sphi 0, %s98
    %s115 = sphi 0, %s99
  $region4: #{ca_transformer_forward.27} parent=0 // loop_header_branch
    %11 = sbr.rel (%p9) target = $region8
  $region5: #{ca_transformer_forward.27} parent=0 // loop_body
    %s13 = ssub.s32 %s8, 1
    %s14 = ssub.s32 %s8, 2
    %s24 = sadd.s32 1, %s17
    %p25 = scmp.ge.s32.totalorder %s24, 1
    %s26 = scalar_select %p25, 0, %s24
    %s27 = sadd.s32 1, %s16
    %s28 = scalar_select %p25, %s27, %s16
    %p29 = scmp.ge.s32.totalorder %s28, 1
    %s30 = scalar_select %p29, 0, %s28
    %s31 = sadd.s32 1, %s15
    %s32 = scalar_select %p29, %s31, %s15
    %p33 = scmp.ge.s32.totalorder %s32, 2
    %s34 = scalar_select %p33, 0, %s32
    %s35 = ssub.s32 %s15, %s34
    %s36 = ssub.s32 %s16, %s30
    %s37 = sor.u32 %s35, %s36
    %p38 = scmp.eq.s32.totalorder %s37, 0
    %s40 = sadd.s32 %s39, 1
    %s41 = scalar_select %p38, %s39, %s40
    %p44 = pneg %p38
    %p45 = scmp.eq.s32.totalorder %s8, 1
    %p46 = por %p44, %p45
    %p47 = scmp.ne.s32.totalorder %s39, %s42
    %p48 = scmp.eq.s32.totalorder %s8, 0
    %p49 = por %p47, %p48
    %p50 = scmp.ne.s32.totalorder %s39, %s42
    %p51 = scmp.eq.s32.totalorder %s13, 1
    %p52 = por %p50, %p51
    %p53 = scmp.ne.s32.totalorder %s42, %s43
    %p54 = scmp.eq.s32.totalorder %s13, 0
    %p55 = por %p53, %p54
    %p56 = scmp.ne.s32.totalorder %s42, %s43
    %p57 = scmp.eq.s32.totalorder %s14, 1
    %p58 = por %p56, %p57
    %p60 = scmp.ne.s32.totalorder %s43, %s59
    %p61 = scmp.eq.s32.totalorder %s14, 0
    %p62 = por %p60, %p61
    %s63 = ssub.s32 %s17, %s26
    %p64 = scmp.eq.s32.totalorder %s63, 0
    %s66 = sadd.s32 %s65, 1
    %s67 = scalar_select %p64, %s65, %s66
    %p70 = pneg %p64
    %p71 = scmp.eq.s32.totalorder %s8, 1
    %p72 = por %p70, %p71
    %p73 = scmp.ne.s32.totalorder %s65, %s68
    %p74 = scmp.eq.s32.totalorder %s8, 0
    %p75 = por %p73, %p74
    %p76 = scmp.ne.s32.totalorder %s65, %s68
    %p77 = scmp.eq.s32.totalorder %s13, 1
    %p78 = por %p76, %p77
    %p79 = scmp.ne.s32.totalorder %s68, %s69
    %p80 = scmp.eq.s32.totalorder %s13, 0
    %p81 = por %p79, %p80
    %p82 = scmp.ne.s32.totalorder %s68, %s69
    %p83 = scmp.eq.s32.totalorder %s14, 1
    %p84 = por %p82, %p83
    %p86 = scmp.ne.s32.totalorder %s69, %s85
    %p87 = scmp.eq.s32.totalorder %s14, 0
    %p88 = por %p86, %p87
    %s89 = ssub.s32 %s15, %s34
    %s90 = ssub.s32 %s16, %s30
    %s91 = sor.u32 %s89, %s90
    %s92 = ssub.s32 %s17, %s26
    %s93 = sor.u32 %s91, %s92
    %p94 = scmp.eq.s32.totalorder %s93, 0
    %s96 = sadd.s32 %s95, 1
    %s97 = scalar_select %p94, %s95, %s96
    %p100 = pneg %p94
    %p101 = scmp.eq.s32.totalorder %s8, 1
    %p102 = por %p100, %p101
    %p103 = scmp.ne.s32.totalorder %s95, %s98
    %p104 = scmp.eq.s32.totalorder %s8, 0
    %p105 = por %p103, %p104
    %p106 = scmp.ne.s32.totalorder %s95, %s98
    %p107 = scmp.eq.s32.totalorder %s13, 1
    %p108 = por %p106, %p107
    %p109 = scmp.ne.s32.totalorder %s98, %s99
    %p110 = scmp.eq.s32.totalorder %s13, 0
    %p111 = por %p109, %p110
    %p112 = scmp.ne.s32.totalorder %s98, %s99
    %p113 = scmp.eq.s32.totalorder %s14, 1
    %p114 = por %p112, %p113
    %p116 = scmp.ne.s32.totalorder %s99, %s115
    %p117 = scmp.eq.s32.totalorder %s14, 0
    %p118 = por %p116, %p117
    %p119 = scmp.le.s32.totalorder 1, %s8
    %p120 = scmp.lt.s32.totalorder %s8, 3
    %p121 = pnand %p119, %p120
    %p122 = pneg %p121
    // Predicated region
    $region9: #{ca_transformer_forward.27} parent=5 // pred_check
      _
    $region10: #{ca_transformer_forward.27} parent=5 // pred_check_branch
      %124 = sbr.rel (%p121) target = $region12
    $region11: #{ca_transformer_forward.27} parent=5 // pred_region
      %s125 = ssub.s32 %s8, 1
      // Predicated region
      $region13: #{ca_transformer_forward.27} parent=11 // pred_check
        %p126 = pneg %p81
      $region14: #{ca_transformer_forward.27} parent=11 // pred_check_branch
        %128 = sbr.rel (%p126) target = $region16
      $region15: #{ca_transformer_forward.27} parent=11 // pred_region
        %s129 = smul.u32 2, %s20
        %p130 = scmp.lt.s32.totalorder %s129, 1
        %s131 = scalar_select %p130, %s129, 1
        %s132 = smul.addr %s131, 4
        %s133 = scalar_lea.vmem %s1, %s132
        %s134 = smul.u32 2, %s20
      $region16: #{ca_transformer_forward.27} parent=11 // pred_fallthru
        _
    $region12: #{ca_transformer_forward.27} parent=5 // pred_fallthru
      _
    %p135 = scmp.lt.s32.totalorder %s8, 2
    // Predicated region
    $region17: #{ca_transformer_forward.27} parent=5 // pred_check
      %p136 = pneg %p135
    $region18: #{ca_transformer_forward.27} parent=5 // pred_check_branch
      %138 = sbr.rel (%p136) target = $region20
    $region19: #{ca_transformer_forward.27} parent=5 // pred_region
      // Predicated region
      $region21: #{ca_transformer_forward.27} parent=19 // pred_check
        %p139 = pneg %p49
      $region22: #{ca_transformer_forward.27} parent=19 // pred_check_branch
        %141 = sbr.rel (%p139) target = $region24
      $region23: #{ca_transformer_forward.27} parent=19 // pred_region
        %p142 = scmp.lt.s32.totalorder %s15, 1
        %s143 = scalar_select %p142, %s15, 1
        %p144 = scmp.lt.s32.totalorder %s16, 0
        %s145 = scalar_select %p144, %s16, 0
        %s146 = sadd.s32 %s145, %s143
        %s147 = smul.addr %s146, 4
        %s148 = scalar_lea.vmem %s0, %s147
      $region24: #{ca_transformer_forward.27} parent=19 // pred_fallthru
        _
    $region20: #{ca_transformer_forward.27} parent=5 // pred_fallthru
      _
    %p149 = scmp.le.s32.totalorder 1, %s8
    %p150 = scmp.lt.s32.totalorder %s8, 3
    %p151 = pnand %p149, %p150
    %p152 = pneg %p151
    // Predicated region
    $region25: #{ca_transformer_forward.27} parent=5 // pred_check
      _
    $region26: #{ca_transformer_forward.27} parent=5 // pred_check_branch
      %154 = sbr.rel (%p151) target = $region28
    $region27: #{ca_transformer_forward.27} parent=5 // pred_region
      %s155 = ssub.s32 %s8, 1
      %p156 = scmp.lt.s32.totalorder %s18, 1
      %s157 = scalar_select %p156, %s18, 1
      %p158 = scmp.lt.s32.totalorder %s19, 0
      %s159 = scalar_select %p158, %s19, 0
      %s160 = sadd.s32 %s159, %s157
      %s161 = smul.addr %s160, 4
      %s162 = scalar_lea.vmem %s0, %s161
      %p163 = pneg %p55
      %p164 = pneg %p52
      %s165 = smul.u32 2, %s20
      %p166 = scmp.lt.s32.totalorder %s165, 1
      %s167 = scalar_select %p166, %s165, 1
      %s168 = smul.addr %s167, 4
      %s169 = scalar_lea.vmem %s1, %s168
      %p170 = pneg %p81
      %p171 = pneg %p78
      %p172 = pneg %p111
      %p173 = pneg %p108
      %s174 = smul.u32 2, %s20
      %p175 = scmp.lt.s32.totalorder %s18, 1
      %s176 = scalar_select %p175, %s18, 1
      %p177 = scmp.lt.s32.totalorder %s19, 0
      %s178 = scalar_select %p177, %s19, 0
      %p179 = scmp.lt.s32.totalorder %s174, 1
      %s180 = scalar_select %p179, %s174, 1
      %s181 = smul.addr %s178, 2
      %s182 = sadd.s32 %s180, %s181
      %s183 = smul.addr %s176, 2
      %s184 = sadd.s32 %s182, %s183
      %s185 = smul.addr %s184, 4
      %s186 = scalar_lea.vmem %s2, %s185
      %p187 = scmp.lt.s32.totalorder %s18, 1
      %s188 = scalar_select %p187, %s18, 1
      %p189 = scmp.lt.s32.totalorder %s19, 0
      %s190 = scalar_select %p189, %s19, 0
      %s191 = sadd.s32 %s190, %s188
      %s192 = smul.addr %s191, 4
      %s193 = scalar_lea.vmem %s0, %s192
      %s194 = smul.u32 2, %s20
      %p195 = scmp.lt.s32.totalorder %s194, 1
      %s196 = scalar_select %p195, %s194, 1
      %s197 = smul.addr %s196, 4
      %s198 = scalar_lea.vmem %s1, %s197
      %s199 = smul.u32 2, %s20
      %s200 = smul.u32 2, %s20
      %p201 = scmp.lt.s32.totalorder %s18, 1
      %s202 = scalar_select %p201, %s18, 1
      %p203 = scmp.lt.s32.totalorder %s19, 0
      %s204 = scalar_select %p203, %s19, 0
      %p205 = scmp.lt.s32.totalorder %s200, 1
      %s206 = scalar_select %p205, %s200, 1
      %s207 = smul.addr %s204, 2
      %s208 = sadd.s32 %s206, %s207
      %s209 = smul.addr %s202, 2
      %s210 = sadd.s32 %s208, %s209
      %s211 = smul.addr %s210, 4
      %s212 = scalar_lea.vmem %s2, %s211
      %s213 = smul.u32 2, %s20
      %v215 = vld [vmem:[%s193] sm:$0xf]
      %v216 = vld [vmem:[%s198] sm:$0xff]
      %v217 = vld [vmem:[%s198 + $0x8] sm:$0xff]
      %v218 = vld [vmem:[%s198 + $0x10] sm:$0xff]
      %v219 = vld [vmem:[%s198 + $0x18] sm:$0xff]
      %v220 = vld [vmem:[%s198 + $0x20] sm:$0xff]
      %v221 = vld [vmem:[%s198 + $0x28] sm:$0xff]
      %v222 = vld [vmem:[%s198 + $0x30] sm:$0xff]
      %v223 = vld [vmem:[%s198 + $0x38] sm:$0xff]
      %v232 = vunpack.c.l.b16 %v216
      %v233 = vunpack.c.h.b16 %v216
      %v234 = vunpack.c.l.b16 %v217
      %v235 = vunpack.c.h.b16 %v217
      %v236 = vunpack.c.l.b16 %v218
      %v237 = vunpack.c.h.b16 %v218
      %v238 = vunpack.c.l.b16 %v219
      %v239 = vunpack.c.h.b16 %v219
      %v240 = vunpack.c.l.b16 %v220
      %v241 = vunpack.c.h.b16 %v220
      %v242 = vunpack.c.l.b16 %v221
      %v243 = vunpack.c.h.b16 %v221
      %v244 = vunpack.c.l.b16 %v222
      %v245 = vunpack.c.h.b16 %v222
      %v246 = vunpack.c.l.b16 %v223
      %v247 = vunpack.c.h.b16 %v223
      %v248 = vpack.c.b16 %v234, %v232
      %v249 = vpack.c.b16 %v235, %v233
      %v250 = vpack.c.b16 %v238, %v236
      %v251 = vpack.c.b16 %v239, %v237
      %v252 = vpack.c.b16 %v242, %v240
      %v253 = vpack.c.b16 %v243, %v241
      %v254 = vpack.c.b16 %v246, %v244
      %v255 = vpack.c.b16 %v247, %v245
      %vm264 = vcmask 523264
      %v266 = vsel %vm264, %v215, 0
      %268 = vmatpush.bf16.msra.mxu0 0
      %269 = vmatpush.bf16.msra.mxu0 0
      %270 = vmatpush.bf16.msra.mxu0 0
      %271 = vmatpush.bf16.msra.mxu0 0
      %272 = vmatpush.bf16.msra.mxu0 %v254
      %273 = vmatpush.bf16.msra.mxu0 %v252
      %274 = vmatpush.bf16.msra.mxu0 %v250
      %275 = vmatpush.bf16.msra.mxu0 %v248
      %276 = vmatmul.bf16.gmra.mxu0 %v266
      %v277 = vpop.f32.mrf.mxu0
      %v278 = vadd.f32 0.0, %v277
      %v279 = vpop.f32.mrf.mxu0
      %280 = vdwg.mxu0
      %281 = vmatpush.bf16.msra.mxu0 0
      %282 = vmatpush.bf16.msra.mxu0 0
      %283 = vmatpush.bf16.msra.mxu0 0
      %284 = vmatpush.bf16.msra.mxu0 0
      %285 = vmatpush.bf16.msra.mxu0 %v255
      %286 = vmatpush.bf16.msra.mxu0 %v253
      %287 = vmatpush.bf16.msra.mxu0 %v251
      %288 = vmatpush.bf16.msra.mxu0 %v249
      %289 = vmatmul.bf16.gmra.mxu0 %v266
      %v290 = vpop.f32.mrf.mxu0
      %v291 = vadd.f32 0.0, %v290
      %v292 = vpop.f32.mrf.mxu0
      %293 = vdwg.mxu0
      %v294 = vpack.c.bf16 %v291, %v278
      %295 = vst [vmem:[%s212] sm:$0xff] %v294
      %s296 = smul.u32 2, %s20
      %p297 = scmp.lt.s32.totalorder %s18, 1
      %s298 = scalar_select %p297, %s18, 1
      %p299 = scmp.lt.s32.totalorder %s19, 0
      %s300 = scalar_select %p299, %s19, 0
      %p301 = scmp.lt.s32.totalorder %s296, 1
      %s302 = scalar_select %p301, %s296, 1
      %s303 = smul.addr %s300, 2
      %s304 = sadd.s32 %s302, %s303
      %s305 = smul.addr %s298, 2
      %s306 = sadd.s32 %s304, %s305
      %s307 = smul.addr %s306, 4
      %s308 = scalar_lea.vmem %s2, %s307
      // Predicated region
      $region29: #{ca_transformer_forward.27} parent=27 // pred_check
        %p309 = pneg %p108
      $region30: #{ca_transformer_forward.27} parent=27 // pred_check_branch
        %311 = sbr.rel (%p309) target = $region32
      $region31: #{ca_transformer_forward.27} parent=27 // pred_region
        %s312 = smul.u32 2, %s20
      $region32: #{ca_transformer_forward.27} parent=27 // pred_fallthru
        _
    $region28: #{ca_transformer_forward.27} parent=5 // pred_fallthru
      _
    %p313 = scmp.le.s32.totalorder 2, %s8
    // Predicated region
    $region33: #{ca_transformer_forward.27} parent=5 // pred_check
      %p314 = pneg %p313
    $region34: #{ca_transformer_forward.27} parent=5 // pred_check_branch
      %316 = sbr.rel (%p314) target = $region36
    $region35: #{ca_transformer_forward.27} parent=5 // pred_region
      %s317 = ssub.s32 %s8, 2
      // Predicated region
      $region37: #{ca_transformer_forward.27} parent=35 // pred_check
        %p318 = pneg %p114
      $region38: #{ca_transformer_forward.27} parent=35 // pred_check_branch
        %320 = sbr.rel (%p318) target = $region40
      $region39: #{ca_transformer_forward.27} parent=35 // pred_region
        %s321 = smul.u32 2, %s23
        %p322 = scmp.lt.s32.totalorder %s21, 1
        %s323 = scalar_select %p322, %s21, 1
        %p324 = scmp.lt.s32.totalorder %s22, 0
        %s325 = scalar_select %p324, %s22, 0
        %p326 = scmp.lt.s32.totalorder %s321, 1
        %s327 = scalar_select %p326, %s321, 1
        %s328 = smul.addr %s325, 2
        %s329 = sadd.s32 %s327, %s328
        %s330 = smul.addr %s323, 2
        %s331 = sadd.s32 %s329, %s330
        %s332 = smul.addr %s331, 4
        %s333 = scalar_lea.vmem %s2, %s332
      $region40: #{ca_transformer_forward.27} parent=35 // pred_fallthru
        _
    $region36: #{ca_transformer_forward.27} parent=5 // pred_fallthru
      _
  $region6: #{ca_transformer_forward.27} parent=0 // loop_footer
    %s12 = sadd.s32 1, %s8
  $region7: #{ca_transformer_forward.27} parent=0 // loop_footer_branch
    %7 = sbr.rel target = $region3
  $region8: #{ca_transformer_forward.27} parent=0 // loop_exit
    _

// kernel: ca_transformer_forward.24
$region0: #{ca_transformer_forward.24}
  #allocation0 [shape = 'u32[]', space=smem, size = 0x4, offset = 0x4, fixed_abs, tag = 'smem constant byte address 0x4 - core index']
  #allocation1 [shape = 'u32[72,128]{1,0:T(1,128)}', space=vmem, size = 0x9000, scoped, tag = 'internal scratch']
  %s0 = inlined_call_operand.vmem [shape: bf16[2,4,64,32], index: 0, kind: input, shape index: {}]
  %s1 = inlined_call_operand.vmem [shape: bf16[2,4,64,32], index: 1, kind: input, shape index: {}]
  %s2 = inlined_call_operand.vmem [shape: bf16[2,4,64,32], index: 2, kind: input, shape index: {}]
  %s3 = inlined_call_operand.vmem [shape: f32[2,64,32], index: 3, kind: input, shape index: {}]
  %s4 = inlined_call_operand.vmem [shape: f32[2,64,32], index: 4, kind: input, shape index: {}]
  %s5 = inlined_call_operand.vmem [shape: bf16[2,4,64,32], index: 5, kind: output, shape index: {}]
  %s6 = sld [smem:[#allocation0]]
  $region53: #{ca_transformer_forward.24} parent=0
    _
  %s8 = ssub.s32 1, %s6
  %s9 = scalar_select 0, %s8, %s6
  loop: start=0, step=1, limit=4
  $region2: #{ca_transformer_forward.24} parent=0 // loop_pre_header
    _
  $region3: #{ca_transformer_forward.24} parent=0 // loop_header
    %s11 = sphi 0, %s15
    %p12 = scmp.ge.s32.totalorder %s11, 4
    %s21 = sphi 0, %s23
    %s24 = sphi 0, %s21
    %s25 = sphi 0, %s24
    %s41 = sphi 0, %s25
    %s47 = sphi 0, %s49
    %s50 = sphi 0, %s47
    %s51 = sphi 0, %s50
    %s67 = sphi 0, %s51
    %s73 = sphi 0, %s75
    %s76 = sphi 0, %s73
    %s77 = sphi 0, %s76
    %s93 = sphi 0, %s77
    %s99 = sphi 0, %s101
    %s102 = sphi 0, %s99
    %s103 = sphi 0, %s102
    %s119 = sphi 0, %s103
    %s125 = sphi 0, %s127
    %s128 = sphi 0, %s125
    %s129 = sphi 0, %s128
    %s145 = sphi 0, %s129
    %s151 = sphi 0, %s153
    %s154 = sphi 0, %s151
    %s155 = sphi 0, %s154
    %s171 = sphi 0, %s155
  $region4: #{ca_transformer_forward.24} parent=0 // loop_header_branch
    %14 = sbr.rel (%p12) target = $region8
  $region5: #{ca_transformer_forward.24} parent=0 // loop_body
    %s16 = ssub.s32 %s11, 1
    %s17 = ssub.s32 %s11, 2
    %s18 = sadd.s32 %s11, 1
    %s19 = ssub.s32 %s11, %s18
    %p20 = scmp.eq.s32.totalorder %s19, 0
    %s22 = sadd.s32 %s21, 1
    %s23 = scalar_select %p20, %s21, %s22
    %p26 = pneg %p20
    %p27 = scmp.eq.s32.totalorder %s11, 1
    %p28 = por %p26, %p27
    %p29 = scmp.ne.s32.totalorder %s21, %s24
    %p30 = scmp.eq.s32.totalorder %s11, 0
    %p31 = por %p29, %p30
    %p32 = scmp.ne.s32.totalorder %s21, %s24
    %p33 = scmp.eq.s32.totalorder %s16, 1
    %p34 = por %p32, %p33
    %p35 = scmp.ne.s32.totalorder %s24, %s25
    %p36 = scmp.eq.s32.totalorder %s16, 0
    %p37 = por %p35, %p36
    %p38 = scmp.ne.s32.totalorder %s24, %s25
    %p39 = scmp.eq.s32.totalorder %s17, 1
    %p40 = por %p38, %p39
    %p42 = scmp.ne.s32.totalorder %s25, %s41
    %p43 = scmp.eq.s32.totalorder %s17, 0
    %p44 = por %p42, %p43
    %s45 = ssub.s32 %s11, %s18
    %p46 = scmp.eq.s32.totalorder %s45, 0
    %s48 = sadd.s32 %s47, 1
    %s49 = scalar_select %p46, %s47, %s48
    %p52 = pneg %p46
    %p53 = scmp.eq.s32.totalorder %s11, 1
    %p54 = por %p52, %p53
    %p55 = scmp.ne.s32.totalorder %s47, %s50
    %p56 = scmp.eq.s32.totalorder %s11, 0
    %p57 = por %p55, %p56
    %p58 = scmp.ne.s32.totalorder %s47, %s50
    %p59 = scmp.eq.s32.totalorder %s16, 1
    %p60 = por %p58, %p59
    %p61 = scmp.ne.s32.totalorder %s50, %s51
    %p62 = scmp.eq.s32.totalorder %s16, 0
    %p63 = por %p61, %p62
    %p64 = scmp.ne.s32.totalorder %s50, %s51
    %p65 = scmp.eq.s32.totalorder %s17, 1
    %p66 = por %p64, %p65
    %p68 = scmp.ne.s32.totalorder %s51, %s67
    %p69 = scmp.eq.s32.totalorder %s17, 0
    %p70 = por %p68, %p69
    %s71 = ssub.s32 %s11, %s18
    %p72 = scmp.eq.s32.totalorder %s71, 0
    %s74 = sadd.s32 %s73, 1
    %s75 = scalar_select %p72, %s73, %s74
    %p78 = pneg %p72
    %p79 = scmp.eq.s32.totalorder %s11, 1
    %p80 = por %p78, %p79
    %p81 = scmp.ne.s32.totalorder %s73, %s76
    %p82 = scmp.eq.s32.totalorder %s11, 0
    %p83 = por %p81, %p82
    %p84 = scmp.ne.s32.totalorder %s73, %s76
    %p85 = scmp.eq.s32.totalorder %s16, 1
    %p86 = por %p84, %p85
    %p87 = scmp.ne.s32.totalorder %s76, %s77
    %p88 = scmp.eq.s32.totalorder %s16, 0
    %p89 = por %p87, %p88
    %p90 = scmp.ne.s32.totalorder %s76, %s77
    %p91 = scmp.eq.s32.totalorder %s17, 1
    %p92 = por %p90, %p91
    %p94 = scmp.ne.s32.totalorder %s77, %s93
    %p95 = scmp.eq.s32.totalorder %s17, 0
    %p96 = por %p94, %p95
    %s97 = ssub.s32 %s11, %s18
    %p98 = scmp.eq.s32.totalorder %s97, 0
    %s100 = sadd.s32 %s99, 1
    %s101 = scalar_select %p98, %s99, %s100
    %p104 = pneg %p98
    %p105 = scmp.eq.s32.totalorder %s11, 1
    %p106 = por %p104, %p105
    %p107 = scmp.ne.s32.totalorder %s99, %s102
    %p108 = scmp.eq.s32.totalorder %s11, 0
    %p109 = por %p107, %p108
    %p110 = scmp.ne.s32.totalorder %s99, %s102
    %p111 = scmp.eq.s32.totalorder %s16, 1
    %p112 = por %p110, %p111
    %p113 = scmp.ne.s32.totalorder %s102, %s103
    %p114 = scmp.eq.s32.totalorder %s16, 0
    %p115 = por %p113, %p114
    %p116 = scmp.ne.s32.totalorder %s102, %s103
    %p117 = scmp.eq.s32.totalorder %s17, 1
    %p118 = por %p116, %p117
    %p120 = scmp.ne.s32.totalorder %s103, %s119
    %p121 = scmp.eq.s32.totalorder %s17, 0
    %p122 = por %p120, %p121
    %s123 = ssub.s32 %s11, %s18
    %p124 = scmp.eq.s32.totalorder %s123, 0
    %s126 = sadd.s32 %s125, 1
    %s127 = scalar_select %p124, %s125, %s126
    %p130 = pneg %p124
    %p131 = scmp.eq.s32.totalorder %s11, 1
    %p132 = por %p130, %p131
    %p133 = scmp.ne.s32.totalorder %s125, %s128
    %p134 = scmp.eq.s32.totalorder %s11, 0
    %p135 = por %p133, %p134
    %p136 = scmp.ne.s32.totalorder %s125, %s128
    %p137 = scmp.eq.s32.totalorder %s16, 1
    %p138 = por %p136, %p137
    %p139 = scmp.ne.s32.totalorder %s128, %s129
    %p140 = scmp.eq.s32.totalorder %s16, 0
    %p141 = por %p139, %p140
    %p142 = scmp.ne.s32.totalorder %s128, %s129
    %p143 = scmp.eq.s32.totalorder %s17, 1
    %p144 = por %p142, %p143
    %p146 = scmp.ne.s32.totalorder %s129, %s145
    %p147 = scmp.eq.s32.totalorder %s17, 0
    %p148 = por %p146, %p147
    %s149 = ssub.s32 %s11, %s18
    %p150 = scmp.eq.s32.totalorder %s149, 0
    %s152 = sadd.s32 %s151, 1
    %s153 = scalar_select %p150, %s151, %s152
    %p156 = pneg %p150
    %p157 = scmp.eq.s32.totalorder %s11, 1
    %p158 = por %p156, %p157
    %p159 = scmp.ne.s32.totalorder %s151, %s154
    %p160 = scmp.eq.s32.totalorder %s11, 0
    %p161 = por %p159, %p160
    %p162 = scmp.ne.s32.totalorder %s151, %s154
    %p163 = scmp.eq.s32.totalorder %s16, 1
    %p164 = por %p162, %p163
    %p165 = scmp.ne.s32.totalorder %s154, %s155
    %p166 = scmp.eq.s32.totalorder %s16, 0
    %p167 = por %p165, %p166
    %p168 = scmp.ne.s32.totalorder %s154, %s155
    %p169 = scmp.eq.s32.totalorder %s17, 1
    %p170 = por %p168, %p169
    %p172 = scmp.ne.s32.totalorder %s155, %s171
    %p173 = scmp.eq.s32.totalorder %s17, 0
    %p174 = por %p172, %p173
    %p175 = scmp.le.s32.totalorder 1, %s11
    %p176 = scmp.lt.s32.totalorder %s11, 3
    %p177 = pnand %p175, %p176
    %p178 = pneg %p177
    // Predicated region
    $region9: #{ca_transformer_forward.24} parent=5 // pred_check
      _
    $region10: #{ca_transformer_forward.24} parent=5 // pred_check_branch
      %180 = sbr.rel (%p177) target = $region12
    $region11: #{ca_transformer_forward.24} parent=5 // pred_region
      %s181 = ssub.s32 %s11, 1
    $region12: #{ca_transformer_forward.24} parent=5 // pred_fallthru
      _
    %p182 = scmp.lt.s32.totalorder %s11, 2
    // Predicated region
    $region13: #{ca_transformer_forward.24} parent=5 // pred_check
      %p183 = pneg %p182
    $region14: #{ca_transformer_forward.24} parent=5 // pred_check_branch
      %185 = sbr.rel (%p183) target = $region16
    $region15: #{ca_transformer_forward.24} parent=5 // pred_region
      // Predicated region
      $region17: #{ca_transformer_forward.24} parent=15 // pred_check
        %p186 = pneg %p31
      $region18: #{ca_transformer_forward.24} parent=15 // pred_check_branch
        %188 = sbr.rel (%p186) target = $region20
      $region19: #{ca_transformer_forward.24} parent=15 // pred_region
        %p189 = scmp.lt.s32.totalorder %s11, 1
        %s190 = scalar_select %p189, %s11, 1
        %s191 = smul.addr %s190, 32
        %s192 = smul.addr %s191, 4
        %s193 = scalar_lea.vmem %s0, %s192
      $region20: #{ca_transformer_forward.24} parent=15 // pred_fallthru
        _
      // Predicated region
      $region21: #{ca_transformer_forward.24} parent=15 // pred_check
        %p194 = pneg %p57
      $region22: #{ca_transformer_forward.24} parent=15 // pred_check_branch
        %196 = sbr.rel (%p194) target = $region24
      $region23: #{ca_transformer_forward.24} parent=15 // pred_region
        %p197 = scmp.lt.s32.totalorder %s11, 1
        %s198 = scalar_select %p197, %s11, 1
        %s199 = smul.addr %s198, 32
        %s200 = smul.addr %s199, 4
        %s201 = scalar_lea.vmem %s1, %s200
      $region24: #{ca_transformer_forward.24} parent=15 // pred_fallthru
        _
      // Predicated region
      $region25: #{ca_transformer_forward.24} parent=15 // pred_check
        %p202 = pneg %p83
      $region26: #{ca_transformer_forward.24} parent=15 // pred_check_branch
        %204 = sbr.rel (%p202) target = $region28
      $region27: #{ca_transformer_forward.24} parent=15 // pred_region
        %p205 = scmp.lt.s32.totalorder %s11, 1
        %s206 = scalar_select %p205, %s11, 1
        %s207 = smul.addr %s206, 32
        %s208 = smul.addr %s207, 4
        %s209 = scalar_lea.vmem %s2, %s208
      $region28: #{ca_transformer_forward.24} parent=15 // pred_fallthru
        _
      // Predicated region
      $region29: #{ca_transformer_forward.24} parent=15 // pred_check
        %p210 = pneg %p109
      $region30: #{ca_transformer_forward.24} parent=15 // pred_check_branch
        %212 = sbr.rel (%p210) target = $region32
      $region31: #{ca_transformer_forward.24} parent=15 // pred_region
        %p213 = scmp.lt.s32.totalorder %s11, 1
        %s214 = scalar_select %p213, %s11, 1
        %s215 = smul.addr %s214, 8
        %s216 = smul.addr %s215, 8
        %s217 = scalar_lea.vmem %s3, %s216
      $region32: #{ca_transformer_forward.24} parent=15 // pred_fallthru
        _
      // Predicated region
      $region33: #{ca_transformer_forward.24} parent=15 // pred_check
        %p218 = pneg %p135
      $region34: #{ca_transformer_forward.24} parent=15 // pred_check_branch
        %220 = sbr.rel (%p218) target = $region36
      $region35: #{ca_transformer_forward.24} parent=15 // pred_region
        %p221 = scmp.lt.s32.totalorder %s11, 1
        %s222 = scalar_select %p221, %s11, 1
        %s223 = smul.addr %s222, 8
        %s224 = smul.addr %s223, 8
        %s225 = scalar_lea.vmem %s4, %s224
      $region36: #{ca_transformer_forward.24} parent=15 // pred_fallthru
        _
    $region16: #{ca_transformer_forward.24} parent=5 // pred_fallthru
      _
    %p226 = scmp.le.s32.totalorder 1, %s11
    %p227 = scmp.lt.s32.totalorder %s11, 3
    %p228 = pnand %p226, %p227
    %p229 = pneg %p228
    // Predicated region
    $region37: #{ca_transformer_forward.24} parent=5 // pred_check
      _
    $region38: #{ca_transformer_forward.24} parent=5 // pred_check_branch
      %231 = sbr.rel (%p228) target = $region40
    $region39: #{ca_transformer_forward.24} parent=5 // pred_region
      %s232 = ssub.s32 %s11, 1
      %p233 = scmp.lt.s32.totalorder %s16, 1
      %s234 = scalar_select %p233, %s16, 1
      %s235 = smul.addr %s234, 32
      %s236 = smul.addr %s235, 4
      %s237 = scalar_lea.vmem %s0, %s236
      %p238 = pneg %p37
      %p239 = pneg %p34
      %p240 = scmp.lt.s32.totalorder %s16, 1
      %s241 = scalar_select %p240, %s16, 1
      %s242 = smul.addr %s241, 32
      %s243 = smul.addr %s242, 4
      %s244 = scalar_lea.vmem %s1, %s243
      %p245 = pneg %p63
      %p246 = pneg %p60
      %p247 = scmp.lt.s32.totalorder %s16, 1
      %s248 = scalar_select %p247, %s16, 1
      %s249 = smul.addr %s248, 32
      %s250 = smul.addr %s249, 4
      %s251 = scalar_lea.vmem %s2, %s250
      %p252 = pneg %p89
      %p253 = pneg %p86
      %p254 = scmp.lt.s32.totalorder %s16, 1
      %s255 = scalar_select %p254, %s16, 1
      %s256 = smul.addr %s255, 8
      %s257 = smul.addr %s256, 8
      %s258 = scalar_lea.vmem %s3, %s257
      %p259 = pneg %p115
      %p260 = pneg %p112
      %p261 = scmp.lt.s32.totalorder %s16, 1
      %s262 = scalar_select %p261, %s16, 1
      %s263 = smul.addr %s262, 8
      %s264 = smul.addr %s263, 8
      %s265 = scalar_lea.vmem %s4, %s264
      %p266 = pneg %p141
      %p267 = pneg %p138
      %p268 = pneg %p167
      %p269 = pneg %p164
      %p270 = scmp.lt.s32.totalorder %s16, 1
      %s271 = scalar_select %p270, %s16, 1
      %s272 = smul.addr %s271, 32
      %s273 = smul.addr %s272, 4
      %s274 = scalar_lea.vmem %s5, %s273
      %p275 = scmp.lt.s32.totalorder %s16, 1
      %s276 = scalar_select %p275, %s16, 1
      %s277 = smul.addr %s276, 32
      %s278 = smul.addr %s277, 4
      %s279 = scalar_lea.vmem %s0, %s278
      %p280 = scmp.lt.s32.totalorder %s16, 1
      %s281 = scalar_select %p280, %s16, 1
      %s282 = smul.addr %s281, 32
      %s283 = smul.addr %s282, 4
      %s284 = scalar_lea.vmem %s1, %s283
      %p285 = scmp.lt.s32.totalorder %s16, 1
      %s286 = scalar_select %p285, %s16, 1
      %s287 = smul.addr %s286, 32
      %s288 = smul.addr %s287, 4
      %s289 = scalar_lea.vmem %s2, %s288
      %p290 = scmp.lt.s32.totalorder %s16, 1
      %s291 = scalar_select %p290, %s16, 1
      %s292 = smul.addr %s291, 8
      %s293 = smul.addr %s292, 8
      %s294 = scalar_lea.vmem %s3, %s293
      %p295 = scmp.lt.s32.totalorder %s16, 1
      %s296 = scalar_select %p295, %s16, 1
      %s297 = smul.addr %s296, 8
      %s298 = smul.addr %s297, 8
      %s299 = scalar_lea.vmem %s4, %s298
      %p300 = scmp.lt.s32.totalorder %s16, 1
      %s301 = scalar_select %p300, %s16, 1
      %s302 = smul.addr %s301, 32
      %s303 = smul.addr %s302, 4
      %s304 = scalar_lea.vmem %s5, %s303
      %v306 = vld [vmem:[%s279] sm:$0xf]
      %v307 = vld [vmem:[%s279 + $0x4] sm:$0xf]
      %v308 = vld [vmem:[%s279 + $0x8] sm:$0xf]
      %v309 = vld [vmem:[%s279 + $0xc] sm:$0xf]
      %v310 = vld [vmem:[%s279 + $0x10] sm:$0xf]
      %v311 = vld [vmem:[%s279 + $0x14] sm:$0xf]
      %v312 = vld [vmem:[%s279 + $0x18] sm:$0xf]
      %v313 = vld [vmem:[%s279 + $0x1c] sm:$0xf]
      %v314 = vld [vmem:[%s279 + $0x20] sm:$0xf]
      %v315 = vld [vmem:[%s279 + $0x24] sm:$0xf]
      %v316 = vld [vmem:[%s279 + $0x28] sm:$0xf]
      %v317 = vld [vmem:[%s279 + $0x2c] sm:$0xf]
      %v318 = vld [vmem:[%s279 + $0x30] sm:$0xf]
      %v319 = vld [vmem:[%s279 + $0x34] sm:$0xf]
      %v320 = vld [vmem:[%s279 + $0x38] sm:$0xf]
      %v321 = vld [vmem:[%s279 + $0x3c] sm:$0xf]
      %v322 = vld [vmem:[%s279 + $0x40] sm:$0xf]
      %v323 = vld [vmem:[%s279 + $0x44] sm:$0xf]
      %v324 = vld [vmem:[%s279 + $0x48] sm:$0xf]
      %v325 = vld [vmem:[%s279 + $0x4c] sm:$0xf]
      %v326 = vld [vmem:[%s279 + $0x50] sm:$0xf]
      %v327 = vld [vmem:[%s279 + $0x54] sm:$0xf]
      %v328 = vld [vmem:[%s279 + $0x58] sm:$0xf]
      %v329 = vld [vmem:[%s279 + $0x5c] sm:$0xf]
      %v330 = vld [vmem:[%s279 + $0x60] sm:$0xf]
      %v331 = vld [vmem:[%s279 + $0x64] sm:$0xf]
      %v332 = vld [vmem:[%s279 + $0x68] sm:$0xf]
      %v333 = vld [vmem:[%s279 + $0x6c] sm:$0xf]
      %v334 = vld [vmem:[%s279 + $0x70] sm:$0xf]
      %v335 = vld [vmem:[%s279 + $0x74] sm:$0xf]
      %v336 = vld [vmem:[%s279 + $0x78] sm:$0xf]
      %v337 = vld [vmem:[%s279 + $0x7c] sm:$0xf]
      %v338 = vunpack.c.l.bf16 %v306
      %v339 = vunpack.c.l.bf16 %v307
      %v340 = vunpack.c.l.bf16 %v308
      %v341 = vunpack.c.l.bf16 %v309
      %v342 = vunpack.c.l.bf16 %v310
      %v343 = vunpack.c.l.bf16 %v311
      %v344 = vunpack.c.l.bf16 %v312
      %v345 = vunpack.c.l.bf16 %v313
      %v346 = vunpack.c.l.bf16 %v314
      %v347 = vunpack.c.l.bf16 %v315
      %v348 = vunpack.c.l.bf16 %v316
      %v349 = vunpack.c.l.bf16 %v317
      %v350 = vunpack.c.l.bf16 %v318
      %v351 = vunpack.c.l.bf16 %v319
      %v352 = vunpack.c.l.bf16 %v320
      %v353 = vunpack.c.l.bf16 %v321
      %v354 = vunpack.c.l.bf16 %v322
      %v355 = vunpack.c.l.bf16 %v323
      %v356 = vunpack.c.l.bf16 %v324
      %v357 = vunpack.c.l.bf16 %v325
      %v358 = vunpack.c.l.bf16 %v326
      %v359 = vunpack.c.l.bf16 %v327
      %v360 = vunpack.c.l.bf16 %v328
      %v361 = vunpack.c.l.bf16 %v329
      %v362 = vunpack.c.l.bf16 %v330
      %v363 = vunpack.c.l.bf16 %v331
      %v364 = vunpack.c.l.bf16 %v332
      %v365 = vunpack.c.l.bf16 %v333
      %v366 = vunpack.c.l.bf16 %v334
      %v367 = vunpack.c.l.bf16 %v335
      %v368 = vunpack.c.l.bf16 %v336
      %v369 = vunpack.c.l.bf16 %v337
      %v370 = vld [vmem:[%s284] sm:$0xf]
      %v371 = vld [vmem:[%s284 + $0x4] sm:$0xf]
      %v372 = vld [vmem:[%s284 + $0x8] sm:$0xf]
      %v373 = vld [vmem:[%s284 + $0xc] sm:$0xf]
      %v374 = vld [vmem:[%s284 + $0x10] sm:$0xf]
      %v375 = vld [vmem:[%s284 + $0x14] sm:$0xf]
      %v376 = vld [vmem:[%s284 + $0x18] sm:$0xf]
      %v377 = vld [vmem:[%s284 + $0x1c] sm:$0xf]
      %v378 = vld [vmem:[%s284 + $0x20] sm:$0xf]
      %v379 = vld [vmem:[%s284 + $0x24] sm:$0xf]
      %v380 = vld [vmem:[%s284 + $0x28] sm:$0xf]
      %v381 = vld [vmem:[%s284 + $0x2c] sm:$0xf]
      %v382 = vld [vmem:[%s284 + $0x30] sm:$0xf]
      %v383 = vld [vmem:[%s284 + $0x34] sm:$0xf]
      %v384 = vld [vmem:[%s284 + $0x38] sm:$0xf]
      %v385 = vld [vmem:[%s284 + $0x3c] sm:$0xf]
      %v386 = vld [vmem:[%s284 + $0x40] sm:$0xf]
      %v387 = vld [vmem:[%s284 + $0x44] sm:$0xf]
      %v388 = vld [vmem:[%s284 + $0x48] sm:$0xf]
      %v389 = vld [vmem:[%s284 + $0x4c] sm:$0xf]
      %v390 = vld [vmem:[%s284 + $0x50] sm:$0xf]
      %v391 = vld [vmem:[%s284 + $0x54] sm:$0xf]
      %v392 = vld [vmem:[%s284 + $0x58] sm:$0xf]
      %v393 = vld [vmem:[%s284 + $0x5c] sm:$0xf]
      %v394 = vld [vmem:[%s284 + $0x60] sm:$0xf]
      %v395 = vld [vmem:[%s284 + $0x64] sm:$0xf]
      %v396 = vld [vmem:[%s284 + $0x68] sm:$0xf]
      %v397 = vld [vmem:[%s284 + $0x6c] sm:$0xf]
      %v398 = vld [vmem:[%s284 + $0x70] sm:$0xf]
      %v399 = vld [vmem:[%s284 + $0x74] sm:$0xf]
      %v400 = vld [vmem:[%s284 + $0x78] sm:$0xf]
      %v401 = vld [vmem:[%s284 + $0x7c] sm:$0xf]
      %v402 = vunpack.c.l.bf16 %v370
      %v403 = vunpack.c.l.bf16 %v371
      %v404 = vunpack.c.l.bf16 %v372
      %v405 = vunpack.c.l.bf16 %v373
      %v406 = vunpack.c.l.bf16 %v374
      %v407 = vunpack.c.l.bf16 %v375
      %v408 = vunpack.c.l.bf16 %v376
      %v409 = vunpack.c.l.bf16 %v377
      %v410 = vunpack.c.l.bf16 %v378
      %v411 = vunpack.c.l.bf16 %v379
      %v412 = vunpack.c.l.bf16 %v380
      %v413 = vunpack.c.l.bf16 %v381
      %v414 = vunpack.c.l.bf16 %v382
      %v415 = vunpack.c.l.bf16 %v383
      %v416 = vunpack.c.l.bf16 %v384
      %v417 = vunpack.c.l.bf16 %v385
      %v418 = vunpack.c.l.bf16 %v386
      %v419 = vunpack.c.l.bf16 %v387
      %v420 = vunpack.c.l.bf16 %v388
      %v421 = vunpack.c.l.bf16 %v389
      %v422 = vunpack.c.l.bf16 %v390
      %v423 = vunpack.c.l.bf16 %v391
      %v424 = vunpack.c.l.bf16 %v392
      %v425 = vunpack.c.l.bf16 %v393
      %v426 = vunpack.c.l.bf16 %v394
      %v427 = vunpack.c.l.bf16 %v395
      %v428 = vunpack.c.l.bf16 %v396
      %v429 = vunpack.c.l.bf16 %v397
      %v430 = vunpack.c.l.bf16 %v398
      %v431 = vunpack.c.l.bf16 %v399
      %v432 = vunpack.c.l.bf16 %v400
      %v433 = vunpack.c.l.bf16 %v401
      %v434 = vld [vmem:[%s289] sm:$0xf]
      %v435 = vld [vmem:[%s289 + $0x4] sm:$0xf]
      %v436 = vld [vmem:[%s289 + $0x8] sm:$0xf]
      %v437 = vld [vmem:[%s289 + $0xc] sm:$0xf]
      %v438 = vld [vmem:[%s289 + $0x10] sm:$0xf]
      %v439 = vld [vmem:[%s289 + $0x14] sm:$0xf]
      %v440 = vld [vmem:[%s289 + $0x18] sm:$0xf]
      %v441 = vld [vmem:[%s289 + $0x1c] sm:$0xf]
      %v442 = vld [vmem:[%s289 + $0x20] sm:$0xf]
      %v443 = vld [vmem:[%s289 + $0x24] sm:$0xf]
      %v444 = vld [vmem:[%s289 + $0x28] sm:$0xf]
      %v445 = vld [vmem:[%s289 + $0x2c] sm:$0xf]
      %v446 = vld [vmem:[%s289 + $0x30] sm:$0xf]
      %v447 = vld [vmem:[%s289 + $0x34] sm:$0xf]
      %v448 = vld [vmem:[%s289 + $0x38] sm:$0xf]
      %v449 = vld [vmem:[%s289 + $0x3c] sm:$0xf]
      %v450 = vld [vmem:[%s289 + $0x40] sm:$0xf]
      %v451 = vld [vmem:[%s289 + $0x44] sm:$0xf]
      %v452 = vld [vmem:[%s289 + $0x48] sm:$0xf]
      %v453 = vld [vmem:[%s289 + $0x4c] sm:$0xf]
      %v454 = vld [vmem:[%s289 + $0x50] sm:$0xf]
      %v455 = vld [vmem:[%s289 + $0x54] sm:$0xf]
      %v456 = vld [vmem:[%s289 + $0x58] sm:$0xf]
      %v457 = vld [vmem:[%s289 + $0x5c] sm:$0xf]
      %v458 = vld [vmem:[%s289 + $0x60] sm:$0xf]
      %v459 = vld [vmem:[%s289 + $0x64] sm:$0xf]
      %v460 = vld [vmem:[%s289 + $0x68] sm:$0xf]
      %v461 = vld [vmem:[%s289 + $0x6c] sm:$0xf]
      %v462 = vld [vmem:[%s289 + $0x70] sm:$0xf]
      %v463 = vld [vmem:[%s289 + $0x74] sm:$0xf]
      %v464 = vld [vmem:[%s289 + $0x78] sm:$0xf]
      %v465 = vld [vmem:[%s289 + $0x7c] sm:$0xf]
      %v466 = vld [vmem:[%s294] sm:$0xff]
      %v467 = vld [vmem:[%s294 + $0x8] sm:$0xff]
      %v468 = vld [vmem:[%s294 + $0x10] sm:$0xff]
      %v469 = vld [vmem:[%s294 + $0x18] sm:$0xff]
      %v470 = vld [vmem:[%s294 + $0x20] sm:$0xff]
      %v471 = vld [vmem:[%s294 + $0x28] sm:$0xff]
      %v472 = vld [vmem:[%s294 + $0x30] sm:$0xff]
      %v473 = vld [vmem:[%s294 + $0x38] sm:$0xff]
      %v474 = vld [vmem:[%s299] sm:$0xff]
      %v475 = vld [vmem:[%s299 + $0x8] sm:$0xff]
      %v476 = vld [vmem:[%s299 + $0x10] sm:$0xff]
      %v477 = vld [vmem:[%s299 + $0x18] sm:$0xff]
      %v478 = vld [vmem:[%s299 + $0x20] sm:$0xff]
      %v479 = vld [vmem:[%s299 + $0x28] sm:$0xff]
      %v480 = vld [vmem:[%s299 + $0x30] sm:$0xff]
      %v481 = vld [vmem:[%s299 + $0x38] sm:$0xff]
      %v482 = vsub.f32 0.0, %v338
      %v483 = vsub.f32 0.0, %v339
      %v484 = vsub.f32 0.0, %v340
      %v485 = vsub.f32 0.0, %v341
      %v486 = vsub.f32 0.0, %v342
      %v487 = vsub.f32 0.0, %v343
      %v488 = vsub.f32 0.0, %v344
      %v489 = vsub.f32 0.0, %v345
      %v490 = vsub.f32 0.0, %v346
      %v491 = vsub.f32 0.0, %v347
      %v492 = vsub.f32 0.0, %v348
      %v493 = vsub.f32 0.0, %v349
      %v494 = vsub.f32 0.0, %v350
      %v495 = vsub.f32 0.0, %v351
      %v496 = vsub.f32 0.0, %v352
      %v497 = vsub.f32 0.0, %v353
      %v498 = vsub.f32 0.0, %v354
      %v499 = vsub.f32 0.0, %v355
      %v500 = vsub.f32 0.0, %v356
      %v501 = vsub.f32 0.0, %v357
      %v502 = vsub.f32 0.0, %v358
      %v503 = vsub.f32 0.0, %v359
      %v504 = vsub.f32 0.0, %v360
      %v505 = vsub.f32 0.0, %v361
      %v506 = vsub.f32 0.0, %v362
      %v507 = vsub.f32 0.0, %v363
      %v508 = vsub.f32 0.0, %v364
      %v509 = vsub.f32 0.0, %v365
      %v510 = vsub.f32 0.0, %v366
      %v511 = vsub.f32 0.0, %v367
      %v512 = vsub.f32 0.0, %v368
      %v513 = vsub.f32 0.0, %v369
      %546 = vrot.lane.b32.xlu0 %v482, 112
      %v547 = vpop.permute.xlu0 %546
      %548 = vrot.lane.b32.xlu0 %v483, 112
      %v549 = vpop.permute.xlu0 %548
      %550 = vrot.lane.b32.xlu0 %v484, 112
      %v551 = vpop.permute.xlu0 %550
      %552 = vrot.lane.b32.xlu0 %v485, 112
      %v553 = vpop.permute.xlu0 %552
      %554 = vrot.lane.b32.xlu0 %v486, 112
      %v555 = vpop.permute.xlu0 %554
      %556 = vrot.lane.b32.xlu0 %v487, 112
      %v557 = vpop.permute.xlu0 %556
      %558 = vrot.lane.b32.xlu0 %v488, 112
      %v559 = vpop.permute.xlu0 %558
      %560 = vrot.lane.b32.xlu0 %v489, 112
      %v561 = vpop.permute.xlu0 %560
      %562 = vrot.lane.b32.xlu0 %v490, 112
      %v563 = vpop.permute.xlu0 %562
      %564 = vrot.lane.b32.xlu0 %v491, 112
      %v565 = vpop.permute.xlu0 %564
      %566 = vrot.lane.b32.xlu0 %v492, 112
      %v567 = vpop.permute.xlu0 %566
      %568 = vrot.lane.b32.xlu0 %v493, 112
      %v569 = vpop.permute.xlu0 %568
      %570 = vrot.lane.b32.xlu0 %v494, 112
      %v571 = vpop.permute.xlu0 %570
      %572 = vrot.lane.b32.xlu0 %v495, 112
      %v573 = vpop.permute.xlu0 %572
      %574 = vrot.lane.b32.xlu0 %v496, 112
      %v575 = vpop.permute.xlu0 %574
      %576 = vrot.lane.b32.xlu0 %v497, 112
      %v577 = vpop.permute.xlu0 %576
      %578 = vrot.lane.b32.xlu0 %v498, 112
      %v579 = vpop.permute.xlu0 %578
      %580 = vrot.lane.b32.xlu0 %v499, 112
      %v581 = vpop.permute.xlu0 %580
      %582 = vrot.lane.b32.xlu0 %v500, 112
      %v583 = vpop.permute.xlu0 %582
      %584 = vrot.lane.b32.xlu0 %v501, 112
      %v585 = vpop.permute.xlu0 %584
      %586 = vrot.lane.b32.xlu0 %v502, 112
      %v587 = vpop.permute.xlu0 %586
      %588 = vrot.lane.b32.xlu0 %v503, 112
      %v589 = vpop.permute.xlu0 %588
      %590 = vrot.lane.b32.xlu0 %v504, 112
      %v591 = vpop.permute.xlu0 %590
      %592 = vrot.lane.b32.xlu0 %v505, 112
      %v593 = vpop.permute.xlu0 %592
      %594 = vrot.lane.b32.xlu0 %v506, 112
      %v595 = vpop.permute.xlu0 %594
      %596 = vrot.lane.b32.xlu0 %v507, 112
      %v597 = vpop.permute.xlu0 %596
      %598 = vrot.lane.b32.xlu0 %v508, 112
      %v599 = vpop.permute.xlu0 %598
      %600 = vrot.lane.b32.xlu0 %v509, 112
      %v601 = vpop.permute.xlu0 %600
      %602 = vrot.lane.b32.xlu0 %v510, 112
      %v603 = vpop.permute.xlu0 %602
      %604 = vrot.lane.b32.xlu0 %v511, 112
      %v605 = vpop.permute.xlu0 %604
      %606 = vrot.lane.b32.xlu0 %v512, 112
      %v607 = vpop.permute.xlu0 %606
      %608 = vrot.lane.b32.xlu0 %v513, 112
      %v609 = vpop.permute.xlu0 %608
      %674 = vrot.lane.b32.xlu0 %v338, 16
      %v675 = vpop.permute.xlu0 %674
      %676 = vrot.lane.b32.xlu0 %v339, 16
      %v677 = vpop.permute.xlu0 %676
      %678 = vrot.lane.b32.xlu0 %v340, 16
      %v679 = vpop.permute.xlu0 %678
      %680 = vrot.lane.b32.xlu0 %v341, 16
      %v681 = vpop.permute.xlu0 %680
      %682 = vrot.lane.b32.xlu0 %v342, 16
      %v683 = vpop.permute.xlu0 %682
      %684 = vrot.lane.b32.xlu0 %v343, 16
      %v685 = vpop.permute.xlu0 %684
      %686 = vrot.lane.b32.xlu0 %v344, 16
      %v687 = vpop.permute.xlu0 %686
      %688 = vrot.lane.b32.xlu0 %v345, 16
      %v689 = vpop.permute.xlu0 %688
      %690 = vrot.lane.b32.xlu0 %v346, 16
      %v691 = vpop.permute.xlu0 %690
      %692 = vrot.lane.b32.xlu0 %v347, 16
      %v693 = vpop.permute.xlu0 %692
      %694 = vrot.lane.b32.xlu0 %v348, 16
      %v695 = vpop.permute.xlu0 %694
      %696 = vrot.lane.b32.xlu0 %v349, 16
      %v697 = vpop.permute.xlu0 %696
      %698 = vrot.lane.b32.xlu0 %v350, 16
      %v699 = vpop.permute.xlu0 %698
      %700 = vrot.lane.b32.xlu0 %v351, 16
      %v701 = vpop.permute.xlu0 %700
      %702 = vrot.lane.b32.xlu0 %v352, 16
      %v703 = vpop.permute.xlu0 %702
      %704 = vrot.lane.b32.xlu0 %v353, 16
      %v705 = vpop.permute.xlu0 %704
      %706 = vrot.lane.b32.xlu0 %v354, 16
      %v707 = vpop.permute.xlu0 %706
      %708 = vrot.lane.b32.xlu0 %v355, 16
      %v709 = vpop.permute.xlu0 %708
      %710 = vrot.lane.b32.xlu0 %v356, 16
      %v711 = vpop.permute.xlu0 %710
      %712 = vrot.lane.b32.xlu0 %v357, 16
      %v713 = vpop.permute.xlu0 %712
      %714 = vrot.lane.b32.xlu0 %v358, 16
      %v715 = vpop.permute.xlu0 %714
      %716 = vrot.lane.b32.xlu0 %v359, 16
      %v717 = vpop.permute.xlu0 %716
      %718 = vrot.lane.b32.xlu0 %v360, 16
      %v719 = vpop.permute.xlu0 %718
      %720 = vrot.lane.b32.xlu0 %v361, 16
      %v721 = vpop.permute.xlu0 %720
      %722 = vrot.lane.b32.xlu0 %v362, 16
      %v723 = vpop.permute.xlu0 %722
      %724 = vrot.lane.b32.xlu0 %v363, 16
      %v725 = vpop.permute.xlu0 %724
      %726 = vrot.lane.b32.xlu0 %v364, 16
      %v727 = vpop.permute.xlu0 %726
      %728 = vrot.lane.b32.xlu0 %v365, 16
      %v729 = vpop.permute.xlu0 %728
      %730 = vrot.lane.b32.xlu0 %v366, 16
      %v731 = vpop.permute.xlu0 %730
      %732 = vrot.lane.b32.xlu0 %v367, 16
      %v733 = vpop.permute.xlu0 %732
      %734 = vrot.lane.b32.xlu0 %v368, 16
      %v735 = vpop.permute.xlu0 %734
      %736 = vrot.lane.b32.xlu0 %v369, 16
      %v737 = vpop.permute.xlu0 %736
      %vm770 = vcmask 130048
      %v771 = vsel %vm770, %v547, %v675
      %v772 = vsel %vm770, %v549, %v677
      %v773 = vsel %vm770, %v551, %v679
      %v774 = vsel %vm770, %v553, %v681
      %v775 = vsel %vm770, %v555, %v683
      %v776 = vsel %vm770, %v557, %v685
      %v777 = vsel %vm770, %v559, %v687
      %v778 = vsel %vm770, %v561, %v689
      %v779 = vsel %vm770, %v563, %v691
      %v780 = vsel %vm770, %v565, %v693
      %v781 = vsel %vm770, %v567, %v695
      %v782 = vsel %vm770, %v569, %v697
      %v783 = vsel %vm770, %v571, %v699
      %v784 = vsel %vm770, %v573, %v701
      %v785 = vsel %vm770, %v575, %v703
      %v786 = vsel %vm770, %v577, %v705
      %v787 = vsel %vm770, %v579, %v707
      %v788 = vsel %vm770, %v581, %v709
      %v789 = vsel %vm770, %v583, %v711
      %v790 = vsel %vm770, %v585, %v713
      %v791 = vsel %vm770, %v587, %v715
      %v792 = vsel %vm770, %v589, %v717
      %v793 = vsel %vm770, %v591, %v719
      %v794 = vsel %vm770, %v593, %v721
      %v795 = vsel %vm770, %v595, %v723
      %v796 = vsel %vm770, %v597, %v725
      %v797 = vsel %vm770, %v599, %v727
      %v798 = vsel %vm770, %v601, %v729
      %v799 = vsel %vm770, %v603, %v731
      %v800 = vsel %vm770, %v605, %v733
      %v801 = vsel %vm770, %v607, %v735
      %v802 = vsel %vm770, %v609, %v737
      %v803 = vmul.f32 %v338, %v466
      %v804 = vmul.f32 %v339, %v467
      %v805 = vmul.f32 %v340, %v468
      %v806 = vmul.f32 %v341, %v469
      %v807 = vmul.f32 %v342, %v470
      %v808 = vmul.f32 %v343, %v471
      %v809 = vmul.f32 %v344, %v472
      %v810 = vmul.f32 %v345, %v473
      %v811 = vmul.f32 %v346, %v466
      %v812 = vmul.f32 %v347, %v467
      %v813 = vmul.f32 %v348, %v468
      %v814 = vmul.f32 %v349, %v469
      %v815 = vmul.f32 %v350, %v470
      %v816 = vmul.f32 %v351, %v471
      %v817 = vmul.f32 %v352, %v472
      %v818 = vmul.f32 %v353, %v473
      %v819 = vmul.f32 %v354, %v466
      %v820 = vmul.f32 %v355, %v467
      %v821 = vmul.f32 %v356, %v468
      %v822 = vmul.f32 %v357, %v469
      %v823 = vmul.f32 %v358, %v470
      %v824 = vmul.f32 %v359, %v471
      %v825 = vmul.f32 %v360, %v472
      %v826 = vmul.f32 %v361, %v473
      %v827 = vmul.f32 %v362, %v466
      %v828 = vmul.f32 %v363, %v467
      %v829 = vmul.f32 %v364, %v468
      %v830 = vmul.f32 %v365, %v469
      %v831 = vmul.f32 %v366, %v470
      %v832 = vmul.f32 %v367, %v471
      %v833 = vmul.f32 %v368, %v472
      %v834 = vmul.f32 %v369, %v473
      %v835 = vmul.f32 %v771, %v474
      %v836 = vmul.f32 %v772, %v475
      %v837 = vmul.f32 %v773, %v476
      %v838 = vmul.f32 %v774, %v477
      %v839 = vmul.f32 %v775, %v478
      %v840 = vmul.f32 %v776, %v479
      %v841 = vmul.f32 %v777, %v480
      %v842 = vmul.f32 %v778, %v481
      %v843 = vmul.f32 %v779, %v474
      %v844 = vmul.f32 %v780, %v475
      %v845 = vmul.f32 %v781, %v476
      %v846 = vmul.f32 %v782, %v477
      %v847 = vmul.f32 %v783, %v478
      %v848 = vmul.f32 %v784, %v479
      %v849 = vmul.f32 %v785, %v480
      %v850 = vmul.f32 %v786, %v481
      %v851 = vmul.f32 %v787, %v474
      %v852 = vmul.f32 %v788, %v475
      %v853 = vmul.f32 %v789, %v476
      %v854 = vmul.f32 %v790, %v477
      %v855 = vmul.f32 %v791, %v478
      %v856 = vmul.f32 %v792, %v479
      %v857 = vmul.f32 %v793, %v480
      %v858 = vmul.f32 %v794, %v481
      %v859 = vmul.f32 %v795, %v474
      %v860 = vmul.f32 %v796, %v475
      %v861 = vmul.f32 %v797, %v476
      %v862 = vmul.f32 %v798, %v477
      %v863 = vmul.f32 %v799, %v478
      %v864 = vmul.f32 %v800, %v479
      %v865 = vmul.f32 %v801, %v480
      %v866 = vmul.f32 %v802, %v481
      %v867 = vadd.f32 %v803, %v835
      %v868 = vadd.f32 %v804, %v836
      %v869 = vadd.f32 %v805, %v837
      %v870 = vadd.f32 %v806, %v838
      %v871 = vadd.f32 %v807, %v839
      %v872 = vadd.f32 %v808, %v840
      %v873 = vadd.f32 %v809, %v841
      %v874 = vadd.f32 %v810, %v842
      %v875 = vadd.f32 %v811, %v843
      %v876 = vadd.f32 %v812, %v844
      %v877 = vadd.f32 %v813, %v845
      %v878 = vadd.f32 %v814, %v846
      %v879 = vadd.f32 %v815, %v847
      %v880 = vadd.f32 %v816, %v848
      %v881 = vadd.f32 %v817, %v849
      %v882 = vadd.f32 %v818, %v850
      %v883 = vadd.f32 %v819, %v851
      %v884 = vadd.f32 %v820, %v852
      %v885 = vadd.f32 %v821, %v853
      %v886 = vadd.f32 %v822, %v854
      %v887 = vadd.f32 %v823, %v855
      %v888 = vadd.f32 %v824, %v856
      %v889 = vadd.f32 %v825, %v857
      %v890 = vadd.f32 %v826, %v858
      %v891 = vadd.f32 %v827, %v859
      %v892 = vadd.f32 %v828, %v860
      %v893 = vadd.f32 %v829, %v861
      %v894 = vadd.f32 %v830, %v862
      %v895 = vadd.f32 %v831, %v863
      %v896 = vadd.f32 %v832, %v864
      %v897 = vadd.f32 %v833, %v865
      %v898 = vadd.f32 %v834, %v866
      %v899 = vmul.f32 %v867, 0.17677669
      %v900 = vmul.f32 %v868, 0.17677669
      %v901 = vmul.f32 %v869, 0.17677669
      %v902 = vmul.f32 %v870, 0.17677669
      %v903 = vmul.f32 %v871, 0.17677669
      %v904 = vmul.f32 %v872, 0.17677669
      %v905 = vmul.f32 %v873, 0.17677669
      %v906 = vmul.f32 %v874, 0.17677669
      %v907 = vmul.f32 %v875, 0.17677669
      %v908 = vmul.f32 %v876, 0.17677669
      %v909 = vmul.f32 %v877, 0.17677669
      %v910 = vmul.f32 %v878, 0.17677669
      %v911 = vmul.f32 %v879, 0.17677669
      %v912 = vmul.f32 %v880, 0.17677669
      %v913 = vmul.f32 %v881, 0.17677669
      %v914 = vmul.f32 %v882, 0.17677669
      %v915 = vmul.f32 %v883, 0.17677669
      %v916 = vmul.f32 %v884, 0.17677669
      %v917 = vmul.f32 %v885, 0.17677669
      %v918 = vmul.f32 %v886, 0.17677669
      %v919 = vmul.f32 %v887, 0.17677669
      %v920 = vmul.f32 %v888, 0.17677669
      %v921 = vmul.f32 %v889, 0.17677669
      %v922 = vmul.f32 %v890, 0.17677669
      %v923 = vmul.f32 %v891, 0.17677669
      %v924 = vmul.f32 %v892, 0.17677669
      %v925 = vmul.f32 %v893, 0.17677669
      %v926 = vmul.f32 %v894, 0.17677669
      %v927 = vmul.f32 %v895, 0.17677669
      %v928 = vmul.f32 %v896, 0.17677669
      %v929 = vmul.f32 %v897, 0.17677669
      %v930 = vmul.f32 %v898, 0.17677669
      %v931 = vpack.c.bf16 %v899, %v899
      %v932 = vpack.c.bf16 %v900, %v900
      %v933 = vpack.c.bf16 %v901, %v901
      %v934 = vpack.c.bf16 %v902, %v902
      %v935 = vpack.c.bf16 %v903, %v903
      %v936 = vpack.c.bf16 %v904, %v904
      %v937 = vpack.c.bf16 %v905, %v905
      %v938 = vpack.c.bf16 %v906, %v906
      %v939 = vpack.c.bf16 %v907, %v907
      %v940 = vpack.c.bf16 %v908, %v908
      %v941 = vpack.c.bf16 %v909, %v909
      %v942 = vpack.c.bf16 %v910, %v910
      %v943 = vpack.c.bf16 %v911, %v911
      %v944 = vpack.c.bf16 %v912, %v912
      %v945 = vpack.c.bf16 %v913, %v913
      %v946 = vpack.c.bf16 %v914, %v914
      %v947 = vpack.c.bf16 %v915, %v915
      %v948 = vpack.c.bf16 %v916, %v916
      %v949 = vpack.c.bf16 %v917, %v917
      %v950 = vpack.c.bf16 %v918, %v918
      %v951 = vpack.c.bf16 %v919, %v919
      %v952 = vpack.c.bf16 %v920, %v920
      %v953 = vpack.c.bf16 %v921, %v921
      %v954 = vpack.c.bf16 %v922, %v922
      %v955 = vpack.c.bf16 %v923, %v923
      %v956 = vpack.c.bf16 %v924, %v924
      %v957 = vpack.c.bf16 %v925, %v925
      %v958 = vpack.c.bf16 %v926, %v926
      %v959 = vpack.c.bf16 %v927, %v927
      %v960 = vpack.c.bf16 %v928, %v928
      %v961 = vpack.c.bf16 %v929, %v929
      %v962 = vpack.c.bf16 %v930, %v930
      %v963 = vsub.f32 0.0, %v402
      %v964 = vsub.f32 0.0, %v403
      %v965 = vsub.f32 0.0, %v404
      %v966 = vsub.f32 0.0, %v405
      %v967 = vsub.f32 0.0, %v406
      %v968 = vsub.f32 0.0, %v407
      %v969 = vsub.f32 0.0, %v408
      %v970 = vsub.f32 0.0, %v409
      %v971 = vsub.f32 0.0, %v410
      %v972 = vsub.f32 0.0, %v411
      %v973 = vsub.f32 0.0, %v412
      %v974 = vsub.f32 0.0, %v413
      %v975 = vsub.f32 0.0, %v414
      %v976 = vsub.f32 0.0, %v415
      %v977 = vsub.f32 0.0, %v416
      %v978 = vsub.f32 0.0, %v417
      %v979 = vsub.f32 0.0, %v418
      %v980 = vsub.f32 0.0, %v419
      %v981 = vsub.f32 0.0, %v420
      %v982 = vsub.f32 0.0, %v421
      %v983 = vsub.f32 0.0, %v422
      %v984 = vsub.f32 0.0, %v423
      %v985 = vsub.f32 0.0, %v424
      %v986 = vsub.f32 0.0, %v425
      %v987 = vsub.f32 0.0, %v426
      %v988 = vsub.f32 0.0, %v427
      %v989 = vsub.f32 0.0, %v428
      %v990 = vsub.f32 0.0, %v429
      %v991 = vsub.f32 0.0, %v430
      %v992 = vsub.f32 0.0, %v431
      %v993 = vsub.f32 0.0, %v432
      %v994 = vsub.f32 0.0, %v433
      %1027 = vrot.lane.b32.xlu0 %v963, 112
      %v1028 = vpop.permute.xlu0 %1027
      %1029 = vrot.lane.b32.xlu0 %v964, 112
      %v1030 = vpop.permute.xlu0 %1029
      %1031 = vrot.lane.b32.xlu0 %v965, 112
      %v1032 = vpop.permute.xlu0 %1031
      %1033 = vrot.lane.b32.xlu0 %v966, 112
      %v1034 = vpop.permute.xlu0 %1033
      %1035 = vrot.lane.b32.xlu0 %v967, 112
      %v1036 = vpop.permute.xlu0 %1035
      %1037 = vrot.lane.b32.xlu0 %v968, 112
      %v1038 = vpop.permute.xlu0 %1037
      %1039 = vrot.lane.b32.xlu0 %v969, 112
      %v1040 = vpop.permute.xlu0 %1039
      %1041 = vrot.lane.b32.xlu0 %v970, 112
      %v1042 = vpop.permute.xlu0 %1041
      %1043 = vrot.lane.b32.xlu0 %v971, 112
      %v1044 = vpop.permute.xlu0 %1043
      %1045 = vrot.lane.b32.xlu0 %v972, 112
      %v1046 = vpop.permute.xlu0 %1045
      %1047 = vrot.lane.b32.xlu0 %v973, 112
      %v1048 = vpop.permute.xlu0 %1047
      %1049 = vrot.lane.b32.xlu0 %v974, 112
      %v1050 = vpop.permute.xlu0 %1049
      %1051 = vrot.lane.b32.xlu0 %v975, 112
      %v1052 = vpop.permute.xlu0 %1051
      %1053 = vrot.lane.b32.xlu0 %v976, 112
      %v1054 = vpop.permute.xlu0 %1053
      %1055 = vrot.lane.b32.xlu0 %v977, 112
      %v1056 = vpop.permute.xlu0 %1055
      %1057 = vrot.lane.b32.xlu0 %v978, 112
      %v1058 = vpop.permute.xlu0 %1057
      %1059 = vrot.lane.b32.xlu0 %v979, 112
      %v1060 = vpop.permute.xlu0 %1059
      %1061 = vrot.lane.b32.xlu0 %v980, 112
      %v1062 = vpop.permute.xlu0 %1061
      %1063 = vrot.lane.b32.xlu0 %v981, 112
      %v1064 = vpop.permute.xlu0 %1063
      %1065 = vrot.lane.b32.xlu0 %v982, 112
      %v1066 = vpop.permute.xlu0 %1065
      %1067 = vrot.lane.b32.xlu0 %v983, 112
      %v1068 = vpop.permute.xlu0 %1067
      %1069 = vrot.lane.b32.xlu0 %v984, 112
      %v1070 = vpop.permute.xlu0 %1069
      %1071 = vrot.lane.b32.xlu0 %v985, 112
      %v1072 = vpop.permute.xlu0 %1071
      %1073 = vrot.lane.b32.xlu0 %v986, 112
      %v1074 = vpop.permute.xlu0 %1073
      %1075 = vrot.lane.b32.xlu0 %v987, 112
      %v1076 = vpop.permute.xlu0 %1075
      %1077 = vrot.lane.b32.xlu0 %v988, 112
      %v1078 = vpop.permute.xlu0 %1077
      %1079 = vrot.lane.b32.xlu0 %v989, 112
      %v1080 = vpop.permute.xlu0 %1079
      %1081 = vrot.lane.b32.xlu0 %v990, 112
      %v1082 = vpop.permute.xlu0 %1081
      %1083 = vrot.lane.b32.xlu0 %v991, 112
      %v1084 = vpop.permute.xlu0 %1083
      %1085 = vrot.lane.b32.xlu0 %v992, 112
      %v1086 = vpop.permute.xlu0 %1085
      %1087 = vrot.lane.b32.xlu0 %v993, 112
      %v1088 = vpop.permute.xlu0 %1087
      %1089 = vrot.lane.b32.xlu0 %v994, 112
      %v1090 = vpop.permute.xlu0 %1089
      %1155 = vrot.lane.b32.xlu0 %v402, 16
      %v1156 = vpop.permute.xlu0 %1155
      %1157 = vrot.lane.b32.xlu0 %v403, 16
      %v1158 = vpop.permute.xlu0 %1157
      %1159 = vrot.lane.b32.xlu0 %v404, 16
      %v1160 = vpop.permute.xlu0 %1159
      %1161 = vrot.lane.b32.xlu0 %v405, 16
      %v1162 = vpop.permute.xlu0 %1161
      %1163 = vrot.lane.b32.xlu0 %v406, 16
      %v1164 = vpop.permute.xlu0 %1163
      %1165 = vrot.lane.b32.xlu0 %v407, 16
      %v1166 = vpop.permute.xlu0 %1165
      %1167 = vrot.lane.b32.xlu0 %v408, 16
      %v1168 = vpop.permute.xlu0 %1167
      %1169 = vrot.lane.b32.xlu0 %v409, 16
      %v1170 = vpop.permute.xlu0 %1169
      %1171 = vrot.lane.b32.xlu0 %v410, 16
      %v1172 = vpop.permute.xlu0 %1171
      %1173 = vrot.lane.b32.xlu0 %v411, 16
      %v1174 = vpop.permute.xlu0 %1173
      %1175 = vrot.lane.b32.xlu0 %v412, 16
      %v1176 = vpop.permute.xlu0 %1175
      %1177 = vrot.lane.b32.xlu0 %v413, 16
      %v1178 = vpop.permute.xlu0 %1177
      %1179 = vrot.lane.b32.xlu0 %v414, 16
      %v1180 = vpop.permute.xlu0 %1179
      %1181 = vrot.lane.b32.xlu0 %v415, 16
      %v1182 = vpop.permute.xlu0 %1181
      %1183 = vrot.lane.b32.xlu0 %v416, 16
      %v1184 = vpop.permute.xlu0 %1183
      %1185 = vrot.lane.b32.xlu0 %v417, 16
      %v1186 = vpop.permute.xlu0 %1185
      %1187 = vrot.lane.b32.xlu0 %v418, 16
      %v1188 = vpop.permute.xlu0 %1187
      %1189 = vrot.lane.b32.xlu0 %v419, 16
      %v1190 = vpop.permute.xlu0 %1189
      %1191 = vrot.lane.b32.xlu0 %v420, 16
      %v1192 = vpop.permute.xlu0 %1191
      %1193 = vrot.lane.b32.xlu0 %v421, 16
      %v1194 = vpop.permute.xlu0 %1193
      %1195 = vrot.lane.b32.xlu0 %v422, 16
      %v1196 = vpop.permute.xlu0 %1195
      %1197 = vrot.lane.b32.xlu0 %v423, 16
      %v1198 = vpop.permute.xlu0 %1197
      %1199 = vrot.lane.b32.xlu0 %v424, 16
      %v1200 = vpop.permute.xlu0 %1199
      %1201 = vrot.lane.b32.xlu0 %v425, 16
      %v1202 = vpop.permute.xlu0 %1201
      %1203 = vrot.lane.b32.xlu0 %v426, 16
      %v1204 = vpop.permute.xlu0 %1203
      %1205 = vrot.lane.b32.xlu0 %v427, 16
      %v1206 = vpop.permute.xlu0 %1205
      %1207 = vrot.lane.b32.xlu0 %v428, 16
      %v1208 = vpop.permute.xlu0 %1207
      %1209 = vrot.lane.b32.xlu0 %v429, 16
      %v1210 = vpop.permute.xlu0 %1209
      %1211 = vrot.lane.b32.xlu0 %v430, 16
      %v1212 = vpop.permute.xlu0 %1211
      %1213 = vrot.lane.b32.xlu0 %v431, 16
      %v1214 = vpop.permute.xlu0 %1213
      %1215 = vrot.lane.b32.xlu0 %v432, 16
      %v1216 = vpop.permute.xlu0 %1215
      %1217 = vrot.lane.b32.xlu0 %v433, 16
      %v1218 = vpop.permute.xlu0 %1217
      %v1251 = vsel %vm770, %v1028, %v1156
      %v1252 = vsel %vm770, %v1030, %v1158
      %v1253 = vsel %vm770, %v1032, %v1160
      %v1254 = vsel %vm770, %v1034, %v1162
      %v1255 = vsel %vm770, %v1036, %v1164
      %v1256 = vsel %vm770, %v1038, %v1166
      %v1257 = vsel %vm770, %v1040, %v1168
      %v1258 = vsel %vm770, %v1042, %v1170
      %v1259 = vsel %vm770, %v1044, %v1172
      %v1260 = vsel %vm770, %v1046, %v1174
      %v1261 = vsel %vm770, %v1048, %v1176
      %v1262 = vsel %vm770, %v1050, %v1178
      %v1263 = vsel %vm770, %v1052, %v1180
      %v1264 = vsel %vm770, %v1054, %v1182
      %v1265 = vsel %vm770, %v1056, %v1184
      %v1266 = vsel %vm770, %v1058, %v1186
      %v1267 = vsel %vm770, %v1060, %v1188
      %v1268 = vsel %vm770, %v1062, %v1190
      %v1269 = vsel %vm770, %v1064, %v1192
      %v1270 = vsel %vm770, %v1066, %v1194
      %v1271 = vsel %vm770, %v1068, %v1196
      %v1272 = vsel %vm770, %v1070, %v1198
      %v1273 = vsel %vm770, %v1072, %v1200
      %v1274 = vsel %vm770, %v1074, %v1202
      %v1275 = vsel %vm770, %v1076, %v1204
      %v1276 = vsel %vm770, %v1078, %v1206
      %v1277 = vsel %vm770, %v1080, %v1208
      %v1278 = vsel %vm770, %v1082, %v1210
      %v1279 = vsel %vm770, %v1084, %v1212
      %v1280 = vsel %vm770, %v1086, %v1214
      %v1281 = vsel %vm770, %v1088, %v1216
      %v1282 = vsel %vm770, %v1090, %v1218
      %v1283 = vmul.f32 %v402, %v466
      %v1284 = vmul.f32 %v403, %v467
      %v1285 = vmul.f32 %v404, %v468
      %v1286 = vmul.f32 %v405, %v469
      %v1287 = vmul.f32 %v406, %v470
      %v1288 = vmul.f32 %v407, %v471
      %v1289 = vmul.f32 %v408, %v472
      %v1290 = vmul.f32 %v409, %v473
      %v1291 = vmul.f32 %v410, %v466
      %v1292 = vmul.f32 %v411, %v467
      %v1293 = vmul.f32 %v412, %v468
      %v1294 = vmul.f32 %v413, %v469
      %v1295 = vmul.f32 %v414, %v470
      %v1296 = vmul.f32 %v415, %v471
      %v1297 = vmul.f32 %v416, %v472
      %v1298 = vmul.f32 %v417, %v473
      %v1299 = vmul.f32 %v418, %v466
      %v1300 = vmul.f32 %v419, %v467
      %v1301 = vmul.f32 %v420, %v468
      %v1302 = vmul.f32 %v421, %v469
      %v1303 = vmul.f32 %v422, %v470
      %v1304 = vmul.f32 %v423, %v471
      %v1305 = vmul.f32 %v424, %v472
      %v1306 = vmul.f32 %v425, %v473
      %v1307 = vmul.f32 %v426, %v466
      %v1308 = vmul.f32 %v427, %v467
      %v1309 = vmul.f32 %v428, %v468
      %v1310 = vmul.f32 %v429, %v469
      %v1311 = vmul.f32 %v430, %v470
      %v1312 = vmul.f32 %v431, %v471
      %v1313 = vmul.f32 %v432, %v472
      %v1314 = vmul.f32 %v433, %v473
      %v1315 = vmul.f32 %v1251, %v474
      %v1316 = vmul.f32 %v1252, %v475
      %v1317 = vmul.f32 %v1253, %v476
      %v1318 = vmul.f32 %v1254, %v477
      %v1319 = vmul.f32 %v1255, %v478
      %v1320 = vmul.f32 %v1256, %v479
      %v1321 = vmul.f32 %v1257, %v480
      %v1322 = vmul.f32 %v1258, %v481
      %v1323 = vmul.f32 %v1259, %v474
      %v1324 = vmul.f32 %v1260, %v475
      %v1325 = vmul.f32 %v1261, %v476
      %v1326 = vmul.f32 %v1262, %v477
      %v1327 = vmul.f32 %v1263, %v478
      %v1328 = vmul.f32 %v1264, %v479
      %v1329 = vmul.f32 %v1265, %v480
      %v1330 = vmul.f32 %v1266, %v481
      %v1331 = vmul.f32 %v1267, %v474
      %v1332 = vmul.f32 %v1268, %v475
      %v1333 = vmul.f32 %v1269, %v476
      %v1334 = vmul.f32 %v1270, %v477
      %v1335 = vmul.f32 %v1271, %v478
      %v1336 = vmul.f32 %v1272, %v479
      %v1337 = vmul.f32 %v1273, %v480
      %v1338 = vmul.f32 %v1274, %v481
      %v1339 = vmul.f32 %v1275, %v474
      %v1340 = vmul.f32 %v1276, %v475
      %v1341 = vmul.f32 %v1277, %v476
      %v1342 = vmul.f32 %v1278, %v477
      %v1343 = vmul.f32 %v1279, %v478
      %v1344 = vmul.f32 %v1280, %v479
      %v1345 = vmul.f32 %v1281, %v480
      %v1346 = vmul.f32 %v1282, %v481
      %v1347 = vadd.f32 %v1283, %v1315
      %v1348 = vadd.f32 %v1284, %v1316
      %v1349 = vadd.f32 %v1285, %v1317
      %v1350 = vadd.f32 %v1286, %v1318
      %v1351 = vadd.f32 %v1287, %v1319
      %v1352 = vadd.f32 %v1288, %v1320
      %v1353 = vadd.f32 %v1289, %v1321
      %v1354 = vadd.f32 %v1290, %v1322
      %v1355 = vadd.f32 %v1291, %v1323
      %v1356 = vadd.f32 %v1292, %v1324
      %v1357 = vadd.f32 %v1293, %v1325
      %v1358 = vadd.f32 %v1294, %v1326
      %v1359 = vadd.f32 %v1295, %v1327
      %v1360 = vadd.f32 %v1296, %v1328
      %v1361 = vadd.f32 %v1297, %v1329
      %v1362 = vadd.f32 %v1298, %v1330
      %v1363 = vadd.f32 %v1299, %v1331
      %v1364 = vadd.f32 %v1300, %v1332
      %v1365 = vadd.f32 %v1301, %v1333
      %v1366 = vadd.f32 %v1302, %v1334
      %v1367 = vadd.f32 %v1303, %v1335
      %v1368 = vadd.f32 %v1304, %v1336
      %v1369 = vadd.f32 %v1305, %v1337
      %v1370 = vadd.f32 %v1306, %v1338
      %v1371 = vadd.f32 %v1307, %v1339
      %v1372 = vadd.f32 %v1308, %v1340
      %v1373 = vadd.f32 %v1309, %v1341
      %v1374 = vadd.f32 %v1310, %v1342
      %v1375 = vadd.f32 %v1311, %v1343
      %v1376 = vadd.f32 %v1312, %v1344
      %v1377 = vadd.f32 %v1313, %v1345
      %v1378 = vadd.f32 %v1314, %v1346
      %v1379 = vpack.c.bf16 %v1347, %v1347
      %v1380 = vpack.c.bf16 %v1348, %v1348
      %v1381 = vpack.c.bf16 %v1349, %v1349
      %v1382 = vpack.c.bf16 %v1350, %v1350
      %v1383 = vpack.c.bf16 %v1351, %v1351
      %v1384 = vpack.c.bf16 %v1352, %v1352
      %v1385 = vpack.c.bf16 %v1353, %v1353
      %v1386 = vpack.c.bf16 %v1354, %v1354
      %v1387 = vpack.c.bf16 %v1355, %v1355
      %v1388 = vpack.c.bf16 %v1356, %v1356
      %v1389 = vpack.c.bf16 %v1357, %v1357
      %v1390 = vpack.c.bf16 %v1358, %v1358
      %v1391 = vpack.c.bf16 %v1359, %v1359
      %v1392 = vpack.c.bf16 %v1360, %v1360
      %v1393 = vpack.c.bf16 %v1361, %v1361
      %v1394 = vpack.c.bf16 %v1362, %v1362
      %v1395 = vpack.c.bf16 %v1363, %v1363
      %v1396 = vpack.c.bf16 %v1364, %v1364
      %v1397 = vpack.c.bf16 %v1365, %v1365
      %v1398 = vpack.c.bf16 %v1366, %v1366
      %v1399 = vpack.c.bf16 %v1367, %v1367
      %v1400 = vpack.c.bf16 %v1368, %v1368
      %v1401 = vpack.c.bf16 %v1369, %v1369
      %v1402 = vpack.c.bf16 %v1370, %v1370
      %v1403 = vpack.c.bf16 %v1371, %v1371
      %v1404 = vpack.c.bf16 %v1372, %v1372
      %v1405 = vpack.c.bf16 %v1373, %v1373
      %v1406 = vpack.c.bf16 %v1374, %v1374
      %v1407 = vpack.c.bf16 %v1375, %v1375
      %v1408 = vpack.c.bf16 %v1376, %v1376
      %v1409 = vpack.c.bf16 %v1377, %v1377
      %v1410 = vpack.c.bf16 %v1378, %v1378
      %v1419 = vunpack.c.l.b16 %v931
      %v1420 = vunpack.c.l.b16 %v932
      %v1421 = vunpack.c.l.b16 %v933
      %v1422 = vunpack.c.l.b16 %v934
      %v1423 = vunpack.c.l.b16 %v935
      %v1424 = vunpack.c.l.b16 %v936
      %v1425 = vunpack.c.l.b16 %v937
      %v1426 = vunpack.c.l.b16 %v938
      %v1427 = vpack.c.b16 %v1420, %v1419
      %v1428 = vpack.c.b16 %v1422, %v1421
      %v1429 = vpack.c.b16 %v1424, %v1423
      %v1430 = vpack.c.b16 %v1426, %v1425
      %v1439 = vunpack.c.l.b16 %v1379
      %v1440 = vunpack.c.l.b16 %v1380
      %v1441 = vunpack.c.l.b16 %v1381
      %v1442 = vunpack.c.l.b16 %v1382
      %v1443 = vunpack.c.l.b16 %v1383
      %v1444 = vunpack.c.l.b16 %v1384
      %v1445 = vunpack.c.l.b16 %v1385
      %v1446 = vunpack.c.l.b16 %v1386
      %v1447 = vpack.c.b16 %v1440, %v1439
      %v1448 = vpack.c.b16 %v1442, %v1441
      %v1449 = vpack.c.b16 %v1444, %v1443
      %v1450 = vpack.c.b16 %v1446, %v1445
      %vm1451 = vcmask 261120
      %v1453 = vsel %vm1451, %v1427, 0
      %v1456 = vsel %vm1451, %v1428, 0
      %v1459 = vsel %vm1451, %v1429, 0
      %v1462 = vsel %vm1451, %v1430, 0
      %v1465 = vsel %vm1451, %v1447, 0
      %v1468 = vsel %vm1451, %v1448, 0
      %v1471 = vsel %vm1451, %v1449, 0
      %v1474 = vsel %vm1451, %v1450, 0
      %1476 = vmatpush.bf16.xpose.msra.mxu0 0
      %1477 = vmatpush.bf16.xpose.msra.mxu0 0
      %1478 = vmatpush.bf16.xpose.msra.mxu0 0
      %1479 = vmatpush.bf16.xpose.msra.mxu0 0
      %1480 = vmatpush.bf16.xpose.msra.mxu0 %v1474
      %1481 = vmatpush.bf16.xpose.msra.mxu0 %v1471
      %1482 = vmatpush.bf16.xpose.msra.mxu0 %v1468
      %1483 = vmatpush.bf16.xpose.msra.mxu0 %v1465
      %1484 = vmatmul.bf16.gmra.mxu0 %v1453
      %v1485 = vpop.f32.mrf.mxu0
      %v1486 = vadd.f32 0.0, %v1485
      %v1487 = vpop.f32.mrf.mxu0
      %v1488 = vadd.f32 0.0, %v1487
      %1489 = vmatmul.bf16.gmra.mxu0 %v1456
      %v1490 = vpop.f32.mrf.mxu0
      %v1491 = vadd.f32 0.0, %v1490
      %v1492 = vpop.f32.mrf.mxu0
      %v1493 = vadd.f32 0.0, %v1492
      %1494 = vmatmul.bf16.gmra.mxu0 %v1459
      %v1495 = vpop.f32.mrf.mxu0
      %v1496 = vadd.f32 0.0, %v1495
      %v1497 = vpop.f32.mrf.mxu0
      %v1498 = vadd.f32 0.0, %v1497
      %1499 = vmatmul.bf16.gmra.mxu0 %v1462
      %v1500 = vpop.f32.mrf.mxu0
      %v1501 = vadd.f32 0.0, %v1500
      %v1502 = vpop.f32.mrf.mxu0
      %v1503 = vadd.f32 0.0, %v1502
      %1504 = vdwg.mxu0
      %v1513 = vunpack.c.l.b16 %v939
      %v1514 = vunpack.c.l.b16 %v940
      %v1515 = vunpack.c.l.b16 %v941
      %v1516 = vunpack.c.l.b16 %v942
      %v1517 = vunpack.c.l.b16 %v943
      %v1518 = vunpack.c.l.b16 %v944
      %v1519 = vunpack.c.l.b16 %v945
      %v1520 = vunpack.c.l.b16 %v946
      %v1521 = vpack.c.b16 %v1514, %v1513
      %v1522 = vpack.c.b16 %v1516, %v1515
      %v1523 = vpack.c.b16 %v1518, %v1517
      %v1524 = vpack.c.b16 %v1520, %v1519
      %v1533 = vunpack.c.l.b16 %v1387
      %v1534 = vunpack.c.l.b16 %v1388
      %v1535 = vunpack.c.l.b16 %v1389
      %v1536 = vunpack.c.l.b16 %v1390
      %v1537 = vunpack.c.l.b16 %v1391
      %v1538 = vunpack.c.l.b16 %v1392
      %v1539 = vunpack.c.l.b16 %v1393
      %v1540 = vunpack.c.l.b16 %v1394
      %v1541 = vpack.c.b16 %v1534, %v1533
      %v1542 = vpack.c.b16 %v1536, %v1535
      %v1543 = vpack.c.b16 %v1538, %v1537
      %v1544 = vpack.c.b16 %v1540, %v1539
      %v1546 = vsel %vm1451, %v1521, 0
      %v1549 = vsel %vm1451, %v1522, 0
      %v1552 = vsel %vm1451, %v1523, 0
      %v1555 = vsel %vm1451, %v1524, 0
      %v1558 = vsel %vm1451, %v1541, 0
      %v1561 = vsel %vm1451, %v1542, 0
      %v1564 = vsel %vm1451, %v1543, 0
      %v1567 = vsel %vm1451, %v1544, 0
      %1569 = vmatpush.bf16.xpose.msra.mxu0 0
      %1570 = vmatpush.bf16.xpose.msra.mxu0 0
      %1571 = vmatpush.bf16.xpose.msra.mxu0 0
      %1572 = vmatpush.bf16.xpose.msra.mxu0 0
      %1573 = vmatpush.bf16.xpose.msra.mxu0 %v1567
      %1574 = vmatpush.bf16.xpose.msra.mxu0 %v1564
      %1575 = vmatpush.bf16.xpose.msra.mxu0 %v1561
      %1576 = vmatpush.bf16.xpose.msra.mxu0 %v1558
      %1577 = vmatmul.bf16.gmra.mxu0 %v1546
      %v1578 = vpop.f32.mrf.mxu0
      %v1579 = vadd.f32 0.0, %v1578
      %v1580 = vpop.f32.mrf.mxu0
      %v1581 = vadd.f32 0.0, %v1580
      %1582 = vmatmul.bf16.gmra.mxu0 %v1549
      %v1583 = vpop.f32.mrf.mxu0
      %v1584 = vadd.f32 0.0, %v1583
      %v1585 = vpop.f32.mrf.mxu0
      %v1586 = vadd.f32 0.0, %v1585
      %1587 = vmatmul.bf16.gmra.mxu0 %v1552
      %v1588 = vpop.f32.mrf.mxu0
      %v1589 = vadd.f32 0.0, %v1588
      %v1590 = vpop.f32.mrf.mxu0
      %v1591 = vadd.f32 0.0, %v1590
      %1592 = vmatmul.bf16.gmra.mxu0 %v1555
      %v1593 = vpop.f32.mrf.mxu0
      %v1594 = vadd.f32 0.0, %v1593
      %v1595 = vpop.f32.mrf.mxu0
      %v1596 = vadd.f32 0.0, %v1595
      %1597 = vdwg.mxu0
      %v1606 = vunpack.c.l.b16 %v947
      %v1607 = vunpack.c.l.b16 %v948
      %v1608 = vunpack.c.l.b16 %v949
      %v1609 = vunpack.c.l.b16 %v950
      %v1610 = vunpack.c.l.b16 %v951
      %v1611 = vunpack.c.l.b16 %v952
      %v1612 = vunpack.c.l.b16 %v953
      %v1613 = vunpack.c.l.b16 %v954
      %v1614 = vpack.c.b16 %v1607, %v1606
      %v1615 = vpack.c.b16 %v1609, %v1608
      %v1616 = vpack.c.b16 %v1611, %v1610
      %v1617 = vpack.c.b16 %v1613, %v1612
      %v1626 = vunpack.c.l.b16 %v1395
      %v1627 = vunpack.c.l.b16 %v1396
      %v1628 = vunpack.c.l.b16 %v1397
      %v1629 = vunpack.c.l.b16 %v1398
      %v1630 = vunpack.c.l.b16 %v1399
      %v1631 = vunpack.c.l.b16 %v1400
      %v1632 = vunpack.c.l.b16 %v1401
      %v1633 = vunpack.c.l.b16 %v1402
      %v1634 = vpack.c.b16 %v1627, %v1626
      %v1635 = vpack.c.b16 %v1629, %v1628
      %v1636 = vpack.c.b16 %v1631, %v1630
      %v1637 = vpack.c.b16 %v1633, %v1632
      %v1639 = vsel %vm1451, %v1614, 0
      %v1642 = vsel %vm1451, %v1615, 0
      %v1645 = vsel %vm1451, %v1616, 0
      %v1648 = vsel %vm1451, %v1617, 0
      %v1651 = vsel %vm1451, %v1634, 0
      %v1654 = vsel %vm1451, %v1635, 0
      %v1657 = vsel %vm1451, %v1636, 0
      %v1660 = vsel %vm1451, %v1637, 0
      %1662 = vmatpush.bf16.xpose.msra.mxu0 0
      %1663 = vmatpush.bf16.xpose.msra.mxu0 0
      %1664 = vmatpush.bf16.xpose.msra.mxu0 0
      %1665 = vmatpush.bf16.xpose.msra.mxu0 0
      %1666 = vmatpush.bf16.xpose.msra.mxu0 %v1660
      %1667 = vmatpush.bf16.xpose.msra.mxu0 %v1657
      %1668 = vmatpush.bf16.xpose.msra.mxu0 %v1654
      %1669 = vmatpush.bf16.xpose.msra.mxu0 %v1651
      %1670 = vmatmul.bf16.gmra.mxu0 %v1639
      %v1671 = vpop.f32.mrf.mxu0
      %v1672 = vadd.f32 0.0, %v1671
      %v1673 = vpop.f32.mrf.mxu0
      %v1674 = vadd.f32 0.0, %v1673
      %1675 = vmatmul.bf16.gmra.mxu0 %v1642
      %v1676 = vpop.f32.mrf.mxu0
      %v1677 = vadd.f32 0.0, %v1676
      %v1678 = vpop.f32.mrf.mxu0
      %v1679 = vadd.f32 0.0, %v1678
      %1680 = vmatmul.bf16.gmra.mxu0 %v1645
      %v1681 = vpop.f32.mrf.mxu0
      %v1682 = vadd.f32 0.0, %v1681
      %v1683 = vpop.f32.mrf.mxu0
      %v1684 = vadd.f32 0.0, %v1683
      %1685 = vmatmul.bf16.gmra.mxu0 %v1648
      %v1686 = vpop.f32.mrf.mxu0
      %v1687 = vadd.f32 0.0, %v1686
      %v1688 = vpop.f32.mrf.mxu0
      %v1689 = vadd.f32 0.0, %v1688
      %1690 = vdwg.mxu0
      %v1699 = vunpack.c.l.b16 %v955
      %v1700 = vunpack.c.l.b16 %v956
      %v1701 = vunpack.c.l.b16 %v957
      %v1702 = vunpack.c.l.b16 %v958
      %v1703 = vunpack.c.l.b16 %v959
      %v1704 = vunpack.c.l.b16 %v960
      %v1705 = vunpack.c.l.b16 %v961
      %v1706 = vunpack.c.l.b16 %v962
      %v1707 = vpack.c.b16 %v1700, %v1699
      %v1708 = vpack.c.b16 %v1702, %v1701
      %v1709 = vpack.c.b16 %v1704, %v1703
      %v1710 = vpack.c.b16 %v1706, %v1705
      %v1719 = vunpack.c.l.b16 %v1403
      %v1720 = vunpack.c.l.b16 %v1404
      %v1721 = vunpack.c.l.b16 %v1405
      %v1722 = vunpack.c.l.b16 %v1406
      %v1723 = vunpack.c.l.b16 %v1407
      %v1724 = vunpack.c.l.b16 %v1408
      %v1725 = vunpack.c.l.b16 %v1409
      %v1726 = vunpack.c.l.b16 %v1410
      %v1727 = vpack.c.b16 %v1720, %v1719
      %v1728 = vpack.c.b16 %v1722, %v1721
      %v1729 = vpack.c.b16 %v1724, %v1723
      %v1730 = vpack.c.b16 %v1726, %v1725
      %v1732 = vsel %vm1451, %v1707, 0
      %v1735 = vsel %vm1451, %v1708, 0
      %v1738 = vsel %vm1451, %v1709, 0
      %v1741 = vsel %vm1451, %v1710, 0
      %v1744 = vsel %vm1451, %v1727, 0
      %v1747 = vsel %vm1451, %v1728, 0
      %v1750 = vsel %vm1451, %v1729, 0
      %v1753 = vsel %vm1451, %v1730, 0
      %1755 = vmatpush.bf16.xpose.msra.mxu0 0
      %1756 = vmatpush.bf16.xpose.msra.mxu0 0
      %1757 = vmatpush.bf16.xpose.msra.mxu0 0
      %1758 = vmatpush.bf16.xpose.msra.mxu0 0
      %1759 = vmatpush.bf16.xpose.msra.mxu0 %v1753
      %1760 = vmatpush.bf16.xpose.msra.mxu0 %v1750
      %1761 = vmatpush.bf16.xpose.msra.mxu0 %v1747
      %1762 = vmatpush.bf16.xpose.msra.mxu0 %v1744
      %1763 = vmatmul.bf16.gmra.mxu0 %v1732
      %v1764 = vpop.f32.mrf.mxu0
      %v1765 = vadd.f32 0.0, %v1764
      %v1766 = vpop.f32.mrf.mxu0
      %v1767 = vadd.f32 0.0, %v1766
      %1768 = vmatmul.bf16.gmra.mxu0 %v1735
      %v1769 = vpop.f32.mrf.mxu0
      %v1770 = vadd.f32 0.0, %v1769
      %v1771 = vpop.f32.mrf.mxu0
      %v1772 = vadd.f32 0.0, %v1771
      %1773 = vmatmul.bf16.gmra.mxu0 %v1738
      %v1774 = vpop.f32.mrf.mxu0
      %v1775 = vadd.f32 0.0, %v1774
      %v1776 = vpop.f32.mrf.mxu0
      %v1777 = vadd.f32 0.0, %v1776
      %1778 = vmatmul.bf16.gmra.mxu0 %v1741
      %v1779 = vpop.f32.mrf.mxu0
      %v1780 = vadd.f32 0.0, %v1779
      %v1781 = vpop.f32.mrf.mxu0
      %v1782 = vadd.f32 0.0, %v1781
      %1783 = vdwg.mxu0
      %vm1784 = vcmask 523264
      %v1785 = vsel %vm1784, %v1486, -inf
      %1786 = vmax.xlane.f32.xlu0 %v1785
      %v1787 = vpop.xlane.xlu0 %1786
      %v1788 = vsel %vm1784, %v1488, -inf
      %1789 = vmax.xlane.f32.xlu0 %v1788
      %v1790 = vpop.xlane.xlu0 %1789
      %v1791 = vsel %vm1784, %v1491, -inf
      %1792 = vmax.xlane.f32.xlu0 %v1791
      %v1793 = vpop.xlane.xlu0 %1792
      %v1794 = vsel %vm1784, %v1493, -inf
      %1795 = vmax.xlane.f32.xlu0 %v1794
      %v1796 = vpop.xlane.xlu0 %1795
      %v1797 = vsel %vm1784, %v1496, -inf
      %1798 = vmax.xlane.f32.xlu0 %v1797
      %v1799 = vpop.xlane.xlu0 %1798
      %v1800 = vsel %vm1784, %v1498, -inf
      %1801 = vmax.xlane.f32.xlu0 %v1800
      %v1802 = vpop.xlane.xlu0 %1801
      %v1803 = vsel %vm1784, %v1501, -inf
      %1804 = vmax.xlane.f32.xlu0 %v1803
      %v1805 = vpop.xlane.xlu0 %1804
      %v1806 = vsel %vm1784, %v1503, -inf
      %1807 = vmax.xlane.f32.xlu0 %v1806
      %v1808 = vpop.xlane.xlu0 %1807
      %v1809 = vsel %vm1784, %v1579, -inf
      %1810 = vmax.xlane.f32.xlu0 %v1809
      %v1811 = vpop.xlane.xlu0 %1810
      %v1812 = vsel %vm1784, %v1581, -inf
      %1813 = vmax.xlane.f32.xlu0 %v1812
      %v1814 = vpop.xlane.xlu0 %1813
      %v1815 = vsel %vm1784, %v1584, -inf
      %1816 = vmax.xlane.f32.xlu0 %v1815
      %v1817 = vpop.xlane.xlu0 %1816
      %v1818 = vsel %vm1784, %v1586, -inf
      %1819 = vmax.xlane.f32.xlu0 %v1818
      %v1820 = vpop.xlane.xlu0 %1819
      %v1821 = vsel %vm1784, %v1589, -inf
      %1822 = vmax.xlane.f32.xlu0 %v1821
      %v1823 = vpop.xlane.xlu0 %1822
      %v1824 = vsel %vm1784, %v1591, -inf
      %1825 = vmax.xlane.f32.xlu0 %v1824
      %v1826 = vpop.xlane.xlu0 %1825
      %v1827 = vsel %vm1784, %v1594, -inf
      %1828 = vmax.xlane.f32.xlu0 %v1827
      %v1829 = vpop.xlane.xlu0 %1828
      %v1830 = vsel %vm1784, %v1596, -inf
      %1831 = vmax.xlane.f32.xlu0 %v1830
      %v1832 = vpop.xlane.xlu0 %1831
      %v1833 = vsel %vm1784, %v1672, -inf
      %1834 = vmax.xlane.f32.xlu0 %v1833
      %v1835 = vpop.xlane.xlu0 %1834
      %v1836 = vsel %vm1784, %v1674, -inf
      %1837 = vmax.xlane.f32.xlu0 %v1836
      %v1838 = vpop.xlane.xlu0 %1837
      %v1839 = vsel %vm1784, %v1677, -inf
      %1840 = vmax.xlane.f32.xlu0 %v1839
      %v1841 = vpop.xlane.xlu0 %1840
      %v1842 = vsel %vm1784, %v1679, -inf
      %1843 = vmax.xlane.f32.xlu0 %v1842
      %v1844 = vpop.xlane.xlu0 %1843
      %v1845 = vsel %vm1784, %v1682, -inf
      %1846 = vmax.xlane.f32.xlu0 %v1845
      %v1847 = vpop.xlane.xlu0 %1846
      %v1848 = vsel %vm1784, %v1684, -inf
      %1849 = vmax.xlane.f32.xlu0 %v1848
      %v1850 = vpop.xlane.xlu0 %1849
      %v1851 = vsel %vm1784, %v1687, -inf
      %1852 = vmax.xlane.f32.xlu0 %v1851
      %v1853 = vpop.xlane.xlu0 %1852
      %v1854 = vsel %vm1784, %v1689, -inf
      %1855 = vmax.xlane.f32.xlu0 %v1854
      %v1856 = vpop.xlane.xlu0 %1855
      %v1857 = vsel %vm1784, %v1765, -inf
      %1858 = vmax.xlane.f32.xlu0 %v1857
      %v1859 = vpop.xlane.xlu0 %1858
      %v1860 = vsel %vm1784, %v1767, -inf
      %1861 = vmax.xlane.f32.xlu0 %v1860
      %v1862 = vpop.xlane.xlu0 %1861
      %v1863 = vsel %vm1784, %v1770, -inf
      %1864 = vmax.xlane.f32.xlu0 %v1863
      %v1865 = vpop.xlane.xlu0 %1864
      %v1866 = vsel %vm1784, %v1772, -inf
      %1867 = vmax.xlane.f32.xlu0 %v1866
      %v1868 = vpop.xlane.xlu0 %1867
      %v1869 = vsel %vm1784, %v1775, -inf
      %1870 = vmax.xlane.f32.xlu0 %v1869
      %v1871 = vpop.xlane.xlu0 %1870
      %v1872 = vsel %vm1784, %v1777, -inf
      %1873 = vmax.xlane.f32.xlu0 %v1872
      %v1874 = vpop.xlane.xlu0 %1873
      %v1875 = vsel %vm1784, %v1780, -inf
      %1876 = vmax.xlane.f32.xlu0 %v1875
      %v1877 = vpop.xlane.xlu0 %1876
      %v1878 = vsel %vm1784, %v1782, -inf
      %1879 = vmax.xlane.f32.xlu0 %v1878
      %v1880 = vpop.xlane.xlu0 %1879
      %v1881 = vsub.f32 %v1486, %v1787
      %v1882 = vsub.f32 %v1488, %v1790
      %v1883 = vsub.f32 %v1491, %v1793
      %v1884 = vsub.f32 %v1493, %v1796
      %v1885 = vsub.f32 %v1496, %v1799
      %v1886 = vsub.f32 %v1498, %v1802
      %v1887 = vsub.f32 %v1501, %v1805
      %v1888 = vsub.f32 %v1503, %v1808
      %v1889 = vsub.f32 %v1579, %v1811
      %v1890 = vsub.f32 %v1581, %v1814
      %v1891 = vsub.f32 %v1584, %v1817
      %v1892 = vsub.f32 %v1586, %v1820
      %v1893 = vsub.f32 %v1589, %v1823
      %v1894 = vsub.f32 %v1591, %v1826
      %v1895 = vsub.f32 %v1594, %v1829
      %v1896 = vsub.f32 %v1596, %v1832
      %v1897 = vsub.f32 %v1672, %v1835
      %v1898 = vsub.f32 %v1674, %v1838
      %v1899 = vsub.f32 %v1677, %v1841
      %v1900 = vsub.f32 %v1679, %v1844
      %v1901 = vsub.f32 %v1682, %v1847
      %v1902 = vsub.f32 %v1684, %v1850
      %v1903 = vsub.f32 %v1687, %v1853
      %v1904 = vsub.f32 %v1689, %v1856
      %v1905 = vsub.f32 %v1765, %v1859
      %v1906 = vsub.f32 %v1767, %v1862
      %v1907 = vsub.f32 %v1770, %v1865
      %v1908 = vsub.f32 %v1772, %v1868
      %v1909 = vsub.f32 %v1775, %v1871
      %v1910 = vsub.f32 %v1777, %v1874
      %v1911 = vsub.f32 %v1780, %v1877
      %v1912 = vsub.f32 %v1782, %v1880
      %v1913 = vmul.f32 %v1881, 1.442695
      %v1914 = vpow.pop %v1913
      %v1915 = vmul.f32 %v1882, 1.442695
      %v1916 = vpow.pop %v1915
      %v1917 = vmul.f32 %v1883, 1.442695
      %v1918 = vpow.pop %v1917
      %v1919 = vmul.f32 %v1884, 1.442695
      %v1920 = vpow.pop %v1919
      %v1921 = vmul.f32 %v1885, 1.442695
      %v1922 = vpow.pop %v1921
      %v1923 = vmul.f32 %v1886, 1.442695
      %v1924 = vpow.pop %v1923
      %v1925 = vmul.f32 %v1887, 1.442695
      %v1926 = vpow.pop %v1925
      %v1927 = vmul.f32 %v1888, 1.442695
      %v1928 = vpow.pop %v1927
      %v1929 = vmul.f32 %v1889, 1.442695
      %v1930 = vpow.pop %v1929
      %v1931 = vmul.f32 %v1890, 1.442695
      %v1932 = vpow.pop %v1931
      %v1933 = vmul.f32 %v1891, 1.442695
      %v1934 = vpow.pop %v1933
      %v1935 = vmul.f32 %v1892, 1.442695
      %v1936 = vpow.pop %v1935
      %v1937 = vmul.f32 %v1893, 1.442695
      %v1938 = vpow.pop %v1937
      %v1939 = vmul.f32 %v1894, 1.442695
      %v1940 = vpow.pop %v1939
      %v1941 = vmul.f32 %v1895, 1.442695
      %v1942 = vpow.pop %v1941
      %v1943 = vmul.f32 %v1896, 1.442695
      %v1944 = vpow.pop %v1943
      %v1945 = vmul.f32 %v1897, 1.442695
      %v1946 = vpow.pop %v1945
      %v1947 = vmul.f32 %v1898, 1.442695
      %v1948 = vpow.pop %v1947
      %v1949 = vmul.f32 %v1899, 1.442695
      %v1950 = vpow.pop %v1949
      %v1951 = vmul.f32 %v1900, 1.442695
      %v1952 = vpow.pop %v1951
      %v1953 = vmul.f32 %v1901, 1.442695
      %v1954 = vpow.pop %v1953
      %v1955 = vmul.f32 %v1902, 1.442695
      %v1956 = vpow.pop %v1955
      %v1957 = vmul.f32 %v1903, 1.442695
      %v1958 = vpow.pop %v1957
      %v1959 = vmul.f32 %v1904, 1.442695
      %v1960 = vpow.pop %v1959
      %v1961 = vmul.f32 %v1905, 1.442695
      %v1962 = vpow.pop %v1961
      %v1963 = vmul.f32 %v1906, 1.442695
      %v1964 = vpow.pop %v1963
      %v1965 = vmul.f32 %v1907, 1.442695
      %v1966 = vpow.pop %v1965
      %v1967 = vmul.f32 %v1908, 1.442695
      %v1968 = vpow.pop %v1967
      %v1969 = vmul.f32 %v1909, 1.442695
      %v1970 = vpow.pop %v1969
      %v1971 = vmul.f32 %v1910, 1.442695
      %v1972 = vpow.pop %v1971
      %v1973 = vmul.f32 %v1911, 1.442695
      %v1974 = vpow.pop %v1973
      %v1975 = vmul.f32 %v1912, 1.442695
      %v1976 = vpow.pop %v1975
      %v1977 = vsel %vm1784, %v1914, 0.0
      %1978 = vadd.xlane.f32.xlu0 %v1977
      %v1979 = vpop.xlane.xlu0 %1978
      %v1980 = vsel %vm1784, %v1916, 0.0
      %1981 = vadd.xlane.f32.xlu0 %v1980
      %v1982 = vpop.xlane.xlu0 %1981
      %v1983 = vsel %vm1784, %v1918, 0.0
      %1984 = vadd.xlane.f32.xlu0 %v1983
      %v1985 = vpop.xlane.xlu0 %1984
      %v1986 = vsel %vm1784, %v1920, 0.0
      %1987 = vadd.xlane.f32.xlu0 %v1986
      %v1988 = vpop.xlane.xlu0 %1987
      %v1989 = vsel %vm1784, %v1922, 0.0
      %1990 = vadd.xlane.f32.xlu0 %v1989
      %v1991 = vpop.xlane.xlu0 %1990
      %v1992 = vsel %vm1784, %v1924, 0.0
      %1993 = vadd.xlane.f32.xlu0 %v1992
      %v1994 = vpop.xlane.xlu0 %1993
      %v1995 = vsel %vm1784, %v1926, 0.0
      %1996 = vadd.xlane.f32.xlu0 %v1995
      %v1997 = vpop.xlane.xlu0 %1996
      %v1998 = vsel %vm1784, %v1928, 0.0
      %1999 = vadd.xlane.f32.xlu0 %v1998
      %v2000 = vpop.xlane.xlu0 %1999
      %v2001 = vsel %vm1784, %v1930, 0.0
      %2002 = vadd.xlane.f32.xlu0 %v2001
      %v2003 = vpop.xlane.xlu0 %2002
      %v2004 = vsel %vm1784, %v1932, 0.0
      %2005 = vadd.xlane.f32.xlu0 %v2004
      %v2006 = vpop.xlane.xlu0 %2005
      %v2007 = vsel %vm1784, %v1934, 0.0
      %2008 = vadd.xlane.f32.xlu0 %v2007
      %v2009 = vpop.xlane.xlu0 %2008
      %v2010 = vsel %vm1784, %v1936, 0.0
      %2011 = vadd.xlane.f32.xlu0 %v2010
      %v2012 = vpop.xlane.xlu0 %2011
      %v2013 = vsel %vm1784, %v1938, 0.0
      %2014 = vadd.xlane.f32.xlu0 %v2013
      %v2015 = vpop.xlane.xlu0 %2014
      %v2016 = vsel %vm1784, %v1940, 0.0
      %2017 = vadd.xlane.f32.xlu0 %v2016
      %v2018 = vpop.xlane.xlu0 %2017
      %v2019 = vsel %vm1784, %v1942, 0.0
      %2020 = vadd.xlane.f32.xlu0 %v2019
      %v2021 = vpop.xlane.xlu0 %2020
      %v2022 = vsel %vm1784, %v1944, 0.0
      %2023 = vadd.xlane.f32.xlu0 %v2022
      %v2024 = vpop.xlane.xlu0 %2023
      %v2025 = vsel %vm1784, %v1946, 0.0
      %2026 = vadd.xlane.f32.xlu0 %v2025
      %v2027 = vpop.xlane.xlu0 %2026
      %v2028 = vsel %vm1784, %v1948, 0.0
      %2029 = vadd.xlane.f32.xlu0 %v2028
      %v2030 = vpop.xlane.xlu0 %2029
      %v2031 = vsel %vm1784, %v1950, 0.0
      %2032 = vadd.xlane.f32.xlu0 %v2031
      %v2033 = vpop.xlane.xlu0 %2032
      %v2034 = vsel %vm1784, %v1952, 0.0
      %2035 = vadd.xlane.f32.xlu0 %v2034
      %v2036 = vpop.xlane.xlu0 %2035
      %v2037 = vsel %vm1784, %v1954, 0.0
      %2038 = vadd.xlane.f32.xlu0 %v2037
      %v2039 = vpop.xlane.xlu0 %2038
      %v2040 = vsel %vm1784, %v1956, 0.0
      %2041 = vadd.xlane.f32.xlu0 %v2040
      %v2042 = vpop.xlane.xlu0 %2041
      %v2043 = vsel %vm1784, %v1958, 0.0
      %2044 = vadd.xlane.f32.xlu0 %v2043
      %v2045 = vpop.xlane.xlu0 %2044
      %v2046 = vsel %vm1784, %v1960, 0.0
      %2047 = vadd.xlane.f32.xlu0 %v2046
      %v2048 = vpop.xlane.xlu0 %2047
      %v2049 = vsel %vm1784, %v1962, 0.0
      %2050 = vadd.xlane.f32.xlu0 %v2049
      %v2051 = vpop.xlane.xlu0 %2050
      %v2052 = vsel %vm1784, %v1964, 0.0
      %2053 = vadd.xlane.f32.xlu0 %v2052
      %v2054 = vpop.xlane.xlu0 %2053
      %v2055 = vsel %vm1784, %v1966, 0.0
      %2056 = vadd.xlane.f32.xlu0 %v2055
      %v2057 = vpop.xlane.xlu0 %2056
      %v2058 = vsel %vm1784, %v1968, 0.0
      %2059 = vadd.xlane.f32.xlu0 %v2058
      %v2060 = vpop.xlane.xlu0 %2059
      %v2061 = vsel %vm1784, %v1970, 0.0
      %2062 = vadd.xlane.f32.xlu0 %v2061
      %v2063 = vpop.xlane.xlu0 %2062
      %v2064 = vsel %vm1784, %v1972, 0.0
      %2065 = vadd.xlane.f32.xlu0 %v2064
      %v2066 = vpop.xlane.xlu0 %2065
      %v2067 = vsel %vm1784, %v1974, 0.0
      %2068 = vadd.xlane.f32.xlu0 %v2067
      %v2069 = vpop.xlane.xlu0 %2068
      %v2070 = vsel %vm1784, %v1976, 0.0
      %2071 = vadd.xlane.f32.xlu0 %v2070
      %v2072 = vpop.xlane.xlu0 %2071
      %v2073 = vrcp.pop %v1979
      %v2074 = vrcp.pop %v1982
      %v2075 = vrcp.pop %v1985
      %v2076 = vrcp.pop %v1988
      %v2077 = vrcp.pop %v1991
      %v2078 = vrcp.pop %v1994
      %v2079 = vrcp.pop %v1997
      %v2080 = vrcp.pop %v2000
      %v2081 = vrcp.pop %v2003
      %v2082 = vrcp.pop %v2006
      %v2083 = vrcp.pop %v2009
      %v2084 = vrcp.pop %v2012
      %v2085 = vrcp.pop %v2015
      %v2086 = vrcp.pop %v2018
      %v2087 = vrcp.pop %v2021
      %v2088 = vrcp.pop %v2024
      %v2089 = vrcp.pop %v2027
      %v2090 = vrcp.pop %v2030
      %v2091 = vrcp.pop %v2033
      %v2092 = vrcp.pop %v2036
      %v2093 = vrcp.pop %v2039
      %v2094 = vrcp.pop %v2042
      %v2095 = vrcp.pop %v2045
      %v2096 = vrcp.pop %v2048
      %v2097 = vrcp.pop %v2051
      %v2098 = vrcp.pop %v2054
      %v2099 = vrcp.pop %v2057
      %v2100 = vrcp.pop %v2060
      %v2101 = vrcp.pop %v2063
      %v2102 = vrcp.pop %v2066
      %v2103 = vrcp.pop %v2069
      %v2104 = vrcp.pop %v2072
      %v2105 = vmul.f32 %v1914, %v2073
      %v2106 = vmul.f32 %v1916, %v2074
      %v2107 = vmul.f32 %v1918, %v2075
      %v2108 = vmul.f32 %v1920, %v2076
      %v2109 = vmul.f32 %v1922, %v2077
      %v2110 = vmul.f32 %v1924, %v2078
      %v2111 = vmul.f32 %v1926, %v2079
      %v2112 = vmul.f32 %v1928, %v2080
      %v2113 = vmul.f32 %v1930, %v2081
      %v2114 = vmul.f32 %v1932, %v2082
      %v2115 = vmul.f32 %v1934, %v2083
      %v2116 = vmul.f32 %v1936, %v2084
      %v2117 = vmul.f32 %v1938, %v2085
      %v2118 = vmul.f32 %v1940, %v2086
      %v2119 = vmul.f32 %v1942, %v2087
      %v2120 = vmul.f32 %v1944, %v2088
      %v2121 = vmul.f32 %v1946, %v2089
      %v2122 = vmul.f32 %v1948, %v2090
      %v2123 = vmul.f32 %v1950, %v2091
      %v2124 = vmul.f32 %v1952, %v2092
      %v2125 = vmul.f32 %v1954, %v2093
      %v2126 = vmul.f32 %v1956, %v2094
      %v2127 = vmul.f32 %v1958, %v2095
      %v2128 = vmul.f32 %v1960, %v2096
      %v2129 = vmul.f32 %v1962, %v2097
      %v2130 = vmul.f32 %v1964, %v2098
      %v2131 = vmul.f32 %v1966, %v2099
      %v2132 = vmul.f32 %v1968, %v2100
      %v2133 = vmul.f32 %v1970, %v2101
      %v2134 = vmul.f32 %v1972, %v2102
      %v2135 = vmul.f32 %v1974, %v2103
      %v2136 = vmul.f32 %v1976, %v2104
      %v2137 = vpack.c.bf16 %v2105, %v2105
      %v2138 = vpack.c.bf16 %v2106, %v2106
      %v2139 = vpack.c.bf16 %v2107, %v2107
      %v2140 = vpack.c.bf16 %v2108, %v2108
      %v2141 = vpack.c.bf16 %v2109, %v2109
      %v2142 = vpack.c.bf16 %v2110, %v2110
      %v2143 = vpack.c.bf16 %v2111, %v2111
      %v2144 = vpack.c.bf16 %v2112, %v2112
      %v2145 = vpack.c.bf16 %v2113, %v2113
      %v2146 = vpack.c.bf16 %v2114, %v2114
      %v2147 = vpack.c.bf16 %v2115, %v2115
      %v2148 = vpack.c.bf16 %v2116, %v2116
      %v2149 = vpack.c.bf16 %v2117, %v2117
      %v2150 = vpack.c.bf16 %v2118, %v2118
      %v2151 = vpack.c.bf16 %v2119, %v2119
      %v2152 = vpack.c.bf16 %v2120, %v2120
      %v2153 = vpack.c.bf16 %v2121, %v2121
      %v2154 = vpack.c.bf16 %v2122, %v2122
      %v2155 = vpack.c.bf16 %v2123, %v2123
      %v2156 = vpack.c.bf16 %v2124, %v2124
      %v2157 = vpack.c.bf16 %v2125, %v2125
      %v2158 = vpack.c.bf16 %v2126, %v2126
      %v2159 = vpack.c.bf16 %v2127, %v2127
      %v2160 = vpack.c.bf16 %v2128, %v2128
      %v2161 = vpack.c.bf16 %v2129, %v2129
      %v2162 = vpack.c.bf16 %v2130, %v2130
      %v2163 = vpack.c.bf16 %v2131, %v2131
      %v2164 = vpack.c.bf16 %v2132, %v2132
      %v2165 = vpack.c.bf16 %v2133, %v2133
      %v2166 = vpack.c.bf16 %v2134, %v2134
      %v2167 = vpack.c.bf16 %v2135, %v2135
      %v2168 = vpack.c.bf16 %v2136, %v2136
      %v2177 = vunpack.c.l.b16 %v2137
      %v2178 = vunpack.c.l.b16 %v2138
      %v2179 = vunpack.c.l.b16 %v2139
      %v2180 = vunpack.c.l.b16 %v2140
      %v2181 = vunpack.c.l.b16 %v2141
      %v2182 = vunpack.c.l.b16 %v2142
      %v2183 = vunpack.c.l.b16 %v2143
      %v2184 = vunpack.c.l.b16 %v2144
      %v2185 = vpack.c.b16 %v2178, %v2177
      %v2186 = vpack.c.b16 %v2180, %v2179
      %v2187 = vpack.c.b16 %v2182, %v2181
      %v2188 = vpack.c.b16 %v2184, %v2183
      %v2197 = vunpack.c.l.b16 %v434
      %v2198 = vunpack.c.l.b16 %v435
      %v2199 = vunpack.c.l.b16 %v436
      %v2200 = vunpack.c.l.b16 %v437
      %v2201 = vunpack.c.l.b16 %v438
      %v2202 = vunpack.c.l.b16 %v439
      %v2203 = vunpack.c.l.b16 %v440
      %v2204 = vunpack.c.l.b16 %v441
      %v2205 = vpack.c.b16 %v2198, %v2197
      %v2206 = vpack.c.b16 %v2200, %v2199
      %v2207 = vpack.c.b16 %v2202, %v2201
      %v2208 = vpack.c.b16 %v2204, %v2203
      %v2214 = vsel %vm1784, %v2185, 0
      %v2217 = vsel %vm1784, %v2186, 0
      %v2220 = vsel %vm1784, %v2187, 0
      %v2223 = vsel %vm1784, %v2188, 0
      %2225 = vmatpush.bf16.msra.mxu0 0
      %2226 = vmatpush.bf16.msra.mxu0 0
      %2227 = vmatpush.bf16.msra.mxu0 0
      %2228 = vmatpush.bf16.msra.mxu0 0
      %2229 = vmatpush.bf16.msra.mxu0 %v2208
      %2230 = vmatpush.bf16.msra.mxu0 %v2207
      %2231 = vmatpush.bf16.msra.mxu0 %v2206
      %2232 = vmatpush.bf16.msra.mxu0 %v2205
      %2233 = vmatmul.bf16.gmra.mxu0 %v2214
      %v2234 = vpop.f32.mrf.mxu0
      %v2235 = vadd.f32 0.0, %v2234
      %v2236 = vpop.f32.mrf.mxu0
      %v2237 = vadd.f32 0.0, %v2236
      %2238 = vmatmul.bf16.gmra.mxu0 %v2217
      %v2239 = vpop.f32.mrf.mxu0
      %v2240 = vadd.f32 0.0, %v2239
      %v2241 = vpop.f32.mrf.mxu0
      %v2242 = vadd.f32 0.0, %v2241
      %2243 = vmatmul.bf16.gmra.mxu0 %v2220
      %v2244 = vpop.f32.mrf.mxu0
      %v2245 = vadd.f32 0.0, %v2244
      %v2246 = vpop.f32.mrf.mxu0
      %v2247 = vadd.f32 0.0, %v2246
      %2248 = vmatmul.bf16.gmra.mxu0 %v2223
      %v2249 = vpop.f32.mrf.mxu0
      %v2250 = vadd.f32 0.0, %v2249
      %v2251 = vpop.f32.mrf.mxu0
      %v2252 = vadd.f32 0.0, %v2251
      %2253 = vdwg.mxu0
      %v2262 = vunpack.c.l.b16 %v2145
      %v2263 = vunpack.c.l.b16 %v2146
      %v2264 = vunpack.c.l.b16 %v2147
      %v2265 = vunpack.c.l.b16 %v2148
      %v2266 = vunpack.c.l.b16 %v2149
      %v2267 = vunpack.c.l.b16 %v2150
      %v2268 = vunpack.c.l.b16 %v2151
      %v2269 = vunpack.c.l.b16 %v2152
      %v2270 = vpack.c.b16 %v2263, %v2262
      %v2271 = vpack.c.b16 %v2265, %v2264
      %v2272 = vpack.c.b16 %v2267, %v2266
      %v2273 = vpack.c.b16 %v2269, %v2268
      %v2282 = vunpack.c.l.b16 %v442
      %v2283 = vunpack.c.l.b16 %v443
      %v2284 = vunpack.c.l.b16 %v444
      %v2285 = vunpack.c.l.b16 %v445
      %v2286 = vunpack.c.l.b16 %v446
      %v2287 = vunpack.c.l.b16 %v447
      %v2288 = vunpack.c.l.b16 %v448
      %v2289 = vunpack.c.l.b16 %v449
      %v2290 = vpack.c.b16 %v2283, %v2282
      %v2291 = vpack.c.b16 %v2285, %v2284
      %v2292 = vpack.c.b16 %v2287, %v2286
      %v2293 = vpack.c.b16 %v2289, %v2288
      %v2299 = vsel %vm1784, %v2270, 0
      %v2302 = vsel %vm1784, %v2271, 0
      %v2305 = vsel %vm1784, %v2272, 0
      %v2308 = vsel %vm1784, %v2273, 0
      %2310 = vmatpush.bf16.msra.mxu0 0
      %2311 = vmatpush.bf16.msra.mxu0 0
      %2312 = vmatpush.bf16.msra.mxu0 0
      %2313 = vmatpush.bf16.msra.mxu0 0
      %2314 = vmatpush.bf16.msra.mxu0 %v2293
      %2315 = vmatpush.bf16.msra.mxu0 %v2292
      %2316 = vmatpush.bf16.msra.mxu0 %v2291
      %2317 = vmatpush.bf16.msra.mxu0 %v2290
      %2318 = vmatmul.bf16.gmra.mxu0 %v2299
      %v2319 = vpop.f32.mrf.mxu0
      %v2320 = vadd.f32 0.0, %v2319
      %v2321 = vpop.f32.mrf.mxu0
      %v2322 = vadd.f32 0.0, %v2321
      %2323 = vmatmul.bf16.gmra.mxu0 %v2302
      %v2324 = vpop.f32.mrf.mxu0
      %v2325 = vadd.f32 0.0, %v2324
      %v2326 = vpop.f32.mrf.mxu0
      %v2327 = vadd.f32 0.0, %v2326
      %2328 = vmatmul.bf16.gmra.mxu0 %v2305
      %v2329 = vpop.f32.mrf.mxu0
      %v2330 = vadd.f32 0.0, %v2329
      %v2331 = vpop.f32.mrf.mxu0
      %v2332 = vadd.f32 0.0, %v2331
      %2333 = vmatmul.bf16.gmra.mxu0 %v2308
      %v2334 = vpop.f32.mrf.mxu0
      %v2335 = vadd.f32 0.0, %v2334
      %v2336 = vpop.f32.mrf.mxu0
      %v2337 = vadd.f32 0.0, %v2336
      %2338 = vdwg.mxu0
      %v2347 = vunpack.c.l.b16 %v2153
      %v2348 = vunpack.c.l.b16 %v2154
      %v2349 = vunpack.c.l.b16 %v2155
      %v2350 = vunpack.c.l.b16 %v2156
      %v2351 = vunpack.c.l.b16 %v2157
      %v2352 = vunpack.c.l.b16 %v2158
      %v2353 = vunpack.c.l.b16 %v2159
      %v2354 = vunpack.c.l.b16 %v2160
      %v2355 = vpack.c.b16 %v2348, %v2347
      %v2356 = vpack.c.b16 %v2350, %v2349
      %v2357 = vpack.c.b16 %v2352, %v2351
      %v2358 = vpack.c.b16 %v2354, %v2353
      %v2367 = vunpack.c.l.b16 %v450
      %v2368 = vunpack.c.l.b16 %v451
      %v2369 = vunpack.c.l.b16 %v452
      %v2370 = vunpack.c.l.b16 %v453
      %v2371 = vunpack.c.l.b16 %v454
      %v2372 = vunpack.c.l.b16 %v455
      %v2373 = vunpack.c.l.b16 %v456
      %v2374 = vunpack.c.l.b16 %v457
      %v2375 = vpack.c.b16 %v2368, %v2367
      %v2376 = vpack.c.b16 %v2370, %v2369
      %v2377 = vpack.c.b16 %v2372, %v2371
      %v2378 = vpack.c.b16 %v2374, %v2373
      %v2384 = vsel %vm1784, %v2355, 0
      %v2387 = vsel %vm1784, %v2356, 0
      %v2390 = vsel %vm1784, %v2357, 0
      %v2393 = vsel %vm1784, %v2358, 0
      %2395 = vmatpush.bf16.msra.mxu0 0
      %2396 = vmatpush.bf16.msra.mxu0 0
      %2397 = vmatpush.bf16.msra.mxu0 0
      %2398 = vmatpush.bf16.msra.mxu0 0
      %2399 = vmatpush.bf16.msra.mxu0 %v2378
      %2400 = vmatpush.bf16.msra.mxu0 %v2377
      %2401 = vmatpush.bf16.msra.mxu0 %v2376
      %2402 = vmatpush.bf16.msra.mxu0 %v2375
      %2403 = vmatmul.bf16.gmra.mxu0 %v2384
      %v2404 = vpop.f32.mrf.mxu0
      %v2405 = vadd.f32 0.0, %v2404
      %v2406 = vpop.f32.mrf.mxu0
      %v2407 = vadd.f32 0.0, %v2406
      %2408 = vmatmul.bf16.gmra.mxu0 %v2387
      %v2409 = vpop.f32.mrf.mxu0
      %v2410 = vadd.f32 0.0, %v2409
      %v2411 = vpop.f32.mrf.mxu0
      %v2412 = vadd.f32 0.0, %v2411
      %2413 = vmatmul.bf16.gmra.mxu0 %v2390
      %v2414 = vpop.f32.mrf.mxu0
      %v2415 = vadd.f32 0.0, %v2414
      %v2416 = vpop.f32.mrf.mxu0
      %v2417 = vadd.f32 0.0, %v2416
      %2418 = vmatmul.bf16.gmra.mxu0 %v2393
      %v2419 = vpop.f32.mrf.mxu0
      %v2420 = vadd.f32 0.0, %v2419
      %v2421 = vpop.f32.mrf.mxu0
      %v2422 = vadd.f32 0.0, %v2421
      %2423 = vdwg.mxu0
      %v2432 = vunpack.c.l.b16 %v2161
      %v2433 = vunpack.c.l.b16 %v2162
      %v2434 = vunpack.c.l.b16 %v2163
      %v2435 = vunpack.c.l.b16 %v2164
      %v2436 = vunpack.c.l.b16 %v2165
      %v2437 = vunpack.c.l.b16 %v2166
      %v2438 = vunpack.c.l.b16 %v2167
      %v2439 = vunpack.c.l.b16 %v2168
      %v2440 = vpack.c.b16 %v2433, %v2432
      %v2441 = vpack.c.b16 %v2435, %v2434
      %v2442 = vpack.c.b16 %v2437, %v2436
      %v2443 = vpack.c.b16 %v2439, %v2438
      %v2452 = vunpack.c.l.b16 %v458
      %v2453 = vunpack.c.l.b16 %v459
      %v2454 = vunpack.c.l.b16 %v460
      %v2455 = vunpack.c.l.b16 %v461
      %v2456 = vunpack.c.l.b16 %v462
      %v2457 = vunpack.c.l.b16 %v463
      %v2458 = vunpack.c.l.b16 %v464
      %v2459 = vunpack.c.l.b16 %v465
      %v2460 = vpack.c.b16 %v2453, %v2452
      %v2461 = vpack.c.b16 %v2455, %v2454
      %v2462 = vpack.c.b16 %v2457, %v2456
      %v2463 = vpack.c.b16 %v2459, %v2458
      %v2469 = vsel %vm1784, %v2440, 0
      %v2472 = vsel %vm1784, %v2441, 0
      %v2475 = vsel %vm1784, %v2442, 0
      %v2478 = vsel %vm1784, %v2443, 0
      %2480 = vmatpush.bf16.msra.mxu0 0
      %2481 = vmatpush.bf16.msra.mxu0 0
      %2482 = vmatpush.bf16.msra.mxu0 0
      %2483 = vmatpush.bf16.msra.mxu0 0
      %2484 = vmatpush.bf16.msra.mxu0 %v2463
      %2485 = vmatpush.bf16.msra.mxu0 %v2462
      %2486 = vmatpush.bf16.msra.mxu0 %v2461
      %2487 = vmatpush.bf16.msra.mxu0 %v2460
      %2488 = vmatmul.bf16.gmra.mxu0 %v2469
      %v2489 = vpop.f32.mrf.mxu0
      %v2490 = vadd.f32 0.0, %v2489
      %v2491 = vpop.f32.mrf.mxu0
      %v2492 = vadd.f32 0.0, %v2491
      %2493 = vmatmul.bf16.gmra.mxu0 %v2472
      %v2494 = vpop.f32.mrf.mxu0
      %v2495 = vadd.f32 0.0, %v2494
      %v2496 = vpop.f32.mrf.mxu0
      %v2497 = vadd.f32 0.0, %v2496
      %2498 = vmatmul.bf16.gmra.mxu0 %v2475
      %v2499 = vpop.f32.mrf.mxu0
      %v2500 = vadd.f32 0.0, %v2499
      %v2501 = vpop.f32.mrf.mxu0
      %v2502 = vadd.f32 0.0, %v2501
      %2503 = vmatmul.bf16.gmra.mxu0 %v2478
      %v2504 = vpop.f32.mrf.mxu0
      %v2505 = vadd.f32 0.0, %v2504
      %v2506 = vpop.f32.mrf.mxu0
      %v2507 = vadd.f32 0.0, %v2506
      %2508 = vdwg.mxu0
      %v2509 = vpack.c.bf16 %v2235, %v2235
      %v2510 = vpack.c.bf16 %v2237, %v2237
      %v2511 = vpack.c.bf16 %v2240, %v2240
      %v2512 = vpack.c.bf16 %v2242, %v2242
      %v2513 = vpack.c.bf16 %v2245, %v2245
      %v2514 = vpack.c.bf16 %v2247, %v2247
      %v2515 = vpack.c.bf16 %v2250, %v2250
      %v2516 = vpack.c.bf16 %v2252, %v2252
      %v2517 = vpack.c.bf16 %v2320, %v2320
      %v2518 = vpack.c.bf16 %v2322, %v2322
      %v2519 = vpack.c.bf16 %v2325, %v2325
      %v2520 = vpack.c.bf16 %v2327, %v2327
      %v2521 = vpack.c.bf16 %v2330, %v2330
      %v2522 = vpack.c.bf16 %v2332, %v2332
      %v2523 = vpack.c.bf16 %v2335, %v2335
      %v2524 = vpack.c.bf16 %v2337, %v2337
      %v2525 = vpack.c.bf16 %v2405, %v2405
      %v2526 = vpack.c.bf16 %v2407, %v2407
      %v2527 = vpack.c.bf16 %v2410, %v2410
      %v2528 = vpack.c.bf16 %v2412, %v2412
      %v2529 = vpack.c.bf16 %v2415, %v2415
      %v2530 = vpack.c.bf16 %v2417, %v2417
      %v2531 = vpack.c.bf16 %v2420, %v2420
      %v2532 = vpack.c.bf16 %v2422, %v2422
      %v2533 = vpack.c.bf16 %v2490, %v2490
      %v2534 = vpack.c.bf16 %v2492, %v2492
      %v2535 = vpack.c.bf16 %v2495, %v2495
      %v2536 = vpack.c.bf16 %v2497, %v2497
      %v2537 = vpack.c.bf16 %v2500, %v2500
      %v2538 = vpack.c.bf16 %v2502, %v2502
      %v2539 = vpack.c.bf16 %v2505, %v2505
      %v2540 = vpack.c.bf16 %v2507, %v2507
      %vm2541 = vcmask 257024
      %2542 = vst.msk [vmem:[%s304] sm:$0xf] %vm2541, %v2509
      %2543 = vst.msk [vmem:[%s304 + $0x4] sm:$0xf] %vm2541, %v2510
      %2544 = vst.msk [vmem:[%s304 + $0x8] sm:$0xf] %vm2541, %v2511
      %2545 = vst.msk [vmem:[%s304 + $0xc] sm:$0xf] %vm2541, %v2512
      %2546 = vst.msk [vmem:[%s304 + $0x10] sm:$0xf] %vm2541, %v2513
      %2547 = vst.msk [vmem:[%s304 + $0x14] sm:$0xf] %vm2541, %v2514
      %2548 = vst.msk [vmem:[%s304 + $0x18] sm:$0xf] %vm2541, %v2515
      %2549 = vst.msk [vmem:[%s304 + $0x1c] sm:$0xf] %vm2541, %v2516
      %2550 = vst.msk [vmem:[%s304 + $0x20] sm:$0xf] %vm2541, %v2517
      %2551 = vst.msk [vmem:[%s304 + $0x24] sm:$0xf] %vm2541, %v2518
      %2552 = vst.msk [vmem:[%s304 + $0x28] sm:$0xf] %vm2541, %v2519
      %2553 = vst.msk [vmem:[%s304 + $0x2c] sm:$0xf] %vm2541, %v2520
      %2554 = vst.msk [vmem:[%s304 + $0x30] sm:$0xf] %vm2541, %v2521
      %2555 = vst.msk [vmem:[%s304 + $0x34] sm:$0xf] %vm2541, %v2522
      %2556 = vst.msk [vmem:[%s304 + $0x38] sm:$0xf] %vm2541, %v2523
      %2557 = vst.msk [vmem:[%s304 + $0x3c] sm:$0xf] %vm2541, %v2524
      %2558 = vst.msk [vmem:[%s304 + $0x40] sm:$0xf] %vm2541, %v2525
      %2559 = vst.msk [vmem:[%s304 + $0x44] sm:$0xf] %vm2541, %v2526
      %2560 = vst.msk [vmem:[%s304 + $0x48] sm:$0xf] %vm2541, %v2527
      %2561 = vst.msk [vmem:[%s304 + $0x4c] sm:$0xf] %vm2541, %v2528
      %2562 = vst.msk [vmem:[%s304 + $0x50] sm:$0xf] %vm2541, %v2529
      %2563 = vst.msk [vmem:[%s304 + $0x54] sm:$0xf] %vm2541, %v2530
      %2564 = vst.msk [vmem:[%s304 + $0x58] sm:$0xf] %vm2541, %v2531
      %2565 = vst.msk [vmem:[%s304 + $0x5c] sm:$0xf] %vm2541, %v2532
      %2566 = vst.msk [vmem:[%s304 + $0x60] sm:$0xf] %vm2541, %v2533
      %2567 = vst.msk [vmem:[%s304 + $0x64] sm:$0xf] %vm2541, %v2534
      %2568 = vst.msk [vmem:[%s304 + $0x68] sm:$0xf] %vm2541, %v2535
      %2569 = vst.msk [vmem:[%s304 + $0x6c] sm:$0xf] %vm2541, %v2536
      %2570 = vst.msk [vmem:[%s304 + $0x70] sm:$0xf] %vm2541, %v2537
      %2571 = vst.msk [vmem:[%s304 + $0x74] sm:$0xf] %vm2541, %v2538
      %2572 = vst.msk [vmem:[%s304 + $0x78] sm:$0xf] %vm2541, %v2539
      %2573 = vst.msk [vmem:[%s304 + $0x7c] sm:$0xf] %vm2541, %v2540
      %p2574 = scmp.lt.s32.totalorder %s16, 1
      %s2575 = scalar_select %p2574, %s16, 1
      %s2576 = smul.addr %s2575, 32
      %s2577 = smul.addr %s2576, 4
      %s2578 = scalar_lea.vmem %s5, %s2577
      // Predicated region
      $region41: #{ca_transformer_forward.24} parent=39 // pred_check
        %p2579 = pneg %p164
      $region42: #{ca_transformer_forward.24} parent=39 // pred_check_branch
        %2581 = sbr.rel (%p2579) target = $region44
      $region43: #{ca_transformer_forward.24} parent=39 // pred_region
        _
      $region44: #{ca_transformer_forward.24} parent=39 // pred_fallthru
        _
    $region40: #{ca_transformer_forward.24} parent=5 // pred_fallthru
      _
    %p2582 = scmp.le.s32.totalorder 2, %s11
    // Predicated region
    $region45: #{ca_transformer_forward.24} parent=5 // pred_check
      %p2583 = pneg %p2582
    $region46: #{ca_transformer_forward.24} parent=5 // pred_check_branch
      %2585 = sbr.rel (%p2583) target = $region48
    $region47: #{ca_transformer_forward.24} parent=5 // pred_region
      %s2586 = ssub.s32 %s11, 2
      // Predicated region
      $region49: #{ca_transformer_forward.24} parent=47 // pred_check
        %p2587 = pneg %p170
      $region50: #{ca_transformer_forward.24} parent=47 // pred_check_branch
        %2589 = sbr.rel (%p2587) target = $region52
      $region51: #{ca_transformer_forward.24} parent=47 // pred_region
        %p2590 = scmp.lt.s32.totalorder %s17, 1
        %s2591 = scalar_select %p2590, %s17, 1
        %s2592 = smul.addr %s2591, 32
        %s2593 = smul.addr %s2592, 4
        %s2594 = scalar_lea.vmem %s5, %s2593
      $region52: #{ca_transformer_forward.24} parent=47 // pred_fallthru
        _
    $region48: #{ca_transformer_forward.24} parent=5 // pred_fallthru
      _
  $region6: #{ca_transformer_forward.24} parent=0 // loop_footer
    %s15 = sadd.s32 1, %s11
  $region7: #{ca_transformer_forward.24} parent=0 // loop_footer_branch
    %10 = sbr.rel target = $region3
  $region8: #{ca_transformer_forward.24} parent=0 // loop_exit
    _

// kernel: ca_transformer_forward.30
$region0: #{ca_transformer_forward.30}
  #allocation0 [shape = 'u32[]', space=smem, size = 0x4, offset = 0x4, fixed_abs, tag = 'smem constant byte address 0x4 - core index']
  #allocation1 [shape = 'u32[72,128]{1,0:T(1,128)}', space=vmem, size = 0x9000, scoped, tag = 'internal scratch']
  %s0 = inlined_call_operand.vmem [shape: f32[2,64,128], index: 0, kind: input, shape index: {}]
  %s1 = inlined_call_operand.vmem [shape: f32[2,1,128], index: 1, kind: input, shape index: {}]
  %s2 = inlined_call_operand.vmem [shape: bf16[128,768], index: 2, kind: input, shape index: {}]
  %s3 = inlined_call_operand.vmem [shape: bf16[2,64,768], index: 3, kind: output, shape index: {}]
  %s4 = sld [smem:[#allocation0]]
  $region93: #{ca_transformer_forward.30} parent=0
    _
  %s6 = ssub.s32 1, %s4
  %s7 = scalar_select 0, %s6, %s4
  $region1: #{ca_transformer_forward.30} parent=0
    #allocation2 [shape = 'u8[196608]{0}', space=vmem, size = 0x30000, scoped, tag = 'input window, operand 2']
    #allocation3 [shape = 'u8[98304]{0}', space=vmem, size = 0x18000, scoped, tag = 'output window, operand 0']
    loop: start=0, step=1, limit=6
    $region2: #{ca_transformer_forward.30} parent=1 // loop_pre_header
      _
    $region3: #{ca_transformer_forward.30} parent=1 // loop_header
      %s9 = sphi 0, %s13
      %p10 = scmp.ge.s32.totalorder %s9, 6
      %s16 = sphi 0, %s35
      %s17 = sphi 0, %s31
      %s18 = sphi 0, %s27
      %s19 = sphi 0, %s16
      %s20 = sphi 0, %s17
      %s21 = sphi 0, %s18
      %s22 = sphi 0, %s19
      %s23 = sphi 0, %s20
      %s24 = sphi 0, %s21
      %s40 = sphi 0, %s42
      %s43 = sphi 0, %s40
      %s44 = sphi 0, %s43
      %s60 = sphi 0, %s44
      %s66 = sphi 0, %s68
      %s69 = sphi 0, %s66
      %s70 = sphi 0, %s69
      %s86 = sphi 0, %s70
      %s92 = sphi 0, %s94
      %s95 = sphi 0, %s92
      %s96 = sphi 0, %s95
      %s112 = sphi 0, %s96
      %s122 = sphi 0, %s124
      %s125 = sphi 0, %s122
      %s126 = sphi 0, %s125
      %s142 = sphi 0, %s126
    $region4: #{ca_transformer_forward.30} parent=1 // loop_header_branch
      %12 = sbr.rel (%p10) target = $region8
    $region5: #{ca_transformer_forward.30} parent=1 // loop_body
      %s14 = ssub.s32 %s9, 1
      %s15 = ssub.s32 %s9, 2
      %s25 = sadd.s32 1, %s18
      %p26 = scmp.ge.s32.totalorder %s25, 2
      %s27 = scalar_select %p26, 0, %s25
      %s28 = sadd.s32 1, %s17
      %s29 = scalar_select %p26, %s28, %s17
      %p30 = scmp.ge.s32.totalorder %s29, 1
      %s31 = scalar_select %p30, 0, %s29
      %s32 = sadd.s32 1, %s16
      %s33 = scalar_select %p30, %s32, %s16
      %p34 = scmp.ge.s32.totalorder %s33, 2
      %s35 = scalar_select %p34, 0, %s33
      %s36 = ssub.s32 %s16, %s35
      %s37 = ssub.s32 %s17, %s31
      %s38 = sor.u32 %s36, %s37
      %p39 = scmp.eq.s32.totalorder %s38, 0
      %s41 = sadd.s32 %s40, 1
      %s42 = scalar_select %p39, %s40, %s41
      %p45 = pneg %p39
      %p46 = scmp.eq.s32.totalorder %s9, 3
      %p47 = por %p45, %p46
      %p48 = scmp.ne.s32.totalorder %s40, %s43
      %p49 = scmp.eq.s32.totalorder %s9, 0
      %p50 = por %p48, %p49
      %p51 = scmp.ne.s32.totalorder %s40, %s43
      %p52 = scmp.eq.s32.totalorder %s14, 3
      %p53 = por %p51, %p52
      %p54 = scmp.ne.s32.totalorder %s43, %s44
      %p55 = scmp.eq.s32.totalorder %s14, 0
      %p56 = por %p54, %p55
      %p57 = scmp.ne.s32.totalorder %s43, %s44
      %p58 = scmp.eq.s32.totalorder %s15, 3
      %p59 = por %p57, %p58
      %p61 = scmp.ne.s32.totalorder %s44, %s60
      %p62 = scmp.eq.s32.totalorder %s15, 0
      %p63 = por %p61, %p62
      %s64 = ssub.s32 %s16, %s35
      %p65 = scmp.eq.s32.totalorder %s64, 0
      %s67 = sadd.s32 %s66, 1
      %s68 = scalar_select %p65, %s66, %s67
      %p71 = pneg %p65
      %p72 = scmp.eq.s32.totalorder %s9, 3
      %p73 = por %p71, %p72
      %p74 = scmp.ne.s32.totalorder %s66, %s69
      %p75 = scmp.eq.s32.totalorder %s9, 0
      %p76 = por %p74, %p75
      %p77 = scmp.ne.s32.totalorder %s66, %s69
      %p78 = scmp.eq.s32.totalorder %s14, 3
      %p79 = por %p77, %p78
      %p80 = scmp.ne.s32.totalorder %s69, %s70
      %p81 = scmp.eq.s32.totalorder %s14, 0
      %p82 = por %p80, %p81
      %p83 = scmp.ne.s32.totalorder %s69, %s70
      %p84 = scmp.eq.s32.totalorder %s15, 3
      %p85 = por %p83, %p84
      %p87 = scmp.ne.s32.totalorder %s70, %s86
      %p88 = scmp.eq.s32.totalorder %s15, 0
      %p89 = por %p87, %p88
      %s90 = ssub.s32 %s18, %s27
      %p91 = scmp.eq.s32.totalorder %s90, 0
      %s93 = sadd.s32 %s92, 1
      %s94 = scalar_select %p91, %s92, %s93
      %p97 = pneg %p91
      %p98 = scmp.eq.s32.totalorder %s9, 3
      %p99 = por %p97, %p98
      %p100 = scmp.ne.s32.totalorder %s92, %s95
      %p101 = scmp.eq.s32.totalorder %s9, 0
      %p102 = por %p100, %p101
      %p103 = scmp.ne.s32.totalorder %s92, %s95
      %p104 = scmp.eq.s32.totalorder %s14, 3
      %p105 = por %p103, %p104
      %p106 = scmp.ne.s32.totalorder %s95, %s96
      %p107 = scmp.eq.s32.totalorder %s14, 0
      %p108 = por %p106, %p107
      %p109 = scmp.ne.s32.totalorder %s95, %s96
      %p110 = scmp.eq.s32.totalorder %s15, 3
      %p111 = por %p109, %p110
      %p113 = scmp.ne.s32.totalorder %s96, %s112
      %p114 = scmp.eq.s32.totalorder %s15, 0
      %p115 = por %p113, %p114
      %s116 = ssub.s32 %s16, %s35
      %s117 = ssub.s32 %s17, %s31
      %s118 = sor.u32 %s116, %s117
      %s119 = ssub.s32 %s18, %s27
      %s120 = sor.u32 %s118, %s119
      %p121 = scmp.eq.s32.totalorder %s120, 0
      %s123 = sadd.s32 %s122, 1
      %s124 = scalar_select %p121, %s122, %s123
      %p127 = pneg %p121
      %p128 = scmp.eq.s32.totalorder %s9, 3
      %p129 = por %p127, %p128
      %p130 = scmp.ne.s32.totalorder %s122, %s125
      %p131 = scmp.eq.s32.totalorder %s9, 0
      %p132 = por %p130, %p131
      %p133 = scmp.ne.s32.totalorder %s122, %s125
      %p134 = scmp.eq.s32.totalorder %s14, 3
      %p135 = por %p133, %p134
      %p136 = scmp.ne.s32.totalorder %s125, %s126
      %p137 = scmp.eq.s32.totalorder %s14, 0
      %p138 = por %p136, %p137
      %p139 = scmp.ne.s32.totalorder %s125, %s126
      %p140 = scmp.eq.s32.totalorder %s15, 3
      %p141 = por %p139, %p140
      %p143 = scmp.ne.s32.totalorder %s126, %s142
      %p144 = scmp.eq.s32.totalorder %s15, 0
      %p145 = por %p143, %p144
      %p146 = scmp.le.s32.totalorder 1, %s9
      %p147 = scmp.lt.s32.totalorder %s9, 5
      %p148 = pnand %p146, %p147
      %p149 = pneg %p148
      // Predicated region
      $region9: #{ca_transformer_forward.30} parent=5 // pred_check
        _
      $region10: #{ca_transformer_forward.30} parent=5 // pred_check_branch
        %151 = sbr.rel (%p148) target = $region12
      $region11: #{ca_transformer_forward.30} parent=5 // pred_region
        %s152 = ssub.s32 %s9, 1
      $region12: #{ca_transformer_forward.30} parent=5 // pred_fallthru
        _
      %p153 = scmp.lt.s32.totalorder %s9, 4
      // Predicated region
      $region13: #{ca_transformer_forward.30} parent=5 // pred_check
        %p154 = pneg %p153
      $region14: #{ca_transformer_forward.30} parent=5 // pred_check_branch
        %156 = sbr.rel (%p154) target = $region16
      $region15: #{ca_transformer_forward.30} parent=5 // pred_region
        // Predicated region
        $region17: #{ca_transformer_forward.30} parent=15 // pred_check
          %p157 = pneg %p50
        $region18: #{ca_transformer_forward.30} parent=15 // pred_check_branch
          %159 = sbr.rel (%p157) target = $region20
        $region19: #{ca_transformer_forward.30} parent=15 // pred_region
          %s160 = smul.u32 8, %s17
          %p161 = scmp.lt.s32.totalorder %s16, 1
          %s162 = scalar_select %p161, %s16, 1
          %p163 = scmp.lt.s32.totalorder %s160, 7
          %s164 = scalar_select %p163, %s160, 7
          %s165 = smul.addr %s162, 8
          %s166 = sadd.s32 %s164, %s165
          %s167 = smul.addr %s166, 8
          %s168 = scalar_lea.vmem %s0, %s167
          %s169 = smul.u32 8, %s17
        $region20: #{ca_transformer_forward.30} parent=15 // pred_fallthru
          _
        // Predicated region
        $region21: #{ca_transformer_forward.30} parent=15 // pred_check
          %p170 = pneg %p76
        $region22: #{ca_transformer_forward.30} parent=15 // pred_check_branch
          %172 = sbr.rel (%p170) target = $region24
        $region23: #{ca_transformer_forward.30} parent=15 // pred_region
          %p173 = scmp.lt.s32.totalorder %s16, 1
          %s174 = scalar_select %p173, %s16, 1
          %s175 = scalar_lea.vmem %s1, %s174
        $region24: #{ca_transformer_forward.30} parent=15 // pred_fallthru
          _
        // Predicated region
        $region25: #{ca_transformer_forward.30} parent=15 // pred_check
          %p176 = pneg %p102
        $region26: #{ca_transformer_forward.30} parent=15 // pred_check_branch
          %178 = sbr.rel (%p176) target = $region28
        $region27: #{ca_transformer_forward.30} parent=15 // pred_region
          %s179 = sand.u32 %s92, 1
          %s180 = sand.u32 %s92, 1
          %s181 = smul.addr %s180, 192
          %s182 = scalar_lea.vmem [#allocation2], %s181
          %s183 = smul.u32 3, %s18
          %s184 = smul.addr %s183, 4
          %s185 = scalar_lea.vmem %s2, %s184
          // Predicated region
          $region29: #{ca_transformer_forward.30} parent=27 // pred_check
            _
          $region30: #{ca_transformer_forward.30} parent=27 // pred_check_branch
            %187 = sbr.rel (0) target = $region32
          $region31: #{ca_transformer_forward.30} parent=27 // pred_region
            // Predicated region
            $region33: #{ca_transformer_forward.30} parent=31 // pred_check
              _
            $region34: #{ca_transformer_forward.30} parent=31 // pred_check_branch
              %189 = sbr.rel (0) target = $region36
            $region35: #{ca_transformer_forward.30} parent=31 // pred_region
              %s190 = scalar_lea.vmem %s185, 8
              %s191 = scalar_lea.vmem %s182, 8 [#allocation2]
              loop: start=0, step=1, limit=1
              $region37: #{ca_transformer_forward.30} parent=35 // loop_pre_header
                _
              $region38: #{ca_transformer_forward.30} parent=35 // loop_header
                %s193 = sphi 0, %s197
                %p194 = scmp.ge.s32.totalorder %s193, 1
                %s198 = sphi %s185, %s185
                %s199 = sphi %s182, %s182
              $region39: #{ca_transformer_forward.30} parent=35 // loop_header_branch
                %196 = sbr.rel (%p194) target = $region43
              $region40: #{ca_transformer_forward.30} parent=35 // loop_body
                %v200 = vld [vmem:[%s198] sm:$0xff]
                %201 = vst [vmem:[%s199] sm:$0xff] %v200
                %v202 = vld [vmem:[%s198 + $0x18] sm:$0xff]
                %203 = vst [vmem:[%s199 + $0xc] sm:$0xff] %v202
                %v204 = vld [vmem:[%s198 + $0x30] sm:$0xff]
                %205 = vst [vmem:[%s199 + $0x18] sm:$0xff] %v204
                %v206 = vld [vmem:[%s198 + $0x48] sm:$0xff]
                %207 = vst [vmem:[%s199 + $0x24] sm:$0xff] %v206
                %v208 = vld [vmem:[%s198 + $0x60] sm:$0xff]
                %209 = vst [vmem:[%s199 + $0x30] sm:$0xff] %v208
                %v210 = vld [vmem:[%s198 + $0x78] sm:$0xff]
                %211 = vst [vmem:[%s199 + $0x3c] sm:$0xff] %v210
                %v212 = vld [vmem:[%s198 + $0x90] sm:$0xff]
                %213 = vst [vmem:[%s199 + $0x48] sm:$0xff] %v212
                %v214 = vld [vmem:[%s198 + $0xa8] sm:$0xff]
                %215 = vst [vmem:[%s199 + $0x54] sm:$0xff] %v214
                %v216 = vld [vmem:[%s198 + $0xc0] sm:$0xff]
                %217 = vst [vmem:[%s199 + $0x60] sm:$0xff] %v216
                %v218 = vld [vmem:[%s198 + $0xd8] sm:$0xff]
                %219 = vst [vmem:[%s199 + $0x6c] sm:$0xff] %v218
                %v220 = vld [vmem:[%s198 + $0xf0] sm:$0xff]
                %221 = vst [vmem:[%s199 + $0x78] sm:$0xff] %v220
                %v222 = vld [vmem:[%s198 + $0x108] sm:$0xff]
                %223 = vst [vmem:[%s199 + $0x84] sm:$0xff] %v222
                %v224 = vld [vmem:[%s198 + $0x120] sm:$0xff]
                %225 = vst [vmem:[%s199 + $0x90] sm:$0xff] %v224
                %v226 = vld [vmem:[%s198 + $0x138] sm:$0xff]
                %227 = vst [vmem:[%s199 + $0x9c] sm:$0xff] %v226
                %v228 = vld [vmem:[%s198 + $0x150] sm:$0xff]
                %229 = vst [vmem:[%s199 + $0xa8] sm:$0xff] %v228
                %v230 = vld [vmem:[%s198 + $0x168] sm:$0xff]
                %231 = vst [vmem:[%s199 + $0xb4] sm:$0xff] %v230
              $region41: #{ca_transformer_forward.30} parent=35 // loop_footer
                %s197 = sadd.s32 1, %s193
              $region42: #{ca_transformer_forward.30} parent=35 // loop_footer_branch
                %192 = sbr.rel target = $region38
              $region43: #{ca_transformer_forward.30} parent=35 // loop_exit
                _
              %s233 = ssub.s32 16, 1
              loop: start=0, step=1, limit=1
              $region44: #{ca_transformer_forward.30} parent=35 // loop_pre_header
                _
              $region45: #{ca_transformer_forward.30} parent=35 // loop_header
                %s235 = sphi 0, %s239
                %p236 = scmp.ge.s32.totalorder %s235, 1
                %s240 = sphi %s190, %s190
                %s241 = sphi %s191, %s191
              $region46: #{ca_transformer_forward.30} parent=35 // loop_header_branch
                %238 = sbr.rel (%p236) target = $region50
              $region47: #{ca_transformer_forward.30} parent=35 // loop_body
                %v242 = vld [vmem:[%s240] sm:%s233]
                %243 = vst [vmem:[%s241] sm:%s233] %v242
                %v244 = vld [vmem:[%s240 + $0x18] sm:%s233]
                %245 = vst [vmem:[%s241 + $0xc] sm:%s233] %v244
                %v246 = vld [vmem:[%s240 + $0x30] sm:%s233]
                %247 = vst [vmem:[%s241 + $0x18] sm:%s233] %v246
                %v248 = vld [vmem:[%s240 + $0x48] sm:%s233]
                %249 = vst [vmem:[%s241 + $0x24] sm:%s233] %v248
                %v250 = vld [vmem:[%s240 + $0x60] sm:%s233]
                %251 = vst [vmem:[%s241 + $0x30] sm:%s233] %v250
                %v252 = vld [vmem:[%s240 + $0x78] sm:%s233]
                %253 = vst [vmem:[%s241 + $0x3c] sm:%s233] %v252
                %v254 = vld [vmem:[%s240 + $0x90] sm:%s233]
                %255 = vst [vmem:[%s241 + $0x48] sm:%s233] %v254
                %v256 = vld [vmem:[%s240 + $0xa8] sm:%s233]
                %257 = vst [vmem:[%s241 + $0x54] sm:%s233] %v256
                %v258 = vld [vmem:[%s240 + $0xc0] sm:%s233]
                %259 = vst [vmem:[%s241 + $0x60] sm:%s233] %v258
                %v260 = vld [vmem:[%s240 + $0xd8] sm:%s233]
                %261 = vst [vmem:[%s241 + $0x6c] sm:%s233] %v260
                %v262 = vld [vmem:[%s240 + $0xf0] sm:%s233]
                %263 = vst [vmem:[%s241 + $0x78] sm:%s233] %v262
                %v264 = vld [vmem:[%s240 + $0x108] sm:%s233]
                %265 = vst [vmem:[%s241 + $0x84] sm:%s233] %v264
                %v266 = vld [vmem:[%s240 + $0x120] sm:%s233]
                %267 = vst [vmem:[%s241 + $0x90] sm:%s233] %v266
                %v268 = vld [vmem:[%s240 + $0x138] sm:%s233]
                %269 = vst [vmem:[%s241 + $0x9c] sm:%s233] %v268
                %v270 = vld [vmem:[%s240 + $0x150] sm:%s233]
                %271 = vst [vmem:[%s241 + $0xa8] sm:%s233] %v270
                %v272 = vld [vmem:[%s240 + $0x168] sm:%s233]
                %273 = vst [vmem:[%s241 + $0xb4] sm:%s233] %v272
              $region48: #{ca_transformer_forward.30} parent=35 // loop_footer
                %s239 = sadd.s32 1, %s235
              $region49: #{ca_transformer_forward.30} parent=35 // loop_footer_branch
                %234 = sbr.rel target = $region45
              $region50: #{ca_transformer_forward.30} parent=35 // loop_exit
                _
            $region36: #{ca_transformer_forward.30} parent=31 // pred_fallthru
              _
          $region32: #{ca_transformer_forward.30} parent=27 // pred_fallthru
            _
          %274 = vnop
        $region28: #{ca_transformer_forward.30} parent=15 // pred_fallthru
          _
      $region16: #{ca_transformer_forward.30} parent=5 // pred_fallthru
        _
      %p275 = scmp.le.s32.totalorder 1, %s9
      %p276 = scmp.lt.s32.totalorder %s9, 5
      %p277 = pnand %p275, %p276
      %p278 = pneg %p277
      // Predicated region
      $region51: #{ca_transformer_forward.30} parent=5 // pred_check
        _
      $region52: #{ca_transformer_forward.30} parent=5 // pred_check_branch
        %280 = sbr.rel (%p277) target = $region54
      $region53: #{ca_transformer_forward.30} parent=5 // pred_region
        %s281 = ssub.s32 %s9, 1
        %s282 = sand.u32 %s95, 1
        %s283 = sand.u32 %s95, 1
        %s284 = smul.addr %s283, 192
        %s285 = scalar_lea.vmem [#allocation2], %s284
        // Predicated region
        $region55: #{ca_transformer_forward.30} parent=53 // pred_check
          %p286 = pneg %p108
        $region56: #{ca_transformer_forward.30} parent=53 // pred_check_branch
          %288 = sbr.rel (%p286) target = $region58
        $region57: #{ca_transformer_forward.30} parent=53 // pred_region
          _
        $region58: #{ca_transformer_forward.30} parent=53 // pred_fallthru
          _
        %s289 = smul.u32 8, %s20
        %p290 = scmp.lt.s32.totalorder %s19, 1
        %s291 = scalar_select %p290, %s19, 1
        %p292 = scmp.lt.s32.totalorder %s289, 7
        %s293 = scalar_select %p292, %s289, 7
        %s294 = smul.addr %s291, 8
        %s295 = sadd.s32 %s293, %s294
        %s296 = smul.addr %s295, 8
        %s297 = scalar_lea.vmem %s0, %s296
        %p298 = pneg %p56
        %p299 = pneg %p53
        %p300 = scmp.lt.s32.totalorder %s19, 1
        %s301 = scalar_select %p300, %s19, 1
        %s302 = scalar_lea.vmem %s1, %s301
        %p303 = pneg %p82
        %p304 = pneg %p79
        %s305 = sand.u32 %s95, 1
        %s306 = sand.u32 %s95, 1
        %s307 = smul.addr %s306, 192
        %s308 = scalar_lea.vmem [#allocation2], %s307
        %p309 = pneg %p108
        %p310 = pneg %p105
        %p311 = pneg %p138
        %p312 = pneg %p135
        %s313 = sand.u32 %s125, 1
        %s314 = sand.u32 %s125, 1
        %s315 = smul.addr %s314, 96
        %s316 = scalar_lea.vmem [#allocation3], %s315
        %s317 = smul.u32 8, %s20
        %p318 = scmp.lt.s32.totalorder %s19, 1
        %s319 = scalar_select %p318, %s19, 1
        %p320 = scmp.lt.s32.totalorder %s317, 7
        %s321 = scalar_select %p320, %s317, 7
        %s322 = smul.addr %s319, 8
        %s323 = sadd.s32 %s321, %s322
        %s324 = smul.addr %s323, 8
        %s325 = scalar_lea.vmem %s0, %s324
        %s326 = smul.u32 8, %s20
        %p327 = scmp.lt.s32.totalorder %s19, 1
        %s328 = scalar_select %p327, %s19, 1
        %s329 = scalar_lea.vmem %s1, %s328
        %s330 = smul.u32 3, %s21
        %s331 = smul.u32 8, %s20
        %s332 = smul.u32 3, %s21
        %v333 = vld [vmem:[%s325] sm:$0xff]
        %v334 = vld [vmem:[%s325 + $0x8] sm:$0xff]
        %v335 = vld [vmem:[%s325 + $0x10] sm:$0xff]
        %v336 = vld [vmem:[%s325 + $0x18] sm:$0xff]
        %v337 = vld [vmem:[%s325 + $0x20] sm:$0xff]
        %v338 = vld [vmem:[%s325 + $0x28] sm:$0xff]
        %v339 = vld [vmem:[%s325 + $0x30] sm:$0xff]
        %v340 = vld [vmem:[%s325 + $0x38] sm:$0xff]
        %v341 = vld [vmem:[%s329] sm:$0x1]
        %v342 = vmul.f32 %v333, %v333
        %v343 = vmul.f32 %v334, %v334
        %v344 = vmul.f32 %v335, %v335
        %v345 = vmul.f32 %v336, %v336
        %v346 = vmul.f32 %v337, %v337
        %v347 = vmul.f32 %v338, %v338
        %v348 = vmul.f32 %v339, %v339
        %v349 = vmul.f32 %v340, %v340
        %350 = vadd.xlane.f32.xlu0 %v342
        %v351 = vpop.xlane.xlu0 %350
        %352 = vadd.xlane.f32.xlu0 %v343
        %v353 = vpop.xlane.xlu0 %352
        %354 = vadd.xlane.f32.xlu0 %v344
        %v355 = vpop.xlane.xlu0 %354
        %356 = vadd.xlane.f32.xlu0 %v345
        %v357 = vpop.xlane.xlu0 %356
        %358 = vadd.xlane.f32.xlu0 %v346
        %v359 = vpop.xlane.xlu0 %358
        %360 = vadd.xlane.f32.xlu0 %v347
        %v361 = vpop.xlane.xlu0 %360
        %362 = vadd.xlane.f32.xlu0 %v348
        %v363 = vpop.xlane.xlu0 %362
        %364 = vadd.xlane.f32.xlu0 %v349
        %v365 = vpop.xlane.xlu0 %364
        %v366 = vrcp.pop 128.0
        %v367 = vmul.f32 128.0, %v366
        %v368 = vsub.f32 1.0, %v367
        %v369 = vmul.f32 %v366, %v368
        %v370 = vadd.f32 %v366, %v369
        %vm371 = vweird.f32 %v366
        %v372 = vsel %vm371, %v366, %v370
        %v373 = vmul.f32 %v351, %v372
        %v374 = vmul.f32 %v353, %v372
        %v375 = vmul.f32 %v355, %v372
        %v376 = vmul.f32 %v357, %v372
        %v377 = vmul.f32 %v359, %v372
        %v378 = vmul.f32 %v361, %v372
        %v379 = vmul.f32 %v363, %v372
        %v380 = vmul.f32 %v365, %v372
        %v381 = vadd.f32 %v373, 1e-06
        %v382 = vadd.f32 %v374, 1e-06
        %v383 = vadd.f32 %v375, 1e-06
        %v384 = vadd.f32 %v376, 1e-06
        %v385 = vadd.f32 %v377, 1e-06
        %v386 = vadd.f32 %v378, 1e-06
        %v387 = vadd.f32 %v379, 1e-06
        %v388 = vadd.f32 %v380, 1e-06
        %v389 = vrsqrt.pop %v381
        %v390 = vmul.f32 %v389, %v381
        %v391 = vmul.f32 %v390, %v389
        %v392 = vmul.f32 0.5, %v391
        %v393 = vsub.f32 1.5, %v392
        %v394 = vmul.f32 %v389, %v393
        %vm395 = vweird.f32 %v381
        %vm396 = vweird.f32 %v389
        %vm397 = vmor %vm395, %vm396
        %v398 = vsel %vm397, %v389, %v394
        %v399 = vrsqrt.pop %v382
        %v400 = vmul.f32 %v399, %v382
        %v401 = vmul.f32 %v400, %v399
        %v402 = vmul.f32 0.5, %v401
        %v403 = vsub.f32 1.5, %v402
        %v404 = vmul.f32 %v399, %v403
        %vm405 = vweird.f32 %v382
        %vm406 = vweird.f32 %v399
        %vm407 = vmor %vm405, %vm406
        %v408 = vsel %vm407, %v399, %v404
        %v409 = vrsqrt.pop %v383
        %v410 = vmul.f32 %v409, %v383
        %v411 = vmul.f32 %v410, %v409
        %v412 = vmul.f32 0.5, %v411
        %v413 = vsub.f32 1.5, %v412
        %v414 = vmul.f32 %v409, %v413
        %vm415 = vweird.f32 %v383
        %vm416 = vweird.f32 %v409
        %vm417 = vmor %vm415, %vm416
        %v418 = vsel %vm417, %v409, %v414
        %v419 = vrsqrt.pop %v384
        %v420 = vmul.f32 %v419, %v384
        %v421 = vmul.f32 %v420, %v419
        %v422 = vmul.f32 0.5, %v421
        %v423 = vsub.f32 1.5, %v422
        %v424 = vmul.f32 %v419, %v423
        %vm425 = vweird.f32 %v384
        %vm426 = vweird.f32 %v419
        %vm427 = vmor %vm425, %vm426
        %v428 = vsel %vm427, %v419, %v424
        %v429 = vrsqrt.pop %v385
        %v430 = vmul.f32 %v429, %v385
        %v431 = vmul.f32 %v430, %v429
        %v432 = vmul.f32 0.5, %v431
        %v433 = vsub.f32 1.5, %v432
        %v434 = vmul.f32 %v429, %v433
        %vm435 = vweird.f32 %v385
        %vm436 = vweird.f32 %v429
        %vm437 = vmor %vm435, %vm436
        %v438 = vsel %vm437, %v429, %v434
        %v439 = vrsqrt.pop %v386
        %v440 = vmul.f32 %v439, %v386
        %v441 = vmul.f32 %v440, %v439
        %v442 = vmul.f32 0.5, %v441
        %v443 = vsub.f32 1.5, %v442
        %v444 = vmul.f32 %v439, %v443
        %vm445 = vweird.f32 %v386
        %vm446 = vweird.f32 %v439
        %vm447 = vmor %vm445, %vm446
        %v448 = vsel %vm447, %v439, %v444
        %v449 = vrsqrt.pop %v387
        %v450 = vmul.f32 %v449, %v387
        %v451 = vmul.f32 %v450, %v449
        %v452 = vmul.f32 0.5, %v451
        %v453 = vsub.f32 1.5, %v452
        %v454 = vmul.f32 %v449, %v453
        %vm455 = vweird.f32 %v387
        %vm456 = vweird.f32 %v449
        %vm457 = vmor %vm455, %vm456
        %v458 = vsel %vm457, %v449, %v454
        %v459 = vrsqrt.pop %v388
        %v460 = vmul.f32 %v459, %v388
        %v461 = vmul.f32 %v460, %v459
        %v462 = vmul.f32 0.5, %v461
        %v463 = vsub.f32 1.5, %v462
        %v464 = vmul.f32 %v459, %v463
        %vm465 = vweird.f32 %v388
        %vm466 = vweird.f32 %v459
        %vm467 = vmor %vm465, %vm466
        %v468 = vsel %vm467, %v459, %v464
        %v469 = vmul.f32 %v333, %v398
        %v470 = vmul.f32 %v334, %v408
        %v471 = vmul.f32 %v335, %v418
        %v472 = vmul.f32 %v336, %v428
        %v473 = vmul.f32 %v337, %v438
        %v474 = vmul.f32 %v338, %v448
        %v475 = vmul.f32 %v339, %v458
        %v476 = vmul.f32 %v340, %v468
        %v477 = vadd.f32 %v341, 1.0
        %v479 = vperm.slane %v477, 0
        %v481 = vmul.f32 %v469, %v479
        %v482 = vmul.f32 %v470, %v479
        %v483 = vmul.f32 %v471, %v479
        %v484 = vmul.f32 %v472, %v479
        %v485 = vmul.f32 %v473, %v479
        %v486 = vmul.f32 %v474, %v479
        %v487 = vmul.f32 %v475, %v479
        %v488 = vmul.f32 %v476, %v479
        %v489 = vpack.c.bf16 %v482, %v481
        %v490 = vpack.c.bf16 %v484, %v483
        %v491 = vpack.c.bf16 %v486, %v485
        %v492 = vpack.c.bf16 %v488, %v487
        %v493 = vld [vmem:[%s285] sm:$0xff]
        %v494 = vld [vmem:[%s285 + $0x8] sm:$0xf]
        %v495 = vld [vmem:[%s285 + $0xc] sm:$0xff]
        %v496 = vld [vmem:[%s285 + $0x14] sm:$0xf]
        %v497 = vld [vmem:[%s285 + $0x18] sm:$0xff]
        %v498 = vld [vmem:[%s285 + $0x20] sm:$0xf]
        %v499 = vld [vmem:[%s285 + $0x24] sm:$0xff]
        %v500 = vld [vmem:[%s285 + $0x2c] sm:$0xf]
        %v501 = vld [vmem:[%s285 + $0x30] sm:$0xff]
        %v502 = vld [vmem:[%s285 + $0x38] sm:$0xf]
        %v503 = vld [vmem:[%s285 + $0x3c] sm:$0xff]
        %v504 = vld [vmem:[%s285 + $0x44] sm:$0xf]
        %v505 = vld [vmem:[%s285 + $0x48] sm:$0xff]
        %v506 = vld [vmem:[%s285 + $0x50] sm:$0xf]
        %v507 = vld [vmem:[%s285 + $0x54] sm:$0xff]
        %v508 = vld [vmem:[%s285 + $0x5c] sm:$0xf]
        %v509 = vld [vmem:[%s285 + $0x60] sm:$0xff]
        %v510 = vld [vmem:[%s285 + $0x68] sm:$0xf]
        %v511 = vld [vmem:[%s285 + $0x6c] sm:$0xff]
        %v512 = vld [vmem:[%s285 + $0x74] sm:$0xf]
        %v513 = vld [vmem:[%s285 + $0x78] sm:$0xff]
        %v514 = vld [vmem:[%s285 + $0x80] sm:$0xf]
        %v515 = vld [vmem:[%s285 + $0x84] sm:$0xff]
        %v516 = vld [vmem:[%s285 + $0x8c] sm:$0xf]
        %v517 = vld [vmem:[%s285 + $0x90] sm:$0xff]
        %v518 = vld [vmem:[%s285 + $0x98] sm:$0xf]
        %v519 = vld [vmem:[%s285 + $0x9c] sm:$0xff]
        %v520 = vld [vmem:[%s285 + $0xa4] sm:$0xf]
        %v521 = vld [vmem:[%s285 + $0xa8] sm:$0xff]
        %v522 = vld [vmem:[%s285 + $0xb0] sm:$0xf]
        %v523 = vld [vmem:[%s285 + $0xb4] sm:$0xff]
        %v524 = vld [vmem:[%s285 + $0xbc] sm:$0xf]
        %v557 = vunpack.c.l.b16 %v493
        %v558 = vunpack.c.h.b16 %v493
        %v559 = vunpack.c.l.b16 %v494
        %v560 = vunpack.c.l.b16 %v495
        %v561 = vunpack.c.h.b16 %v495
        %v562 = vunpack.c.l.b16 %v496
        %v563 = vunpack.c.l.b16 %v497
        %v564 = vunpack.c.h.b16 %v497
        %v565 = vunpack.c.l.b16 %v498
        %v566 = vunpack.c.l.b16 %v499
        %v567 = vunpack.c.h.b16 %v499
        %v568 = vunpack.c.l.b16 %v500
        %v569 = vunpack.c.l.b16 %v501
        %v570 = vunpack.c.h.b16 %v501
        %v571 = vunpack.c.l.b16 %v502
        %v572 = vunpack.c.l.b16 %v503
        %v573 = vunpack.c.h.b16 %v503
        %v574 = vunpack.c.l.b16 %v504
        %v575 = vunpack.c.l.b16 %v505
        %v576 = vunpack.c.h.b16 %v505
        %v577 = vunpack.c.l.b16 %v506
        %v578 = vunpack.c.l.b16 %v507
        %v579 = vunpack.c.h.b16 %v507
        %v580 = vunpack.c.l.b16 %v508
        %v581 = vunpack.c.l.b16 %v509
        %v582 = vunpack.c.h.b16 %v509
        %v583 = vunpack.c.l.b16 %v510
        %v584 = vunpack.c.l.b16 %v511
        %v585 = vunpack.c.h.b16 %v511
        %v586 = vunpack.c.l.b16 %v512
        %v587 = vunpack.c.l.b16 %v513
        %v588 = vunpack.c.h.b16 %v513
        %v589 = vunpack.c.l.b16 %v514
        %v590 = vunpack.c.l.b16 %v515
        %v591 = vunpack.c.h.b16 %v515
        %v592 = vunpack.c.l.b16 %v516
        %v593 = vunpack.c.l.b16 %v517
        %v594 = vunpack.c.h.b16 %v517
        %v595 = vunpack.c.l.b16 %v518
        %v596 = vunpack.c.l.b16 %v519
        %v597 = vunpack.c.h.b16 %v519
        %v598 = vunpack.c.l.b16 %v520
        %v599 = vunpack.c.l.b16 %v521
        %v600 = vunpack.c.h.b16 %v521
        %v601 = vunpack.c.l.b16 %v522
        %v602 = vunpack.c.l.b16 %v523
        %v603 = vunpack.c.h.b16 %v523
        %v604 = vunpack.c.l.b16 %v524
        %v605 = vpack.c.b16 %v560, %v557
        %v606 = vpack.c.b16 %v561, %v558
        %v607 = vpack.c.b16 %v562, %v559
        %v608 = vpack.c.b16 %v566, %v563
        %v609 = vpack.c.b16 %v567, %v564
        %v610 = vpack.c.b16 %v568, %v565
        %v611 = vpack.c.b16 %v572, %v569
        %v612 = vpack.c.b16 %v573, %v570
        %v613 = vpack.c.b16 %v574, %v571
        %v614 = vpack.c.b16 %v578, %v575
        %v615 = vpack.c.b16 %v579, %v576
        %v616 = vpack.c.b16 %v580, %v577
        %v617 = vpack.c.b16 %v584, %v581
        %v618 = vpack.c.b16 %v585, %v582
        %v619 = vpack.c.b16 %v586, %v583
        %v620 = vpack.c.b16 %v590, %v587
        %v621 = vpack.c.b16 %v591, %v588
        %v622 = vpack.c.b16 %v592, %v589
        %v623 = vpack.c.b16 %v596, %v593
        %v624 = vpack.c.b16 %v597, %v594
        %v625 = vpack.c.b16 %v598, %v595
        %v626 = vpack.c.b16 %v602, %v599
        %v627 = vpack.c.b16 %v603, %v600
        %v628 = vpack.c.b16 %v604, %v601
        %653 = vmatpush.bf16.msra.mxu0 %v626
        %654 = vmatpush.bf16.msra.mxu0 %v623
        %655 = vmatpush.bf16.msra.mxu0 %v620
        %656 = vmatpush.bf16.msra.mxu0 %v617
        %657 = vmatpush.bf16.msra.mxu0 %v614
        %658 = vmatpush.bf16.msra.mxu0 %v611
        %659 = vmatpush.bf16.msra.mxu0 %v608
        %660 = vmatpush.bf16.msra.mxu0 %v605
        %661 = vmatmul.bf16.gmra.mxu0 %v489
        %v662 = vpop.f32.mrf.mxu0
        %v663 = vadd.f32 0.0, %v662
        %v664 = vpop.f32.mrf.mxu0
        %v665 = vadd.f32 0.0, %v664
        %666 = vmatmul.bf16.gmra.mxu0 %v490
        %v667 = vpop.f32.mrf.mxu0
        %v668 = vadd.f32 0.0, %v667
        %v669 = vpop.f32.mrf.mxu0
        %v670 = vadd.f32 0.0, %v669
        %671 = vmatmul.bf16.gmra.mxu0 %v491
        %v672 = vpop.f32.mrf.mxu0
        %v673 = vadd.f32 0.0, %v672
        %v674 = vpop.f32.mrf.mxu0
        %v675 = vadd.f32 0.0, %v674
        %676 = vmatmul.bf16.gmra.mxu0 %v492
        %v677 = vpop.f32.mrf.mxu0
        %v678 = vadd.f32 0.0, %v677
        %v679 = vpop.f32.mrf.mxu0
        %v680 = vadd.f32 0.0, %v679
        %681 = vdwg.mxu0
        %682 = vmatpush.bf16.msra.mxu0 %v627
        %683 = vmatpush.bf16.msra.mxu0 %v624
        %684 = vmatpush.bf16.msra.mxu0 %v621
        %685 = vmatpush.bf16.msra.mxu0 %v618
        %686 = vmatpush.bf16.msra.mxu0 %v615
        %687 = vmatpush.bf16.msra.mxu0 %v612
        %688 = vmatpush.bf16.msra.mxu0 %v609
        %689 = vmatpush.bf16.msra.mxu0 %v606
        %690 = vmatmul.bf16.gmra.mxu0 %v489
        %v691 = vpop.f32.mrf.mxu0
        %v692 = vadd.f32 0.0, %v691
        %v693 = vpop.f32.mrf.mxu0
        %v694 = vadd.f32 0.0, %v693
        %695 = vmatmul.bf16.gmra.mxu0 %v490
        %v696 = vpop.f32.mrf.mxu0
        %v697 = vadd.f32 0.0, %v696
        %v698 = vpop.f32.mrf.mxu0
        %v699 = vadd.f32 0.0, %v698
        %700 = vmatmul.bf16.gmra.mxu0 %v491
        %v701 = vpop.f32.mrf.mxu0
        %v702 = vadd.f32 0.0, %v701
        %v703 = vpop.f32.mrf.mxu0
        %v704 = vadd.f32 0.0, %v703
        %705 = vmatmul.bf16.gmra.mxu0 %v492
        %v706 = vpop.f32.mrf.mxu0
        %v707 = vadd.f32 0.0, %v706
        %v708 = vpop.f32.mrf.mxu0
        %v709 = vadd.f32 0.0, %v708
        %710 = vdwg.mxu0
        %711 = vmatpush.bf16.msra.mxu0 %v628
        %712 = vmatpush.bf16.msra.mxu0 %v625
        %713 = vmatpush.bf16.msra.mxu0 %v622
        %714 = vmatpush.bf16.msra.mxu0 %v619
        %715 = vmatpush.bf16.msra.mxu0 %v616
        %716 = vmatpush.bf16.msra.mxu0 %v613
        %717 = vmatpush.bf16.msra.mxu0 %v610
        %718 = vmatpush.bf16.msra.mxu0 %v607
        %719 = vmatmul.bf16.gmra.mxu0 %v489
        %v720 = vpop.f32.mrf.mxu0
        %v721 = vadd.f32 0.0, %v720
        %v722 = vpop.f32.mrf.mxu0
        %v723 = vadd.f32 0.0, %v722
        %724 = vmatmul.bf16.gmra.mxu0 %v490
        %v725 = vpop.f32.mrf.mxu0
        %v726 = vadd.f32 0.0, %v725
        %v727 = vpop.f32.mrf.mxu0
        %v728 = vadd.f32 0.0, %v727
        %729 = vmatmul.bf16.gmra.mxu0 %v491
        %v730 = vpop.f32.mrf.mxu0
        %v731 = vadd.f32 0.0, %v730
        %v732 = vpop.f32.mrf.mxu0
        %v733 = vadd.f32 0.0, %v732
        %734 = vmatmul.bf16.gmra.mxu0 %v492
        %v735 = vpop.f32.mrf.mxu0
        %v736 = vadd.f32 0.0, %v735
        %v737 = vpop.f32.mrf.mxu0
        %v738 = vadd.f32 0.0, %v737
        %739 = vdwg.mxu0
        %v740 = vpack.c.bf16 %v692, %v663
        %v741 = vpack.c.bf16 %v721, %v721
        %v742 = vpack.c.bf16 %v694, %v665
        %v743 = vpack.c.bf16 %v723, %v723
        %v744 = vpack.c.bf16 %v697, %v668
        %v745 = vpack.c.bf16 %v726, %v726
        %v746 = vpack.c.bf16 %v699, %v670
        %v747 = vpack.c.bf16 %v728, %v728
        %v748 = vpack.c.bf16 %v702, %v673
        %v749 = vpack.c.bf16 %v731, %v731
        %v750 = vpack.c.bf16 %v704, %v675
        %v751 = vpack.c.bf16 %v733, %v733
        %v752 = vpack.c.bf16 %v707, %v678
        %v753 = vpack.c.bf16 %v736, %v736
        %v754 = vpack.c.bf16 %v709, %v680
        %v755 = vpack.c.bf16 %v738, %v738
        %756 = vst [vmem:[%s316] sm:$0xff] %v740
        %757 = vst [vmem:[%s316 + $0x8] sm:$0xf] %v741
        %758 = vst [vmem:[%s316 + $0xc] sm:$0xff] %v742
        %759 = vst [vmem:[%s316 + $0x14] sm:$0xf] %v743
        %760 = vst [vmem:[%s316 + $0x18] sm:$0xff] %v744
        %761 = vst [vmem:[%s316 + $0x20] sm:$0xf] %v745
        %762 = vst [vmem:[%s316 + $0x24] sm:$0xff] %v746
        %763 = vst [vmem:[%s316 + $0x2c] sm:$0xf] %v747
        %764 = vst [vmem:[%s316 + $0x30] sm:$0xff] %v748
        %765 = vst [vmem:[%s316 + $0x38] sm:$0xf] %v749
        %766 = vst [vmem:[%s316 + $0x3c] sm:$0xff] %v750
        %767 = vst [vmem:[%s316 + $0x44] sm:$0xf] %v751
        %768 = vst [vmem:[%s316 + $0x48] sm:$0xff] %v752
        %769 = vst [vmem:[%s316 + $0x50] sm:$0xf] %v753
        %770 = vst [vmem:[%s316 + $0x54] sm:$0xff] %v754
        %771 = vst [vmem:[%s316 + $0x5c] sm:$0xf] %v755
        %s772 = sand.u32 %s125, 1
        %s773 = sand.u32 %s125, 1
        %s774 = smul.addr %s773, 96
        %s775 = scalar_lea.vmem [#allocation3], %s774
        // Predicated region
        $region59: #{ca_transformer_forward.30} parent=53 // pred_check
          %p776 = pneg %p135
        $region60: #{ca_transformer_forward.30} parent=53 // pred_check_branch
          %778 = sbr.rel (%p776) target = $region62
        $region61: #{ca_transformer_forward.30} parent=53 // pred_region
          %s779 = smul.u32 8, %s20
          %s780 = smul.u32 3, %s21
          %s781 = smul.addr %s779, 6
          %s782 = sadd.s32 %s780, %s781
          %s783 = smul.addr %s19, 48
          %s784 = sadd.s32 %s782, %s783
          %s785 = smul.addr %s784, 4
          %s786 = scalar_lea.vmem %s3, %s785
          // Predicated region
          $region63: #{ca_transformer_forward.30} parent=61 // pred_check
            _
          $region64: #{ca_transformer_forward.30} parent=61 // pred_check_branch
            %788 = sbr.rel (0) target = $region66
          $region65: #{ca_transformer_forward.30} parent=61 // pred_region
            // Predicated region
            $region67: #{ca_transformer_forward.30} parent=65 // pred_check
              _
            $region68: #{ca_transformer_forward.30} parent=65 // pred_check_branch
              %790 = sbr.rel (0) target = $region70
            $region69: #{ca_transformer_forward.30} parent=65 // pred_region
              %s791 = scalar_lea.vmem %s775, 8 [#allocation3]
              %s792 = scalar_lea.vmem %s786, 8
              loop: start=0, step=1, limit=1
              $region71: #{ca_transformer_forward.30} parent=69 // loop_pre_header
                _
              $region72: #{ca_transformer_forward.30} parent=69 // loop_header
                %s794 = sphi 0, %s798
                %p795 = scmp.ge.s32.totalorder %s794, 1
                %s799 = sphi %s775, %s775
                %s800 = sphi %s786, %s786
              $region73: #{ca_transformer_forward.30} parent=69 // loop_header_branch
                %797 = sbr.rel (%p795) target = $region77
              $region74: #{ca_transformer_forward.30} parent=69 // loop_body
                %v801 = vld [vmem:[%s799] sm:$0xff]
                %802 = vst [vmem:[%s800] sm:$0xff] %v801
                %v803 = vld [vmem:[%s799 + $0xc] sm:$0xff]
                %804 = vst [vmem:[%s800 + $0x18] sm:$0xff] %v803
                %v805 = vld [vmem:[%s799 + $0x18] sm:$0xff]
                %806 = vst [vmem:[%s800 + $0x30] sm:$0xff] %v805
                %v807 = vld [vmem:[%s799 + $0x24] sm:$0xff]
                %808 = vst [vmem:[%s800 + $0x48] sm:$0xff] %v807
                %v809 = vld [vmem:[%s799 + $0x30] sm:$0xff]
                %810 = vst [vmem:[%s800 + $0x60] sm:$0xff] %v809
                %v811 = vld [vmem:[%s799 + $0x3c] sm:$0xff]
                %812 = vst [vmem:[%s800 + $0x78] sm:$0xff] %v811
                %v813 = vld [vmem:[%s799 + $0x48] sm:$0xff]
                %814 = vst [vmem:[%s800 + $0x90] sm:$0xff] %v813
                %v815 = vld [vmem:[%s799 + $0x54] sm:$0xff]
                %816 = vst [vmem:[%s800 + $0xa8] sm:$0xff] %v815
              $region75: #{ca_transformer_forward.30} parent=69 // loop_footer
                %s798 = sadd.s32 1, %s794
              $region76: #{ca_transformer_forward.30} parent=69 // loop_footer_branch
                %793 = sbr.rel target = $region72
              $region77: #{ca_transformer_forward.30} parent=69 // loop_exit
                _
              %s818 = ssub.s32 16, 1
              loop: start=0, step=1, limit=1
              $region78: #{ca_transformer_forward.30} parent=69 // loop_pre_header
                _
              $region79: #{ca_transformer_forward.30} parent=69 // loop_header
                %s820 = sphi 0, %s824
                %p821 = scmp.ge.s32.totalorder %s820, 1
                %s825 = sphi %s791, %s791
                %s826 = sphi %s792, %s792
              $region80: #{ca_transformer_forward.30} parent=69 // loop_header_branch
                %823 = sbr.rel (%p821) target = $region84
              $region81: #{ca_transformer_forward.30} parent=69 // loop_body
                %v827 = vld [vmem:[%s825] sm:%s818]
                %828 = vst [vmem:[%s826] sm:%s818] %v827
                %v829 = vld [vmem:[%s825 + $0xc] sm:%s818]
                %830 = vst [vmem:[%s826 + $0x18] sm:%s818] %v829
                %v831 = vld [vmem:[%s825 + $0x18] sm:%s818]
                %832 = vst [vmem:[%s826 + $0x30] sm:%s818] %v831
                %v833 = vld [vmem:[%s825 + $0x24] sm:%s818]
                %834 = vst [vmem:[%s826 + $0x48] sm:%s818] %v833
                %v835 = vld [vmem:[%s825 + $0x30] sm:%s818]
                %836 = vst [vmem:[%s826 + $0x60] sm:%s818] %v835
                %v837 = vld [vmem:[%s825 + $0x3c] sm:%s818]
                %838 = vst [vmem:[%s826 + $0x78] sm:%s818] %v837
                %v839 = vld [vmem:[%s825 + $0x48] sm:%s818]
                %840 = vst [vmem:[%s826 + $0x90] sm:%s818] %v839
                %v841 = vld [vmem:[%s825 + $0x54] sm:%s818]
                %842 = vst [vmem:[%s826 + $0xa8] sm:%s818] %v841
              $region82: #{ca_transformer_forward.30} parent=69 // loop_footer
                %s824 = sadd.s32 1, %s820
              $region83: #{ca_transformer_forward.30} parent=69 // loop_footer_branch
                %819 = sbr.rel target = $region79
              $region84: #{ca_transformer_forward.30} parent=69 // loop_exit
                _
            $region70: #{ca_transformer_forward.30} parent=65 // pred_fallthru
              _
          $region66: #{ca_transformer_forward.30} parent=61 // pred_fallthru
            _
          %843 = vnop
        $region62: #{ca_transformer_forward.30} parent=53 // pred_fallthru
          _
      $region54: #{ca_transformer_forward.30} parent=5 // pred_fallthru
        _
      %p844 = scmp.le.s32.totalorder 2, %s9
      // Predicated region
      $region85: #{ca_transformer_forward.30} parent=5 // pred_check
        %p845 = pneg %p844
      $region86: #{ca_transformer_forward.30} parent=5 // pred_check_branch
        %847 = sbr.rel (%p845) target = $region88
      $region87: #{ca_transformer_forward.30} parent=5 // pred_region
        %s848 = ssub.s32 %s9, 2
        // Predicated region
        $region89: #{ca_transformer_forward.30} parent=87 // pred_check
          %p849 = pneg %p141
        $region90: #{ca_transformer_forward.30} parent=87 // pred_check_branch
          %851 = sbr.rel (%p849) target = $region92
        $region91: #{ca_transformer_forward.30} parent=87 // pred_region
          %s852 = sand.u32 %s126, 1
          %s853 = sand.u32 %s126, 1
          %s854 = smul.addr %s853, 96
          %s855 = scalar_lea.vmem [#allocation3], %s854
        $region92: #{ca_transformer_forward.30} parent=87 // pred_fallthru
          _
      $region88: #{ca_transformer_forward.30} parent=5 // pred_fallthru
        _
    $region6: #{ca_transformer_forward.30} parent=1 // loop_footer
      %s13 = sadd.s32 1, %s9
    $region7: #{ca_transformer_forward.30} parent=1 // loop_footer_branch
      %8 = sbr.rel target = $region3
    $region8: #{ca_transformer_forward.30} parent=1 // loop_exit
      _

// kernel: ca_transformer_forward.31
$region0: #{ca_transformer_forward.31}
  #allocation0 [shape = 'u32[]', space=smem, size = 0x4, offset = 0x4, fixed_abs, tag = 'smem constant byte address 0x4 - core index']
  #allocation1 [shape = 'u32[72,128]{1,0:T(1,128)}', space=vmem, size = 0x9000, scoped, tag = 'internal scratch']
  %s0 = inlined_call_operand.vmem [shape: bf16[2,64,768], index: 0, kind: input, shape index: {}]
  %s1 = inlined_call_operand.vmem [shape: f32[2,64,128], index: 1, kind: input, shape index: {}]
  %s2 = inlined_call_operand.vmem [shape: bf16[384,128], index: 2, kind: input, shape index: {}]
  %s3 = inlined_call_operand.vmem [shape: f32[2,64,128], index: 3, kind: output, shape index: {}]
  %s4 = sld [smem:[#allocation0]]
  $region45: #{ca_transformer_forward.31} parent=0
    _
  %s6 = ssub.s32 1, %s4
  %s7 = scalar_select 0, %s6, %s4
  loop: start=0, step=1, limit=4
  $region2: #{ca_transformer_forward.31} parent=0 // loop_pre_header
    _
  $region3: #{ca_transformer_forward.31} parent=0 // loop_header
    %s9 = sphi 0, %s13
    %p10 = scmp.ge.s32.totalorder %s9, 4
    %s16 = sphi 0, %s35
    %s17 = sphi 0, %s31
    %s18 = sphi 0, %s27
    %s19 = sphi 0, %s16
    %s20 = sphi 0, %s17
    %s21 = sphi 0, %s18
    %s22 = sphi 0, %s19
    %s23 = sphi 0, %s20
    %s24 = sphi 0, %s21
    %s40 = sphi 0, %s42
    %s43 = sphi 0, %s40
    %s44 = sphi 0, %s43
    %s60 = sphi 0, %s44
    %s70 = sphi 0, %s72
    %s73 = sphi 0, %s70
    %s74 = sphi 0, %s73
    %s90 = sphi 0, %s74
    %s96 = sphi 0, %s98
    %s99 = sphi 0, %s96
    %s100 = sphi 0, %s99
    %s116 = sphi 0, %s100
    %s126 = sphi 0, %s128
    %s129 = sphi 0, %s126
    %s130 = sphi 0, %s129
    %s146 = sphi 0, %s130
  $region4: #{ca_transformer_forward.31} parent=0 // loop_header_branch
    %12 = sbr.rel (%p10) target = $region8
  $region5: #{ca_transformer_forward.31} parent=0 // loop_body
    %s14 = ssub.s32 %s9, 1
    %s15 = ssub.s32 %s9, 2
    %s25 = sadd.s32 1, %s18
    %p26 = scmp.ge.s32.totalorder %s25, 1
    %s27 = scalar_select %p26, 0, %s25
    %s28 = sadd.s32 1, %s17
    %s29 = scalar_select %p26, %s28, %s17
    %p30 = scmp.ge.s32.totalorder %s29, 1
    %s31 = scalar_select %p30, 0, %s29
    %s32 = sadd.s32 1, %s16
    %s33 = scalar_select %p30, %s32, %s16
    %p34 = scmp.ge.s32.totalorder %s33, 2
    %s35 = scalar_select %p34, 0, %s33
    %s36 = ssub.s32 %s16, %s35
    %s37 = ssub.s32 %s17, %s31
    %s38 = sor.u32 %s36, %s37
    %p39 = scmp.eq.s32.totalorder %s38, 0
    %s41 = sadd.s32 %s40, 1
    %s42 = scalar_select %p39, %s40, %s41
    %p45 = pneg %p39
    %p46 = scmp.eq.s32.totalorder %s9, 1
    %p47 = por %p45, %p46
    %p48 = scmp.ne.s32.totalorder %s40, %s43
    %p49 = scmp.eq.s32.totalorder %s9, 0
    %p50 = por %p48, %p49
    %p51 = scmp.ne.s32.totalorder %s40, %s43
    %p52 = scmp.eq.s32.totalorder %s14, 1
    %p53 = por %p51, %p52
    %p54 = scmp.ne.s32.totalorder %s43, %s44
    %p55 = scmp.eq.s32.totalorder %s14, 0
    %p56 = por %p54, %p55
    %p57 = scmp.ne.s32.totalorder %s43, %s44
    %p58 = scmp.eq.s32.totalorder %s15, 1
    %p59 = por %p57, %p58
    %p61 = scmp.ne.s32.totalorder %s44, %s60
    %p62 = scmp.eq.s32.totalorder %s15, 0
    %p63 = por %p61, %p62
    %s64 = ssub.s32 %s16, %s35
    %s65 = ssub.s32 %s17, %s31
    %s66 = sor.u32 %s64, %s65
    %s67 = ssub.s32 %s18, %s27
    %s68 = sor.u32 %s66, %s67
    %p69 = scmp.eq.s32.totalorder %s68, 0
    %s71 = sadd.s32 %s70, 1
    %s72 = scalar_select %p69, %s70, %s71
    %p75 = pneg %p69
    %p76 = scmp.eq.s32.totalorder %s9, 1
    %p77 = por %p75, %p76
    %p78 = scmp.ne.s32.totalorder %s70, %s73
    %p79 = scmp.eq.s32.totalorder %s9, 0
    %p80 = por %p78, %p79
    %p81 = scmp.ne.s32.totalorder %s70, %s73
    %p82 = scmp.eq.s32.totalorder %s14, 1
    %p83 = por %p81, %p82
    %p84 = scmp.ne.s32.totalorder %s73, %s74
    %p85 = scmp.eq.s32.totalorder %s14, 0
    %p86 = por %p84, %p85
    %p87 = scmp.ne.s32.totalorder %s73, %s74
    %p88 = scmp.eq.s32.totalorder %s15, 1
    %p89 = por %p87, %p88
    %p91 = scmp.ne.s32.totalorder %s74, %s90
    %p92 = scmp.eq.s32.totalorder %s15, 0
    %p93 = por %p91, %p92
    %s94 = ssub.s32 %s18, %s27
    %p95 = scmp.eq.s32.totalorder %s94, 0
    %s97 = sadd.s32 %s96, 1
    %s98 = scalar_select %p95, %s96, %s97
    %p101 = pneg %p95
    %p102 = scmp.eq.s32.totalorder %s9, 1
    %p103 = por %p101, %p102
    %p104 = scmp.ne.s32.totalorder %s96, %s99
    %p105 = scmp.eq.s32.totalorder %s9, 0
    %p106 = por %p104, %p105
    %p107 = scmp.ne.s32.totalorder %s96, %s99
    %p108 = scmp.eq.s32.totalorder %s14, 1
    %p109 = por %p107, %p108
    %p110 = scmp.ne.s32.totalorder %s99, %s100
    %p111 = scmp.eq.s32.totalorder %s14, 0
    %p112 = por %p110, %p111
    %p113 = scmp.ne.s32.totalorder %s99, %s100
    %p114 = scmp.eq.s32.totalorder %s15, 1
    %p115 = por %p113, %p114
    %p117 = scmp.ne.s32.totalorder %s100, %s116
    %p118 = scmp.eq.s32.totalorder %s15, 0
    %p119 = por %p117, %p118
    %s120 = ssub.s32 %s16, %s35
    %s121 = ssub.s32 %s17, %s31
    %s122 = sor.u32 %s120, %s121
    %s123 = ssub.s32 %s18, %s27
    %s124 = sor.u32 %s122, %s123
    %p125 = scmp.eq.s32.totalorder %s124, 0
    %s127 = sadd.s32 %s126, 1
    %s128 = scalar_select %p125, %s126, %s127
    %p131 = pneg %p125
    %p132 = scmp.eq.s32.totalorder %s9, 1
    %p133 = por %p131, %p132
    %p134 = scmp.ne.s32.totalorder %s126, %s129
    %p135 = scmp.eq.s32.totalorder %s9, 0
    %p136 = por %p134, %p135
    %p137 = scmp.ne.s32.totalorder %s126, %s129
    %p138 = scmp.eq.s32.totalorder %s14, 1
    %p139 = por %p137, %p138
    %p140 = scmp.ne.s32.totalorder %s129, %s130
    %p141 = scmp.eq.s32.totalorder %s14, 0
    %p142 = por %p140, %p141
    %p143 = scmp.ne.s32.totalorder %s129, %s130
    %p144 = scmp.eq.s32.totalorder %s15, 1
    %p145 = por %p143, %p144
    %p147 = scmp.ne.s32.totalorder %s130, %s146
    %p148 = scmp.eq.s32.totalorder %s15, 0
    %p149 = por %p147, %p148
    %p150 = scmp.le.s32.totalorder 1, %s9
    %p151 = scmp.lt.s32.totalorder %s9, 3
    %p152 = pnand %p150, %p151
    %p153 = pneg %p152
    // Predicated region
    $region9: #{ca_transformer_forward.31} parent=5 // pred_check
      _
    $region10: #{ca_transformer_forward.31} parent=5 // pred_check_branch
      %155 = sbr.rel (%p152) target = $region12
    $region11: #{ca_transformer_forward.31} parent=5 // pred_region
      %s156 = ssub.s32 %s9, 1
      // Predicated region
      $region13: #{ca_transformer_forward.31} parent=11 // pred_check
        %p157 = pneg %p112
      $region14: #{ca_transformer_forward.31} parent=11 // pred_check_branch
        %159 = sbr.rel (%p157) target = $region16
      $region15: #{ca_transformer_forward.31} parent=11 // pred_region
        %p160 = scmp.lt.s32.totalorder %s21, 0
        %s161 = scalar_select %p160, %s21, 0
        %s162 = smul.addr %s161, 4
        %s163 = scalar_lea.vmem %s2, %s162
      $region16: #{ca_transformer_forward.31} parent=11 // pred_fallthru
        _
    $region12: #{ca_transformer_forward.31} parent=5 // pred_fallthru
      _
    %p164 = scmp.lt.s32.totalorder %s9, 2
    // Predicated region
    $region17: #{ca_transformer_forward.31} parent=5 // pred_check
      %p165 = pneg %p164
    $region18: #{ca_transformer_forward.31} parent=5 // pred_check_branch
      %167 = sbr.rel (%p165) target = $region20
    $region19: #{ca_transformer_forward.31} parent=5 // pred_region
      // Predicated region
      $region21: #{ca_transformer_forward.31} parent=19 // pred_check
        %p168 = pneg %p50
      $region22: #{ca_transformer_forward.31} parent=19 // pred_check_branch
        %170 = sbr.rel (%p168) target = $region24
      $region23: #{ca_transformer_forward.31} parent=19 // pred_region
        %s171 = smul.u32 8, %s17
        %p172 = scmp.lt.s32.totalorder %s16, 1
        %s173 = scalar_select %p172, %s16, 1
        %p174 = scmp.lt.s32.totalorder %s171, 7
        %s175 = scalar_select %p174, %s171, 7
        %s176 = smul.addr %s175, 6
        %s177 = smul.addr %s173, 48
        %s178 = sadd.s32 %s176, %s177
        %s179 = smul.addr %s178, 4
        %s180 = scalar_lea.vmem %s0, %s179
        %s181 = smul.u32 8, %s17
      $region24: #{ca_transformer_forward.31} parent=19 // pred_fallthru
        _
      // Predicated region
      $region25: #{ca_transformer_forward.31} parent=19 // pred_check
        %p182 = pneg %p80
      $region26: #{ca_transformer_forward.31} parent=19 // pred_check_branch
        %184 = sbr.rel (%p182) target = $region28
      $region27: #{ca_transformer_forward.31} parent=19 // pred_region
        %s185 = smul.u32 8, %s17
        %p186 = scmp.lt.s32.totalorder %s16, 1
        %s187 = scalar_select %p186, %s16, 1
        %p188 = scmp.lt.s32.totalorder %s185, 7
        %s189 = scalar_select %p188, %s185, 7
        %p190 = scmp.lt.s32.totalorder %s18, 0
        %s191 = scalar_select %p190, %s18, 0
        %s192 = sadd.s32 %s191, %s189
        %s193 = smul.addr %s187, 8
        %s194 = sadd.s32 %s192, %s193
        %s195 = smul.addr %s194, 8
        %s196 = scalar_lea.vmem %s1, %s195
        %s197 = smul.u32 8, %s17
      $region28: #{ca_transformer_forward.31} parent=19 // pred_fallthru
        _
    $region20: #{ca_transformer_forward.31} parent=5 // pred_fallthru
      _
    %p198 = scmp.le.s32.totalorder 1, %s9
    %p199 = scmp.lt.s32.totalorder %s9, 3
    %p200 = pnand %p198, %p199
    %p201 = pneg %p200
    // Predicated region
    $region29: #{ca_transformer_forward.31} parent=5 // pred_check
      _
    $region30: #{ca_transformer_forward.31} parent=5 // pred_check_branch
      %203 = sbr.rel (%p200) target = $region32
    $region31: #{ca_transformer_forward.31} parent=5 // pred_region
      %s204 = ssub.s32 %s9, 1
      %s205 = smul.u32 8, %s20
      %p206 = scmp.lt.s32.totalorder %s19, 1
      %s207 = scalar_select %p206, %s19, 1
      %p208 = scmp.lt.s32.totalorder %s205, 7
      %s209 = scalar_select %p208, %s205, 7
      %s210 = smul.addr %s209, 6
      %s211 = smul.addr %s207, 48
      %s212 = sadd.s32 %s210, %s211
      %s213 = smul.addr %s212, 4
      %s214 = scalar_lea.vmem %s0, %s213
      %p215 = pneg %p56
      %p216 = pneg %p53
      %s217 = smul.u32 8, %s20
      %p218 = scmp.lt.s32.totalorder %s19, 1
      %s219 = scalar_select %p218, %s19, 1
      %p220 = scmp.lt.s32.totalorder %s217, 7
      %s221 = scalar_select %p220, %s217, 7
      %p222 = scmp.lt.s32.totalorder %s21, 0
      %s223 = scalar_select %p222, %s21, 0
      %s224 = sadd.s32 %s223, %s221
      %s225 = smul.addr %s219, 8
      %s226 = sadd.s32 %s224, %s225
      %s227 = smul.addr %s226, 8
      %s228 = scalar_lea.vmem %s1, %s227
      %p229 = pneg %p86
      %p230 = pneg %p83
      %p231 = scmp.lt.s32.totalorder %s21, 0
      %s232 = scalar_select %p231, %s21, 0
      %s233 = smul.addr %s232, 4
      %s234 = scalar_lea.vmem %s2, %s233
      %p235 = pneg %p112
      %p236 = pneg %p109
      %p237 = pneg %p142
      %p238 = pneg %p139
      %s239 = smul.u32 8, %s20
      %p240 = scmp.lt.s32.totalorder %s19, 1
      %s241 = scalar_select %p240, %s19, 1
      %p242 = scmp.lt.s32.totalorder %s239, 7
      %s243 = scalar_select %p242, %s239, 7
      %p244 = scmp.lt.s32.totalorder %s21, 0
      %s245 = scalar_select %p244, %s21, 0
      %s246 = sadd.s32 %s245, %s243
      %s247 = smul.addr %s241, 8
      %s248 = sadd.s32 %s246, %s247
      %s249 = smul.addr %s248, 8
      %s250 = scalar_lea.vmem %s3, %s249
      %s251 = smul.u32 8, %s20
      %p252 = scmp.lt.s32.totalorder %s19, 1
      %s253 = scalar_select %p252, %s19, 1
      %p254 = scmp.lt.s32.totalorder %s251, 7
      %s255 = scalar_select %p254, %s251, 7
      %s256 = smul.addr %s255, 6
      %s257 = smul.addr %s253, 48
      %s258 = sadd.s32 %s256, %s257
      %s259 = smul.addr %s258, 4
      %s260 = scalar_lea.vmem %s0, %s259
      %s261 = smul.u32 8, %s20
      %s262 = smul.u32 8, %s20
      %p263 = scmp.lt.s32.totalorder %s19, 1
      %s264 = scalar_select %p263, %s19, 1
      %p265 = scmp.lt.s32.totalorder %s262, 7
      %s266 = scalar_select %p265, %s262, 7
      %p267 = scmp.lt.s32.totalorder %s21, 0
      %s268 = scalar_select %p267, %s21, 0
      %s269 = sadd.s32 %s268, %s266
      %s270 = smul.addr %s264, 8
      %s271 = sadd.s32 %s269, %s270
      %s272 = smul.addr %s271, 8
      %s273 = scalar_lea.vmem %s1, %s272
      %s274 = smul.u32 8, %s20
      %p275 = scmp.lt.s32.totalorder %s21, 0
      %s276 = scalar_select %p275, %s21, 0
      %s277 = smul.addr %s276, 4
      %s278 = scalar_lea.vmem %s2, %s277
      %s279 = smul.u32 8, %s20
      %p280 = scmp.lt.s32.totalorder %s19, 1
      %s281 = scalar_select %p280, %s19, 1
      %p282 = scmp.lt.s32.totalorder %s279, 7
      %s283 = scalar_select %p282, %s279, 7
      %p284 = scmp.lt.s32.totalorder %s21, 0
      %s285 = scalar_select %p284, %s21, 0
      %s286 = sadd.s32 %s285, %s283
      %s287 = smul.addr %s281, 8
      %s288 = sadd.s32 %s286, %s287
      %s289 = smul.addr %s288, 8
      %s290 = scalar_lea.vmem %s3, %s289
      %s291 = smul.u32 8, %s20
      %v292 = vld [vmem:[%s260] sm:$0xff]
      %v293 = vld [vmem:[%s260 + $0x8] sm:$0xff]
      %v294 = vld [vmem:[%s260 + $0x10] sm:$0xff]
      %v295 = vld [vmem:[%s260 + $0x18] sm:$0xff]
      %v296 = vld [vmem:[%s260 + $0x20] sm:$0xff]
      %v297 = vld [vmem:[%s260 + $0x28] sm:$0xff]
      %v298 = vld [vmem:[%s260 + $0x30] sm:$0xff]
      %v299 = vld [vmem:[%s260 + $0x38] sm:$0xff]
      %v300 = vld [vmem:[%s260 + $0x40] sm:$0xff]
      %v301 = vld [vmem:[%s260 + $0x48] sm:$0xff]
      %v302 = vld [vmem:[%s260 + $0x50] sm:$0xff]
      %v303 = vld [vmem:[%s260 + $0x58] sm:$0xff]
      %v304 = vld [vmem:[%s260 + $0x60] sm:$0xff]
      %v305 = vld [vmem:[%s260 + $0x68] sm:$0xff]
      %v306 = vld [vmem:[%s260 + $0x70] sm:$0xff]
      %v307 = vld [vmem:[%s260 + $0x78] sm:$0xff]
      %v308 = vld [vmem:[%s260 + $0x80] sm:$0xff]
      %v309 = vld [vmem:[%s260 + $0x88] sm:$0xff]
      %v310 = vld [vmem:[%s260 + $0x90] sm:$0xff]
      %v311 = vld [vmem:[%s260 + $0x98] sm:$0xff]
      %v312 = vld [vmem:[%s260 + $0xa0] sm:$0xff]
      %v313 = vld [vmem:[%s260 + $0xa8] sm:$0xff]
      %v314 = vld [vmem:[%s260 + $0xb0] sm:$0xff]
      %v315 = vld [vmem:[%s260 + $0xb8] sm:$0xff]
      %v316 = vunpack.c.l.bf16 %v292
      %v317 = vunpack.c.h.bf16 %v292
      %v318 = vunpack.c.l.bf16 %v293
      %v319 = vunpack.c.h.bf16 %v293
      %v320 = vunpack.c.l.bf16 %v294
      %v321 = vunpack.c.h.bf16 %v294
      %v322 = vunpack.c.l.bf16 %v295
      %v323 = vunpack.c.h.bf16 %v295
      %v324 = vunpack.c.l.bf16 %v296
      %v325 = vunpack.c.h.bf16 %v296
      %v326 = vunpack.c.l.bf16 %v297
      %v327 = vunpack.c.h.bf16 %v297
      %v328 = vunpack.c.l.bf16 %v298
      %v329 = vunpack.c.h.bf16 %v298
      %v330 = vunpack.c.l.bf16 %v299
      %v331 = vunpack.c.h.bf16 %v299
      %v332 = vunpack.c.l.bf16 %v300
      %v333 = vunpack.c.h.bf16 %v300
      %v334 = vunpack.c.l.bf16 %v301
      %v335 = vunpack.c.h.bf16 %v301
      %v336 = vunpack.c.l.bf16 %v302
      %v337 = vunpack.c.h.bf16 %v302
      %v338 = vunpack.c.l.bf16 %v303
      %v339 = vunpack.c.h.bf16 %v303
      %v340 = vunpack.c.l.bf16 %v304
      %v341 = vunpack.c.h.bf16 %v304
      %v342 = vunpack.c.l.bf16 %v305
      %v343 = vunpack.c.h.bf16 %v305
      %v344 = vunpack.c.l.bf16 %v306
      %v345 = vunpack.c.h.bf16 %v306
      %v346 = vunpack.c.l.bf16 %v307
      %v347 = vunpack.c.h.bf16 %v307
      %v348 = vunpack.c.l.bf16 %v308
      %v349 = vunpack.c.h.bf16 %v308
      %v350 = vunpack.c.l.bf16 %v309
      %v351 = vunpack.c.h.bf16 %v309
      %v352 = vunpack.c.l.bf16 %v310
      %v353 = vunpack.c.h.bf16 %v310
      %v354 = vunpack.c.l.bf16 %v311
      %v355 = vunpack.c.h.bf16 %v311
      %v356 = vunpack.c.l.bf16 %v312
      %v357 = vunpack.c.h.bf16 %v312
      %v358 = vunpack.c.l.bf16 %v313
      %v359 = vunpack.c.h.bf16 %v313
      %v360 = vunpack.c.l.bf16 %v314
      %v361 = vunpack.c.h.bf16 %v314
      %v362 = vunpack.c.l.bf16 %v315
      %v363 = vunpack.c.h.bf16 %v315
      %v364 = vmul.f32 %v319, %v319
      %v365 = vmul.f32 %v320, %v320
      %v366 = vmul.f32 %v321, %v321
      %v367 = vmul.f32 %v325, %v325
      %v368 = vmul.f32 %v326, %v326
      %v369 = vmul.f32 %v327, %v327
      %v370 = vmul.f32 %v331, %v331
      %v371 = vmul.f32 %v332, %v332
      %v372 = vmul.f32 %v333, %v333
      %v373 = vmul.f32 %v337, %v337
      %v374 = vmul.f32 %v338, %v338
      %v375 = vmul.f32 %v339, %v339
      %v376 = vmul.f32 %v343, %v343
      %v377 = vmul.f32 %v344, %v344
      %v378 = vmul.f32 %v345, %v345
      %v379 = vmul.f32 %v349, %v349
      %v380 = vmul.f32 %v350, %v350
      %v381 = vmul.f32 %v351, %v351
      %v382 = vmul.f32 %v355, %v355
      %v383 = vmul.f32 %v356, %v356
      %v384 = vmul.f32 %v357, %v357
      %v385 = vmul.f32 %v361, %v361
      %v386 = vmul.f32 %v362, %v362
      %v387 = vmul.f32 %v363, %v363
      %v388 = vmul.f32 %v319, %v364
      %v389 = vmul.f32 %v320, %v365
      %v390 = vmul.f32 %v321, %v366
      %v391 = vmul.f32 %v325, %v367
      %v392 = vmul.f32 %v326, %v368
      %v393 = vmul.f32 %v327, %v369
      %v394 = vmul.f32 %v331, %v370
      %v395 = vmul.f32 %v332, %v371
      %v396 = vmul.f32 %v333, %v372
      %v397 = vmul.f32 %v337, %v373
      %v398 = vmul.f32 %v338, %v374
      %v399 = vmul.f32 %v339, %v375
      %v400 = vmul.f32 %v343, %v376
      %v401 = vmul.f32 %v344, %v377
      %v402 = vmul.f32 %v345, %v378
      %v403 = vmul.f32 %v349, %v379
      %v404 = vmul.f32 %v350, %v380
      %v405 = vmul.f32 %v351, %v381
      %v406 = vmul.f32 %v355, %v382
      %v407 = vmul.f32 %v356, %v383
      %v408 = vmul.f32 %v357, %v384
      %v409 = vmul.f32 %v361, %v385
      %v410 = vmul.f32 %v362, %v386
      %v411 = vmul.f32 %v363, %v387
      %v412 = vmul.f32 %v388, 0.044715
      %v413 = vmul.f32 %v389, 0.044715
      %v414 = vmul.f32 %v390, 0.044715
      %v415 = vmul.f32 %v391, 0.044715
      %v416 = vmul.f32 %v392, 0.044715
      %v417 = vmul.f32 %v393, 0.044715
      %v418 = vmul.f32 %v394, 0.044715
      %v419 = vmul.f32 %v395, 0.044715
      %v420 = vmul.f32 %v396, 0.044715
      %v421 = vmul.f32 %v397, 0.044715
      %v422 = vmul.f32 %v398, 0.044715
      %v423 = vmul.f32 %v399, 0.044715
      %v424 = vmul.f32 %v400, 0.044715
      %v425 = vmul.f32 %v401, 0.044715
      %v426 = vmul.f32 %v402, 0.044715
      %v427 = vmul.f32 %v403, 0.044715
      %v428 = vmul.f32 %v404, 0.044715
      %v429 = vmul.f32 %v405, 0.044715
      %v430 = vmul.f32 %v406, 0.044715
      %v431 = vmul.f32 %v407, 0.044715
      %v432 = vmul.f32 %v408, 0.044715
      %v433 = vmul.f32 %v409, 0.044715
      %v434 = vmul.f32 %v410, 0.044715
      %v435 = vmul.f32 %v411, 0.044715
      %v436 = vadd.f32 %v319, %v412
      %v437 = vadd.f32 %v320, %v413
      %v438 = vadd.f32 %v321, %v414
      %v439 = vadd.f32 %v325, %v415
      %v440 = vadd.f32 %v326, %v416
      %v441 = vadd.f32 %v327, %v417
      %v442 = vadd.f32 %v331, %v418
      %v443 = vadd.f32 %v332, %v419
      %v444 = vadd.f32 %v333, %v420
      %v445 = vadd.f32 %v337, %v421
      %v446 = vadd.f32 %v338, %v422
      %v447 = vadd.f32 %v339, %v423
      %v448 = vadd.f32 %v343, %v424
      %v449 = vadd.f32 %v344, %v425
      %v450 = vadd.f32 %v345, %v426
      %v451 = vadd.f32 %v349, %v427
      %v452 = vadd.f32 %v350, %v428
      %v453 = vadd.f32 %v351, %v429
      %v454 = vadd.f32 %v355, %v430
      %v455 = vadd.f32 %v356, %v431
      %v456 = vadd.f32 %v357, %v432
      %v457 = vadd.f32 %v361, %v433
      %v458 = vadd.f32 %v362, %v434
      %v459 = vadd.f32 %v363, %v435
      %v460 = vmul.f32 %v436, 0.7978846
      %v461 = vmul.f32 %v437, 0.7978846
      %v462 = vmul.f32 %v438, 0.7978846
      %v463 = vmul.f32 %v439, 0.7978846
      %v464 = vmul.f32 %v440, 0.7978846
      %v465 = vmul.f32 %v441, 0.7978846
      %v466 = vmul.f32 %v442, 0.7978846
      %v467 = vmul.f32 %v443, 0.7978846
      %v468 = vmul.f32 %v444, 0.7978846
      %v469 = vmul.f32 %v445, 0.7978846
      %v470 = vmul.f32 %v446, 0.7978846
      %v471 = vmul.f32 %v447, 0.7978846
      %v472 = vmul.f32 %v448, 0.7978846
      %v473 = vmul.f32 %v449, 0.7978846
      %v474 = vmul.f32 %v450, 0.7978846
      %v475 = vmul.f32 %v451, 0.7978846
      %v476 = vmul.f32 %v452, 0.7978846
      %v477 = vmul.f32 %v453, 0.7978846
      %v478 = vmul.f32 %v454, 0.7978846
      %v479 = vmul.f32 %v455, 0.7978846
      %v480 = vmul.f32 %v456, 0.7978846
      %v481 = vmul.f32 %v457, 0.7978846
      %v482 = vmul.f32 %v458, 0.7978846
      %v483 = vmul.f32 %v459, 0.7978846
      %v484 = vtanh.pop %v460
      %v485 = vtanh.pop %v461
      %v486 = vtanh.pop %v462
      %v487 = vtanh.pop %v463
      %v488 = vtanh.pop %v464
      %v489 = vtanh.pop %v465
      %v490 = vtanh.pop %v466
      %v491 = vtanh.pop %v467
      %v492 = vtanh.pop %v468
      %v493 = vtanh.pop %v469
      %v494 = vtanh.pop %v470
      %v495 = vtanh.pop %v471
      %v496 = vtanh.pop %v472
      %v497 = vtanh.pop %v473
      %v498 = vtanh.pop %v474
      %v499 = vtanh.pop %v475
      %v500 = vtanh.pop %v476
      %v501 = vtanh.pop %v477
      %v502 = vtanh.pop %v478
      %v503 = vtanh.pop %v479
      %v504 = vtanh.pop %v480
      %v505 = vtanh.pop %v481
      %v506 = vtanh.pop %v482
      %v507 = vtanh.pop %v483
      %v508 = vadd.f32 %v484, 1.0
      %v509 = vadd.f32 %v485, 1.0
      %v510 = vadd.f32 %v486, 1.0
      %v511 = vadd.f32 %v487, 1.0
      %v512 = vadd.f32 %v488, 1.0
      %v513 = vadd.f32 %v489, 1.0
      %v514 = vadd.f32 %v490, 1.0
      %v515 = vadd.f32 %v491, 1.0
      %v516 = vadd.f32 %v492, 1.0
      %v517 = vadd.f32 %v493, 1.0
      %v518 = vadd.f32 %v494, 1.0
      %v519 = vadd.f32 %v495, 1.0
      %v520 = vadd.f32 %v496, 1.0
      %v521 = vadd.f32 %v497, 1.0
      %v522 = vadd.f32 %v498, 1.0
      %v523 = vadd.f32 %v499, 1.0
      %v524 = vadd.f32 %v500, 1.0
      %v525 = vadd.f32 %v501, 1.0
      %v526 = vadd.f32 %v502, 1.0
      %v527 = vadd.f32 %v503, 1.0
      %v528 = vadd.f32 %v504, 1.0
      %v529 = vadd.f32 %v505, 1.0
      %v530 = vadd.f32 %v506, 1.0
      %v531 = vadd.f32 %v507, 1.0
      %v532 = vmul.f32 %v508, 0.5
      %v533 = vmul.f32 %v509, 0.5
      %v534 = vmul.f32 %v510, 0.5
      %v535 = vmul.f32 %v511, 0.5
      %v536 = vmul.f32 %v512, 0.5
      %v537 = vmul.f32 %v513, 0.5
      %v538 = vmul.f32 %v514, 0.5
      %v539 = vmul.f32 %v515, 0.5
      %v540 = vmul.f32 %v516, 0.5
      %v541 = vmul.f32 %v517, 0.5
      %v542 = vmul.f32 %v518, 0.5
      %v543 = vmul.f32 %v519, 0.5
      %v544 = vmul.f32 %v520, 0.5
      %v545 = vmul.f32 %v521, 0.5
      %v546 = vmul.f32 %v522, 0.5
      %v547 = vmul.f32 %v523, 0.5
      %v548 = vmul.f32 %v524, 0.5
      %v549 = vmul.f32 %v525, 0.5
      %v550 = vmul.f32 %v526, 0.5
      %v551 = vmul.f32 %v527, 0.5
      %v552 = vmul.f32 %v528, 0.5
      %v553 = vmul.f32 %v529, 0.5
      %v554 = vmul.f32 %v530, 0.5
      %v555 = vmul.f32 %v531, 0.5
      %v556 = vmul.f32 %v319, %v532
      %v557 = vmul.f32 %v320, %v533
      %v558 = vmul.f32 %v321, %v534
      %v559 = vmul.f32 %v325, %v535
      %v560 = vmul.f32 %v326, %v536
      %v561 = vmul.f32 %v327, %v537
      %v562 = vmul.f32 %v331, %v538
      %v563 = vmul.f32 %v332, %v539
      %v564 = vmul.f32 %v333, %v540
      %v565 = vmul.f32 %v337, %v541
      %v566 = vmul.f32 %v338, %v542
      %v567 = vmul.f32 %v339, %v543
      %v568 = vmul.f32 %v343, %v544
      %v569 = vmul.f32 %v344, %v545
      %v570 = vmul.f32 %v345, %v546
      %v571 = vmul.f32 %v349, %v547
      %v572 = vmul.f32 %v350, %v548
      %v573 = vmul.f32 %v351, %v549
      %v574 = vmul.f32 %v355, %v550
      %v575 = vmul.f32 %v356, %v551
      %v576 = vmul.f32 %v357, %v552
      %v577 = vmul.f32 %v361, %v553
      %v578 = vmul.f32 %v362, %v554
      %v579 = vmul.f32 %v363, %v555
      %v580 = vmul.f32 %v316, %v556
      %v581 = vmul.f32 %v317, %v557
      %v582 = vmul.f32 %v318, %v558
      %v583 = vmul.f32 %v322, %v559
      %v584 = vmul.f32 %v323, %v560
      %v585 = vmul.f32 %v324, %v561
      %v586 = vmul.f32 %v328, %v562
      %v587 = vmul.f32 %v329, %v563
      %v588 = vmul.f32 %v330, %v564
      %v589 = vmul.f32 %v334, %v565
      %v590 = vmul.f32 %v335, %v566
      %v591 = vmul.f32 %v336, %v567
      %v592 = vmul.f32 %v340, %v568
      %v593 = vmul.f32 %v341, %v569
      %v594 = vmul.f32 %v342, %v570
      %v595 = vmul.f32 %v346, %v571
      %v596 = vmul.f32 %v347, %v572
      %v597 = vmul.f32 %v348, %v573
      %v598 = vmul.f32 %v352, %v574
      %v599 = vmul.f32 %v353, %v575
      %v600 = vmul.f32 %v354, %v576
      %v601 = vmul.f32 %v358, %v577
      %v602 = vmul.f32 %v359, %v578
      %v603 = vmul.f32 %v360, %v579
      %v604 = vpack.c.bf16 %v583, %v580
      %v605 = vpack.c.bf16 %v584, %v581
      %v606 = vpack.c.bf16 %v585, %v582
      %v607 = vpack.c.bf16 %v589, %v586
      %v608 = vpack.c.bf16 %v590, %v587
      %v609 = vpack.c.bf16 %v591, %v588
      %v610 = vpack.c.bf16 %v595, %v592
      %v611 = vpack.c.bf16 %v596, %v593
      %v612 = vpack.c.bf16 %v597, %v594
      %v613 = vpack.c.bf16 %v601, %v598
      %v614 = vpack.c.bf16 %v602, %v599
      %v615 = vpack.c.bf16 %v603, %v600
      %v616 = vld [vmem:[%s278] sm:$0xf]
      %v617 = vld [vmem:[%s278 + $0x4] sm:$0xf]
      %v618 = vld [vmem:[%s278 + $0x8] sm:$0xf]
      %v619 = vld [vmem:[%s278 + $0xc] sm:$0xf]
      %v620 = vld [vmem:[%s278 + $0x10] sm:$0xf]
      %v621 = vld [vmem:[%s278 + $0x14] sm:$0xf]
      %v622 = vld [vmem:[%s278 + $0x18] sm:$0xf]
      %v623 = vld [vmem:[%s278 + $0x1c] sm:$0xf]
      %v624 = vld [vmem:[%s278 + $0x20] sm:$0xf]
      %v625 = vld [vmem:[%s278 + $0x24] sm:$0xf]
      %v626 = vld [vmem:[%s278 + $0x28] sm:$0xf]
      %v627 = vld [vmem:[%s278 + $0x2c] sm:$0xf]
      %v628 = vld [vmem:[%s278 + $0x30] sm:$0xf]
      %v629 = vld [vmem:[%s278 + $0x34] sm:$0xf]
      %v630 = vld [vmem:[%s278 + $0x38] sm:$0xf]
      %v631 = vld [vmem:[%s278 + $0x3c] sm:$0xf]
      %v632 = vld [vmem:[%s278 + $0x40] sm:$0xf]
      %v633 = vld [vmem:[%s278 + $0x44] sm:$0xf]
      %v634 = vld [vmem:[%s278 + $0x48] sm:$0xf]
      %v635 = vld [vmem:[%s278 + $0x4c] sm:$0xf]
      %v636 = vld [vmem:[%s278 + $0x50] sm:$0xf]
      %v637 = vld [vmem:[%s278 + $0x54] sm:$0xf]
      %v638 = vld [vmem:[%s278 + $0x58] sm:$0xf]
      %v639 = vld [vmem:[%s278 + $0x5c] sm:$0xf]
      %v640 = vld [vmem:[%s278 + $0x60] sm:$0xf]
      %v641 = vld [vmem:[%s278 + $0x64] sm:$0xf]
      %v642 = vld [vmem:[%s278 + $0x68] sm:$0xf]
      %v643 = vld [vmem:[%s278 + $0x6c] sm:$0xf]
      %v644 = vld [vmem:[%s278 + $0x70] sm:$0xf]
      %v645 = vld [vmem:[%s278 + $0x74] sm:$0xf]
      %v646 = vld [vmem:[%s278 + $0x78] sm:$0xf]
      %v647 = vld [vmem:[%s278 + $0x7c] sm:$0xf]
      %v648 = vld [vmem:[%s278 + $0x80] sm:$0xf]
      %v649 = vld [vmem:[%s278 + $0x84] sm:$0xf]
      %v650 = vld [vmem:[%s278 + $0x88] sm:$0xf]
      %v651 = vld [vmem:[%s278 + $0x8c] sm:$0xf]
      %v652 = vld [vmem:[%s278 + $0x90] sm:$0xf]
      %v653 = vld [vmem:[%s278 + $0x94] sm:$0xf]
      %v654 = vld [vmem:[%s278 + $0x98] sm:$0xf]
      %v655 = vld [vmem:[%s278 + $0x9c] sm:$0xf]
      %v656 = vld [vmem:[%s278 + $0xa0] sm:$0xf]
      %v657 = vld [vmem:[%s278 + $0xa4] sm:$0xf]
      %v658 = vld [vmem:[%s278 + $0xa8] sm:$0xf]
      %v659 = vld [vmem:[%s278 + $0xac] sm:$0xf]
      %v660 = vld [vmem:[%s278 + $0xb0] sm:$0xf]
      %v661 = vld [vmem:[%s278 + $0xb4] sm:$0xf]
      %v662 = vld [vmem:[%s278 + $0xb8] sm:$0xf]
      %v663 = vld [vmem:[%s278 + $0xbc] sm:$0xf]
      %v712 = vunpack.c.l.b16 %v616
      %v713 = vunpack.c.l.b16 %v617
      %v714 = vunpack.c.l.b16 %v618
      %v715 = vunpack.c.l.b16 %v619
      %v716 = vunpack.c.l.b16 %v620
      %v717 = vunpack.c.l.b16 %v621
      %v718 = vunpack.c.l.b16 %v622
      %v719 = vunpack.c.l.b16 %v623
      %v720 = vunpack.c.l.b16 %v624
      %v721 = vunpack.c.l.b16 %v625
      %v722 = vunpack.c.l.b16 %v626
      %v723 = vunpack.c.l.b16 %v627
      %v724 = vunpack.c.l.b16 %v628
      %v725 = vunpack.c.l.b16 %v629
      %v726 = vunpack.c.l.b16 %v630
      %v727 = vunpack.c.l.b16 %v631
      %v728 = vunpack.c.l.b16 %v632
      %v729 = vunpack.c.l.b16 %v633
      %v730 = vunpack.c.l.b16 %v634
      %v731 = vunpack.c.l.b16 %v635
      %v732 = vunpack.c.l.b16 %v636
      %v733 = vunpack.c.l.b16 %v637
      %v734 = vunpack.c.l.b16 %v638
      %v735 = vunpack.c.l.b16 %v639
      %v736 = vunpack.c.l.b16 %v640
      %v737 = vunpack.c.l.b16 %v641
      %v738 = vunpack.c.l.b16 %v642
      %v739 = vunpack.c.l.b16 %v643
      %v740 = vunpack.c.l.b16 %v644
      %v741 = vunpack.c.l.b16 %v645
      %v742 = vunpack.c.l.b16 %v646
      %v743 = vunpack.c.l.b16 %v647
      %v744 = vunpack.c.l.b16 %v648
      %v745 = vunpack.c.l.b16 %v649
      %v746 = vunpack.c.l.b16 %v650
      %v747 = vunpack.c.l.b16 %v651
      %v748 = vunpack.c.l.b16 %v652
      %v749 = vunpack.c.l.b16 %v653
      %v750 = vunpack.c.l.b16 %v654
      %v751 = vunpack.c.l.b16 %v655
      %v752 = vunpack.c.l.b16 %v656
      %v753 = vunpack.c.l.b16 %v657
      %v754 = vunpack.c.l.b16 %v658
      %v755 = vunpack.c.l.b16 %v659
      %v756 = vunpack.c.l.b16 %v660
      %v757 = vunpack.c.l.b16 %v661
      %v758 = vunpack.c.l.b16 %v662
      %v759 = vunpack.c.l.b16 %v663
      %v760 = vpack.c.b16 %v713, %v712
      %v761 = vpack.c.b16 %v715, %v714
      %v762 = vpack.c.b16 %v717, %v716
      %v763 = vpack.c.b16 %v719, %v718
      %v764 = vpack.c.b16 %v721, %v720
      %v765 = vpack.c.b16 %v723, %v722
      %v766 = vpack.c.b16 %v725, %v724
      %v767 = vpack.c.b16 %v727, %v726
      %v768 = vpack.c.b16 %v729, %v728
      %v769 = vpack.c.b16 %v731, %v730
      %v770 = vpack.c.b16 %v733, %v732
      %v771 = vpack.c.b16 %v735, %v734
      %v772 = vpack.c.b16 %v737, %v736
      %v773 = vpack.c.b16 %v739, %v738
      %v774 = vpack.c.b16 %v741, %v740
      %v775 = vpack.c.b16 %v743, %v742
      %v776 = vpack.c.b16 %v745, %v744
      %v777 = vpack.c.b16 %v747, %v746
      %v778 = vpack.c.b16 %v749, %v748
      %v779 = vpack.c.b16 %v751, %v750
      %v780 = vpack.c.b16 %v753, %v752
      %v781 = vpack.c.b16 %v755, %v754
      %v782 = vpack.c.b16 %v757, %v756
      %v783 = vpack.c.b16 %v759, %v758
      %808 = vmatpush.bf16.msra.mxu0 %v767
      %809 = vmatpush.bf16.msra.mxu0 %v766
      %810 = vmatpush.bf16.msra.mxu0 %v765
      %811 = vmatpush.bf16.msra.mxu0 %v764
      %812 = vmatpush.bf16.msra.mxu0 %v763
      %813 = vmatpush.bf16.msra.mxu0 %v762
      %814 = vmatpush.bf16.msra.mxu0 %v761
      %815 = vmatpush.bf16.msra.mxu0 %v760
      %816 = vmatmul.bf16.gmra.mxu0 %v604
      %v817 = vpop.f32.mrf.mxu0
      %v818 = vadd.f32 0.0, %v817
      %v819 = vpop.f32.mrf.mxu0
      %v820 = vadd.f32 0.0, %v819
      %821 = vmatmul.bf16.gmra.mxu0 %v607
      %v822 = vpop.f32.mrf.mxu0
      %v823 = vadd.f32 0.0, %v822
      %v824 = vpop.f32.mrf.mxu0
      %v825 = vadd.f32 0.0, %v824
      %826 = vmatmul.bf16.gmra.mxu0 %v610
      %v827 = vpop.f32.mrf.mxu0
      %v828 = vadd.f32 0.0, %v827
      %v829 = vpop.f32.mrf.mxu0
      %v830 = vadd.f32 0.0, %v829
      %831 = vmatmul.bf16.gmra.mxu0 %v613
      %v832 = vpop.f32.mrf.mxu0
      %v833 = vadd.f32 0.0, %v832
      %v834 = vpop.f32.mrf.mxu0
      %v835 = vadd.f32 0.0, %v834
      %836 = vdwg.mxu0
      %837 = vmatpush.bf16.msra.mxu0 %v775
      %838 = vmatpush.bf16.msra.mxu0 %v774
      %839 = vmatpush.bf16.msra.mxu0 %v773
      %840 = vmatpush.bf16.msra.mxu0 %v772
      %841 = vmatpush.bf16.msra.mxu0 %v771
      %842 = vmatpush.bf16.msra.mxu0 %v770
      %843 = vmatpush.bf16.msra.mxu0 %v769
      %844 = vmatpush.bf16.msra.mxu0 %v768
      %845 = vmatmul.bf16.gmra.mxu0 %v605
      %v846 = vpop.f32.mrf.mxu0
      %v847 = vadd.f32 %v818, %v846
      %v848 = vpop.f32.mrf.mxu0
      %v849 = vadd.f32 %v820, %v848
      %850 = vmatmul.bf16.gmra.mxu0 %v608
      %v851 = vpop.f32.mrf.mxu0
      %v852 = vadd.f32 %v823, %v851
      %v853 = vpop.f32.mrf.mxu0
      %v854 = vadd.f32 %v825, %v853
      %855 = vmatmul.bf16.gmra.mxu0 %v611
      %v856 = vpop.f32.mrf.mxu0
      %v857 = vadd.f32 %v828, %v856
      %v858 = vpop.f32.mrf.mxu0
      %v859 = vadd.f32 %v830, %v858
      %860 = vmatmul.bf16.gmra.mxu0 %v614
      %v861 = vpop.f32.mrf.mxu0
      %v862 = vadd.f32 %v833, %v861
      %v863 = vpop.f32.mrf.mxu0
      %v864 = vadd.f32 %v835, %v863
      %865 = vdwg.mxu0
      %866 = vmatpush.bf16.msra.mxu0 %v783
      %867 = vmatpush.bf16.msra.mxu0 %v782
      %868 = vmatpush.bf16.msra.mxu0 %v781
      %869 = vmatpush.bf16.msra.mxu0 %v780
      %870 = vmatpush.bf16.msra.mxu0 %v779
      %871 = vmatpush.bf16.msra.mxu0 %v778
      %872 = vmatpush.bf16.msra.mxu0 %v777
      %873 = vmatpush.bf16.msra.mxu0 %v776
      %874 = vmatmul.bf16.gmra.mxu0 %v606
      %v875 = vpop.f32.mrf.mxu0
      %v876 = vadd.f32 %v847, %v875
      %v877 = vpop.f32.mrf.mxu0
      %v878 = vadd.f32 %v849, %v877
      %879 = vmatmul.bf16.gmra.mxu0 %v609
      %v880 = vpop.f32.mrf.mxu0
      %v881 = vadd.f32 %v852, %v880
      %v882 = vpop.f32.mrf.mxu0
      %v883 = vadd.f32 %v854, %v882
      %884 = vmatmul.bf16.gmra.mxu0 %v612
      %v885 = vpop.f32.mrf.mxu0
      %v886 = vadd.f32 %v857, %v885
      %v887 = vpop.f32.mrf.mxu0
      %v888 = vadd.f32 %v859, %v887
      %889 = vmatmul.bf16.gmra.mxu0 %v615
      %v890 = vpop.f32.mrf.mxu0
      %v891 = vadd.f32 %v862, %v890
      %v892 = vpop.f32.mrf.mxu0
      %v893 = vadd.f32 %v864, %v892
      %894 = vdwg.mxu0
      %v895 = vld [vmem:[%s273] sm:$0xff]
      %v896 = vld [vmem:[%s273 + $0x8] sm:$0xff]
      %v897 = vld [vmem:[%s273 + $0x10] sm:$0xff]
      %v898 = vld [vmem:[%s273 + $0x18] sm:$0xff]
      %v899 = vld [vmem:[%s273 + $0x20] sm:$0xff]
      %v900 = vld [vmem:[%s273 + $0x28] sm:$0xff]
      %v901 = vld [vmem:[%s273 + $0x30] sm:$0xff]
      %v902 = vld [vmem:[%s273 + $0x38] sm:$0xff]
      %v903 = vadd.f32 %v895, %v876
      %v904 = vadd.f32 %v896, %v878
      %v905 = vadd.f32 %v897, %v881
      %v906 = vadd.f32 %v898, %v883
      %v907 = vadd.f32 %v899, %v886
      %v908 = vadd.f32 %v900, %v888
      %v909 = vadd.f32 %v901, %v891
      %v910 = vadd.f32 %v902, %v893
      %911 = vst [vmem:[%s290] sm:$0xff] %v903
      %912 = vst [vmem:[%s290 + $0x8] sm:$0xff] %v904
      %913 = vst [vmem:[%s290 + $0x10] sm:$0xff] %v905
      %914 = vst [vmem:[%s290 + $0x18] sm:$0xff] %v906
      %915 = vst [vmem:[%s290 + $0x20] sm:$0xff] %v907
      %916 = vst [vmem:[%s290 + $0x28] sm:$0xff] %v908
      %917 = vst [vmem:[%s290 + $0x30] sm:$0xff] %v909
      %918 = vst [vmem:[%s290 + $0x38] sm:$0xff] %v910
      %s919 = smul.u32 8, %s20
      %p920 = scmp.lt.s32.totalorder %s19, 1
      %s921 = scalar_select %p920, %s19, 1
      %p922 = scmp.lt.s32.totalorder %s919, 7
      %s923 = scalar_select %p922, %s919, 7
      %p924 = scmp.lt.s32.totalorder %s21, 0
      %s925 = scalar_select %p924, %s21, 0
      %s926 = sadd.s32 %s925, %s923
      %s927 = smul.addr %s921, 8
      %s928 = sadd.s32 %s926, %s927
      %s929 = smul.addr %s928, 8
      %s930 = scalar_lea.vmem %s3, %s929
      // Predicated region
      $region33: #{ca_transformer_forward.31} parent=31 // pred_check
        %p931 = pneg %p139
      $region34: #{ca_transformer_forward.31} parent=31 // pred_check_branch
        %933 = sbr.rel (%p931) target = $region36
      $region35: #{ca_transformer_forward.31} parent=31 // pred_region
        %s934 = smul.u32 8, %s20
      $region36: #{ca_transformer_forward.31} parent=31 // pred_fallthru
        _
    $region32: #{ca_transformer_forward.31} parent=5 // pred_fallthru
      _
    %p935 = scmp.le.s32.totalorder 2, %s9
    // Predicated region
    $region37: #{ca_transformer_forward.31} parent=5 // pred_check
      %p936 = pneg %p935
    $region38: #{ca_transformer_forward.31} parent=5 // pred_check_branch
      %938 = sbr.rel (%p936) target = $region40
    $region39: #{ca_transformer_forward.31} parent=5 // pred_region
      %s939 = ssub.s32 %s9, 2
      // Predicated region
      $region41: #{ca_transformer_forward.31} parent=39 // pred_check
        %p940 = pneg %p145
      $region42: #{ca_transformer_forward.31} parent=39 // pred_check_branch
        %942 = sbr.rel (%p940) target = $region44
      $region43: #{ca_transformer_forward.31} parent=39 // pred_region
        %s943 = smul.u32 8, %s23
        %p944 = scmp.lt.s32.totalorder %s22, 1
        %s945 = scalar_select %p944, %s22, 1
        %p946 = scmp.lt.s32.totalorder %s943, 7
        %s947 = scalar_select %p946, %s943, 7
        %p948 = scmp.lt.s32.totalorder %s24, 0
        %s949 = scalar_select %p948, %s24, 0
        %s950 = sadd.s32 %s949, %s947
        %s951 = smul.addr %s945, 8
        %s952 = sadd.s32 %s950, %s951
        %s953 = smul.addr %s952, 8
        %s954 = scalar_lea.vmem %s3, %s953
      $region44: #{ca_transformer_forward.31} parent=39 // pred_fallthru
        _
    $region40: #{ca_transformer_forward.31} parent=5 // pred_fallthru
      _
  $region6: #{ca_transformer_forward.31} parent=0 // loop_footer
    %s13 = sadd.s32 1, %s9
  $region7: #{ca_transformer_forward.31} parent=0 // loop_footer_branch
    %8 = sbr.rel target = $region3
  $region8: #{ca_transformer_forward.31} parent=0 // loop_exit
    _

// kernel: ca_transformer_forward.28
$region0: #{ca_transformer_forward.28}
  #allocation0 [shape = 'u32[]', space=smem, size = 0x4, offset = 0x4, fixed_abs, tag = 'smem constant byte address 0x4 - core index']
  #allocation1 [shape = 'u32[72,128]{1,0:T(1,128)}', space=vmem, size = 0x9000, scoped, tag = 'internal scratch']
  %s0 = inlined_call_operand.vmem [shape: bf16[2,4,64,32], index: 0, kind: input, shape index: {}]
  %s1 = inlined_call_operand.vmem [shape: bf16[2,4,8,32], index: 1, kind: input, shape index: {}]
  %s2 = inlined_call_operand.vmem [shape: bf16[2,4,8,32], index: 2, kind: input, shape index: {}]
  %s3 = inlined_call_operand.vmem [shape: bf16[2,4,64,32], index: 3, kind: output, shape index: {}]
  %s4 = sld [smem:[#allocation0]]
  $region45: #{ca_transformer_forward.28} parent=0
    _
  %s6 = ssub.s32 1, %s4
  %s7 = scalar_select 0, %s6, %s4
  loop: start=0, step=1, limit=4
  $region2: #{ca_transformer_forward.28} parent=0 // loop_pre_header
    _
  $region3: #{ca_transformer_forward.28} parent=0 // loop_header
    %s9 = sphi 0, %s13
    %p10 = scmp.ge.s32.totalorder %s9, 4
    %s19 = sphi 0, %s21
    %s22 = sphi 0, %s19
    %s23 = sphi 0, %s22
    %s39 = sphi 0, %s23
    %s45 = sphi 0, %s47
    %s48 = sphi 0, %s45
    %s49 = sphi 0, %s48
    %s65 = sphi 0, %s49
    %s71 = sphi 0, %s73
    %s74 = sphi 0, %s71
    %s75 = sphi 0, %s74
    %s91 = sphi 0, %s75
    %s97 = sphi 0, %s99
    %s100 = sphi 0, %s97
    %s101 = sphi 0, %s100
    %s117 = sphi 0, %s101
  $region4: #{ca_transformer_forward.28} parent=0 // loop_header_branch
    %12 = sbr.rel (%p10) target = $region8
  $region5: #{ca_transformer_forward.28} parent=0 // loop_body
    %s14 = ssub.s32 %s9, 1
    %s15 = ssub.s32 %s9, 2
    %s16 = sadd.s32 %s9, 1
    %s17 = ssub.s32 %s9, %s16
    %p18 = scmp.eq.s32.totalorder %s17, 0
    %s20 = sadd.s32 %s19, 1
    %s21 = scalar_select %p18, %s19, %s20
    %p24 = pneg %p18
    %p25 = scmp.eq.s32.totalorder %s9, 1
    %p26 = por %p24, %p25
    %p27 = scmp.ne.s32.totalorder %s19, %s22
    %p28 = scmp.eq.s32.totalorder %s9, 0
    %p29 = por %p27, %p28
    %p30 = scmp.ne.s32.totalorder %s19, %s22
    %p31 = scmp.eq.s32.totalorder %s14, 1
    %p32 = por %p30, %p31
    %p33 = scmp.ne.s32.totalorder %s22, %s23
    %p34 = scmp.eq.s32.totalorder %s14, 0
    %p35 = por %p33, %p34
    %p36 = scmp.ne.s32.totalorder %s22, %s23
    %p37 = scmp.eq.s32.totalorder %s15, 1
    %p38 = por %p36, %p37
    %p40 = scmp.ne.s32.totalorder %s23, %s39
    %p41 = scmp.eq.s32.totalorder %s15, 0
    %p42 = por %p40, %p41
    %s43 = ssub.s32 %s9, %s16
    %p44 = scmp.eq.s32.totalorder %s43, 0
    %s46 = sadd.s32 %s45, 1
    %s47 = scalar_select %p44, %s45, %s46
    %p50 = pneg %p44
    %p51 = scmp.eq.s32.totalorder %s9, 1
    %p52 = por %p50, %p51
    %p53 = scmp.ne.s32.totalorder %s45, %s48
    %p54 = scmp.eq.s32.totalorder %s9, 0
    %p55 = por %p53, %p54
    %p56 = scmp.ne.s32.totalorder %s45, %s48
    %p57 = scmp.eq.s32.totalorder %s14, 1
    %p58 = por %p56, %p57
    %p59 = scmp.ne.s32.totalorder %s48, %s49
    %p60 = scmp.eq.s32.totalorder %s14, 0
    %p61 = por %p59, %p60
    %p62 = scmp.ne.s32.totalorder %s48, %s49
    %p63 = scmp.eq.s32.totalorder %s15, 1
    %p64 = por %p62, %p63
    %p66 = scmp.ne.s32.totalorder %s49, %s65
    %p67 = scmp.eq.s32.totalorder %s15, 0
    %p68 = por %p66, %p67
    %s69 = ssub.s32 %s9, %s16
    %p70 = scmp.eq.s32.totalorder %s69, 0
    %s72 = sadd.s32 %s71, 1
    %s73 = scalar_select %p70, %s71, %s72
    %p76 = pneg %p70
    %p77 = scmp.eq.s32.totalorder %s9, 1
    %p78 = por %p76, %p77
    %p79 = scmp.ne.s32.totalorder %s71, %s74
    %p80 = scmp.eq.s32.totalorder %s9, 0
    %p81 = por %p79, %p80
    %p82 = scmp.ne.s32.totalorder %s71, %s74
    %p83 = scmp.eq.s32.totalorder %s14, 1
    %p84 = por %p82, %p83
    %p85 = scmp.ne.s32.totalorder %s74, %s75
    %p86 = scmp.eq.s32.totalorder %s14, 0
    %p87 = por %p85, %p86
    %p88 = scmp.ne.s32.totalorder %s74, %s75
    %p89 = scmp.eq.s32.totalorder %s15, 1
    %p90 = por %p88, %p89
    %p92 = scmp.ne.s32.totalorder %s75, %s91
    %p93 = scmp.eq.s32.totalorder %s15, 0
    %p94 = por %p92, %p93
    %s95 = ssub.s32 %s9, %s16
    %p96 = scmp.eq.s32.totalorder %s95, 0
    %s98 = sadd.s32 %s97, 1
    %s99 = scalar_select %p96, %s97, %s98
    %p102 = pneg %p96
    %p103 = scmp.eq.s32.totalorder %s9, 1
    %p104 = por %p102, %p103
    %p105 = scmp.ne.s32.totalorder %s97, %s100
    %p106 = scmp.eq.s32.totalorder %s9, 0
    %p107 = por %p105, %p106
    %p108 = scmp.ne.s32.totalorder %s97, %s100
    %p109 = scmp.eq.s32.totalorder %s14, 1
    %p110 = por %p108, %p109
    %p111 = scmp.ne.s32.totalorder %s100, %s101
    %p112 = scmp.eq.s32.totalorder %s14, 0
    %p113 = por %p111, %p112
    %p114 = scmp.ne.s32.totalorder %s100, %s101
    %p115 = scmp.eq.s32.totalorder %s15, 1
    %p116 = por %p114, %p115
    %p118 = scmp.ne.s32.totalorder %s101, %s117
    %p119 = scmp.eq.s32.totalorder %s15, 0
    %p120 = por %p118, %p119
    %p121 = scmp.le.s32.totalorder 1, %s9
    %p122 = scmp.lt.s32.totalorder %s9, 3
    %p123 = pnand %p121, %p122
    %p124 = pneg %p123
    // Predicated region
    $region9: #{ca_transformer_forward.28} parent=5 // pred_check
      _
    $region10: #{ca_transformer_forward.28} parent=5 // pred_check_branch
      %126 = sbr.rel (%p123) target = $region12
    $region11: #{ca_transformer_forward.28} parent=5 // pred_region
      %s127 = ssub.s32 %s9, 1
    $region12: #{ca_transformer_forward.28} parent=5 // pred_fallthru
      _
    %p128 = scmp.lt.s32.totalorder %s9, 2
    // Predicated region
    $region13: #{ca_transformer_forward.28} parent=5 // pred_check
      %p129 = pneg %p128
    $region14: #{ca_transformer_forward.28} parent=5 // pred_check_branch
      %131 = sbr.rel (%p129) target = $region16
    $region15: #{ca_transformer_forward.28} parent=5 // pred_region
      // Predicated region
      $region17: #{ca_transformer_forward.28} parent=15 // pred_check
        %p132 = pneg %p29
      $region18: #{ca_transformer_forward.28} parent=15 // pred_check_branch
        %134 = sbr.rel (%p132) target = $region20
      $region19: #{ca_transformer_forward.28} parent=15 // pred_region
        %p135 = scmp.lt.s32.totalorder %s9, 1
        %s136 = scalar_select %p135, %s9, 1
        %s137 = smul.addr %s136, 32
        %s138 = smul.addr %s137, 4
        %s139 = scalar_lea.vmem %s0, %s138
      $region20: #{ca_transformer_forward.28} parent=15 // pred_fallthru
        _
      // Predicated region
      $region21: #{ca_transformer_forward.28} parent=15 // pred_check
        %p140 = pneg %p55
      $region22: #{ca_transformer_forward.28} parent=15 // pred_check_branch
        %142 = sbr.rel (%p140) target = $region24
      $region23: #{ca_transformer_forward.28} parent=15 // pred_region
        %p143 = scmp.lt.s32.totalorder %s9, 1
        %s144 = scalar_select %p143, %s9, 1
        %s145 = smul.addr %s144, 4
        %s146 = smul.addr %s145, 4
        %s147 = scalar_lea.vmem %s1, %s146
      $region24: #{ca_transformer_forward.28} parent=15 // pred_fallthru
        _
      // Predicated region
      $region25: #{ca_transformer_forward.28} parent=15 // pred_check
        %p148 = pneg %p81
      $region26: #{ca_transformer_forward.28} parent=15 // pred_check_branch
        %150 = sbr.rel (%p148) target = $region28
      $region27: #{ca_transformer_forward.28} parent=15 // pred_region
        %p151 = scmp.lt.s32.totalorder %s9, 1
        %s152 = scalar_select %p151, %s9, 1
        %s153 = smul.addr %s152, 4
        %s154 = smul.addr %s153, 4
        %s155 = scalar_lea.vmem %s2, %s154
      $region28: #{ca_transformer_forward.28} parent=15 // pred_fallthru
        _
    $region16: #{ca_transformer_forward.28} parent=5 // pred_fallthru
      _
    %p156 = scmp.le.s32.totalorder 1, %s9
    %p157 = scmp.lt.s32.totalorder %s9, 3
    %p158 = pnand %p156, %p157
    %p159 = pneg %p158
    // Predicated region
    $region29: #{ca_transformer_forward.28} parent=5 // pred_check
      _
    $region30: #{ca_transformer_forward.28} parent=5 // pred_check_branch
      %161 = sbr.rel (%p158) target = $region32
    $region31: #{ca_transformer_forward.28} parent=5 // pred_region
      %s162 = ssub.s32 %s9, 1
      %p163 = scmp.lt.s32.totalorder %s14, 1
      %s164 = scalar_select %p163, %s14, 1
      %s165 = smul.addr %s164, 32
      %s166 = smul.addr %s165, 4
      %s167 = scalar_lea.vmem %s0, %s166
      %p168 = pneg %p35
      %p169 = pneg %p32
      %p170 = scmp.lt.s32.totalorder %s14, 1
      %s171 = scalar_select %p170, %s14, 1
      %s172 = smul.addr %s171, 4
      %s173 = smul.addr %s172, 4
      %s174 = scalar_lea.vmem %s1, %s173
      %p175 = pneg %p61
      %p176 = pneg %p58
      %p177 = scmp.lt.s32.totalorder %s14, 1
      %s178 = scalar_select %p177, %s14, 1
      %s179 = smul.addr %s178, 4
      %s180 = smul.addr %s179, 4
      %s181 = scalar_lea.vmem %s2, %s180
      %p182 = pneg %p87
      %p183 = pneg %p84
      %p184 = pneg %p113
      %p185 = pneg %p110
      %p186 = scmp.lt.s32.totalorder %s14, 1
      %s187 = scalar_select %p186, %s14, 1
      %s188 = smul.addr %s187, 32
      %s189 = smul.addr %s188, 4
      %s190 = scalar_lea.vmem %s3, %s189
      %p191 = scmp.lt.s32.totalorder %s14, 1
      %s192 = scalar_select %p191, %s14, 1
      %s193 = smul.addr %s192, 32
      %s194 = smul.addr %s193, 4
      %s195 = scalar_lea.vmem %s0, %s194
      %p196 = scmp.lt.s32.totalorder %s14, 1
      %s197 = scalar_select %p196, %s14, 1
      %s198 = smul.addr %s197, 4
      %s199 = smul.addr %s198, 4
      %s200 = scalar_lea.vmem %s1, %s199
      %p201 = scmp.lt.s32.totalorder %s14, 1
      %s202 = scalar_select %p201, %s14, 1
      %s203 = smul.addr %s202, 4
      %s204 = smul.addr %s203, 4
      %s205 = scalar_lea.vmem %s2, %s204
      %p206 = scmp.lt.s32.totalorder %s14, 1
      %s207 = scalar_select %p206, %s14, 1
      %s208 = smul.addr %s207, 32
      %s209 = smul.addr %s208, 4
      %s210 = scalar_lea.vmem %s3, %s209
      %v212 = vld [vmem:[%s195] sm:$0xf]
      %v213 = vld [vmem:[%s195 + $0x4] sm:$0xf]
      %v214 = vld [vmem:[%s195 + $0x8] sm:$0xf]
      %v215 = vld [vmem:[%s195 + $0xc] sm:$0xf]
      %v216 = vld [vmem:[%s195 + $0x10] sm:$0xf]
      %v217 = vld [vmem:[%s195 + $0x14] sm:$0xf]
      %v218 = vld [vmem:[%s195 + $0x18] sm:$0xf]
      %v219 = vld [vmem:[%s195 + $0x1c] sm:$0xf]
      %v220 = vld [vmem:[%s195 + $0x20] sm:$0xf]
      %v221 = vld [vmem:[%s195 + $0x24] sm:$0xf]
      %v222 = vld [vmem:[%s195 + $0x28] sm:$0xf]
      %v223 = vld [vmem:[%s195 + $0x2c] sm:$0xf]
      %v224 = vld [vmem:[%s195 + $0x30] sm:$0xf]
      %v225 = vld [vmem:[%s195 + $0x34] sm:$0xf]
      %v226 = vld [vmem:[%s195 + $0x38] sm:$0xf]
      %v227 = vld [vmem:[%s195 + $0x3c] sm:$0xf]
      %v228 = vld [vmem:[%s195 + $0x40] sm:$0xf]
      %v229 = vld [vmem:[%s195 + $0x44] sm:$0xf]
      %v230 = vld [vmem:[%s195 + $0x48] sm:$0xf]
      %v231 = vld [vmem:[%s195 + $0x4c] sm:$0xf]
      %v232 = vld [vmem:[%s195 + $0x50] sm:$0xf]
      %v233 = vld [vmem:[%s195 + $0x54] sm:$0xf]
      %v234 = vld [vmem:[%s195 + $0x58] sm:$0xf]
      %v235 = vld [vmem:[%s195 + $0x5c] sm:$0xf]
      %v236 = vld [vmem:[%s195 + $0x60] sm:$0xf]
      %v237 = vld [vmem:[%s195 + $0x64] sm:$0xf]
      %v238 = vld [vmem:[%s195 + $0x68] sm:$0xf]
      %v239 = vld [vmem:[%s195 + $0x6c] sm:$0xf]
      %v240 = vld [vmem:[%s195 + $0x70] sm:$0xf]
      %v241 = vld [vmem:[%s195 + $0x74] sm:$0xf]
      %v242 = vld [vmem:[%s195 + $0x78] sm:$0xf]
      %v243 = vld [vmem:[%s195 + $0x7c] sm:$0xf]
      %v244 = vunpack.c.l.bf16 %v212
      %v245 = vunpack.c.l.bf16 %v213
      %v246 = vunpack.c.l.bf16 %v214
      %v247 = vunpack.c.l.bf16 %v215
      %v248 = vunpack.c.l.bf16 %v216
      %v249 = vunpack.c.l.bf16 %v217
      %v250 = vunpack.c.l.bf16 %v218
      %v251 = vunpack.c.l.bf16 %v219
      %v252 = vunpack.c.l.bf16 %v220
      %v253 = vunpack.c.l.bf16 %v221
      %v254 = vunpack.c.l.bf16 %v222
      %v255 = vunpack.c.l.bf16 %v223
      %v256 = vunpack.c.l.bf16 %v224
      %v257 = vunpack.c.l.bf16 %v225
      %v258 = vunpack.c.l.bf16 %v226
      %v259 = vunpack.c.l.bf16 %v227
      %v260 = vunpack.c.l.bf16 %v228
      %v261 = vunpack.c.l.bf16 %v229
      %v262 = vunpack.c.l.bf16 %v230
      %v263 = vunpack.c.l.bf16 %v231
      %v264 = vunpack.c.l.bf16 %v232
      %v265 = vunpack.c.l.bf16 %v233
      %v266 = vunpack.c.l.bf16 %v234
      %v267 = vunpack.c.l.bf16 %v235
      %v268 = vunpack.c.l.bf16 %v236
      %v269 = vunpack.c.l.bf16 %v237
      %v270 = vunpack.c.l.bf16 %v238
      %v271 = vunpack.c.l.bf16 %v239
      %v272 = vunpack.c.l.bf16 %v240
      %v273 = vunpack.c.l.bf16 %v241
      %v274 = vunpack.c.l.bf16 %v242
      %v275 = vunpack.c.l.bf16 %v243
      %v276 = vmul.f32 %v244, 0.17677669
      %v277 = vmul.f32 %v245, 0.17677669
      %v278 = vmul.f32 %v246, 0.17677669
      %v279 = vmul.f32 %v247, 0.17677669
      %v280 = vmul.f32 %v248, 0.17677669
      %v281 = vmul.f32 %v249, 0.17677669
      %v282 = vmul.f32 %v250, 0.17677669
      %v283 = vmul.f32 %v251, 0.17677669
      %v284 = vmul.f32 %v252, 0.17677669
      %v285 = vmul.f32 %v253, 0.17677669
      %v286 = vmul.f32 %v254, 0.17677669
      %v287 = vmul.f32 %v255, 0.17677669
      %v288 = vmul.f32 %v256, 0.17677669
      %v289 = vmul.f32 %v257, 0.17677669
      %v290 = vmul.f32 %v258, 0.17677669
      %v291 = vmul.f32 %v259, 0.17677669
      %v292 = vmul.f32 %v260, 0.17677669
      %v293 = vmul.f32 %v261, 0.17677669
      %v294 = vmul.f32 %v262, 0.17677669
      %v295 = vmul.f32 %v263, 0.17677669
      %v296 = vmul.f32 %v264, 0.17677669
      %v297 = vmul.f32 %v265, 0.17677669
      %v298 = vmul.f32 %v266, 0.17677669
      %v299 = vmul.f32 %v267, 0.17677669
      %v300 = vmul.f32 %v268, 0.17677669
      %v301 = vmul.f32 %v269, 0.17677669
      %v302 = vmul.f32 %v270, 0.17677669
      %v303 = vmul.f32 %v271, 0.17677669
      %v304 = vmul.f32 %v272, 0.17677669
      %v305 = vmul.f32 %v273, 0.17677669
      %v306 = vmul.f32 %v274, 0.17677669
      %v307 = vmul.f32 %v275, 0.17677669
      %v308 = vpack.c.bf16 %v276, %v276
      %v309 = vpack.c.bf16 %v277, %v277
      %v310 = vpack.c.bf16 %v278, %v278
      %v311 = vpack.c.bf16 %v279, %v279
      %v312 = vpack.c.bf16 %v280, %v280
      %v313 = vpack.c.bf16 %v281, %v281
      %v314 = vpack.c.bf16 %v282, %v282
      %v315 = vpack.c.bf16 %v283, %v283
      %v316 = vpack.c.bf16 %v284, %v284
      %v317 = vpack.c.bf16 %v285, %v285
      %v318 = vpack.c.bf16 %v286, %v286
      %v319 = vpack.c.bf16 %v287, %v287
      %v320 = vpack.c.bf16 %v288, %v288
      %v321 = vpack.c.bf16 %v289, %v289
      %v322 = vpack.c.bf16 %v290, %v290
      %v323 = vpack.c.bf16 %v291, %v291
      %v324 = vpack.c.bf16 %v292, %v292
      %v325 = vpack.c.bf16 %v293, %v293
      %v326 = vpack.c.bf16 %v294, %v294
      %v327 = vpack.c.bf16 %v295, %v295
      %v328 = vpack.c.bf16 %v296, %v296
      %v329 = vpack.c.bf16 %v297, %v297
      %v330 = vpack.c.bf16 %v298, %v298
      %v331 = vpack.c.bf16 %v299, %v299
      %v332 = vpack.c.bf16 %v300, %v300
      %v333 = vpack.c.bf16 %v301, %v301
      %v334 = vpack.c.bf16 %v302, %v302
      %v335 = vpack.c.bf16 %v303, %v303
      %v336 = vpack.c.bf16 %v304, %v304
      %v337 = vpack.c.bf16 %v305, %v305
      %v338 = vpack.c.bf16 %v306, %v306
      %v339 = vpack.c.bf16 %v307, %v307
      %v340 = vld [vmem:[%s200] sm:$0xf]
      %v341 = vld [vmem:[%s200 + $0x4] sm:$0xf]
      %v342 = vld [vmem:[%s200 + $0x8] sm:$0xf]
      %v343 = vld [vmem:[%s200 + $0xc] sm:$0xf]
      %v344 = vld [vmem:[%s205] sm:$0xf]
      %v345 = vld [vmem:[%s205 + $0x4] sm:$0xf]
      %v346 = vld [vmem:[%s205 + $0x8] sm:$0xf]
      %v347 = vld [vmem:[%s205 + $0xc] sm:$0xf]
      %v356 = vunpack.c.l.b16 %v308
      %v357 = vunpack.c.l.b16 %v309
      %v358 = vunpack.c.l.b16 %v310
      %v359 = vunpack.c.l.b16 %v311
      %v360 = vunpack.c.l.b16 %v312
      %v361 = vunpack.c.l.b16 %v313
      %v362 = vunpack.c.l.b16 %v314
      %v363 = vunpack.c.l.b16 %v315
      %v364 = vpack.c.b16 %v357, %v356
      %v365 = vpack.c.b16 %v359, %v358
      %v366 = vpack.c.b16 %v361, %v360
      %v367 = vpack.c.b16 %v363, %v362
      %vm368 = vcmask 261120
      %v370 = vsel %vm368, %v364, 0
      %v373 = vsel %vm368, %v365, 0
      %v376 = vsel %vm368, %v366, 0
      %v379 = vsel %vm368, %v367, 0
      %v382 = vsel %vm368, %v340, 0
      %384 = vmatpush.bf16.xpose.msra.mxu0 0
      %385 = vmatpush.bf16.xpose.msra.mxu0 0
      %386 = vmatpush.bf16.xpose.msra.mxu0 0
      %387 = vmatpush.bf16.xpose.msra.mxu0 0
      %388 = vmatpush.bf16.xpose.msra.mxu0 0
      %389 = vmatpush.bf16.xpose.msra.mxu0 0
      %390 = vmatpush.bf16.xpose.msra.mxu0 0
      %391 = vmatpush.bf16.xpose.msra.mxu0 %v382
      %392 = vmatmul.bf16.gmra.mxu0 %v370
      %v393 = vpop.f32.mrf.mxu0
      %v394 = vadd.f32 0.0, %v393
      %v395 = vpop.f32.mrf.mxu0
      %v396 = vadd.f32 0.0, %v395
      %397 = vmatmul.bf16.gmra.mxu0 %v373
      %v398 = vpop.f32.mrf.mxu0
      %v399 = vadd.f32 0.0, %v398
      %v400 = vpop.f32.mrf.mxu0
      %v401 = vadd.f32 0.0, %v400
      %402 = vmatmul.bf16.gmra.mxu0 %v376
      %v403 = vpop.f32.mrf.mxu0
      %v404 = vadd.f32 0.0, %v403
      %v405 = vpop.f32.mrf.mxu0
      %v406 = vadd.f32 0.0, %v405
      %407 = vmatmul.bf16.gmra.mxu0 %v379
      %v408 = vpop.f32.mrf.mxu0
      %v409 = vadd.f32 0.0, %v408
      %v410 = vpop.f32.mrf.mxu0
      %v411 = vadd.f32 0.0, %v410
      %412 = vdwg.mxu0
      %v421 = vunpack.c.l.b16 %v316
      %v422 = vunpack.c.l.b16 %v317
      %v423 = vunpack.c.l.b16 %v318
      %v424 = vunpack.c.l.b16 %v319
      %v425 = vunpack.c.l.b16 %v320
      %v426 = vunpack.c.l.b16 %v321
      %v427 = vunpack.c.l.b16 %v322
      %v428 = vunpack.c.l.b16 %v323
      %v429 = vpack.c.b16 %v422, %v421
      %v430 = vpack.c.b16 %v424, %v423
      %v431 = vpack.c.b16 %v426, %v425
      %v432 = vpack.c.b16 %v428, %v427
      %v434 = vsel %vm368, %v429, 0
      %v437 = vsel %vm368, %v430, 0
      %v440 = vsel %vm368, %v431, 0
      %v443 = vsel %vm368, %v432, 0
      %v446 = vsel %vm368, %v341, 0
      %448 = vmatpush.bf16.xpose.msra.mxu0 0
      %449 = vmatpush.bf16.xpose.msra.mxu0 0
      %450 = vmatpush.bf16.xpose.msra.mxu0 0
      %451 = vmatpush.bf16.xpose.msra.mxu0 0
      %452 = vmatpush.bf16.xpose.msra.mxu0 0
      %453 = vmatpush.bf16.xpose.msra.mxu0 0
      %454 = vmatpush.bf16.xpose.msra.mxu0 0
      %455 = vmatpush.bf16.xpose.msra.mxu0 %v446
      %456 = vmatmul.bf16.gmra.mxu0 %v434
      %v457 = vpop.f32.mrf.mxu0
      %v458 = vadd.f32 0.0, %v457
      %v459 = vpop.f32.mrf.mxu0
      %v460 = vadd.f32 0.0, %v459
      %461 = vmatmul.bf16.gmra.mxu0 %v437
      %v462 = vpop.f32.mrf.mxu0
      %v463 = vadd.f32 0.0, %v462
      %v464 = vpop.f32.mrf.mxu0
      %v465 = vadd.f32 0.0, %v464
      %466 = vmatmul.bf16.gmra.mxu0 %v440
      %v467 = vpop.f32.mrf.mxu0
      %v468 = vadd.f32 0.0, %v467
      %v469 = vpop.f32.mrf.mxu0
      %v470 = vadd.f32 0.0, %v469
      %471 = vmatmul.bf16.gmra.mxu0 %v443
      %v472 = vpop.f32.mrf.mxu0
      %v473 = vadd.f32 0.0, %v472
      %v474 = vpop.f32.mrf.mxu0
      %v475 = vadd.f32 0.0, %v474
      %476 = vdwg.mxu0
      %v485 = vunpack.c.l.b16 %v324
      %v486 = vunpack.c.l.b16 %v325
      %v487 = vunpack.c.l.b16 %v326
      %v488 = vunpack.c.l.b16 %v327
      %v489 = vunpack.c.l.b16 %v328
      %v490 = vunpack.c.l.b16 %v329
      %v491 = vunpack.c.l.b16 %v330
      %v492 = vunpack.c.l.b16 %v331
      %v493 = vpack.c.b16 %v486, %v485
      %v494 = vpack.c.b16 %v488, %v487
      %v495 = vpack.c.b16 %v490, %v489
      %v496 = vpack.c.b16 %v492, %v491
      %v498 = vsel %vm368, %v493, 0
      %v501 = vsel %vm368, %v494, 0
      %v504 = vsel %vm368, %v495, 0
      %v507 = vsel %vm368, %v496, 0
      %v510 = vsel %vm368, %v342, 0
      %512 = vmatpush.bf16.xpose.msra.mxu0 0
      %513 = vmatpush.bf16.xpose.msra.mxu0 0
      %514 = vmatpush.bf16.xpose.msra.mxu0 0
      %515 = vmatpush.bf16.xpose.msra.mxu0 0
      %516 = vmatpush.bf16.xpose.msra.mxu0 0
      %517 = vmatpush.bf16.xpose.msra.mxu0 0
      %518 = vmatpush.bf16.xpose.msra.mxu0 0
      %519 = vmatpush.bf16.xpose.msra.mxu0 %v510
      %520 = vmatmul.bf16.gmra.mxu0 %v498
      %v521 = vpop.f32.mrf.mxu0
      %v522 = vadd.f32 0.0, %v521
      %v523 = vpop.f32.mrf.mxu0
      %v524 = vadd.f32 0.0, %v523
      %525 = vmatmul.bf16.gmra.mxu0 %v501
      %v526 = vpop.f32.mrf.mxu0
      %v527 = vadd.f32 0.0, %v526
      %v528 = vpop.f32.mrf.mxu0
      %v529 = vadd.f32 0.0, %v528
      %530 = vmatmul.bf16.gmra.mxu0 %v504
      %v531 = vpop.f32.mrf.mxu0
      %v532 = vadd.f32 0.0, %v531
      %v533 = vpop.f32.mrf.mxu0
      %v534 = vadd.f32 0.0, %v533
      %535 = vmatmul.bf16.gmra.mxu0 %v507
      %v536 = vpop.f32.mrf.mxu0
      %v537 = vadd.f32 0.0, %v536
      %v538 = vpop.f32.mrf.mxu0
      %v539 = vadd.f32 0.0, %v538
      %540 = vdwg.mxu0
      %v549 = vunpack.c.l.b16 %v332
      %v550 = vunpack.c.l.b16 %v333
      %v551 = vunpack.c.l.b16 %v334
      %v552 = vunpack.c.l.b16 %v335
      %v553 = vunpack.c.l.b16 %v336
      %v554 = vunpack.c.l.b16 %v337
      %v555 = vunpack.c.l.b16 %v338
      %v556 = vunpack.c.l.b16 %v339
      %v557 = vpack.c.b16 %v550, %v549
      %v558 = vpack.c.b16 %v552, %v551
      %v559 = vpack.c.b16 %v554, %v553
      %v560 = vpack.c.b16 %v556, %v555
      %v562 = vsel %vm368, %v557, 0
      %v565 = vsel %vm368, %v558, 0
      %v568 = vsel %vm368, %v559, 0
      %v571 = vsel %vm368, %v560, 0
      %v574 = vsel %vm368, %v343, 0
      %576 = vmatpush.bf16.xpose.msra.mxu0 0
      %577 = vmatpush.bf16.xpose.msra.mxu0 0
      %578 = vmatpush.bf16.xpose.msra.mxu0 0
      %579 = vmatpush.bf16.xpose.msra.mxu0 0
      %580 = vmatpush.bf16.xpose.msra.mxu0 0
      %581 = vmatpush.bf16.xpose.msra.mxu0 0
      %582 = vmatpush.bf16.xpose.msra.mxu0 0
      %583 = vmatpush.bf16.xpose.msra.mxu0 %v574
      %584 = vmatmul.bf16.gmra.mxu0 %v562
      %v585 = vpop.f32.mrf.mxu0
      %v586 = vadd.f32 0.0, %v585
      %v587 = vpop.f32.mrf.mxu0
      %v588 = vadd.f32 0.0, %v587
      %589 = vmatmul.bf16.gmra.mxu0 %v565
      %v590 = vpop.f32.mrf.mxu0
      %v591 = vadd.f32 0.0, %v590
      %v592 = vpop.f32.mrf.mxu0
      %v593 = vadd.f32 0.0, %v592
      %594 = vmatmul.bf16.gmra.mxu0 %v568
      %v595 = vpop.f32.mrf.mxu0
      %v596 = vadd.f32 0.0, %v595
      %v597 = vpop.f32.mrf.mxu0
      %v598 = vadd.f32 0.0, %v597
      %599 = vmatmul.bf16.gmra.mxu0 %v571
      %v600 = vpop.f32.mrf.mxu0
      %v601 = vadd.f32 0.0, %v600
      %v602 = vpop.f32.mrf.mxu0
      %v603 = vadd.f32 0.0, %v602
      %604 = vdwg.mxu0
      %vm605 = vcmask 64512
      %v606 = vsel %vm605, %v394, -inf
      %607 = vmax.xlane.f32.xlu0 %v606
      %v608 = vpop.xlane.xlu0 %607
      %v609 = vsel %vm605, %v396, -inf
      %610 = vmax.xlane.f32.xlu0 %v609
      %v611 = vpop.xlane.xlu0 %610
      %v612 = vsel %vm605, %v399, -inf
      %613 = vmax.xlane.f32.xlu0 %v612
      %v614 = vpop.xlane.xlu0 %613
      %v615 = vsel %vm605, %v401, -inf
      %616 = vmax.xlane.f32.xlu0 %v615
      %v617 = vpop.xlane.xlu0 %616
      %v618 = vsel %vm605, %v404, -inf
      %619 = vmax.xlane.f32.xlu0 %v618
      %v620 = vpop.xlane.xlu0 %619
      %v621 = vsel %vm605, %v406, -inf
      %622 = vmax.xlane.f32.xlu0 %v621
      %v623 = vpop.xlane.xlu0 %622
      %v624 = vsel %vm605, %v409, -inf
      %625 = vmax.xlane.f32.xlu0 %v624
      %v626 = vpop.xlane.xlu0 %625
      %v627 = vsel %vm605, %v411, -inf
      %628 = vmax.xlane.f32.xlu0 %v627
      %v629 = vpop.xlane.xlu0 %628
      %v630 = vsel %vm605, %v458, -inf
      %631 = vmax.xlane.f32.xlu0 %v630
      %v632 = vpop.xlane.xlu0 %631
      %v633 = vsel %vm605, %v460, -inf
      %634 = vmax.xlane.f32.xlu0 %v633
      %v635 = vpop.xlane.xlu0 %634
      %v636 = vsel %vm605, %v463, -inf
      %637 = vmax.xlane.f32.xlu0 %v636
      %v638 = vpop.xlane.xlu0 %637
      %v639 = vsel %vm605, %v465, -inf
      %640 = vmax.xlane.f32.xlu0 %v639
      %v641 = vpop.xlane.xlu0 %640
      %v642 = vsel %vm605, %v468, -inf
      %643 = vmax.xlane.f32.xlu0 %v642
      %v644 = vpop.xlane.xlu0 %643
      %v645 = vsel %vm605, %v470, -inf
      %646 = vmax.xlane.f32.xlu0 %v645
      %v647 = vpop.xlane.xlu0 %646
      %v648 = vsel %vm605, %v473, -inf
      %649 = vmax.xlane.f32.xlu0 %v648
      %v650 = vpop.xlane.xlu0 %649
      %v651 = vsel %vm605, %v475, -inf
      %652 = vmax.xlane.f32.xlu0 %v651
      %v653 = vpop.xlane.xlu0 %652
      %v654 = vsel %vm605, %v522, -inf
      %655 = vmax.xlane.f32.xlu0 %v654
      %v656 = vpop.xlane.xlu0 %655
      %v657 = vsel %vm605, %v524, -inf
      %658 = vmax.xlane.f32.xlu0 %v657
      %v659 = vpop.xlane.xlu0 %658
      %v660 = vsel %vm605, %v527, -inf
      %661 = vmax.xlane.f32.xlu0 %v660
      %v662 = vpop.xlane.xlu0 %661
      %v663 = vsel %vm605, %v529, -inf
      %664 = vmax.xlane.f32.xlu0 %v663
      %v665 = vpop.xlane.xlu0 %664
      %v666 = vsel %vm605, %v532, -inf
      %667 = vmax.xlane.f32.xlu0 %v666
      %v668 = vpop.xlane.xlu0 %667
      %v669 = vsel %vm605, %v534, -inf
      %670 = vmax.xlane.f32.xlu0 %v669
      %v671 = vpop.xlane.xlu0 %670
      %v672 = vsel %vm605, %v537, -inf
      %673 = vmax.xlane.f32.xlu0 %v672
      %v674 = vpop.xlane.xlu0 %673
      %v675 = vsel %vm605, %v539, -inf
      %676 = vmax.xlane.f32.xlu0 %v675
      %v677 = vpop.xlane.xlu0 %676
      %v678 = vsel %vm605, %v586, -inf
      %679 = vmax.xlane.f32.xlu0 %v678
      %v680 = vpop.xlane.xlu0 %679
      %v681 = vsel %vm605, %v588, -inf
      %682 = vmax.xlane.f32.xlu0 %v681
      %v683 = vpop.xlane.xlu0 %682
      %v684 = vsel %vm605, %v591, -inf
      %685 = vmax.xlane.f32.xlu0 %v684
      %v686 = vpop.xlane.xlu0 %685
      %v687 = vsel %vm605, %v593, -inf
      %688 = vmax.xlane.f32.xlu0 %v687
      %v689 = vpop.xlane.xlu0 %688
      %v690 = vsel %vm605, %v596, -inf
      %691 = vmax.xlane.f32.xlu0 %v690
      %v692 = vpop.xlane.xlu0 %691
      %v693 = vsel %vm605, %v598, -inf
      %694 = vmax.xlane.f32.xlu0 %v693
      %v695 = vpop.xlane.xlu0 %694
      %v696 = vsel %vm605, %v601, -inf
      %697 = vmax.xlane.f32.xlu0 %v696
      %v698 = vpop.xlane.xlu0 %697
      %v699 = vsel %vm605, %v603, -inf
      %700 = vmax.xlane.f32.xlu0 %v699
      %v701 = vpop.xlane.xlu0 %700
      %v702 = vsub.f32 %v394, %v608
      %v703 = vsub.f32 %v396, %v611
      %v704 = vsub.f32 %v399, %v614
      %v705 = vsub.f32 %v401, %v617
      %v706 = vsub.f32 %v404, %v620
      %v707 = vsub.f32 %v406, %v623
      %v708 = vsub.f32 %v409, %v626
      %v709 = vsub.f32 %v411, %v629
      %v710 = vsub.f32 %v458, %v632
      %v711 = vsub.f32 %v460, %v635
      %v712 = vsub.f32 %v463, %v638
      %v713 = vsub.f32 %v465, %v641
      %v714 = vsub.f32 %v468, %v644
      %v715 = vsub.f32 %v470, %v647
      %v716 = vsub.f32 %v473, %v650
      %v717 = vsub.f32 %v475, %v653
      %v718 = vsub.f32 %v522, %v656
      %v719 = vsub.f32 %v524, %v659
      %v720 = vsub.f32 %v527, %v662
      %v721 = vsub.f32 %v529, %v665
      %v722 = vsub.f32 %v532, %v668
      %v723 = vsub.f32 %v534, %v671
      %v724 = vsub.f32 %v537, %v674
      %v725 = vsub.f32 %v539, %v677
      %v726 = vsub.f32 %v586, %v680
      %v727 = vsub.f32 %v588, %v683
      %v728 = vsub.f32 %v591, %v686
      %v729 = vsub.f32 %v593, %v689
      %v730 = vsub.f32 %v596, %v692
      %v731 = vsub.f32 %v598, %v695
      %v732 = vsub.f32 %v601, %v698
      %v733 = vsub.f32 %v603, %v701
      %v734 = vmul.f32 %v702, 1.442695
      %v735 = vpow.pop %v734
      %v736 = vmul.f32 %v703, 1.442695
      %v737 = vpow.pop %v736
      %v738 = vmul.f32 %v704, 1.442695
      %v739 = vpow.pop %v738
      %v740 = vmul.f32 %v705, 1.442695
      %v741 = vpow.pop %v740
      %v742 = vmul.f32 %v706, 1.442695
      %v743 = vpow.pop %v742
      %v744 = vmul.f32 %v707, 1.442695
      %v745 = vpow.pop %v744
      %v746 = vmul.f32 %v708, 1.442695
      %v747 = vpow.pop %v746
      %v748 = vmul.f32 %v709, 1.442695
      %v749 = vpow.pop %v748
      %v750 = vmul.f32 %v710, 1.442695
      %v751 = vpow.pop %v750
      %v752 = vmul.f32 %v711, 1.442695
      %v753 = vpow.pop %v752
      %v754 = vmul.f32 %v712, 1.442695
      %v755 = vpow.pop %v754
      %v756 = vmul.f32 %v713, 1.442695
      %v757 = vpow.pop %v756
      %v758 = vmul.f32 %v714, 1.442695
      %v759 = vpow.pop %v758
      %v760 = vmul.f32 %v715, 1.442695
      %v761 = vpow.pop %v760
      %v762 = vmul.f32 %v716, 1.442695
      %v763 = vpow.pop %v762
      %v764 = vmul.f32 %v717, 1.442695
      %v765 = vpow.pop %v764
      %v766 = vmul.f32 %v718, 1.442695
      %v767 = vpow.pop %v766
      %v768 = vmul.f32 %v719, 1.442695
      %v769 = vpow.pop %v768
      %v770 = vmul.f32 %v720, 1.442695
      %v771 = vpow.pop %v770
      %v772 = vmul.f32 %v721, 1.442695
      %v773 = vpow.pop %v772
      %v774 = vmul.f32 %v722, 1.442695
      %v775 = vpow.pop %v774
      %v776 = vmul.f32 %v723, 1.442695
      %v777 = vpow.pop %v776
      %v778 = vmul.f32 %v724, 1.442695
      %v779 = vpow.pop %v778
      %v780 = vmul.f32 %v725, 1.442695
      %v781 = vpow.pop %v780
      %v782 = vmul.f32 %v726, 1.442695
      %v783 = vpow.pop %v782
      %v784 = vmul.f32 %v727, 1.442695
      %v785 = vpow.pop %v784
      %v786 = vmul.f32 %v728, 1.442695
      %v787 = vpow.pop %v786
      %v788 = vmul.f32 %v729, 1.442695
      %v789 = vpow.pop %v788
      %v790 = vmul.f32 %v730, 1.442695
      %v791 = vpow.pop %v790
      %v792 = vmul.f32 %v731, 1.442695
      %v793 = vpow.pop %v792
      %v794 = vmul.f32 %v732, 1.442695
      %v795 = vpow.pop %v794
      %v796 = vmul.f32 %v733, 1.442695
      %v797 = vpow.pop %v796
      %v798 = vsel %vm605, %v735, 0.0
      %799 = vadd.xlane.f32.xlu0 %v798
      %v800 = vpop.xlane.xlu0 %799
      %v801 = vsel %vm605, %v737, 0.0
      %802 = vadd.xlane.f32.xlu0 %v801
      %v803 = vpop.xlane.xlu0 %802
      %v804 = vsel %vm605, %v739, 0.0
      %805 = vadd.xlane.f32.xlu0 %v804
      %v806 = vpop.xlane.xlu0 %805
      %v807 = vsel %vm605, %v741, 0.0
      %808 = vadd.xlane.f32.xlu0 %v807
      %v809 = vpop.xlane.xlu0 %808
      %v810 = vsel %vm605, %v743, 0.0
      %811 = vadd.xlane.f32.xlu0 %v810
      %v812 = vpop.xlane.xlu0 %811
      %v813 = vsel %vm605, %v745, 0.0
      %814 = vadd.xlane.f32.xlu0 %v813
      %v815 = vpop.xlane.xlu0 %814
      %v816 = vsel %vm605, %v747, 0.0
      %817 = vadd.xlane.f32.xlu0 %v816
      %v818 = vpop.xlane.xlu0 %817
      %v819 = vsel %vm605, %v749, 0.0
      %820 = vadd.xlane.f32.xlu0 %v819
      %v821 = vpop.xlane.xlu0 %820
      %v822 = vsel %vm605, %v751, 0.0
      %823 = vadd.xlane.f32.xlu0 %v822
      %v824 = vpop.xlane.xlu0 %823
      %v825 = vsel %vm605, %v753, 0.0
      %826 = vadd.xlane.f32.xlu0 %v825
      %v827 = vpop.xlane.xlu0 %826
      %v828 = vsel %vm605, %v755, 0.0
      %829 = vadd.xlane.f32.xlu0 %v828
      %v830 = vpop.xlane.xlu0 %829
      %v831 = vsel %vm605, %v757, 0.0
      %832 = vadd.xlane.f32.xlu0 %v831
      %v833 = vpop.xlane.xlu0 %832
      %v834 = vsel %vm605, %v759, 0.0
      %835 = vadd.xlane.f32.xlu0 %v834
      %v836 = vpop.xlane.xlu0 %835
      %v837 = vsel %vm605, %v761, 0.0
      %838 = vadd.xlane.f32.xlu0 %v837
      %v839 = vpop.xlane.xlu0 %838
      %v840 = vsel %vm605, %v763, 0.0
      %841 = vadd.xlane.f32.xlu0 %v840
      %v842 = vpop.xlane.xlu0 %841
      %v843 = vsel %vm605, %v765, 0.0
      %844 = vadd.xlane.f32.xlu0 %v843
      %v845 = vpop.xlane.xlu0 %844
      %v846 = vsel %vm605, %v767, 0.0
      %847 = vadd.xlane.f32.xlu0 %v846
      %v848 = vpop.xlane.xlu0 %847
      %v849 = vsel %vm605, %v769, 0.0
      %850 = vadd.xlane.f32.xlu0 %v849
      %v851 = vpop.xlane.xlu0 %850
      %v852 = vsel %vm605, %v771, 0.0
      %853 = vadd.xlane.f32.xlu0 %v852
      %v854 = vpop.xlane.xlu0 %853
      %v855 = vsel %vm605, %v773, 0.0
      %856 = vadd.xlane.f32.xlu0 %v855
      %v857 = vpop.xlane.xlu0 %856
      %v858 = vsel %vm605, %v775, 0.0
      %859 = vadd.xlane.f32.xlu0 %v858
      %v860 = vpop.xlane.xlu0 %859
      %v861 = vsel %vm605, %v777, 0.0
      %862 = vadd.xlane.f32.xlu0 %v861
      %v863 = vpop.xlane.xlu0 %862
      %v864 = vsel %vm605, %v779, 0.0
      %865 = vadd.xlane.f32.xlu0 %v864
      %v866 = vpop.xlane.xlu0 %865
      %v867 = vsel %vm605, %v781, 0.0
      %868 = vadd.xlane.f32.xlu0 %v867
      %v869 = vpop.xlane.xlu0 %868
      %v870 = vsel %vm605, %v783, 0.0
      %871 = vadd.xlane.f32.xlu0 %v870
      %v872 = vpop.xlane.xlu0 %871
      %v873 = vsel %vm605, %v785, 0.0
      %874 = vadd.xlane.f32.xlu0 %v873
      %v875 = vpop.xlane.xlu0 %874
      %v876 = vsel %vm605, %v787, 0.0
      %877 = vadd.xlane.f32.xlu0 %v876
      %v878 = vpop.xlane.xlu0 %877
      %v879 = vsel %vm605, %v789, 0.0
      %880 = vadd.xlane.f32.xlu0 %v879
      %v881 = vpop.xlane.xlu0 %880
      %v882 = vsel %vm605, %v791, 0.0
      %883 = vadd.xlane.f32.xlu0 %v882
      %v884 = vpop.xlane.xlu0 %883
      %v885 = vsel %vm605, %v793, 0.0
      %886 = vadd.xlane.f32.xlu0 %v885
      %v887 = vpop.xlane.xlu0 %886
      %v888 = vsel %vm605, %v795, 0.0
      %889 = vadd.xlane.f32.xlu0 %v888
      %v890 = vpop.xlane.xlu0 %889
      %v891 = vsel %vm605, %v797, 0.0
      %892 = vadd.xlane.f32.xlu0 %v891
      %v893 = vpop.xlane.xlu0 %892
      %v894 = vrcp.pop %v800
      %v895 = vrcp.pop %v803
      %v896 = vrcp.pop %v806
      %v897 = vrcp.pop %v809
      %v898 = vrcp.pop %v812
      %v899 = vrcp.pop %v815
      %v900 = vrcp.pop %v818
      %v901 = vrcp.pop %v821
      %v902 = vrcp.pop %v824
      %v903 = vrcp.pop %v827
      %v904 = vrcp.pop %v830
      %v905 = vrcp.pop %v833
      %v906 = vrcp.pop %v836
      %v907 = vrcp.pop %v839
      %v908 = vrcp.pop %v842
      %v909 = vrcp.pop %v845
      %v910 = vrcp.pop %v848
      %v911 = vrcp.pop %v851
      %v912 = vrcp.pop %v854
      %v913 = vrcp.pop %v857
      %v914 = vrcp.pop %v860
      %v915 = vrcp.pop %v863
      %v916 = vrcp.pop %v866
      %v917 = vrcp.pop %v869
      %v918 = vrcp.pop %v872
      %v919 = vrcp.pop %v875
      %v920 = vrcp.pop %v878
      %v921 = vrcp.pop %v881
      %v922 = vrcp.pop %v884
      %v923 = vrcp.pop %v887
      %v924 = vrcp.pop %v890
      %v925 = vrcp.pop %v893
      %v926 = vmul.f32 %v735, %v894
      %v927 = vmul.f32 %v737, %v895
      %v928 = vmul.f32 %v739, %v896
      %v929 = vmul.f32 %v741, %v897
      %v930 = vmul.f32 %v743, %v898
      %v931 = vmul.f32 %v745, %v899
      %v932 = vmul.f32 %v747, %v900
      %v933 = vmul.f32 %v749, %v901
      %v934 = vmul.f32 %v751, %v902
      %v935 = vmul.f32 %v753, %v903
      %v936 = vmul.f32 %v755, %v904
      %v937 = vmul.f32 %v757, %v905
      %v938 = vmul.f32 %v759, %v906
      %v939 = vmul.f32 %v761, %v907
      %v940 = vmul.f32 %v763, %v908
      %v941 = vmul.f32 %v765, %v909
      %v942 = vmul.f32 %v767, %v910
      %v943 = vmul.f32 %v769, %v911
      %v944 = vmul.f32 %v771, %v912
      %v945 = vmul.f32 %v773, %v913
      %v946 = vmul.f32 %v775, %v914
      %v947 = vmul.f32 %v777, %v915
      %v948 = vmul.f32 %v779, %v916
      %v949 = vmul.f32 %v781, %v917
      %v950 = vmul.f32 %v783, %v918
      %v951 = vmul.f32 %v785, %v919
      %v952 = vmul.f32 %v787, %v920
      %v953 = vmul.f32 %v789, %v921
      %v954 = vmul.f32 %v791, %v922
      %v955 = vmul.f32 %v793, %v923
      %v956 = vmul.f32 %v795, %v924
      %v957 = vmul.f32 %v797, %v925
      %v958 = vpack.c.bf16 %v926, %v926
      %v959 = vpack.c.bf16 %v927, %v927
      %v960 = vpack.c.bf16 %v928, %v928
      %v961 = vpack.c.bf16 %v929, %v929
      %v962 = vpack.c.bf16 %v930, %v930
      %v963 = vpack.c.bf16 %v931, %v931
      %v964 = vpack.c.bf16 %v932, %v932
      %v965 = vpack.c.bf16 %v933, %v933
      %v966 = vpack.c.bf16 %v934, %v934
      %v967 = vpack.c.bf16 %v935, %v935
      %v968 = vpack.c.bf16 %v936, %v936
      %v969 = vpack.c.bf16 %v937, %v937
      %v970 = vpack.c.bf16 %v938, %v938
      %v971 = vpack.c.bf16 %v939, %v939
      %v972 = vpack.c.bf16 %v940, %v940
      %v973 = vpack.c.bf16 %v941, %v941
      %v974 = vpack.c.bf16 %v942, %v942
      %v975 = vpack.c.bf16 %v943, %v943
      %v976 = vpack.c.bf16 %v944, %v944
      %v977 = vpack.c.bf16 %v945, %v945
      %v978 = vpack.c.bf16 %v946, %v946
      %v979 = vpack.c.bf16 %v947, %v947
      %v980 = vpack.c.bf16 %v948, %v948
      %v981 = vpack.c.bf16 %v949, %v949
      %v982 = vpack.c.bf16 %v950, %v950
      %v983 = vpack.c.bf16 %v951, %v951
      %v984 = vpack.c.bf16 %v952, %v952
      %v985 = vpack.c.bf16 %v953, %v953
      %v986 = vpack.c.bf16 %v954, %v954
      %v987 = vpack.c.bf16 %v955, %v955
      %v988 = vpack.c.bf16 %v956, %v956
      %v989 = vpack.c.bf16 %v957, %v957
      %v998 = vunpack.c.l.b16 %v958
      %v999 = vunpack.c.l.b16 %v959
      %v1000 = vunpack.c.l.b16 %v960
      %v1001 = vunpack.c.l.b16 %v961
      %v1002 = vunpack.c.l.b16 %v962
      %v1003 = vunpack.c.l.b16 %v963
      %v1004 = vunpack.c.l.b16 %v964
      %v1005 = vunpack.c.l.b16 %v965
      %v1006 = vpack.c.b16 %v999, %v998
      %v1007 = vpack.c.b16 %v1001, %v1000
      %v1008 = vpack.c.b16 %v1003, %v1002
      %v1009 = vpack.c.b16 %v1005, %v1004
      %v1011 = vsel %vm605, %v1006, 0
      %v1014 = vsel %vm605, %v1007, 0
      %v1017 = vsel %vm605, %v1008, 0
      %v1020 = vsel %vm605, %v1009, 0
      %vm1022 = vcmask 1043456
      %v1024 = vsel %vm1022, %v344, 0
      %1026 = vmatpush.bf16.msra.mxu0 0
      %1027 = vmatpush.bf16.msra.mxu0 0
      %1028 = vmatpush.bf16.msra.mxu0 0
      %1029 = vmatpush.bf16.msra.mxu0 0
      %1030 = vmatpush.bf16.msra.mxu0 0
      %1031 = vmatpush.bf16.msra.mxu0 0
      %1032 = vmatpush.bf16.msra.mxu0 0
      %1033 = vmatpush.bf16.msra.mxu0 %v1024
      %1034 = vmatmul.bf16.gmra.mxu0 %v1011
      %v1035 = vpop.f32.mrf.mxu0
      %v1036 = vadd.f32 0.0, %v1035
      %v1037 = vpop.f32.mrf.mxu0
      %v1038 = vadd.f32 0.0, %v1037
      %1039 = vmatmul.bf16.gmra.mxu0 %v1014
      %v1040 = vpop.f32.mrf.mxu0
      %v1041 = vadd.f32 0.0, %v1040
      %v1042 = vpop.f32.mrf.mxu0
      %v1043 = vadd.f32 0.0, %v1042
      %1044 = vmatmul.bf16.gmra.mxu0 %v1017
      %v1045 = vpop.f32.mrf.mxu0
      %v1046 = vadd.f32 0.0, %v1045
      %v1047 = vpop.f32.mrf.mxu0
      %v1048 = vadd.f32 0.0, %v1047
      %1049 = vmatmul.bf16.gmra.mxu0 %v1020
      %v1050 = vpop.f32.mrf.mxu0
      %v1051 = vadd.f32 0.0, %v1050
      %v1052 = vpop.f32.mrf.mxu0
      %v1053 = vadd.f32 0.0, %v1052
      %1054 = vdwg.mxu0
      %v1063 = vunpack.c.l.b16 %v966
      %v1064 = vunpack.c.l.b16 %v967
      %v1065 = vunpack.c.l.b16 %v968
      %v1066 = vunpack.c.l.b16 %v969
      %v1067 = vunpack.c.l.b16 %v970
      %v1068 = vunpack.c.l.b16 %v971
      %v1069 = vunpack.c.l.b16 %v972
      %v1070 = vunpack.c.l.b16 %v973
      %v1071 = vpack.c.b16 %v1064, %v1063
      %v1072 = vpack.c.b16 %v1066, %v1065
      %v1073 = vpack.c.b16 %v1068, %v1067
      %v1074 = vpack.c.b16 %v1070, %v1069
      %v1076 = vsel %vm605, %v1071, 0
      %v1079 = vsel %vm605, %v1072, 0
      %v1082 = vsel %vm605, %v1073, 0
      %v1085 = vsel %vm605, %v1074, 0
      %v1088 = vsel %vm1022, %v345, 0
      %1090 = vmatpush.bf16.msra.mxu0 0
      %1091 = vmatpush.bf16.msra.mxu0 0
      %1092 = vmatpush.bf16.msra.mxu0 0
      %1093 = vmatpush.bf16.msra.mxu0 0
      %1094 = vmatpush.bf16.msra.mxu0 0
      %1095 = vmatpush.bf16.msra.mxu0 0
      %1096 = vmatpush.bf16.msra.mxu0 0
      %1097 = vmatpush.bf16.msra.mxu0 %v1088
      %1098 = vmatmul.bf16.gmra.mxu0 %v1076
      %v1099 = vpop.f32.mrf.mxu0
      %v1100 = vadd.f32 0.0, %v1099
      %v1101 = vpop.f32.mrf.mxu0
      %v1102 = vadd.f32 0.0, %v1101
      %1103 = vmatmul.bf16.gmra.mxu0 %v1079
      %v1104 = vpop.f32.mrf.mxu0
      %v1105 = vadd.f32 0.0, %v1104
      %v1106 = vpop.f32.mrf.mxu0
      %v1107 = vadd.f32 0.0, %v1106
      %1108 = vmatmul.bf16.gmra.mxu0 %v1082
      %v1109 = vpop.f32.mrf.mxu0
      %v1110 = vadd.f32 0.0, %v1109
      %v1111 = vpop.f32.mrf.mxu0
      %v1112 = vadd.f32 0.0, %v1111
      %1113 = vmatmul.bf16.gmra.mxu0 %v1085
      %v1114 = vpop.f32.mrf.mxu0
      %v1115 = vadd.f32 0.0, %v1114
      %v1116 = vpop.f32.mrf.mxu0
      %v1117 = vadd.f32 0.0, %v1116
      %1118 = vdwg.mxu0
      %v1127 = vunpack.c.l.b16 %v974
      %v1128 = vunpack.c.l.b16 %v975
      %v1129 = vunpack.c.l.b16 %v976
      %v1130 = vunpack.c.l.b16 %v977
      %v1131 = vunpack.c.l.b16 %v978
      %v1132 = vunpack.c.l.b16 %v979
      %v1133 = vunpack.c.l.b16 %v980
      %v1134 = vunpack.c.l.b16 %v981
      %v1135 = vpack.c.b16 %v1128, %v1127
      %v1136 = vpack.c.b16 %v1130, %v1129
      %v1137 = vpack.c.b16 %v1132, %v1131
      %v1138 = vpack.c.b16 %v1134, %v1133
      %v1140 = vsel %vm605, %v1135, 0
      %v1143 = vsel %vm605, %v1136, 0
      %v1146 = vsel %vm605, %v1137, 0
      %v1149 = vsel %vm605, %v1138, 0
      %v1152 = vsel %vm1022, %v346, 0
      %1154 = vmatpush.bf16.msra.mxu0 0
      %1155 = vmatpush.bf16.msra.mxu0 0
      %1156 = vmatpush.bf16.msra.mxu0 0
      %1157 = vmatpush.bf16.msra.mxu0 0
      %1158 = vmatpush.bf16.msra.mxu0 0
      %1159 = vmatpush.bf16.msra.mxu0 0
      %1160 = vmatpush.bf16.msra.mxu0 0
      %1161 = vmatpush.bf16.msra.mxu0 %v1152
      %1162 = vmatmul.bf16.gmra.mxu0 %v1140
      %v1163 = vpop.f32.mrf.mxu0
      %v1164 = vadd.f32 0.0, %v1163
      %v1165 = vpop.f32.mrf.mxu0
      %v1166 = vadd.f32 0.0, %v1165
      %1167 = vmatmul.bf16.gmra.mxu0 %v1143
      %v1168 = vpop.f32.mrf.mxu0
      %v1169 = vadd.f32 0.0, %v1168
      %v1170 = vpop.f32.mrf.mxu0
      %v1171 = vadd.f32 0.0, %v1170
      %1172 = vmatmul.bf16.gmra.mxu0 %v1146
      %v1173 = vpop.f32.mrf.mxu0
      %v1174 = vadd.f32 0.0, %v1173
      %v1175 = vpop.f32.mrf.mxu0
      %v1176 = vadd.f32 0.0, %v1175
      %1177 = vmatmul.bf16.gmra.mxu0 %v1149
      %v1178 = vpop.f32.mrf.mxu0
      %v1179 = vadd.f32 0.0, %v1178
      %v1180 = vpop.f32.mrf.mxu0
      %v1181 = vadd.f32 0.0, %v1180
      %1182 = vdwg.mxu0
      %v1191 = vunpack.c.l.b16 %v982
      %v1192 = vunpack.c.l.b16 %v983
      %v1193 = vunpack.c.l.b16 %v984
      %v1194 = vunpack.c.l.b16 %v985
      %v1195 = vunpack.c.l.b16 %v986
      %v1196 = vunpack.c.l.b16 %v987
      %v1197 = vunpack.c.l.b16 %v988
      %v1198 = vunpack.c.l.b16 %v989
      %v1199 = vpack.c.b16 %v1192, %v1191
      %v1200 = vpack.c.b16 %v1194, %v1193
      %v1201 = vpack.c.b16 %v1196, %v1195
      %v1202 = vpack.c.b16 %v1198, %v1197
      %v1204 = vsel %vm605, %v1199, 0
      %v1207 = vsel %vm605, %v1200, 0
      %v1210 = vsel %vm605, %v1201, 0
      %v1213 = vsel %vm605, %v1202, 0
      %v1216 = vsel %vm1022, %v347, 0
      %1218 = vmatpush.bf16.msra.mxu0 0
      %1219 = vmatpush.bf16.msra.mxu0 0
      %1220 = vmatpush.bf16.msra.mxu0 0
      %1221 = vmatpush.bf16.msra.mxu0 0
      %1222 = vmatpush.bf16.msra.mxu0 0
      %1223 = vmatpush.bf16.msra.mxu0 0
      %1224 = vmatpush.bf16.msra.mxu0 0
      %1225 = vmatpush.bf16.msra.mxu0 %v1216
      %1226 = vmatmul.bf16.gmra.mxu0 %v1204
      %v1227 = vpop.f32.mrf.mxu0
      %v1228 = vadd.f32 0.0, %v1227
      %v1229 = vpop.f32.mrf.mxu0
      %v1230 = vadd.f32 0.0, %v1229
      %1231 = vmatmul.bf16.gmra.mxu0 %v1207
      %v1232 = vpop.f32.mrf.mxu0
      %v1233 = vadd.f32 0.0, %v1232
      %v1234 = vpop.f32.mrf.mxu0
      %v1235 = vadd.f32 0.0, %v1234
      %1236 = vmatmul.bf16.gmra.mxu0 %v1210
      %v1237 = vpop.f32.mrf.mxu0
      %v1238 = vadd.f32 0.0, %v1237
      %v1239 = vpop.f32.mrf.mxu0
      %v1240 = vadd.f32 0.0, %v1239
      %1241 = vmatmul.bf16.gmra.mxu0 %v1213
      %v1242 = vpop.f32.mrf.mxu0
      %v1243 = vadd.f32 0.0, %v1242
      %v1244 = vpop.f32.mrf.mxu0
      %v1245 = vadd.f32 0.0, %v1244
      %1246 = vdwg.mxu0
      %v1247 = vpack.c.bf16 %v1036, %v1036
      %v1248 = vpack.c.bf16 %v1038, %v1038
      %v1249 = vpack.c.bf16 %v1041, %v1041
      %v1250 = vpack.c.bf16 %v1043, %v1043
      %v1251 = vpack.c.bf16 %v1046, %v1046
      %v1252 = vpack.c.bf16 %v1048, %v1048
      %v1253 = vpack.c.bf16 %v1051, %v1051
      %v1254 = vpack.c.bf16 %v1053, %v1053
      %v1255 = vpack.c.bf16 %v1100, %v1100
      %v1256 = vpack.c.bf16 %v1102, %v1102
      %v1257 = vpack.c.bf16 %v1105, %v1105
      %v1258 = vpack.c.bf16 %v1107, %v1107
      %v1259 = vpack.c.bf16 %v1110, %v1110
      %v1260 = vpack.c.bf16 %v1112, %v1112
      %v1261 = vpack.c.bf16 %v1115, %v1115
      %v1262 = vpack.c.bf16 %v1117, %v1117
      %v1263 = vpack.c.bf16 %v1164, %v1164
      %v1264 = vpack.c.bf16 %v1166, %v1166
      %v1265 = vpack.c.bf16 %v1169, %v1169
      %v1266 = vpack.c.bf16 %v1171, %v1171
      %v1267 = vpack.c.bf16 %v1174, %v1174
      %v1268 = vpack.c.bf16 %v1176, %v1176
      %v1269 = vpack.c.bf16 %v1179, %v1179
      %v1270 = vpack.c.bf16 %v1181, %v1181
      %v1271 = vpack.c.bf16 %v1228, %v1228
      %v1272 = vpack.c.bf16 %v1230, %v1230
      %v1273 = vpack.c.bf16 %v1233, %v1233
      %v1274 = vpack.c.bf16 %v1235, %v1235
      %v1275 = vpack.c.bf16 %v1238, %v1238
      %v1276 = vpack.c.bf16 %v1240, %v1240
      %v1277 = vpack.c.bf16 %v1243, %v1243
      %v1278 = vpack.c.bf16 %v1245, %v1245
      %vm1279 = vcmask 257024
      %1280 = vst.msk [vmem:[%s210] sm:$0xf] %vm1279, %v1247
      %1281 = vst.msk [vmem:[%s210 + $0x4] sm:$0xf] %vm1279, %v1248
      %1282 = vst.msk [vmem:[%s210 + $0x8] sm:$0xf] %vm1279, %v1249
      %1283 = vst.msk [vmem:[%s210 + $0xc] sm:$0xf] %vm1279, %v1250
      %1284 = vst.msk [vmem:[%s210 + $0x10] sm:$0xf] %vm1279, %v1251
      %1285 = vst.msk [vmem:[%s210 + $0x14] sm:$0xf] %vm1279, %v1252
      %1286 = vst.msk [vmem:[%s210 + $0x18] sm:$0xf] %vm1279, %v1253
      %1287 = vst.msk [vmem:[%s210 + $0x1c] sm:$0xf] %vm1279, %v1254
      %1288 = vst.msk [vmem:[%s210 + $0x20] sm:$0xf] %vm1279, %v1255
      %1289 = vst.msk [vmem:[%s210 + $0x24] sm:$0xf] %vm1279, %v1256
      %1290 = vst.msk [vmem:[%s210 + $0x28] sm:$0xf] %vm1279, %v1257
      %1291 = vst.msk [vmem:[%s210 + $0x2c] sm:$0xf] %vm1279, %v1258
      %1292 = vst.msk [vmem:[%s210 + $0x30] sm:$0xf] %vm1279, %v1259
      %1293 = vst.msk [vmem:[%s210 + $0x34] sm:$0xf] %vm1279, %v1260
      %1294 = vst.msk [vmem:[%s210 + $0x38] sm:$0xf] %vm1279, %v1261
      %1295 = vst.msk [vmem:[%s210 + $0x3c] sm:$0xf] %vm1279, %v1262
      %1296 = vst.msk [vmem:[%s210 + $0x40] sm:$0xf] %vm1279, %v1263
      %1297 = vst.msk [vmem:[%s210 + $0x44] sm:$0xf] %vm1279, %v1264
      %1298 = vst.msk [vmem:[%s210 + $0x48] sm:$0xf] %vm1279, %v1265
      %1299 = vst.msk [vmem:[%s210 + $0x4c] sm:$0xf] %vm1279, %v1266
      %1300 = vst.msk [vmem:[%s210 + $0x50] sm:$0xf] %vm1279, %v1267
      %1301 = vst.msk [vmem:[%s210 + $0x54] sm:$0xf] %vm1279, %v1268
      %1302 = vst.msk [vmem:[%s210 + $0x58] sm:$0xf] %vm1279, %v1269
      %1303 = vst.msk [vmem:[%s210 + $0x5c] sm:$0xf] %vm1279, %v1270
      %1304 = vst.msk [vmem:[%s210 + $0x60] sm:$0xf] %vm1279, %v1271
      %1305 = vst.msk [vmem:[%s210 + $0x64] sm:$0xf] %vm1279, %v1272
      %1306 = vst.msk [vmem:[%s210 + $0x68] sm:$0xf] %vm1279, %v1273
      %1307 = vst.msk [vmem:[%s210 + $0x6c] sm:$0xf] %vm1279, %v1274
      %1308 = vst.msk [vmem:[%s210 + $0x70] sm:$0xf] %vm1279, %v1275
      %1309 = vst.msk [vmem:[%s210 + $0x74] sm:$0xf] %vm1279, %v1276
      %1310 = vst.msk [vmem:[%s210 + $0x78] sm:$0xf] %vm1279, %v1277
      %1311 = vst.msk [vmem:[%s210 + $0x7c] sm:$0xf] %vm1279, %v1278
      %p1312 = scmp.lt.s32.totalorder %s14, 1
      %s1313 = scalar_select %p1312, %s14, 1
      %s1314 = smul.addr %s1313, 32
      %s1315 = smul.addr %s1314, 4
      %s1316 = scalar_lea.vmem %s3, %s1315
      // Predicated region
      $region33: #{ca_transformer_forward.28} parent=31 // pred_check
        %p1317 = pneg %p110
      $region34: #{ca_transformer_forward.28} parent=31 // pred_check_branch
        %1319 = sbr.rel (%p1317) target = $region36
      $region35: #{ca_transformer_forward.28} parent=31 // pred_region
        _
      $region36: #{ca_transformer_forward.28} parent=31 // pred_fallthru
        _
    $region32: #{ca_transformer_forward.28} parent=5 // pred_fallthru
      _
    %p1320 = scmp.le.s32.totalorder 2, %s9
    // Predicated region
    $region37: #{ca_transformer_forward.28} parent=5 // pred_check
      %p1321 = pneg %p1320
    $region38: #{ca_transformer_forward.28} parent=5 // pred_check_branch
      %1323 = sbr.rel (%p1321) target = $region40
    $region39: #{ca_transformer_forward.28} parent=5 // pred_region
      %s1324 = ssub.s32 %s9, 2
      // Predicated region
      $region41: #{ca_transformer_forward.28} parent=39 // pred_check
        %p1325 = pneg %p116
      $region42: #{ca_transformer_forward.28} parent=39 // pred_check_branch
        %1327 = sbr.rel (%p1325) target = $region44
      $region43: #{ca_transformer_forward.28} parent=39 // pred_region
        %p1328 = scmp.lt.s32.totalorder %s15, 1
        %s1329 = scalar_select %p1328, %s15, 1
        %s1330 = smul.addr %s1329, 32
        %s1331 = smul.addr %s1330, 4
        %s1332 = scalar_lea.vmem %s3, %s1331
      $region44: #{ca_transformer_forward.28} parent=39 // pred_fallthru
        _
    $region40: #{ca_transformer_forward.28} parent=5 // pred_fallthru
      _
  $region6: #{ca_transformer_forward.28} parent=0 // loop_footer
    %s13 = sadd.s32 1, %s9
  $region7: #{ca_transformer_forward.28} parent=0 // loop_footer_branch
    %8 = sbr.rel target = $region3
  $region8: #{ca_transformer_forward.28} parent=0 // loop_exit
    _

// kernel: ca_transformer_forward.41
$region0: #{ca_transformer_forward.41}
  #allocation0 [shape = 'u32[]', space=smem, size = 0x4, offset = 0x4, fixed_abs, tag = 'smem constant byte address 0x4 - core index']
  #allocation1 [shape = 'u32[72,128]{1,0:T(1,128)}', space=vmem, size = 0x9000, scoped, tag = 'internal scratch']
  %s0 = inlined_call_operand.vmem [shape: f32[2,64,128], index: 0, kind: input, shape index: {}]
  %s1 = inlined_call_operand.vmem [shape: f32[2,1,128], index: 1, kind: input, shape index: {}]
  %s2 = inlined_call_operand.vmem [shape: bf16[128,16], index: 2, kind: input, shape index: {}]
  %s3 = inlined_call_operand.vmem [shape: f32[2,64,16], index: 3, kind: output, shape index: {}]
  %s4 = sld [smem:[#allocation0]]
  $region45: #{ca_transformer_forward.41} parent=0
    _
  %s6 = ssub.s32 1, %s4
  %s7 = scalar_select 0, %s6, %s4
  loop: start=0, step=1, limit=4
  $region2: #{ca_transformer_forward.41} parent=0 // loop_pre_header
    _
  $region3: #{ca_transformer_forward.41} parent=0 // loop_header
    %s9 = sphi 0, %s13
    %p10 = scmp.ge.s32.totalorder %s9, 4
    %s16 = sphi 0, %s35
    %s17 = sphi 0, %s31
    %s18 = sphi 0, %s27
    %s19 = sphi 0, %s16
    %s20 = sphi 0, %s17
    %s21 = sphi 0, %s18
    %s22 = sphi 0, %s19
    %s23 = sphi 0, %s20
    %s24 = sphi 0, %s21
    %s40 = sphi 0, %s42
    %s43 = sphi 0, %s40
    %s44 = sphi 0, %s43
    %s60 = sphi 0, %s44
    %s66 = sphi 0, %s68
    %s69 = sphi 0, %s66
    %s70 = sphi 0, %s69
    %s86 = sphi 0, %s70
    %s92 = sphi 0, %s94
    %s95 = sphi 0, %s92
    %s96 = sphi 0, %s95
    %s112 = sphi 0, %s96
    %s122 = sphi 0, %s124
    %s125 = sphi 0, %s122
    %s126 = sphi 0, %s125
    %s142 = sphi 0, %s126
  $region4: #{ca_transformer_forward.41} parent=0 // loop_header_branch
    %12 = sbr.rel (%p10) target = $region8
  $region5: #{ca_transformer_forward.41} parent=0 // loop_body
    %s14 = ssub.s32 %s9, 1
    %s15 = ssub.s32 %s9, 2
    %s25 = sadd.s32 1, %s18
    %p26 = scmp.ge.s32.totalorder %s25, 1
    %s27 = scalar_select %p26, 0, %s25
    %s28 = sadd.s32 1, %s17
    %s29 = scalar_select %p26, %s28, %s17
    %p30 = scmp.ge.s32.totalorder %s29, 1
    %s31 = scalar_select %p30, 0, %s29
    %s32 = sadd.s32 1, %s16
    %s33 = scalar_select %p30, %s32, %s16
    %p34 = scmp.ge.s32.totalorder %s33, 2
    %s35 = scalar_select %p34, 0, %s33
    %s36 = ssub.s32 %s16, %s35
    %s37 = ssub.s32 %s17, %s31
    %s38 = sor.u32 %s36, %s37
    %p39 = scmp.eq.s32.totalorder %s38, 0
    %s41 = sadd.s32 %s40, 1
    %s42 = scalar_select %p39, %s40, %s41
    %p45 = pneg %p39
    %p46 = scmp.eq.s32.totalorder %s9, 1
    %p47 = por %p45, %p46
    %p48 = scmp.ne.s32.totalorder %s40, %s43
    %p49 = scmp.eq.s32.totalorder %s9, 0
    %p50 = por %p48, %p49
    %p51 = scmp.ne.s32.totalorder %s40, %s43
    %p52 = scmp.eq.s32.totalorder %s14, 1
    %p53 = por %p51, %p52
    %p54 = scmp.ne.s32.totalorder %s43, %s44
    %p55 = scmp.eq.s32.totalorder %s14, 0
    %p56 = por %p54, %p55
    %p57 = scmp.ne.s32.totalorder %s43, %s44
    %p58 = scmp.eq.s32.totalorder %s15, 1
    %p59 = por %p57, %p58
    %p61 = scmp.ne.s32.totalorder %s44, %s60
    %p62 = scmp.eq.s32.totalorder %s15, 0
    %p63 = por %p61, %p62
    %s64 = ssub.s32 %s16, %s35
    %p65 = scmp.eq.s32.totalorder %s64, 0
    %s67 = sadd.s32 %s66, 1
    %s68 = scalar_select %p65, %s66, %s67
    %p71 = pneg %p65
    %p72 = scmp.eq.s32.totalorder %s9, 1
    %p73 = por %p71, %p72
    %p74 = scmp.ne.s32.totalorder %s66, %s69
    %p75 = scmp.eq.s32.totalorder %s9, 0
    %p76 = por %p74, %p75
    %p77 = scmp.ne.s32.totalorder %s66, %s69
    %p78 = scmp.eq.s32.totalorder %s14, 1
    %p79 = por %p77, %p78
    %p80 = scmp.ne.s32.totalorder %s69, %s70
    %p81 = scmp.eq.s32.totalorder %s14, 0
    %p82 = por %p80, %p81
    %p83 = scmp.ne.s32.totalorder %s69, %s70
    %p84 = scmp.eq.s32.totalorder %s15, 1
    %p85 = por %p83, %p84
    %p87 = scmp.ne.s32.totalorder %s70, %s86
    %p88 = scmp.eq.s32.totalorder %s15, 0
    %p89 = por %p87, %p88
    %s90 = ssub.s32 %s18, %s27
    %p91 = scmp.eq.s32.totalorder %s90, 0
    %s93 = sadd.s32 %s92, 1
    %s94 = scalar_select %p91, %s92, %s93
    %p97 = pneg %p91
    %p98 = scmp.eq.s32.totalorder %s9, 1
    %p99 = por %p97, %p98
    %p100 = scmp.ne.s32.totalorder %s92, %s95
    %p101 = scmp.eq.s32.totalorder %s9, 0
    %p102 = por %p100, %p101
    %p103 = scmp.ne.s32.totalorder %s92, %s95
    %p104 = scmp.eq.s32.totalorder %s14, 1
    %p105 = por %p103, %p104
    %p106 = scmp.ne.s32.totalorder %s95, %s96
    %p107 = scmp.eq.s32.totalorder %s14, 0
    %p108 = por %p106, %p107
    %p109 = scmp.ne.s32.totalorder %s95, %s96
    %p110 = scmp.eq.s32.totalorder %s15, 1
    %p111 = por %p109, %p110
    %p113 = scmp.ne.s32.totalorder %s96, %s112
    %p114 = scmp.eq.s32.totalorder %s15, 0
    %p115 = por %p113, %p114
    %s116 = ssub.s32 %s16, %s35
    %s117 = ssub.s32 %s17, %s31
    %s118 = sor.u32 %s116, %s117
    %s119 = ssub.s32 %s18, %s27
    %s120 = sor.u32 %s118, %s119
    %p121 = scmp.eq.s32.totalorder %s120, 0
    %s123 = sadd.s32 %s122, 1
    %s124 = scalar_select %p121, %s122, %s123
    %p127 = pneg %p121
    %p128 = scmp.eq.s32.totalorder %s9, 1
    %p129 = por %p127, %p128
    %p130 = scmp.ne.s32.totalorder %s122, %s125
    %p131 = scmp.eq.s32.totalorder %s9, 0
    %p132 = por %p130, %p131
    %p133 = scmp.ne.s32.totalorder %s122, %s125
    %p134 = scmp.eq.s32.totalorder %s14, 1
    %p135 = por %p133, %p134
    %p136 = scmp.ne.s32.totalorder %s125, %s126
    %p137 = scmp.eq.s32.totalorder %s14, 0
    %p138 = por %p136, %p137
    %p139 = scmp.ne.s32.totalorder %s125, %s126
    %p140 = scmp.eq.s32.totalorder %s15, 1
    %p141 = por %p139, %p140
    %p143 = scmp.ne.s32.totalorder %s126, %s142
    %p144 = scmp.eq.s32.totalorder %s15, 0
    %p145 = por %p143, %p144
    %p146 = scmp.le.s32.totalorder 1, %s9
    %p147 = scmp.lt.s32.totalorder %s9, 3
    %p148 = pnand %p146, %p147
    %p149 = pneg %p148
    // Predicated region
    $region9: #{ca_transformer_forward.41} parent=5 // pred_check
      _
    $region10: #{ca_transformer_forward.41} parent=5 // pred_check_branch
      %151 = sbr.rel (%p148) target = $region12
    $region11: #{ca_transformer_forward.41} parent=5 // pred_region
      %s152 = ssub.s32 %s9, 1
      // Predicated region
      $region13: #{ca_transformer_forward.41} parent=11 // pred_check
        %p153 = pneg %p108
      $region14: #{ca_transformer_forward.41} parent=11 // pred_check_branch
        %155 = sbr.rel (%p153) target = $region16
      $region15: #{ca_transformer_forward.41} parent=11 // pred_region
        %p156 = scmp.lt.s32.totalorder %s21, 0
        %s157 = scalar_select %p156, %s21, 0
        %s158 = smul.addr %s157, 4
        %s159 = scalar_lea.vmem %s2, %s158
      $region16: #{ca_transformer_forward.41} parent=11 // pred_fallthru
        _
    $region12: #{ca_transformer_forward.41} parent=5 // pred_fallthru
      _
    %p160 = scmp.lt.s32.totalorder %s9, 2
    // Predicated region
    $region17: #{ca_transformer_forward.41} parent=5 // pred_check
      %p161 = pneg %p160
    $region18: #{ca_transformer_forward.41} parent=5 // pred_check_branch
      %163 = sbr.rel (%p161) target = $region20
    $region19: #{ca_transformer_forward.41} parent=5 // pred_region
      // Predicated region
      $region21: #{ca_transformer_forward.41} parent=19 // pred_check
        %p164 = pneg %p50
      $region22: #{ca_transformer_forward.41} parent=19 // pred_check_branch
        %166 = sbr.rel (%p164) target = $region24
      $region23: #{ca_transformer_forward.41} parent=19 // pred_region
        %s167 = smul.u32 8, %s17
        %p168 = scmp.lt.s32.totalorder %s16, 1
        %s169 = scalar_select %p168, %s16, 1
        %p170 = scmp.lt.s32.totalorder %s167, 7
        %s171 = scalar_select %p170, %s167, 7
        %s172 = smul.addr %s169, 8
        %s173 = sadd.s32 %s171, %s172
        %s174 = smul.addr %s173, 8
        %s175 = scalar_lea.vmem %s0, %s174
        %s176 = smul.u32 8, %s17
      $region24: #{ca_transformer_forward.41} parent=19 // pred_fallthru
        _
      // Predicated region
      $region25: #{ca_transformer_forward.41} parent=19 // pred_check
        %p177 = pneg %p76
      $region26: #{ca_transformer_forward.41} parent=19 // pred_check_branch
        %179 = sbr.rel (%p177) target = $region28
      $region27: #{ca_transformer_forward.41} parent=19 // pred_region
        %p180 = scmp.lt.s32.totalorder %s16, 1
        %s181 = scalar_select %p180, %s16, 1
        %s182 = scalar_lea.vmem %s1, %s181
      $region28: #{ca_transformer_forward.41} parent=19 // pred_fallthru
        _
    $region20: #{ca_transformer_forward.41} parent=5 // pred_fallthru
      _
    %p183 = scmp.le.s32.totalorder 1, %s9
    %p184 = scmp.lt.s32.totalorder %s9, 3
    %p185 = pnand %p183, %p184
    %p186 = pneg %p185
    // Predicated region
    $region29: #{ca_transformer_forward.41} parent=5 // pred_check
      _
    $region30: #{ca_transformer_forward.41} parent=5 // pred_check_branch
      %188 = sbr.rel (%p185) target = $region32
    $region31: #{ca_transformer_forward.41} parent=5 // pred_region
      %s189 = ssub.s32 %s9, 1
      %s190 = smul.u32 8, %s20
      %p191 = scmp.lt.s32.totalorder %s19, 1
      %s192 = scalar_select %p191, %s19, 1
      %p193 = scmp.lt.s32.totalorder %s190, 7
      %s194 = scalar_select %p193, %s190, 7
      %s195 = smul.addr %s192, 8
      %s196 = sadd.s32 %s194, %s195
      %s197 = smul.addr %s196, 8
      %s198 = scalar_lea.vmem %s0, %s197
      %p199 = pneg %p56
      %p200 = pneg %p53
      %p201 = scmp.lt.s32.totalorder %s19, 1
      %s202 = scalar_select %p201, %s19, 1
      %s203 = scalar_lea.vmem %s1, %s202
      %p204 = pneg %p82
      %p205 = pneg %p79
      %p206 = scmp.lt.s32.totalorder %s21, 0
      %s207 = scalar_select %p206, %s21, 0
      %s208 = smul.addr %s207, 4
      %s209 = scalar_lea.vmem %s2, %s208
      %p210 = pneg %p108
      %p211 = pneg %p105
      %p212 = pneg %p138
      %p213 = pneg %p135
      %s214 = smul.u32 8, %s20
      %p215 = scmp.lt.s32.totalorder %s19, 1
      %s216 = scalar_select %p215, %s19, 1
      %p217 = scmp.lt.s32.totalorder %s214, 7
      %s218 = scalar_select %p217, %s214, 7
      %p219 = scmp.lt.s32.totalorder %s21, 0
      %s220 = scalar_select %p219, %s21, 0
      %s221 = sadd.s32 %s220, %s218
      %s222 = smul.addr %s216, 8
      %s223 = sadd.s32 %s221, %s222
      %s224 = smul.addr %s223, 8
      %s225 = scalar_lea.vmem %s3, %s224
      %s226 = smul.u32 8, %s20
      %p227 = scmp.lt.s32.totalorder %s19, 1
      %s228 = scalar_select %p227, %s19, 1
      %p229 = scmp.lt.s32.totalorder %s226, 7
      %s230 = scalar_select %p229, %s226, 7
      %s231 = smul.addr %s228, 8
      %s232 = sadd.s32 %s230, %s231
      %s233 = smul.addr %s232, 8
      %s234 = scalar_lea.vmem %s0, %s233
      %s235 = smul.u32 8, %s20
      %p236 = scmp.lt.s32.totalorder %s19, 1
      %s237 = scalar_select %p236, %s19, 1
      %s238 = scalar_lea.vmem %s1, %s237
      %p239 = scmp.lt.s32.totalorder %s21, 0
      %s240 = scalar_select %p239, %s21, 0
      %s241 = smul.addr %s240, 4
      %s242 = scalar_lea.vmem %s2, %s241
      %s243 = smul.u32 8, %s20
      %p244 = scmp.lt.s32.totalorder %s19, 1
      %s245 = scalar_select %p244, %s19, 1
      %p246 = scmp.lt.s32.totalorder %s243, 7
      %s247 = scalar_select %p246, %s243, 7
      %p248 = scmp.lt.s32.totalorder %s21, 0
      %s249 = scalar_select %p248, %s21, 0
      %s250 = sadd.s32 %s249, %s247
      %s251 = smul.addr %s245, 8
      %s252 = sadd.s32 %s250, %s251
      %s253 = smul.addr %s252, 8
      %s254 = scalar_lea.vmem %s3, %s253
      %s255 = smul.u32 8, %s20
      %v256 = vld [vmem:[%s234] sm:$0xff]
      %v257 = vld [vmem:[%s234 + $0x8] sm:$0xff]
      %v258 = vld [vmem:[%s234 + $0x10] sm:$0xff]
      %v259 = vld [vmem:[%s234 + $0x18] sm:$0xff]
      %v260 = vld [vmem:[%s234 + $0x20] sm:$0xff]
      %v261 = vld [vmem:[%s234 + $0x28] sm:$0xff]
      %v262 = vld [vmem:[%s234 + $0x30] sm:$0xff]
      %v263 = vld [vmem:[%s234 + $0x38] sm:$0xff]
      %v264 = vld [vmem:[%s238] sm:$0x1]
      %v265 = vmul.f32 %v256, %v256
      %v266 = vmul.f32 %v257, %v257
      %v267 = vmul.f32 %v258, %v258
      %v268 = vmul.f32 %v259, %v259
      %v269 = vmul.f32 %v260, %v260
      %v270 = vmul.f32 %v261, %v261
      %v271 = vmul.f32 %v262, %v262
      %v272 = vmul.f32 %v263, %v263
      %273 = vadd.xlane.f32.xlu0 %v265
      %v274 = vpop.xlane.xlu0 %273
      %275 = vadd.xlane.f32.xlu0 %v266
      %v276 = vpop.xlane.xlu0 %275
      %277 = vadd.xlane.f32.xlu0 %v267
      %v278 = vpop.xlane.xlu0 %277
      %279 = vadd.xlane.f32.xlu0 %v268
      %v280 = vpop.xlane.xlu0 %279
      %281 = vadd.xlane.f32.xlu0 %v269
      %v282 = vpop.xlane.xlu0 %281
      %283 = vadd.xlane.f32.xlu0 %v270
      %v284 = vpop.xlane.xlu0 %283
      %285 = vadd.xlane.f32.xlu0 %v271
      %v286 = vpop.xlane.xlu0 %285
      %287 = vadd.xlane.f32.xlu0 %v272
      %v288 = vpop.xlane.xlu0 %287
      %v289 = vrcp.pop 128.0
      %v290 = vmul.f32 128.0, %v289
      %v291 = vsub.f32 1.0, %v290
      %v292 = vmul.f32 %v289, %v291
      %v293 = vadd.f32 %v289, %v292
      %vm294 = vweird.f32 %v289
      %v295 = vsel %vm294, %v289, %v293
      %v296 = vmul.f32 %v274, %v295
      %v297 = vmul.f32 %v276, %v295
      %v298 = vmul.f32 %v278, %v295
      %v299 = vmul.f32 %v280, %v295
      %v300 = vmul.f32 %v282, %v295
      %v301 = vmul.f32 %v284, %v295
      %v302 = vmul.f32 %v286, %v295
      %v303 = vmul.f32 %v288, %v295
      %v304 = vadd.f32 %v296, 1e-06
      %v305 = vadd.f32 %v297, 1e-06
      %v306 = vadd.f32 %v298, 1e-06
      %v307 = vadd.f32 %v299, 1e-06
      %v308 = vadd.f32 %v300, 1e-06
      %v309 = vadd.f32 %v301, 1e-06
      %v310 = vadd.f32 %v302, 1e-06
      %v311 = vadd.f32 %v303, 1e-06
      %v312 = vrsqrt.pop %v304
      %v313 = vmul.f32 %v312, %v304
      %v314 = vmul.f32 %v313, %v312
      %v315 = vmul.f32 0.5, %v314
      %v316 = vsub.f32 1.5, %v315
      %v317 = vmul.f32 %v312, %v316
      %vm318 = vweird.f32 %v304
      %vm319 = vweird.f32 %v312
      %vm320 = vmor %vm318, %vm319
      %v321 = vsel %vm320, %v312, %v317
      %v322 = vrsqrt.pop %v305
      %v323 = vmul.f32 %v322, %v305
      %v324 = vmul.f32 %v323, %v322
      %v325 = vmul.f32 0.5, %v324
      %v326 = vsub.f32 1.5, %v325
      %v327 = vmul.f32 %v322, %v326
      %vm328 = vweird.f32 %v305
      %vm329 = vweird.f32 %v322
      %vm330 = vmor %vm328, %vm329
      %v331 = vsel %vm330, %v322, %v327
      %v332 = vrsqrt.pop %v306
      %v333 = vmul.f32 %v332, %v306
      %v334 = vmul.f32 %v333, %v332
      %v335 = vmul.f32 0.5, %v334
      %v336 = vsub.f32 1.5, %v335
      %v337 = vmul.f32 %v332, %v336
      %vm338 = vweird.f32 %v306
      %vm339 = vweird.f32 %v332
      %vm340 = vmor %vm338, %vm339
      %v341 = vsel %vm340, %v332, %v337
      %v342 = vrsqrt.pop %v307
      %v343 = vmul.f32 %v342, %v307
      %v344 = vmul.f32 %v343, %v342
      %v345 = vmul.f32 0.5, %v344
      %v346 = vsub.f32 1.5, %v345
      %v347 = vmul.f32 %v342, %v346
      %vm348 = vweird.f32 %v307
      %vm349 = vweird.f32 %v342
      %vm350 = vmor %vm348, %vm349
      %v351 = vsel %vm350, %v342, %v347
      %v352 = vrsqrt.pop %v308
      %v353 = vmul.f32 %v352, %v308
      %v354 = vmul.f32 %v353, %v352
      %v355 = vmul.f32 0.5, %v354
      %v356 = vsub.f32 1.5, %v355
      %v357 = vmul.f32 %v352, %v356
      %vm358 = vweird.f32 %v308
      %vm359 = vweird.f32 %v352
      %vm360 = vmor %vm358, %vm359
      %v361 = vsel %vm360, %v352, %v357
      %v362 = vrsqrt.pop %v309
      %v363 = vmul.f32 %v362, %v309
      %v364 = vmul.f32 %v363, %v362
      %v365 = vmul.f32 0.5, %v364
      %v366 = vsub.f32 1.5, %v365
      %v367 = vmul.f32 %v362, %v366
      %vm368 = vweird.f32 %v309
      %vm369 = vweird.f32 %v362
      %vm370 = vmor %vm368, %vm369
      %v371 = vsel %vm370, %v362, %v367
      %v372 = vrsqrt.pop %v310
      %v373 = vmul.f32 %v372, %v310
      %v374 = vmul.f32 %v373, %v372
      %v375 = vmul.f32 0.5, %v374
      %v376 = vsub.f32 1.5, %v375
      %v377 = vmul.f32 %v372, %v376
      %vm378 = vweird.f32 %v310
      %vm379 = vweird.f32 %v372
      %vm380 = vmor %vm378, %vm379
      %v381 = vsel %vm380, %v372, %v377
      %v382 = vrsqrt.pop %v311
      %v383 = vmul.f32 %v382, %v311
      %v384 = vmul.f32 %v383, %v382
      %v385 = vmul.f32 0.5, %v384
      %v386 = vsub.f32 1.5, %v385
      %v387 = vmul.f32 %v382, %v386
      %vm388 = vweird.f32 %v311
      %vm389 = vweird.f32 %v382
      %vm390 = vmor %vm388, %vm389
      %v391 = vsel %vm390, %v382, %v387
      %v392 = vmul.f32 %v256, %v321
      %v393 = vmul.f32 %v257, %v331
      %v394 = vmul.f32 %v258, %v341
      %v395 = vmul.f32 %v259, %v351
      %v396 = vmul.f32 %v260, %v361
      %v397 = vmul.f32 %v261, %v371
      %v398 = vmul.f32 %v262, %v381
      %v399 = vmul.f32 %v263, %v391
      %v400 = vadd.f32 %v264, 1.0
      %v402 = vperm.slane %v400, 0
      %v404 = vmul.f32 %v392, %v402
      %v405 = vmul.f32 %v393, %v402
      %v406 = vmul.f32 %v394, %v402
      %v407 = vmul.f32 %v395, %v402
      %v408 = vmul.f32 %v396, %v402
      %v409 = vmul.f32 %v397, %v402
      %v410 = vmul.f32 %v398, %v402
      %v411 = vmul.f32 %v399, %v402
      %v412 = vpack.c.bf16 %v405, %v404
      %v413 = vpack.c.bf16 %v407, %v406
      %v414 = vpack.c.bf16 %v409, %v408
      %v415 = vpack.c.bf16 %v411, %v410
      %v416 = vld [vmem:[%s242] sm:$0xf]
      %v417 = vld [vmem:[%s242 + $0x4] sm:$0xf]
      %v418 = vld [vmem:[%s242 + $0x8] sm:$0xf]
      %v419 = vld [vmem:[%s242 + $0xc] sm:$0xf]
      %v420 = vld [vmem:[%s242 + $0x10] sm:$0xf]
      %v421 = vld [vmem:[%s242 + $0x14] sm:$0xf]
      %v422 = vld [vmem:[%s242 + $0x18] sm:$0xf]
      %v423 = vld [vmem:[%s242 + $0x1c] sm:$0xf]
      %v424 = vld [vmem:[%s242 + $0x20] sm:$0xf]
      %v425 = vld [vmem:[%s242 + $0x24] sm:$0xf]
      %v426 = vld [vmem:[%s242 + $0x28] sm:$0xf]
      %v427 = vld [vmem:[%s242 + $0x2c] sm:$0xf]
      %v428 = vld [vmem:[%s242 + $0x30] sm:$0xf]
      %v429 = vld [vmem:[%s242 + $0x34] sm:$0xf]
      %v430 = vld [vmem:[%s242 + $0x38] sm:$0xf]
      %v431 = vld [vmem:[%s242 + $0x3c] sm:$0xf]
      %v448 = vunpack.c.l.b16 %v416
      %v449 = vunpack.c.l.b16 %v417
      %v450 = vunpack.c.l.b16 %v418
      %v451 = vunpack.c.l.b16 %v419
      %v452 = vunpack.c.l.b16 %v420
      %v453 = vunpack.c.l.b16 %v421
      %v454 = vunpack.c.l.b16 %v422
      %v455 = vunpack.c.l.b16 %v423
      %v456 = vunpack.c.l.b16 %v424
      %v457 = vunpack.c.l.b16 %v425
      %v458 = vunpack.c.l.b16 %v426
      %v459 = vunpack.c.l.b16 %v427
      %v460 = vunpack.c.l.b16 %v428
      %v461 = vunpack.c.l.b16 %v429
      %v462 = vunpack.c.l.b16 %v430
      %v463 = vunpack.c.l.b16 %v431
      %v464 = vpack.c.b16 %v449, %v448
      %v465 = vpack.c.b16 %v451, %v450
      %v466 = vpack.c.b16 %v453, %v452
      %v467 = vpack.c.b16 %v455, %v454
      %v468 = vpack.c.b16 %v457, %v456
      %v469 = vpack.c.b16 %v459, %v458
      %v470 = vpack.c.b16 %v461, %v460
      %v471 = vpack.c.b16 %v463, %v462
      %480 = vmatpush.bf16.msra.mxu0 %v471
      %481 = vmatpush.bf16.msra.mxu0 %v470
      %482 = vmatpush.bf16.msra.mxu0 %v469
      %483 = vmatpush.bf16.msra.mxu0 %v468
      %484 = vmatpush.bf16.msra.mxu0 %v467
      %485 = vmatpush.bf16.msra.mxu0 %v466
      %486 = vmatpush.bf16.msra.mxu0 %v465
      %487 = vmatpush.bf16.msra.mxu0 %v464
      %488 = vmatmul.bf16.gmra.mxu0 %v412
      %v489 = vpop.f32.mrf.mxu0
      %v490 = vadd.f32 0.0, %v489
      %v491 = vpop.f32.mrf.mxu0
      %v492 = vadd.f32 0.0, %v491
      %493 = vmatmul.bf16.gmra.mxu0 %v413
      %v494 = vpop.f32.mrf.mxu0
      %v495 = vadd.f32 0.0, %v494
      %v496 = vpop.f32.mrf.mxu0
      %v497 = vadd.f32 0.0, %v496
      %498 = vmatmul.bf16.gmra.mxu0 %v414
      %v499 = vpop.f32.mrf.mxu0
      %v500 = vadd.f32 0.0, %v499
      %v501 = vpop.f32.mrf.mxu0
      %v502 = vadd.f32 0.0, %v501
      %503 = vmatmul.bf16.gmra.mxu0 %v415
      %v504 = vpop.f32.mrf.mxu0
      %v505 = vadd.f32 0.0, %v504
      %v506 = vpop.f32.mrf.mxu0
      %v507 = vadd.f32 0.0, %v506
      %508 = vdwg.mxu0
      %vm509 = vcmask 130048
      %510 = vst.msk [vmem:[%s254] sm:$0xff] %vm509, %v490
      %511 = vst.msk [vmem:[%s254 + $0x8] sm:$0xff] %vm509, %v492
      %512 = vst.msk [vmem:[%s254 + $0x10] sm:$0xff] %vm509, %v495
      %513 = vst.msk [vmem:[%s254 + $0x18] sm:$0xff] %vm509, %v497
      %514 = vst.msk [vmem:[%s254 + $0x20] sm:$0xff] %vm509, %v500
      %515 = vst.msk [vmem:[%s254 + $0x28] sm:$0xff] %vm509, %v502
      %516 = vst.msk [vmem:[%s254 + $0x30] sm:$0xff] %vm509, %v505
      %517 = vst.msk [vmem:[%s254 + $0x38] sm:$0xff] %vm509, %v507
      %s518 = smul.u32 8, %s20
      %p519 = scmp.lt.s32.totalorder %s19, 1
      %s520 = scalar_select %p519, %s19, 1
      %p521 = scmp.lt.s32.totalorder %s518, 7
      %s522 = scalar_select %p521, %s518, 7
      %p523 = scmp.lt.s32.totalorder %s21, 0
      %s524 = scalar_select %p523, %s21, 0
      %s525 = sadd.s32 %s524, %s522
      %s526 = smul.addr %s520, 8
      %s527 = sadd.s32 %s525, %s526
      %s528 = smul.addr %s527, 8
      %s529 = scalar_lea.vmem %s3, %s528
      // Predicated region
      $region33: #{ca_transformer_forward.41} parent=31 // pred_check
        %p530 = pneg %p135
      $region34: #{ca_transformer_forward.41} parent=31 // pred_check_branch
        %532 = sbr.rel (%p530) target = $region36
      $region35: #{ca_transformer_forward.41} parent=31 // pred_region
        %s533 = smul.u32 8, %s20
      $region36: #{ca_transformer_forward.41} parent=31 // pred_fallthru
        _
    $region32: #{ca_transformer_forward.41} parent=5 // pred_fallthru
      _
    %p534 = scmp.le.s32.totalorder 2, %s9
    // Predicated region
    $region37: #{ca_transformer_forward.41} parent=5 // pred_check
      %p535 = pneg %p534
    $region38: #{ca_transformer_forward.41} parent=5 // pred_check_branch
      %537 = sbr.rel (%p535) target = $region40
    $region39: #{ca_transformer_forward.41} parent=5 // pred_region
      %s538 = ssub.s32 %s9, 2
      // Predicated region
      $region41: #{ca_transformer_forward.41} parent=39 // pred_check
        %p539 = pneg %p141
      $region42: #{ca_transformer_forward.41} parent=39 // pred_check_branch
        %541 = sbr.rel (%p539) target = $region44
      $region43: #{ca_transformer_forward.41} parent=39 // pred_region
        %s542 = smul.u32 8, %s23
        %p543 = scmp.lt.s32.totalorder %s22, 1
        %s544 = scalar_select %p543, %s22, 1
        %p545 = scmp.lt.s32.totalorder %s542, 7
        %s546 = scalar_select %p545, %s542, 7
        %p547 = scmp.lt.s32.totalorder %s24, 0
        %s548 = scalar_select %p547, %s24, 0
        %s549 = sadd.s32 %s548, %s546
        %s550 = smul.addr %s544, 8
        %s551 = sadd.s32 %s549, %s550
        %s552 = smul.addr %s551, 8
        %s553 = scalar_lea.vmem %s3, %s552
      $region44: #{ca_transformer_forward.41} parent=39 // pred_fallthru
        _
    $region40: #{ca_transformer_forward.41} parent=5 // pred_fallthru
      _
  $region6: #{ca_transformer_forward.41} parent=0 // loop_footer
    %s13 = sadd.s32 1, %s9
  $region7: #{ca_transformer_forward.41} parent=0 // loop_footer_branch
    %8 = sbr.rel target = $region3
  $region8: #{ca_transformer_forward.41} parent=0 // loop_exit
    _

</llo_original>
